<compile_context>
chip_gen: v5e
topology: v5e:2x2
jax: 0.10.0
libtpu: 0.0.40
codegen_flags: <defaults>
</compile_context>

<pallas_src>
import functools

import jax
import jax.numpy as jnp
from jax.experimental import pallas as pl
from jax.experimental.pallas import tpu as pltpu


def encoder_layer_kernel(
    x_ref,                      # (Bb, S, H) f32
    wqkv_ref, bqkv_ref,         # (H, 3H) bf16, (1, 3H) f32  (Q cols pre-scaled)
    wo_ref, bo_ref,             # (H, H)  bf16, (1, H)  f32
    ln1_g_ref, ln1_b_ref,       # (1, H) f32
    w1_ref, b1_ref,             # (H, F) bf16, (1, F) f32
    w2_ref, b2_ref,             # (F, H) bf16, (1, H) f32
    ln2_g_ref, ln2_b_ref,       # (1, H) f32
    out_ref,                    # (Bb, S, H)
    *, num_heads, alpha, eps):
  Bb, S, H = x_ref.shape
  dph = H // num_heads
  R = Bb * S

  x2 = x_ref[...].reshape(R, H)             # flatten batch tile for dense math

  # Fused QKV projection in bf16 on the MXU, f32 accumulation.
  qkv = jnp.dot(x2.astype(jnp.bfloat16), wqkv_ref[...],
                preferred_element_type=jnp.float32) + bqkv_ref[0]
  # One full-width f32->bf16 pack; per-head slices come from the bf16 tensor.
  qkv_bf = qkv.astype(jnp.bfloat16).reshape(Bb, S, 3 * H)

  # Attention: per-head score/context matmuls batched over the Bb batch dim,
  # with the out-projection accumulated per head (no (rows, dph) concat).
  # (1/sqrt(dph) already folded into the Q columns of wqkv in the wrapper.)
  attn = jnp.zeros((R, H), jnp.float32) + bo_ref[0]
  for h in range(num_heads):
    qh = qkv_bf[:, :, h * dph:(h + 1) * dph]                  # (Bb, S, dph) bf16
    kh = qkv_bf[:, :, H + h * dph:H + (h + 1) * dph]
    vh = qkv_bf[:, :, 2 * H + h * dph:2 * H + (h + 1) * dph]
    s = jnp.einsum('bqd,bkd->bqk', qh, kh,
                   preferred_element_type=jnp.float32)        # (Bb, S, S) f32
    s = s - jnp.max(s, axis=-1, keepdims=True)
    p = jnp.exp(s)
    p = p / jnp.sum(p, axis=-1, keepdims=True)                # exact softmax
    ctx_h = jnp.einsum('bqk,bkd->bqd', p.astype(jnp.bfloat16), vh,
                       preferred_element_type=jnp.float32)    # (Bb, S, dph)
    attn = attn + jnp.dot(
        ctx_h.reshape(R, dph).astype(jnp.bfloat16),
        wo_ref[h * dph:(h + 1) * dph, :],                     # static row slice
        preferred_element_type=jnp.float32)

  def layernorm(t, g, b):
    mu = jnp.mean(t, axis=-1, keepdims=True)
    var = jnp.mean(jnp.square(t - mu), axis=-1, keepdims=True)
    return (t - mu) * jax.lax.rsqrt(var + eps) * g + b

  res1 = x2 if alpha == 1.0 else x2 * alpha
  out1 = layernorm(res1 + attn, ln1_g_ref[0], ln1_b_ref[0])

  # MLP2Layer with ReLUSquared activation.
  h1 = jnp.dot(out1.astype(jnp.bfloat16), w1_ref[...],
               preferred_element_type=jnp.float32) + b1_ref[0]
  h1 = jnp.maximum(h1, 0.0)
  h1 = h1 * h1
  mlp = jnp.dot(h1.astype(jnp.bfloat16), w2_ref[...],
                preferred_element_type=jnp.float32) + b2_ref[0]

  res2 = out1 if alpha == 1.0 else out1 * alpha
  out2 = layernorm(res2 + mlp, ln2_g_ref[0], ln2_b_ref[0])
  out_ref[...] = out2.reshape(Bb, S, H).astype(out_ref.dtype)


def _prepare_params(params, num_heads):
  """Fold 1/sqrt(dph) into the Q columns of wqkv/bqkv; cast weights to bf16."""
  H = params["wo"].shape[0]
  dph = H // num_heads
  scale = 1.0 / (float(dph) ** 0.5)
  col = jnp.concatenate([jnp.full((H,), scale, jnp.float32),
                         jnp.ones((2 * H,), jnp.float32)])
  return {
      "wqkv": (params["wqkv"] * col[None, :]).astype(jnp.bfloat16),
      "bqkv": params["bqkv"] * col[None, :],
      "wo": params["wo"].astype(jnp.bfloat16), "bo": params["bo"],
      "w1": params["w1"].astype(jnp.bfloat16), "b1": params["b1"],
      "w2": params["w2"].astype(jnp.bfloat16), "b2": params["b2"],
      "ln1_g": params["ln1_g"], "ln1_b": params["ln1_b"],
      "ln2_g": params["ln2_g"], "ln2_b": params["ln2_b"],
  }


def encoder_layer_pallas(x, params, *, num_heads, alpha=1.0, eps=1e-5,
                         batch_block=None):
  B, S, H = x.shape
  F = params["w1"].shape[1]
  p = _prepare_params(params, num_heads)

  # Default: whole batch in one block -> grid of 1 (best for 1-TC v5e/v6e).
  # On v7x, pass batch_block = B // 2 to shard the batch across the 2 TCs.
  if batch_block is None:
    batch_block = B
  Bb = batch_block
  assert B % Bb == 0, "batch_block must divide batch size"
  grid = (B // Bb,)

  def wspec(shape):
    return pl.BlockSpec(shape, lambda b: (0,) * len(shape))

  kernel = functools.partial(
      encoder_layer_kernel, num_heads=num_heads, alpha=alpha, eps=eps)

  # Advisory cost estimate so XLA schedules neighbours around this kernel.
  flops = (2 * B * S * (3 * H * H + H * H + 2 * H * F)   # QKV, out-proj, MLP
           + 4 * B * S * S * H)                          # scores + context
  transcendentals = B * num_heads * S * S                # softmax exp
  bytes_accessed = (2 * B * S * H * 4                    # x in, out2 out
                    + (3 * H * H + H * H + 2 * H * F) * 2  # bf16 weights
                    + (3 * H + H + F + H + 4 * H) * 4)     # biases + LN params
  cost = pl.CostEstimate(flops=flops, transcendentals=transcendentals,
                         bytes_accessed=bytes_accessed)

  return pl.pallas_call(
      kernel,
      out_shape=jax.ShapeDtypeStruct((B, S, H), x.dtype),
      grid_spec=pltpu.PrefetchScalarGridSpec(
          num_scalar_prefetch=0,
          grid=grid,
          in_specs=[
              pl.BlockSpec((Bb, S, H), lambda b: (b, 0, 0)),
              wspec((H, 3 * H)), wspec((1, 3 * H)),
              wspec((H, H)), wspec((1, H)),
              wspec((1, H)), wspec((1, H)),
              wspec((H, F)), wspec((1, F)),
              wspec((F, H)), wspec((1, H)),
              wspec((1, H)), wspec((1, H)),
          ],
          out_specs=pl.BlockSpec((Bb, S, H), lambda b: (b, 0, 0)),
      ),
      compiler_params=pltpu.CompilerParams(
          dimension_semantics=("parallel",)),
      cost_estimate=cost,
  )(x,
    p["wqkv"], p["bqkv"],
    p["wo"], p["bo"],
    p["ln1_g"], p["ln1_b"],
    p["w1"], p["b1"],
    p["w2"], p["b2"],
    p["ln2_g"], p["ln2_b"])


def encoder_layer_ref(x, params, *, num_heads, alpha=1.0, eps=1e-5):
  """Pure-JAX reference mirroring the kernel's bf16-matmul / f32-accumulate
  precision (uses the same prepared params, exact softmax)."""
  p = _prepare_params(params, num_heads)
  B, S, H = x.shape
  dph = H // num_heads

  def ln(t, g, b):
    mu = jnp.mean(t, axis=-1, keepdims=True)
    var = jnp.mean((t - mu) ** 2, axis=-1, keepdims=True)
    return (t - mu) * jax.lax.rsqrt(var + eps) * g[0] + b[0]

  def one(xb):                                  # (S, H)
    qkv = jnp.dot(xb.astype(jnp.bfloat16), p["wqkv"],
                  preferred_element_type=jnp.float32) + p["bqkv"][0]
    qkv_bf = qkv.astype(jnp.bfloat16)
    attn = jnp.zeros((S, H), jnp.float32) + p["bo"][0]
    for h in range(num_heads):
      qh = qkv_bf[:, h * dph:(h + 1) * dph]
      kh = qkv_bf[:, H + h * dph:H + (h + 1) * dph]
      vh = qkv_bf[:, 2 * H + h * dph:2 * H + (h + 1) * dph]
      s = jnp.dot(qh, kh.T, preferred_element_type=jnp.float32)
      pr = jax.nn.softmax(s, axis=-1)
      ctx = jnp.dot(pr.astype(jnp.bfloat16), vh,
                    preferred_element_type=jnp.float32)
      attn = attn + jnp.dot(ctx.astype(jnp.bfloat16),
                            p["wo"][h * dph:(h + 1) * dph, :],
                            preferred_element_type=jnp.float32)
    out1 = ln(xb * alpha + attn, p["ln1_g"], p["ln1_b"])
    h1 = jnp.maximum(jnp.dot(out1.astype(jnp.bfloat16), p["w1"],
                             preferred_element_type=jnp.float32) + p["b1"][0],
                     0.0)
    h1 = h1 * h1
    mlp = jnp.dot(h1.astype(jnp.bfloat16), p["w2"],
                  preferred_element_type=jnp.float32) + p["b2"][0]
    return ln(out1 * alpha + mlp, p["ln2_g"], p["ln2_b"])

  return jax.vmap(one)(x)


def make_params(key, hidden, ffn_hidden):
  ks = jax.random.split(key, 6)
  dt = jnp.float32
  return {
      "wqkv": 0.1 * jax.random.normal(ks[0], (hidden, 3 * hidden), dt),
      "bqkv": 0.01 * jax.random.normal(ks[1], (1, 3 * hidden), dt),
      "wo": 0.1 * jax.random.normal(ks[2], (hidden, hidden), dt),
      "bo": 0.01 * jax.random.normal(ks[3], (1, hidden), dt),
      "ln1_g": jnp.ones((1, hidden), dt),
      "ln1_b": jnp.zeros((1, hidden), dt),
      "w1": 0.1 * jax.random.normal(ks[4], (hidden, ffn_hidden), dt),
      "b1": jnp.zeros((1, ffn_hidden), dt),
      "w2": 0.1 * jax.random.normal(ks[5], (ffn_hidden, hidden), dt),
      "b2": jnp.zeros((1, hidden), dt),
      "ln2_g": jnp.ones((1, hidden), dt),
      "ln2_b": jnp.zeros((1, hidden), dt),
  }


if __name__ == "__main__":
  B, S, H, F = 4, 64, 32, 64      # batch, seq (chess squares), hidden, ffn_hidden
  NUM_HEADS = 4
  ALPHA = 1.0
  EPS = 1e-5

  key = jax.random.PRNGKey(0)
  kx, kp = jax.random.split(key)
  x = jax.random.normal(kx, (B, S, H), jnp.float32)
  params = make_params(kp, H, F)

  # Default batch_block=B -> single grid step (1 TC chips); on v7x use B//2.
  out = encoder_layer_pallas(x, params, num_heads=NUM_HEADS, alpha=ALPHA,
                             eps=EPS)
  out = jax.block_until_ready(out)

  ref = encoder_layer_ref(x, params, num_heads=NUM_HEADS, alpha=ALPHA, eps=EPS)
  assert out.shape == (B, S, H)
  assert jnp.allclose(out, ref, rtol=2e-2, atol=2e-2), "mismatch vs JAX reference"

  # TODO(synk): smolgen branch, SoftMoE branch and dropout are disabled in this
  # configuration (dims=0 / num_experts=0 / rate=0), matching the module defaults.
  print("KERNEL_OK")
</pallas_src>

<mosaic_0001>
module attributes {stable_mosaic.version = 11 : i64} {
  func.func @encoder_layer_kernel(%arg0: i32, %arg1: memref<4x64x32xf32, #tpu.memory_space<vmem>>, %arg2: memref<32x96xbf16, #tpu.memory_space<vmem>>, %arg3: memref<1x96xf32, #tpu.memory_space<vmem>>, %arg4: memref<32x32xbf16, #tpu.memory_space<vmem>>, %arg5: memref<1x32xf32, #tpu.memory_space<vmem>>, %arg6: memref<1x32xf32, #tpu.memory_space<vmem>>, %arg7: memref<1x32xf32, #tpu.memory_space<vmem>>, %arg8: memref<32x64xbf16, #tpu.memory_space<vmem>>, %arg9: memref<1x64xf32, #tpu.memory_space<vmem>>, %arg10: memref<64x32xbf16, #tpu.memory_space<vmem>>, %arg11: memref<1x32xf32, #tpu.memory_space<vmem>>, %arg12: memref<1x32xf32, #tpu.memory_space<vmem>>, %arg13: memref<1x32xf32, #tpu.memory_space<vmem>>, %arg14: memref<4x64x32xf32, #tpu.memory_space<vmem>>) attributes {dimension_semantics = [#tpu.dimension_semantics<parallel>], iteration_bounds = array<i64: 1>, scalar_prefetch = 0 : i64, scratch_operands = 0 : i64, tpu.core_type = #tpu.core_type<tc>, window_params = [{transform_indices = @transform_0, window_bounds = array<i64: 4, 64, 32>}, {pipeline_mode = #tpu.pipeline_mode<synchronous>, transform_indices = @transform_1, window_bounds = array<i64: 32, 96>}, {pipeline_mode = #tpu.pipeline_mode<synchronous>, transform_indices = @transform_2, window_bounds = array<i64: 1, 96>}, {pipeline_mode = #tpu.pipeline_mode<synchronous>, transform_indices = @transform_3, window_bounds = array<i64: 32, 32>}, {pipeline_mode = #tpu.pipeline_mode<synchronous>, transform_indices = @transform_4, window_bounds = array<i64: 1, 32>}, {pipeline_mode = #tpu.pipeline_mode<synchronous>, transform_indices = @transform_5, window_bounds = array<i64: 1, 32>}, {pipeline_mode = #tpu.pipeline_mode<synchronous>, transform_indices = @transform_6, window_bounds = array<i64: 1, 32>}, {pipeline_mode = #tpu.pipeline_mode<synchronous>, transform_indices = @transform_7, window_bounds = array<i64: 32, 64>}, {pipeline_mode = #tpu.pipeline_mode<synchronous>, transform_indices = @transform_8, window_bounds = array<i64: 1, 64>}, {pipeline_mode = #tpu.pipeline_mode<synchronous>, transform_indices = @transform_9, window_bounds = array<i64: 64, 32>}, {pipeline_mode = #tpu.pipeline_mode<synchronous>, transform_indices = @transform_10, window_bounds = array<i64: 1, 32>}, {pipeline_mode = #tpu.pipeline_mode<synchronous>, transform_indices = @transform_11, window_bounds = array<i64: 1, 32>}, {pipeline_mode = #tpu.pipeline_mode<synchronous>, transform_indices = @transform_12, window_bounds = array<i64: 1, 32>}, {transform_indices = @transform_13, window_bounds = array<i64: 4, 64, 32>}]} {
    %c0 = arith.constant 0 : index
    %c0_0 = arith.constant 0 : index
    %c0_1 = arith.constant 0 : index
    %0 = vector.load %arg1[%c0, %c0_0, %c0_1] : memref<4x64x32xf32, #tpu.memory_space<vmem>>, vector<4x64x32xf32>
    %1 = vector.shape_cast %0 : vector<4x64x32xf32> to vector<256x32xf32>
    %2 = arith.truncf %1 : vector<256x32xf32> to vector<256x32xbf16>
    %c0_2 = arith.constant 0 : index
    %c0_3 = arith.constant 0 : index
    %3 = vector.load %arg2[%c0_2, %c0_3] : memref<32x96xbf16, #tpu.memory_space<vmem>>, vector<32x96xbf16>
    %cst = arith.constant dense<0.000000e+00> : vector<256x96xf32>
    %4 = tpu.matmul %2, %3, %cst {dimension_numbers = #tpu.dot_dimension_numbers<[1], [0], [0], [1], [0, 0, 1, 1], [], []>} : vector<256x32xbf16>, vector<32x96xbf16>, vector<256x96xf32> -> vector<256x96xf32>
    %c0_4 = arith.constant 0 : index
    %c0_5 = arith.constant 0 : index
    %5 = vector.load %arg3[%c0_4, %c0_5] : memref<1x96xf32, #tpu.memory_space<vmem>>, vector<1x96xf32>
    %6 = vector.shape_cast %5 : vector<1x96xf32> to vector<96xf32>
    %7 = vector.shape_cast %6 : vector<96xf32> to vector<1x96xf32>
    %8 = vector.broadcast %7 : vector<1x96xf32> to vector<256x96xf32>
    %9 = arith.addf %4, %8 : vector<256x96xf32>
    %10 = arith.truncf %9 : vector<256x96xf32> to vector<256x96xbf16>
    %11 = vector.shape_cast %10 : vector<256x96xbf16> to vector<4x64x96xbf16>
    %cst_6 = arith.constant 0.000000e+00 : f32
    %12 = vector.broadcast %cst_6 : f32 to vector<256x32xf32>
    %c0_7 = arith.constant 0 : index
    %c0_8 = arith.constant 0 : index
    %13 = vector.load %arg5[%c0_7, %c0_8] : memref<1x32xf32, #tpu.memory_space<vmem>>, vector<1x32xf32>
    %14 = vector.shape_cast %13 : vector<1x32xf32> to vector<32xf32>
    %15 = vector.shape_cast %14 : vector<32xf32> to vector<1x32xf32>
    %16 = vector.broadcast %15 : vector<1x32xf32> to vector<256x32xf32>
    %17 = arith.addf %12, %16 : vector<256x32xf32>
    %18 = vector.extract_strided_slice %11 {offsets = [0, 0, 0], sizes = [4, 64, 8], strides = [1, 1, 1]} : vector<4x64x96xbf16> to vector<4x64x8xbf16>
    %19 = vector.extract_strided_slice %11 {offsets = [0, 0, 32], sizes = [4, 64, 8], strides = [1, 1, 1]} : vector<4x64x96xbf16> to vector<4x64x8xbf16>
    %20 = vector.extract_strided_slice %11 {offsets = [0, 0, 64], sizes = [4, 64, 8], strides = [1, 1, 1]} : vector<4x64x96xbf16> to vector<4x64x8xbf16>
    "tpu.trace_start"() <{level = 10 : i32, message = "bqd,bkd->bqk"}> : () -> ()
    %cst_9 = arith.constant dense<0.000000e+00> : vector<4x64x64xf32>
    %21 = tpu.matmul %18, %19, %cst_9 {dimension_numbers = #tpu.dot_dimension_numbers<[2], [2], [1], [1], [0, 0, 0, 1, 1, 1], [0], [0]>} : vector<4x64x8xbf16>, vector<4x64x8xbf16>, vector<4x64x64xf32> -> vector<4x64x64xf32>
    "tpu.trace_stop"() : () -> ()
    %cst_10 = arith.constant dense<0xFF800000> : vector<4x64xf32>
    %22 = vector.multi_reduction <maximumf>, %21, %cst_10 [2] : vector<4x64x64xf32> to vector<4x64xf32>
    %23 = vector.shape_cast %22 : vector<4x64xf32> to vector<4x64x1xf32>
    %24 = vector.broadcast %23 : vector<4x64x1xf32> to vector<4x64x64xf32>
    %25 = arith.subf %21, %24 : vector<4x64x64xf32>
    %26 = math.exp %25 : vector<4x64x64xf32>
    %cst_11 = arith.constant dense<0.000000e+00> : vector<4x64xf32>
    %27 = vector.multi_reduction <add>, %26, %cst_11 [2] : vector<4x64x64xf32> to vector<4x64xf32>
    %28 = vector.shape_cast %27 : vector<4x64xf32> to vector<4x64x1xf32>
    %29 = vector.broadcast %28 : vector<4x64x1xf32> to vector<4x64x64xf32>
    %30 = arith.divf %26, %29 : vector<4x64x64xf32>
    %31 = arith.truncf %30 : vector<4x64x64xf32> to vector<4x64x64xbf16>
    "tpu.trace_start"() <{level = 10 : i32, message = "bqk,bkd->bqd"}> : () -> ()
    %cst_12 = arith.constant dense<0.000000e+00> : vector<4x64x8xf32>
    %32 = tpu.matmul %31, %20, %cst_12 {dimension_numbers = #tpu.dot_dimension_numbers<[2], [1], [1], [2], [0, 0, 0, 1, 1, 2], [0], [0]>} : vector<4x64x64xbf16>, vector<4x64x8xbf16>, vector<4x64x8xf32> -> vector<4x64x8xf32>
    "tpu.trace_stop"() : () -> ()
    %33 = vector.shape_cast %32 : vector<4x64x8xf32> to vector<256x8xf32>
    %34 = arith.truncf %33 : vector<256x8xf32> to vector<256x8xbf16>
    %c0_13 = arith.constant 0 : index
    %c0_14 = arith.constant 0 : index
    %35 = vector.load %arg4[%c0_13, %c0_14] : memref<32x32xbf16, #tpu.memory_space<vmem>>, vector<8x32xbf16>
    %cst_15 = arith.constant dense<0.000000e+00> : vector<256x32xf32>
    %36 = tpu.matmul %34, %35, %cst_15 {dimension_numbers = #tpu.dot_dimension_numbers<[1], [0], [0], [1], [0, 0, 1, 1], [], []>} : vector<256x8xbf16>, vector<8x32xbf16>, vector<256x32xf32> -> vector<256x32xf32>
    %37 = arith.addf %17, %36 : vector<256x32xf32>
    %38 = vector.extract_strided_slice %11 {offsets = [0, 0, 8], sizes = [4, 64, 8], strides = [1, 1, 1]} : vector<4x64x96xbf16> to vector<4x64x8xbf16>
    %39 = vector.extract_strided_slice %11 {offsets = [0, 0, 40], sizes = [4, 64, 8], strides = [1, 1, 1]} : vector<4x64x96xbf16> to vector<4x64x8xbf16>
    %40 = vector.extract_strided_slice %11 {offsets = [0, 0, 72], sizes = [4, 64, 8], strides = [1, 1, 1]} : vector<4x64x96xbf16> to vector<4x64x8xbf16>
    "tpu.trace_start"() <{level = 10 : i32, message = "bqd,bkd->bqk"}> : () -> ()
    %cst_16 = arith.constant dense<0.000000e+00> : vector<4x64x64xf32>
    %41 = tpu.matmul %38, %39, %cst_16 {dimension_numbers = #tpu.dot_dimension_numbers<[2], [2], [1], [1], [0, 0, 0, 1, 1, 1], [0], [0]>} : vector<4x64x8xbf16>, vector<4x64x8xbf16>, vector<4x64x64xf32> -> vector<4x64x64xf32>
    "tpu.trace_stop"() : () -> ()
    %cst_17 = arith.constant dense<0xFF800000> : vector<4x64xf32>
    %42 = vector.multi_reduction <maximumf>, %41, %cst_17 [2] : vector<4x64x64xf32> to vector<4x64xf32>
    %43 = vector.shape_cast %42 : vector<4x64xf32> to vector<4x64x1xf32>
    %44 = vector.broadcast %43 : vector<4x64x1xf32> to vector<4x64x64xf32>
    %45 = arith.subf %41, %44 : vector<4x64x64xf32>
    %46 = math.exp %45 : vector<4x64x64xf32>
    %cst_18 = arith.constant dense<0.000000e+00> : vector<4x64xf32>
    %47 = vector.multi_reduction <add>, %46, %cst_18 [2] : vector<4x64x64xf32> to vector<4x64xf32>
    %48 = vector.shape_cast %47 : vector<4x64xf32> to vector<4x64x1xf32>
    %49 = vector.broadcast %48 : vector<4x64x1xf32> to vector<4x64x64xf32>
    %50 = arith.divf %46, %49 : vector<4x64x64xf32>
    %51 = arith.truncf %50 : vector<4x64x64xf32> to vector<4x64x64xbf16>
    "tpu.trace_start"() <{level = 10 : i32, message = "bqk,bkd->bqd"}> : () -> ()
    %cst_19 = arith.constant dense<0.000000e+00> : vector<4x64x8xf32>
    %52 = tpu.matmul %51, %40, %cst_19 {dimension_numbers = #tpu.dot_dimension_numbers<[2], [1], [1], [2], [0, 0, 0, 1, 1, 2], [0], [0]>} : vector<4x64x64xbf16>, vector<4x64x8xbf16>, vector<4x64x8xf32> -> vector<4x64x8xf32>
    "tpu.trace_stop"() : () -> ()
    %53 = vector.shape_cast %52 : vector<4x64x8xf32> to vector<256x8xf32>
    %54 = arith.truncf %53 : vector<256x8xf32> to vector<256x8xbf16>
    %c8 = arith.constant 8 : index
    %c0_20 = arith.constant 0 : index
    %55 = vector.load %arg4[%c8, %c0_20] : memref<32x32xbf16, #tpu.memory_space<vmem>>, vector<8x32xbf16>
    %cst_21 = arith.constant dense<0.000000e+00> : vector<256x32xf32>
    %56 = tpu.matmul %54, %55, %cst_21 {dimension_numbers = #tpu.dot_dimension_numbers<[1], [0], [0], [1], [0, 0, 1, 1], [], []>} : vector<256x8xbf16>, vector<8x32xbf16>, vector<256x32xf32> -> vector<256x32xf32>
    %57 = arith.addf %37, %56 : vector<256x32xf32>
    %58 = vector.extract_strided_slice %11 {offsets = [0, 0, 16], sizes = [4, 64, 8], strides = [1, 1, 1]} : vector<4x64x96xbf16> to vector<4x64x8xbf16>
    %59 = vector.extract_strided_slice %11 {offsets = [0, 0, 48], sizes = [4, 64, 8], strides = [1, 1, 1]} : vector<4x64x96xbf16> to vector<4x64x8xbf16>
    %60 = vector.extract_strided_slice %11 {offsets = [0, 0, 80], sizes = [4, 64, 8], strides = [1, 1, 1]} : vector<4x64x96xbf16> to vector<4x64x8xbf16>
    "tpu.trace_start"() <{level = 10 : i32, message = "bqd,bkd->bqk"}> : () -> ()
    %cst_22 = arith.constant dense<0.000000e+00> : vector<4x64x64xf32>
    %61 = tpu.matmul %58, %59, %cst_22 {dimension_numbers = #tpu.dot_dimension_numbers<[2], [2], [1], [1], [0, 0, 0, 1, 1, 1], [0], [0]>} : vector<4x64x8xbf16>, vector<4x64x8xbf16>, vector<4x64x64xf32> -> vector<4x64x64xf32>
    "tpu.trace_stop"() : () -> ()
    %cst_23 = arith.constant dense<0xFF800000> : vector<4x64xf32>
    %62 = vector.multi_reduction <maximumf>, %61, %cst_23 [2] : vector<4x64x64xf32> to vector<4x64xf32>
    %63 = vector.shape_cast %62 : vector<4x64xf32> to vector<4x64x1xf32>
    %64 = vector.broadcast %63 : vector<4x64x1xf32> to vector<4x64x64xf32>
    %65 = arith.subf %61, %64 : vector<4x64x64xf32>
    %66 = math.exp %65 : vector<4x64x64xf32>
    %cst_24 = arith.constant dense<0.000000e+00> : vector<4x64xf32>
    %67 = vector.multi_reduction <add>, %66, %cst_24 [2] : vector<4x64x64xf32> to vector<4x64xf32>
    %68 = vector.shape_cast %67 : vector<4x64xf32> to vector<4x64x1xf32>
    %69 = vector.broadcast %68 : vector<4x64x1xf32> to vector<4x64x64xf32>
    %70 = arith.divf %66, %69 : vector<4x64x64xf32>
    %71 = arith.truncf %70 : vector<4x64x64xf32> to vector<4x64x64xbf16>
    "tpu.trace_start"() <{level = 10 : i32, message = "bqk,bkd->bqd"}> : () -> ()
    %cst_25 = arith.constant dense<0.000000e+00> : vector<4x64x8xf32>
    %72 = tpu.matmul %71, %60, %cst_25 {dimension_numbers = #tpu.dot_dimension_numbers<[2], [1], [1], [2], [0, 0, 0, 1, 1, 2], [0], [0]>} : vector<4x64x64xbf16>, vector<4x64x8xbf16>, vector<4x64x8xf32> -> vector<4x64x8xf32>
    "tpu.trace_stop"() : () -> ()
    %73 = vector.shape_cast %72 : vector<4x64x8xf32> to vector<256x8xf32>
    %74 = arith.truncf %73 : vector<256x8xf32> to vector<256x8xbf16>
    %c16 = arith.constant 16 : index
    %c0_26 = arith.constant 0 : index
    %75 = vector.load %arg4[%c16, %c0_26] : memref<32x32xbf16, #tpu.memory_space<vmem>>, vector<8x32xbf16>
    %cst_27 = arith.constant dense<0.000000e+00> : vector<256x32xf32>
    %76 = tpu.matmul %74, %75, %cst_27 {dimension_numbers = #tpu.dot_dimension_numbers<[1], [0], [0], [1], [0, 0, 1, 1], [], []>} : vector<256x8xbf16>, vector<8x32xbf16>, vector<256x32xf32> -> vector<256x32xf32>
    %77 = arith.addf %57, %76 : vector<256x32xf32>
    %78 = vector.extract_strided_slice %11 {offsets = [0, 0, 24], sizes = [4, 64, 8], strides = [1, 1, 1]} : vector<4x64x96xbf16> to vector<4x64x8xbf16>
    %79 = vector.extract_strided_slice %11 {offsets = [0, 0, 56], sizes = [4, 64, 8], strides = [1, 1, 1]} : vector<4x64x96xbf16> to vector<4x64x8xbf16>
    %80 = vector.extract_strided_slice %11 {offsets = [0, 0, 88], sizes = [4, 64, 8], strides = [1, 1, 1]} : vector<4x64x96xbf16> to vector<4x64x8xbf16>
    "tpu.trace_start"() <{level = 10 : i32, message = "bqd,bkd->bqk"}> : () -> ()
    %cst_28 = arith.constant dense<0.000000e+00> : vector<4x64x64xf32>
    %81 = tpu.matmul %78, %79, %cst_28 {dimension_numbers = #tpu.dot_dimension_numbers<[2], [2], [1], [1], [0, 0, 0, 1, 1, 1], [0], [0]>} : vector<4x64x8xbf16>, vector<4x64x8xbf16>, vector<4x64x64xf32> -> vector<4x64x64xf32>
    "tpu.trace_stop"() : () -> ()
    %cst_29 = arith.constant dense<0xFF800000> : vector<4x64xf32>
    %82 = vector.multi_reduction <maximumf>, %81, %cst_29 [2] : vector<4x64x64xf32> to vector<4x64xf32>
    %83 = vector.shape_cast %82 : vector<4x64xf32> to vector<4x64x1xf32>
    %84 = vector.broadcast %83 : vector<4x64x1xf32> to vector<4x64x64xf32>
    %85 = arith.subf %81, %84 : vector<4x64x64xf32>
    %86 = math.exp %85 : vector<4x64x64xf32>
    %cst_30 = arith.constant dense<0.000000e+00> : vector<4x64xf32>
    %87 = vector.multi_reduction <add>, %86, %cst_30 [2] : vector<4x64x64xf32> to vector<4x64xf32>
    %88 = vector.shape_cast %87 : vector<4x64xf32> to vector<4x64x1xf32>
    %89 = vector.broadcast %88 : vector<4x64x1xf32> to vector<4x64x64xf32>
    %90 = arith.divf %86, %89 : vector<4x64x64xf32>
    %91 = arith.truncf %90 : vector<4x64x64xf32> to vector<4x64x64xbf16>
    "tpu.trace_start"() <{level = 10 : i32, message = "bqk,bkd->bqd"}> : () -> ()
    %cst_31 = arith.constant dense<0.000000e+00> : vector<4x64x8xf32>
    %92 = tpu.matmul %91, %80, %cst_31 {dimension_numbers = #tpu.dot_dimension_numbers<[2], [1], [1], [2], [0, 0, 0, 1, 1, 2], [0], [0]>} : vector<4x64x64xbf16>, vector<4x64x8xbf16>, vector<4x64x8xf32> -> vector<4x64x8xf32>
    "tpu.trace_stop"() : () -> ()
    %93 = vector.shape_cast %92 : vector<4x64x8xf32> to vector<256x8xf32>
    %94 = arith.truncf %93 : vector<256x8xf32> to vector<256x8xbf16>
    %c24 = arith.constant 24 : index
    %c0_32 = arith.constant 0 : index
    %95 = vector.load %arg4[%c24, %c0_32] : memref<32x32xbf16, #tpu.memory_space<vmem>>, vector<8x32xbf16>
    %cst_33 = arith.constant dense<0.000000e+00> : vector<256x32xf32>
    %96 = tpu.matmul %94, %95, %cst_33 {dimension_numbers = #tpu.dot_dimension_numbers<[1], [0], [0], [1], [0, 0, 1, 1], [], []>} : vector<256x8xbf16>, vector<8x32xbf16>, vector<256x32xf32> -> vector<256x32xf32>
    %97 = arith.addf %77, %96 : vector<256x32xf32>
    %98 = arith.addf %1, %97 : vector<256x32xf32>
    %c0_34 = arith.constant 0 : index
    %c0_35 = arith.constant 0 : index
    %99 = vector.load %arg6[%c0_34, %c0_35] : memref<1x32xf32, #tpu.memory_space<vmem>>, vector<1x32xf32>
    %100 = vector.shape_cast %99 : vector<1x32xf32> to vector<32xf32>
    %c0_36 = arith.constant 0 : index
    %c0_37 = arith.constant 0 : index
    %101 = vector.load %arg7[%c0_36, %c0_37] : memref<1x32xf32, #tpu.memory_space<vmem>>, vector<1x32xf32>
    %102 = vector.shape_cast %101 : vector<1x32xf32> to vector<32xf32>
    %cst_38 = arith.constant dense<0.000000e+00> : vector<256xf32>
    %103 = vector.multi_reduction <add>, %98, %cst_38 [1] : vector<256x32xf32> to vector<256xf32>
    %104 = vector.shape_cast %103 : vector<256xf32> to vector<256x1xf32>
    %cst_39 = arith.constant 3.200000e+01 : f32
    %105 = vector.broadcast %cst_39 : f32 to vector<256x1xf32>
    %106 = arith.divf %104, %105 : vector<256x1xf32>
    %107 = vector.broadcast %106 : vector<256x1xf32> to vector<256x32xf32>
    %108 = arith.subf %98, %107 : vector<256x32xf32>
    %109 = arith.mulf %108, %108 : vector<256x32xf32>
    %cst_40 = arith.constant dense<0.000000e+00> : vector<256xf32>
    %110 = vector.multi_reduction <add>, %109, %cst_40 [1] : vector<256x32xf32> to vector<256xf32>
    %111 = vector.shape_cast %110 : vector<256xf32> to vector<256x1xf32>
    %cst_41 = arith.constant 3.200000e+01 : f32
    %112 = vector.broadcast %cst_41 : f32 to vector<256x1xf32>
    %113 = arith.divf %111, %112 : vector<256x1xf32>
    %114 = vector.broadcast %106 : vector<256x1xf32> to vector<256x32xf32>
    %115 = arith.subf %98, %114 : vector<256x32xf32>
    %cst_42 = arith.constant 9.99999974E-6 : f32
    %116 = vector.broadcast %cst_42 : f32 to vector<256x1xf32>
    %117 = arith.addf %113, %116 : vector<256x1xf32>
    %118 = math.rsqrt %117 : vector<256x1xf32>
    %119 = vector.broadcast %118 : vector<256x1xf32> to vector<256x32xf32>
    %120 = arith.mulf %115, %119 : vector<256x32xf32>
    %121 = vector.shape_cast %100 : vector<32xf32> to vector<1x32xf32>
    %122 = vector.broadcast %121 : vector<1x32xf32> to vector<256x32xf32>
    %123 = arith.mulf %120, %122 : vector<256x32xf32>
    %124 = vector.shape_cast %102 : vector<32xf32> to vector<1x32xf32>
    %125 = vector.broadcast %124 : vector<1x32xf32> to vector<256x32xf32>
    %126 = arith.addf %123, %125 : vector<256x32xf32>
    %127 = arith.truncf %126 : vector<256x32xf32> to vector<256x32xbf16>
    %c0_43 = arith.constant 0 : index
    %c0_44 = arith.constant 0 : index
    %128 = vector.load %arg8[%c0_43, %c0_44] : memref<32x64xbf16, #tpu.memory_space<vmem>>, vector<32x64xbf16>
    %cst_45 = arith.constant dense<0.000000e+00> : vector<256x64xf32>
    %129 = tpu.matmul %127, %128, %cst_45 {dimension_numbers = #tpu.dot_dimension_numbers<[1], [0], [0], [1], [0, 0, 1, 1], [], []>} : vector<256x32xbf16>, vector<32x64xbf16>, vector<256x64xf32> -> vector<256x64xf32>
    %c0_46 = arith.constant 0 : index
    %c0_47 = arith.constant 0 : index
    %130 = vector.load %arg9[%c0_46, %c0_47] : memref<1x64xf32, #tpu.memory_space<vmem>>, vector<1x64xf32>
    %131 = vector.shape_cast %130 : vector<1x64xf32> to vector<64xf32>
    %132 = vector.shape_cast %131 : vector<64xf32> to vector<1x64xf32>
    %133 = vector.broadcast %132 : vector<1x64xf32> to vector<256x64xf32>
    %134 = arith.addf %129, %133 : vector<256x64xf32>
    %cst_48 = arith.constant 0.000000e+00 : f32
    %135 = vector.broadcast %cst_48 : f32 to vector<256x64xf32>
    %136 = arith.maximumf %134, %135 : vector<256x64xf32>
    %137 = arith.mulf %136, %136 : vector<256x64xf32>
    %138 = arith.truncf %137 : vector<256x64xf32> to vector<256x64xbf16>
    %c0_49 = arith.constant 0 : index
    %c0_50 = arith.constant 0 : index
    %139 = vector.load %arg10[%c0_49, %c0_50] : memref<64x32xbf16, #tpu.memory_space<vmem>>, vector<64x32xbf16>
    %cst_51 = arith.constant dense<0.000000e+00> : vector<256x32xf32>
    %140 = tpu.matmul %138, %139, %cst_51 {dimension_numbers = #tpu.dot_dimension_numbers<[1], [0], [0], [1], [0, 0, 1, 1], [], []>} : vector<256x64xbf16>, vector<64x32xbf16>, vector<256x32xf32> -> vector<256x32xf32>
    %c0_52 = arith.constant 0 : index
    %c0_53 = arith.constant 0 : index
    %141 = vector.load %arg11[%c0_52, %c0_53] : memref<1x32xf32, #tpu.memory_space<vmem>>, vector<1x32xf32>
    %142 = vector.shape_cast %141 : vector<1x32xf32> to vector<32xf32>
    %143 = vector.shape_cast %142 : vector<32xf32> to vector<1x32xf32>
    %144 = vector.broadcast %143 : vector<1x32xf32> to vector<256x32xf32>
    %145 = arith.addf %140, %144 : vector<256x32xf32>
    %146 = arith.addf %126, %145 : vector<256x32xf32>
    %c0_54 = arith.constant 0 : index
    %c0_55 = arith.constant 0 : index
    %147 = vector.load %arg12[%c0_54, %c0_55] : memref<1x32xf32, #tpu.memory_space<vmem>>, vector<1x32xf32>
    %148 = vector.shape_cast %147 : vector<1x32xf32> to vector<32xf32>
    %c0_56 = arith.constant 0 : index
    %c0_57 = arith.constant 0 : index
    %149 = vector.load %arg13[%c0_56, %c0_57] : memref<1x32xf32, #tpu.memory_space<vmem>>, vector<1x32xf32>
    %150 = vector.shape_cast %149 : vector<1x32xf32> to vector<32xf32>
    %cst_58 = arith.constant dense<0.000000e+00> : vector<256xf32>
    %151 = vector.multi_reduction <add>, %146, %cst_58 [1] : vector<256x32xf32> to vector<256xf32>
    %152 = vector.shape_cast %151 : vector<256xf32> to vector<256x1xf32>
    %cst_59 = arith.constant 3.200000e+01 : f32
    %153 = vector.broadcast %cst_59 : f32 to vector<256x1xf32>
    %154 = arith.divf %152, %153 : vector<256x1xf32>
    %155 = vector.broadcast %154 : vector<256x1xf32> to vector<256x32xf32>
    %156 = arith.subf %146, %155 : vector<256x32xf32>
    %157 = arith.mulf %156, %156 : vector<256x32xf32>
    %cst_60 = arith.constant dense<0.000000e+00> : vector<256xf32>
    %158 = vector.multi_reduction <add>, %157, %cst_60 [1] : vector<256x32xf32> to vector<256xf32>
    %159 = vector.shape_cast %158 : vector<256xf32> to vector<256x1xf32>
    %cst_61 = arith.constant 3.200000e+01 : f32
    %160 = vector.broadcast %cst_61 : f32 to vector<256x1xf32>
    %161 = arith.divf %159, %160 : vector<256x1xf32>
    %162 = vector.broadcast %154 : vector<256x1xf32> to vector<256x32xf32>
    %163 = arith.subf %146, %162 : vector<256x32xf32>
    %cst_62 = arith.constant 9.99999974E-6 : f32
    %164 = vector.broadcast %cst_62 : f32 to vector<256x1xf32>
    %165 = arith.addf %161, %164 : vector<256x1xf32>
    %166 = math.rsqrt %165 : vector<256x1xf32>
    %167 = vector.broadcast %166 : vector<256x1xf32> to vector<256x32xf32>
    %168 = arith.mulf %163, %167 : vector<256x32xf32>
    %169 = vector.shape_cast %148 : vector<32xf32> to vector<1x32xf32>
    %170 = vector.broadcast %169 : vector<1x32xf32> to vector<256x32xf32>
    %171 = arith.mulf %168, %170 : vector<256x32xf32>
    %172 = vector.shape_cast %150 : vector<32xf32> to vector<1x32xf32>
    %173 = vector.broadcast %172 : vector<1x32xf32> to vector<256x32xf32>
    %174 = arith.addf %171, %173 : vector<256x32xf32>
    %175 = vector.shape_cast %174 : vector<256x32xf32> to vector<4x64x32xf32>
    %c0_63 = arith.constant 0 : index
    %c0_64 = arith.constant 0 : index
    %c0_65 = arith.constant 0 : index
    %176 = vector.load %arg14[%c0_63, %c0_64, %c0_65] : memref<4x64x32xf32, #tpu.memory_space<vmem>>, vector<4x64x32xf32>
    tpu.vector_store %arg14[%c0_63, %c0_64, %c0_65], %175 {strides = array<i32>} : memref<4x64x32xf32, #tpu.memory_space<vmem>>, vector<4x64x32xf32>,
    return
  }
  func.func @transform_0(%arg0: i32) -> (i32, i32, i32) {
    %c0_i32 = arith.constant 0 : i32
    %c0_i32_0 = arith.constant 0 : i32
    %c0_i32_1 = arith.constant 0 : i32
    return %arg0, %c0_i32, %c0_i32_0 : i32, i32, i32
  }
  func.func @transform_1(%arg0: i32) -> (i32, i32) {
    %c0_i32 = arith.constant 0 : i32
    %c0_i32_0 = arith.constant 0 : i32
    %c0_i32_1 = arith.constant 0 : i32
    return %c0_i32, %c0_i32_0 : i32, i32
  }
  func.func @transform_2(%arg0: i32) -> (i32, i32) {
    %c0_i32 = arith.constant 0 : i32
    %c0_i32_0 = arith.constant 0 : i32
    %c0_i32_1 = arith.constant 0 : i32
    return %c0_i32, %c0_i32_0 : i32, i32
  }
  func.func @transform_3(%arg0: i32) -> (i32, i32) {
    %c0_i32 = arith.constant 0 : i32
    %c0_i32_0 = arith.constant 0 : i32
    %c0_i32_1 = arith.constant 0 : i32
    return %c0_i32, %c0_i32_0 : i32, i32
  }
  func.func @transform_4(%arg0: i32) -> (i32, i32) {
    %c0_i32 = arith.constant 0 : i32
    %c0_i32_0 = arith.constant 0 : i32
    %c0_i32_1 = arith.constant 0 : i32
    return %c0_i32, %c0_i32_0 : i32, i32
  }
  func.func @transform_5(%arg0: i32) -> (i32, i32) {
    %c0_i32 = arith.constant 0 : i32
    %c0_i32_0 = arith.constant 0 : i32
    %c0_i32_1 = arith.constant 0 : i32
    return %c0_i32, %c0_i32_0 : i32, i32
  }
  func.func @transform_6(%arg0: i32) -> (i32, i32) {
    %c0_i32 = arith.constant 0 : i32
    %c0_i32_0 = arith.constant 0 : i32
    %c0_i32_1 = arith.constant 0 : i32
    return %c0_i32, %c0_i32_0 : i32, i32
  }
  func.func @transform_7(%arg0: i32) -> (i32, i32) {
    %c0_i32 = arith.constant 0 : i32
    %c0_i32_0 = arith.constant 0 : i32
    %c0_i32_1 = arith.constant 0 : i32
    return %c0_i32, %c0_i32_0 : i32, i32
  }
  func.func @transform_8(%arg0: i32) -> (i32, i32) {
    %c0_i32 = arith.constant 0 : i32
    %c0_i32_0 = arith.constant 0 : i32
    %c0_i32_1 = arith.constant 0 : i32
    return %c0_i32, %c0_i32_0 : i32, i32
  }
  func.func @transform_9(%arg0: i32) -> (i32, i32) {
    %c0_i32 = arith.constant 0 : i32
    %c0_i32_0 = arith.constant 0 : i32
    %c0_i32_1 = arith.constant 0 : i32
    return %c0_i32, %c0_i32_0 : i32, i32
  }
  func.func @transform_10(%arg0: i32) -> (i32, i32) {
    %c0_i32 = arith.constant 0 : i32
    %c0_i32_0 = arith.constant 0 : i32
    %c0_i32_1 = arith.constant 0 : i32
    return %c0_i32, %c0_i32_0 : i32, i32
  }
  func.func @transform_11(%arg0: i32) -> (i32, i32) {
    %c0_i32 = arith.constant 0 : i32
    %c0_i32_0 = arith.constant 0 : i32
    %c0_i32_1 = arith.constant 0 : i32
    return %c0_i32, %c0_i32_0 : i32, i32
  }
  func.func @transform_12(%arg0: i32) -> (i32, i32) {
    %c0_i32 = arith.constant 0 : i32
    %c0_i32_0 = arith.constant 0 : i32
    %c0_i32_1 = arith.constant 0 : i32
    return %c0_i32, %c0_i32_0 : i32, i32
  }
  func.func @transform_13(%arg0: i32) -> (i32, i32, i32) {
    %c0_i32 = arith.constant 0 : i32
    %c0_i32_0 = arith.constant 0 : i32
    %c0_i32_1 = arith.constant 0 : i32
    return %arg0, %c0_i32, %c0_i32_0 : i32, i32, i32
  }
}

</mosaic_0001>

<llo_original>
// kernel: tpu_custom_call.1
$region0: #{tpu_custom_call.1}
  #allocation0 [shape = 'u32[]', space=smem, size = 0x4, offset = 0x4, fixed_abs, tag = 'smem constant byte address 0x4 - core index']
  #allocation1 [shape = 'u32[72,128]{1,0:T(1,128)}', space=vmem, size = 0x9000, scoped, tag = 'internal scratch']
  %s0 = inlined_call_operand.vmem [shape: f32[4,64,32], index: 0, kind: input, shape index: {}]
  %s1 = inlined_call_operand.vmem [shape: bf16[32,96], index: 1, kind: input, shape index: {}]
  %s2 = inlined_call_operand.vmem [shape: f32[1,96], index: 2, kind: input, shape index: {}]
  %s3 = inlined_call_operand.vmem [shape: bf16[32,32], index: 3, kind: input, shape index: {}]
  %s4 = inlined_call_operand.vmem [shape: f32[1,32], index: 4, kind: input, shape index: {}]
  %s5 = inlined_call_operand.vmem [shape: f32[1,32], index: 5, kind: input, shape index: {}]
  %s6 = inlined_call_operand.vmem [shape: f32[1,32], index: 6, kind: input, shape index: {}]
  %s7 = inlined_call_operand.vmem [shape: bf16[32,64], index: 7, kind: input, shape index: {}]
  %s8 = inlined_call_operand.vmem [shape: f32[1,64], index: 8, kind: input, shape index: {}]
  %s9 = inlined_call_operand.vmem [shape: bf16[64,32], index: 9, kind: input, shape index: {}]
  %s10 = inlined_call_operand.vmem [shape: f32[1,32], index: 10, kind: input, shape index: {}]
  %s11 = inlined_call_operand.vmem [shape: f32[1,32], index: 11, kind: input, shape index: {}]
  %s12 = inlined_call_operand.vmem [shape: f32[1,32], index: 12, kind: input, shape index: {}]
  %s13 = inlined_call_operand.vmem [shape: f32[4,64,32], index: 13, kind: output, shape index: {}]
  %s14 = sld [smem:[#allocation0]]
  $region62: #{tpu_custom_call.1} parent=0
    _
  %s16 = ssub.s32 1, %s14
  %s17 = scalar_select 0, %s16, %s14
  // Predicated region
  $region2: #{tpu_custom_call.1} parent=0 // pred_check
    _
  $region3: #{tpu_custom_call.1} parent=0 // pred_check_branch
    %19 = sbr.rel (0) target = $region5
  $region4: #{tpu_custom_call.1} parent=0 // pred_region
    _
  $region5: #{tpu_custom_call.1} parent=0 // pred_fallthru
    _
  // Predicated region
  $region6: #{tpu_custom_call.1} parent=0 // pred_check
    _
  $region7: #{tpu_custom_call.1} parent=0 // pred_check_branch
    %21 = sbr.rel (0) target = $region9
  $region8: #{tpu_custom_call.1} parent=0 // pred_region
    _
  $region9: #{tpu_custom_call.1} parent=0 // pred_fallthru
    _
  // Predicated region
  $region10: #{tpu_custom_call.1} parent=0 // pred_check
    _
  $region11: #{tpu_custom_call.1} parent=0 // pred_check_branch
    %23 = sbr.rel (0) target = $region13
  $region12: #{tpu_custom_call.1} parent=0 // pred_region
    _
  $region13: #{tpu_custom_call.1} parent=0 // pred_fallthru
    _
  // Predicated region
  $region14: #{tpu_custom_call.1} parent=0 // pred_check
    _
  $region15: #{tpu_custom_call.1} parent=0 // pred_check_branch
    %25 = sbr.rel (0) target = $region17
  $region16: #{tpu_custom_call.1} parent=0 // pred_region
    _
  $region17: #{tpu_custom_call.1} parent=0 // pred_fallthru
    _
  // Predicated region
  $region18: #{tpu_custom_call.1} parent=0 // pred_check
    _
  $region19: #{tpu_custom_call.1} parent=0 // pred_check_branch
    %27 = sbr.rel (0) target = $region21
  $region20: #{tpu_custom_call.1} parent=0 // pred_region
    _
  $region21: #{tpu_custom_call.1} parent=0 // pred_fallthru
    _
  // Predicated region
  $region22: #{tpu_custom_call.1} parent=0 // pred_check
    _
  $region23: #{tpu_custom_call.1} parent=0 // pred_check_branch
    %29 = sbr.rel (0) target = $region25
  $region24: #{tpu_custom_call.1} parent=0 // pred_region
    _
  $region25: #{tpu_custom_call.1} parent=0 // pred_fallthru
    _
  // Predicated region
  $region26: #{tpu_custom_call.1} parent=0 // pred_check
    _
  $region27: #{tpu_custom_call.1} parent=0 // pred_check_branch
    %31 = sbr.rel (0) target = $region29
  $region28: #{tpu_custom_call.1} parent=0 // pred_region
    _
  $region29: #{tpu_custom_call.1} parent=0 // pred_fallthru
    _
  // Predicated region
  $region30: #{tpu_custom_call.1} parent=0 // pred_check
    _
  $region31: #{tpu_custom_call.1} parent=0 // pred_check_branch
    %33 = sbr.rel (0) target = $region33
  $region32: #{tpu_custom_call.1} parent=0 // pred_region
    _
  $region33: #{tpu_custom_call.1} parent=0 // pred_fallthru
    _
  // Predicated region
  $region34: #{tpu_custom_call.1} parent=0 // pred_check
    _
  $region35: #{tpu_custom_call.1} parent=0 // pred_check_branch
    %35 = sbr.rel (0) target = $region37
  $region36: #{tpu_custom_call.1} parent=0 // pred_region
    _
  $region37: #{tpu_custom_call.1} parent=0 // pred_fallthru
    _
  // Predicated region
  $region38: #{tpu_custom_call.1} parent=0 // pred_check
    _
  $region39: #{tpu_custom_call.1} parent=0 // pred_check_branch
    %37 = sbr.rel (0) target = $region41
  $region40: #{tpu_custom_call.1} parent=0 // pred_region
    _
  $region41: #{tpu_custom_call.1} parent=0 // pred_fallthru
    _
  // Predicated region
  $region42: #{tpu_custom_call.1} parent=0 // pred_check
    _
  $region43: #{tpu_custom_call.1} parent=0 // pred_check_branch
    %39 = sbr.rel (0) target = $region45
  $region44: #{tpu_custom_call.1} parent=0 // pred_region
    _
  $region45: #{tpu_custom_call.1} parent=0 // pred_fallthru
    _
  // Predicated region
  $region46: #{tpu_custom_call.1} parent=0 // pred_check
    _
  $region47: #{tpu_custom_call.1} parent=0 // pred_check_branch
    %41 = sbr.rel (0) target = $region49
  $region48: #{tpu_custom_call.1} parent=0 // pred_region
    _
  $region49: #{tpu_custom_call.1} parent=0 // pred_fallthru
    _
  // Predicated region
  $region50: #{tpu_custom_call.1} parent=0 // pred_check
    _
  $region51: #{tpu_custom_call.1} parent=0 // pred_check_branch
    %43 = sbr.rel (0) target = $region53
  $region52: #{tpu_custom_call.1} parent=0 // pred_region
    _
  $region53: #{tpu_custom_call.1} parent=0 // pred_fallthru
    _
  %v45 = vld [vmem:[%s0] sm:$0xff]
  %v46 = vld [vmem:[%s0 + $0x8] sm:$0xff]
  %v47 = vld [vmem:[%s0 + $0x10] sm:$0xff]
  %v48 = vld [vmem:[%s0 + $0x18] sm:$0xff]
  %v49 = vld [vmem:[%s0 + $0x20] sm:$0xff]
  %v50 = vld [vmem:[%s0 + $0x28] sm:$0xff]
  %v51 = vld [vmem:[%s0 + $0x30] sm:$0xff]
  %v52 = vld [vmem:[%s0 + $0x38] sm:$0xff]
  %v53 = vld [vmem:[%s0 + $0x40] sm:$0xff]
  %v54 = vld [vmem:[%s0 + $0x48] sm:$0xff]
  %v55 = vld [vmem:[%s0 + $0x50] sm:$0xff]
  %v56 = vld [vmem:[%s0 + $0x58] sm:$0xff]
  %v57 = vld [vmem:[%s0 + $0x60] sm:$0xff]
  %v58 = vld [vmem:[%s0 + $0x68] sm:$0xff]
  %v59 = vld [vmem:[%s0 + $0x70] sm:$0xff]
  %v60 = vld [vmem:[%s0 + $0x78] sm:$0xff]
  %v61 = vld [vmem:[%s0 + $0x80] sm:$0xff]
  %v62 = vld [vmem:[%s0 + $0x88] sm:$0xff]
  %v63 = vld [vmem:[%s0 + $0x90] sm:$0xff]
  %v64 = vld [vmem:[%s0 + $0x98] sm:$0xff]
  %v65 = vld [vmem:[%s0 + $0xa0] sm:$0xff]
  %v66 = vld [vmem:[%s0 + $0xa8] sm:$0xff]
  %v67 = vld [vmem:[%s0 + $0xb0] sm:$0xff]
  %v68 = vld [vmem:[%s0 + $0xb8] sm:$0xff]
  %v69 = vld [vmem:[%s0 + $0xc0] sm:$0xff]
  %v70 = vld [vmem:[%s0 + $0xc8] sm:$0xff]
  %v71 = vld [vmem:[%s0 + $0xd0] sm:$0xff]
  %v72 = vld [vmem:[%s0 + $0xd8] sm:$0xff]
  %v73 = vld [vmem:[%s0 + $0xe0] sm:$0xff]
  %v74 = vld [vmem:[%s0 + $0xe8] sm:$0xff]
  %v75 = vld [vmem:[%s0 + $0xf0] sm:$0xff]
  %v76 = vld [vmem:[%s0 + $0xf8] sm:$0xff]
  %v77 = vpack.c.bf16 %v46, %v45
  %v78 = vpack.c.bf16 %v48, %v47
  %v79 = vpack.c.bf16 %v50, %v49
  %v80 = vpack.c.bf16 %v52, %v51
  %v81 = vpack.c.bf16 %v54, %v53
  %v82 = vpack.c.bf16 %v56, %v55
  %v83 = vpack.c.bf16 %v58, %v57
  %v84 = vpack.c.bf16 %v60, %v59
  %v85 = vpack.c.bf16 %v62, %v61
  %v86 = vpack.c.bf16 %v64, %v63
  %v87 = vpack.c.bf16 %v66, %v65
  %v88 = vpack.c.bf16 %v68, %v67
  %v89 = vpack.c.bf16 %v70, %v69
  %v90 = vpack.c.bf16 %v72, %v71
  %v91 = vpack.c.bf16 %v74, %v73
  %v92 = vpack.c.bf16 %v76, %v75
  %v93 = vld [vmem:[%s1] sm:$0xf]
  %v94 = vld [vmem:[%s1 + $0x4] sm:$0xf]
  %v95 = vld [vmem:[%s1 + $0x8] sm:$0xf]
  %v96 = vld [vmem:[%s1 + $0xc] sm:$0xf]
  %v97 = vld [vmem:[%s2] sm:$0x1]
  %v99 = vperm.slane %v97, 0
  %v105 = vunpack.c.l.b16 %v93
  %v106 = vunpack.c.l.b16 %v94
  %v107 = vunpack.c.l.b16 %v95
  %v108 = vunpack.c.l.b16 %v96
  %v109 = vpack.c.b16 %v106, %v105
  %v110 = vpack.c.b16 %v108, %v107
  %vm113 = vcmask 261120
  %v115 = vsel %vm113, %v77, 0
  %v118 = vsel %vm113, %v78, 0
  %v121 = vsel %vm113, %v79, 0
  %v124 = vsel %vm113, %v80, 0
  %v127 = vsel %vm113, %v81, 0
  %v130 = vsel %vm113, %v82, 0
  %v133 = vsel %vm113, %v83, 0
  %v136 = vsel %vm113, %v84, 0
  %v139 = vsel %vm113, %v85, 0
  %v142 = vsel %vm113, %v86, 0
  %v145 = vsel %vm113, %v87, 0
  %v148 = vsel %vm113, %v88, 0
  %v151 = vsel %vm113, %v89, 0
  %v154 = vsel %vm113, %v90, 0
  %v157 = vsel %vm113, %v91, 0
  %v160 = vsel %vm113, %v92, 0
  %162 = vmatpush.bf16.msra.mxu0 0
  %163 = vmatpush.bf16.msra.mxu0 0
  %164 = vmatpush.bf16.msra.mxu0 0
  %165 = vmatpush.bf16.msra.mxu0 0
  %166 = vmatpush.bf16.msra.mxu0 0
  %167 = vmatpush.bf16.msra.mxu0 0
  %168 = vmatpush.bf16.msra.mxu0 %v110
  %169 = vmatpush.bf16.msra.mxu0 %v109
  %170 = vmatmul.bf16.gmra.mxu0 %v115
  %v171 = vpop.f32.mrf.mxu0
  %v172 = vadd.f32 %v99, %v171
  %v173 = vpop.f32.mrf.mxu0
  %v174 = vadd.f32 %v99, %v173
  %175 = vmatmul.bf16.gmra.mxu0 %v118
  %v176 = vpop.f32.mrf.mxu0
  %v177 = vadd.f32 %v99, %v176
  %v178 = vpop.f32.mrf.mxu0
  %v179 = vadd.f32 %v99, %v178
  %180 = vmatmul.bf16.gmra.mxu0 %v121
  %v181 = vpop.f32.mrf.mxu0
  %v182 = vadd.f32 %v99, %v181
  %v183 = vpop.f32.mrf.mxu0
  %v184 = vadd.f32 %v99, %v183
  %185 = vmatmul.bf16.gmra.mxu0 %v124
  %v186 = vpop.f32.mrf.mxu0
  %v187 = vadd.f32 %v99, %v186
  %v188 = vpop.f32.mrf.mxu0
  %v189 = vadd.f32 %v99, %v188
  %190 = vmatmul.bf16.gmra.mxu0 %v127
  %v191 = vpop.f32.mrf.mxu0
  %v192 = vadd.f32 %v99, %v191
  %v193 = vpop.f32.mrf.mxu0
  %v194 = vadd.f32 %v99, %v193
  %195 = vmatmul.bf16.gmra.mxu0 %v130
  %v196 = vpop.f32.mrf.mxu0
  %v197 = vadd.f32 %v99, %v196
  %v198 = vpop.f32.mrf.mxu0
  %v199 = vadd.f32 %v99, %v198
  %200 = vmatmul.bf16.gmra.mxu0 %v133
  %v201 = vpop.f32.mrf.mxu0
  %v202 = vadd.f32 %v99, %v201
  %v203 = vpop.f32.mrf.mxu0
  %v204 = vadd.f32 %v99, %v203
  %205 = vmatmul.bf16.gmra.mxu0 %v136
  %v206 = vpop.f32.mrf.mxu0
  %v207 = vadd.f32 %v99, %v206
  %v208 = vpop.f32.mrf.mxu0
  %v209 = vadd.f32 %v99, %v208
  %210 = vmatmul.bf16.gmra.mxu0 %v139
  %v211 = vpop.f32.mrf.mxu0
  %v212 = vadd.f32 %v99, %v211
  %v213 = vpop.f32.mrf.mxu0
  %v214 = vadd.f32 %v99, %v213
  %215 = vmatmul.bf16.gmra.mxu0 %v142
  %v216 = vpop.f32.mrf.mxu0
  %v217 = vadd.f32 %v99, %v216
  %v218 = vpop.f32.mrf.mxu0
  %v219 = vadd.f32 %v99, %v218
  %220 = vmatmul.bf16.gmra.mxu0 %v145
  %v221 = vpop.f32.mrf.mxu0
  %v222 = vadd.f32 %v99, %v221
  %v223 = vpop.f32.mrf.mxu0
  %v224 = vadd.f32 %v99, %v223
  %225 = vmatmul.bf16.gmra.mxu0 %v148
  %v226 = vpop.f32.mrf.mxu0
  %v227 = vadd.f32 %v99, %v226
  %v228 = vpop.f32.mrf.mxu0
  %v229 = vadd.f32 %v99, %v228
  %230 = vmatmul.bf16.gmra.mxu0 %v151
  %v231 = vpop.f32.mrf.mxu0
  %v232 = vadd.f32 %v99, %v231
  %v233 = vpop.f32.mrf.mxu0
  %v234 = vadd.f32 %v99, %v233
  %235 = vmatmul.bf16.gmra.mxu0 %v154
  %v236 = vpop.f32.mrf.mxu0
  %v237 = vadd.f32 %v99, %v236
  %v238 = vpop.f32.mrf.mxu0
  %v239 = vadd.f32 %v99, %v238
  %240 = vmatmul.bf16.gmra.mxu0 %v157
  %v241 = vpop.f32.mrf.mxu0
  %v242 = vadd.f32 %v99, %v241
  %v243 = vpop.f32.mrf.mxu0
  %v244 = vadd.f32 %v99, %v243
  %245 = vmatmul.bf16.gmra.mxu0 %v160
  %v246 = vpop.f32.mrf.mxu0
  %v247 = vadd.f32 %v99, %v246
  %v248 = vpop.f32.mrf.mxu0
  %v249 = vadd.f32 %v99, %v248
  %250 = vdwg.mxu0
  %v251 = vpack.c.bf16 %v172, %v172
  %v252 = vpack.c.bf16 %v174, %v174
  %v253 = vpack.c.bf16 %v177, %v177
  %v254 = vpack.c.bf16 %v179, %v179
  %v255 = vpack.c.bf16 %v182, %v182
  %v256 = vpack.c.bf16 %v184, %v184
  %v257 = vpack.c.bf16 %v187, %v187
  %v258 = vpack.c.bf16 %v189, %v189
  %v259 = vpack.c.bf16 %v192, %v192
  %v260 = vpack.c.bf16 %v194, %v194
  %v261 = vpack.c.bf16 %v197, %v197
  %v262 = vpack.c.bf16 %v199, %v199
  %v263 = vpack.c.bf16 %v202, %v202
  %v264 = vpack.c.bf16 %v204, %v204
  %v265 = vpack.c.bf16 %v207, %v207
  %v266 = vpack.c.bf16 %v209, %v209
  %v267 = vpack.c.bf16 %v212, %v212
  %v268 = vpack.c.bf16 %v214, %v214
  %v269 = vpack.c.bf16 %v217, %v217
  %v270 = vpack.c.bf16 %v219, %v219
  %v271 = vpack.c.bf16 %v222, %v222
  %v272 = vpack.c.bf16 %v224, %v224
  %v273 = vpack.c.bf16 %v227, %v227
  %v274 = vpack.c.bf16 %v229, %v229
  %v275 = vpack.c.bf16 %v232, %v232
  %v276 = vpack.c.bf16 %v234, %v234
  %v277 = vpack.c.bf16 %v237, %v237
  %v278 = vpack.c.bf16 %v239, %v239
  %v279 = vpack.c.bf16 %v242, %v242
  %v280 = vpack.c.bf16 %v244, %v244
  %v281 = vpack.c.bf16 %v247, %v247
  %v282 = vpack.c.bf16 %v249, %v249
  %v283 = vld [vmem:[%s4] sm:$0x1]
  %v285 = vperm.slane %v283, 0
  %v287 = vadd.f32 %v285, 0.0
  %v296 = vunpack.c.l.b16 %v251
  %v297 = vunpack.c.l.b16 %v252
  %v298 = vunpack.c.l.b16 %v253
  %v299 = vunpack.c.l.b16 %v254
  %v300 = vunpack.c.l.b16 %v255
  %v301 = vunpack.c.l.b16 %v256
  %v302 = vunpack.c.l.b16 %v257
  %v303 = vunpack.c.l.b16 %v258
  %v304 = vpack.c.b16 %v297, %v296
  %v305 = vpack.c.b16 %v299, %v298
  %v306 = vpack.c.b16 %v301, %v300
  %v307 = vpack.c.b16 %v303, %v302
  %308 = vrot.lane.b32.xlu0 %v304, 96
  %v309 = vpop.permute.xlu0 %308
  %310 = vrot.lane.b32.xlu0 %v305, 96
  %v311 = vpop.permute.xlu0 %310
  %312 = vrot.lane.b32.xlu0 %v306, 96
  %v313 = vpop.permute.xlu0 %312
  %314 = vrot.lane.b32.xlu0 %v307, 96
  %v315 = vpop.permute.xlu0 %314
  %vm316 = vcmask 64512
  %v318 = vsel %vm316, %v304, 0
  %v321 = vsel %vm316, %v305, 0
  %v324 = vsel %vm316, %v306, 0
  %v327 = vsel %vm316, %v307, 0
  %v330 = vsel %vm316, %v309, 0
  %v333 = vsel %vm316, %v311, 0
  %v336 = vsel %vm316, %v313, 0
  %v339 = vsel %vm316, %v315, 0
  %341 = vmatpush.bf16.xpose.msra.mxu0 0
  %342 = vmatpush.bf16.xpose.msra.mxu0 0
  %343 = vmatpush.bf16.xpose.msra.mxu0 0
  %344 = vmatpush.bf16.xpose.msra.mxu0 0
  %345 = vmatpush.bf16.xpose.msra.mxu0 %v339
  %346 = vmatpush.bf16.xpose.msra.mxu0 %v336
  %347 = vmatpush.bf16.xpose.msra.mxu0 %v333
  %348 = vmatpush.bf16.xpose.msra.mxu0 %v330
  %349 = vmatmul.bf16.gmra.mxu0 %v318
  %v350 = vpop.f32.mrf.mxu0
  %v351 = vadd.f32 0.0, %v350
  %v352 = vpop.f32.mrf.mxu0
  %v353 = vadd.f32 0.0, %v352
  %354 = vmatmul.bf16.gmra.mxu0 %v321
  %v355 = vpop.f32.mrf.mxu0
  %v356 = vadd.f32 0.0, %v355
  %v357 = vpop.f32.mrf.mxu0
  %v358 = vadd.f32 0.0, %v357
  %359 = vmatmul.bf16.gmra.mxu0 %v324
  %v360 = vpop.f32.mrf.mxu0
  %v361 = vadd.f32 0.0, %v360
  %v362 = vpop.f32.mrf.mxu0
  %v363 = vadd.f32 0.0, %v362
  %364 = vmatmul.bf16.gmra.mxu0 %v327
  %v365 = vpop.f32.mrf.mxu0
  %v366 = vadd.f32 0.0, %v365
  %v367 = vpop.f32.mrf.mxu0
  %v368 = vadd.f32 0.0, %v367
  %369 = vdwg.mxu0
  %v378 = vunpack.c.l.b16 %v259
  %v379 = vunpack.c.l.b16 %v260
  %v380 = vunpack.c.l.b16 %v261
  %v381 = vunpack.c.l.b16 %v262
  %v382 = vunpack.c.l.b16 %v263
  %v383 = vunpack.c.l.b16 %v264
  %v384 = vunpack.c.l.b16 %v265
  %v385 = vunpack.c.l.b16 %v266
  %v386 = vpack.c.b16 %v379, %v378
  %v387 = vpack.c.b16 %v381, %v380
  %v388 = vpack.c.b16 %v383, %v382
  %v389 = vpack.c.b16 %v385, %v384
  %390 = vrot.lane.b32.xlu0 %v386, 96
  %v391 = vpop.permute.xlu0 %390
  %392 = vrot.lane.b32.xlu0 %v387, 96
  %v393 = vpop.permute.xlu0 %392
  %394 = vrot.lane.b32.xlu0 %v388, 96
  %v395 = vpop.permute.xlu0 %394
  %396 = vrot.lane.b32.xlu0 %v389, 96
  %v397 = vpop.permute.xlu0 %396
  %v399 = vsel %vm316, %v386, 0
  %v402 = vsel %vm316, %v387, 0
  %v405 = vsel %vm316, %v388, 0
  %v408 = vsel %vm316, %v389, 0
  %v411 = vsel %vm316, %v391, 0
  %v414 = vsel %vm316, %v393, 0
  %v417 = vsel %vm316, %v395, 0
  %v420 = vsel %vm316, %v397, 0
  %422 = vmatpush.bf16.xpose.msra.mxu0 0
  %423 = vmatpush.bf16.xpose.msra.mxu0 0
  %424 = vmatpush.bf16.xpose.msra.mxu0 0
  %425 = vmatpush.bf16.xpose.msra.mxu0 0
  %426 = vmatpush.bf16.xpose.msra.mxu0 %v420
  %427 = vmatpush.bf16.xpose.msra.mxu0 %v417
  %428 = vmatpush.bf16.xpose.msra.mxu0 %v414
  %429 = vmatpush.bf16.xpose.msra.mxu0 %v411
  %430 = vmatmul.bf16.gmra.mxu0 %v399
  %v431 = vpop.f32.mrf.mxu0
  %v432 = vadd.f32 0.0, %v431
  %v433 = vpop.f32.mrf.mxu0
  %v434 = vadd.f32 0.0, %v433
  %435 = vmatmul.bf16.gmra.mxu0 %v402
  %v436 = vpop.f32.mrf.mxu0
  %v437 = vadd.f32 0.0, %v436
  %v438 = vpop.f32.mrf.mxu0
  %v439 = vadd.f32 0.0, %v438
  %440 = vmatmul.bf16.gmra.mxu0 %v405
  %v441 = vpop.f32.mrf.mxu0
  %v442 = vadd.f32 0.0, %v441
  %v443 = vpop.f32.mrf.mxu0
  %v444 = vadd.f32 0.0, %v443
  %445 = vmatmul.bf16.gmra.mxu0 %v408
  %v446 = vpop.f32.mrf.mxu0
  %v447 = vadd.f32 0.0, %v446
  %v448 = vpop.f32.mrf.mxu0
  %v449 = vadd.f32 0.0, %v448
  %450 = vdwg.mxu0
  %v459 = vunpack.c.l.b16 %v267
  %v460 = vunpack.c.l.b16 %v268
  %v461 = vunpack.c.l.b16 %v269
  %v462 = vunpack.c.l.b16 %v270
  %v463 = vunpack.c.l.b16 %v271
  %v464 = vunpack.c.l.b16 %v272
  %v465 = vunpack.c.l.b16 %v273
  %v466 = vunpack.c.l.b16 %v274
  %v467 = vpack.c.b16 %v460, %v459
  %v468 = vpack.c.b16 %v462, %v461
  %v469 = vpack.c.b16 %v464, %v463
  %v470 = vpack.c.b16 %v466, %v465
  %471 = vrot.lane.b32.xlu0 %v467, 96
  %v472 = vpop.permute.xlu0 %471
  %473 = vrot.lane.b32.xlu0 %v468, 96
  %v474 = vpop.permute.xlu0 %473
  %475 = vrot.lane.b32.xlu0 %v469, 96
  %v476 = vpop.permute.xlu0 %475
  %477 = vrot.lane.b32.xlu0 %v470, 96
  %v478 = vpop.permute.xlu0 %477
  %v480 = vsel %vm316, %v467, 0
  %v483 = vsel %vm316, %v468, 0
  %v486 = vsel %vm316, %v469, 0
  %v489 = vsel %vm316, %v470, 0
  %v492 = vsel %vm316, %v472, 0
  %v495 = vsel %vm316, %v474, 0
  %v498 = vsel %vm316, %v476, 0
  %v501 = vsel %vm316, %v478, 0
  %503 = vmatpush.bf16.xpose.msra.mxu0 0
  %504 = vmatpush.bf16.xpose.msra.mxu0 0
  %505 = vmatpush.bf16.xpose.msra.mxu0 0
  %506 = vmatpush.bf16.xpose.msra.mxu0 0
  %507 = vmatpush.bf16.xpose.msra.mxu0 %v501
  %508 = vmatpush.bf16.xpose.msra.mxu0 %v498
  %509 = vmatpush.bf16.xpose.msra.mxu0 %v495
  %510 = vmatpush.bf16.xpose.msra.mxu0 %v492
  %511 = vmatmul.bf16.gmra.mxu0 %v480
  %v512 = vpop.f32.mrf.mxu0
  %v513 = vadd.f32 0.0, %v512
  %v514 = vpop.f32.mrf.mxu0
  %v515 = vadd.f32 0.0, %v514
  %516 = vmatmul.bf16.gmra.mxu0 %v483
  %v517 = vpop.f32.mrf.mxu0
  %v518 = vadd.f32 0.0, %v517
  %v519 = vpop.f32.mrf.mxu0
  %v520 = vadd.f32 0.0, %v519
  %521 = vmatmul.bf16.gmra.mxu0 %v486
  %v522 = vpop.f32.mrf.mxu0
  %v523 = vadd.f32 0.0, %v522
  %v524 = vpop.f32.mrf.mxu0
  %v525 = vadd.f32 0.0, %v524
  %526 = vmatmul.bf16.gmra.mxu0 %v489
  %v527 = vpop.f32.mrf.mxu0
  %v528 = vadd.f32 0.0, %v527
  %v529 = vpop.f32.mrf.mxu0
  %v530 = vadd.f32 0.0, %v529
  %531 = vdwg.mxu0
  %v540 = vunpack.c.l.b16 %v275
  %v541 = vunpack.c.l.b16 %v276
  %v542 = vunpack.c.l.b16 %v277
  %v543 = vunpack.c.l.b16 %v278
  %v544 = vunpack.c.l.b16 %v279
  %v545 = vunpack.c.l.b16 %v280
  %v546 = vunpack.c.l.b16 %v281
  %v547 = vunpack.c.l.b16 %v282
  %v548 = vpack.c.b16 %v541, %v540
  %v549 = vpack.c.b16 %v543, %v542
  %v550 = vpack.c.b16 %v545, %v544
  %v551 = vpack.c.b16 %v547, %v546
  %552 = vrot.lane.b32.xlu0 %v548, 96
  %v553 = vpop.permute.xlu0 %552
  %554 = vrot.lane.b32.xlu0 %v549, 96
  %v555 = vpop.permute.xlu0 %554
  %556 = vrot.lane.b32.xlu0 %v550, 96
  %v557 = vpop.permute.xlu0 %556
  %558 = vrot.lane.b32.xlu0 %v551, 96
  %v559 = vpop.permute.xlu0 %558
  %v561 = vsel %vm316, %v548, 0
  %v564 = vsel %vm316, %v549, 0
  %v567 = vsel %vm316, %v550, 0
  %v570 = vsel %vm316, %v551, 0
  %v573 = vsel %vm316, %v553, 0
  %v576 = vsel %vm316, %v555, 0
  %v579 = vsel %vm316, %v557, 0
  %v582 = vsel %vm316, %v559, 0
  %584 = vmatpush.bf16.xpose.msra.mxu0 0
  %585 = vmatpush.bf16.xpose.msra.mxu0 0
  %586 = vmatpush.bf16.xpose.msra.mxu0 0
  %587 = vmatpush.bf16.xpose.msra.mxu0 0
  %588 = vmatpush.bf16.xpose.msra.mxu0 %v582
  %589 = vmatpush.bf16.xpose.msra.mxu0 %v579
  %590 = vmatpush.bf16.xpose.msra.mxu0 %v576
  %591 = vmatpush.bf16.xpose.msra.mxu0 %v573
  %592 = vmatmul.bf16.gmra.mxu0 %v561
  %v593 = vpop.f32.mrf.mxu0
  %v594 = vadd.f32 0.0, %v593
  %v595 = vpop.f32.mrf.mxu0
  %v596 = vadd.f32 0.0, %v595
  %597 = vmatmul.bf16.gmra.mxu0 %v564
  %v598 = vpop.f32.mrf.mxu0
  %v599 = vadd.f32 0.0, %v598
  %v600 = vpop.f32.mrf.mxu0
  %v601 = vadd.f32 0.0, %v600
  %602 = vmatmul.bf16.gmra.mxu0 %v567
  %v603 = vpop.f32.mrf.mxu0
  %v604 = vadd.f32 0.0, %v603
  %v605 = vpop.f32.mrf.mxu0
  %v606 = vadd.f32 0.0, %v605
  %607 = vmatmul.bf16.gmra.mxu0 %v570
  %v608 = vpop.f32.mrf.mxu0
  %v609 = vadd.f32 0.0, %v608
  %v610 = vpop.f32.mrf.mxu0
  %v611 = vadd.f32 0.0, %v610
  %612 = vdwg.mxu0
  %vm613 = vcmask 523264
  %v614 = vsel %vm613, %v351, -inf
  %615 = vmax.xlane.f32.xlu0 %v614
  %v616 = vpop.xlane.xlu0 %615
  %v617 = vsel %vm613, %v353, -inf
  %618 = vmax.xlane.f32.xlu0 %v617
  %v619 = vpop.xlane.xlu0 %618
  %v620 = vsel %vm613, %v356, -inf
  %621 = vmax.xlane.f32.xlu0 %v620
  %v622 = vpop.xlane.xlu0 %621
  %v623 = vsel %vm613, %v358, -inf
  %624 = vmax.xlane.f32.xlu0 %v623
  %v625 = vpop.xlane.xlu0 %624
  %v626 = vsel %vm613, %v361, -inf
  %627 = vmax.xlane.f32.xlu0 %v626
  %v628 = vpop.xlane.xlu0 %627
  %v629 = vsel %vm613, %v363, -inf
  %630 = vmax.xlane.f32.xlu0 %v629
  %v631 = vpop.xlane.xlu0 %630
  %v632 = vsel %vm613, %v366, -inf
  %633 = vmax.xlane.f32.xlu0 %v632
  %v634 = vpop.xlane.xlu0 %633
  %v635 = vsel %vm613, %v368, -inf
  %636 = vmax.xlane.f32.xlu0 %v635
  %v637 = vpop.xlane.xlu0 %636
  %v638 = vsel %vm613, %v432, -inf
  %639 = vmax.xlane.f32.xlu0 %v638
  %v640 = vpop.xlane.xlu0 %639
  %v641 = vsel %vm613, %v434, -inf
  %642 = vmax.xlane.f32.xlu0 %v641
  %v643 = vpop.xlane.xlu0 %642
  %v644 = vsel %vm613, %v437, -inf
  %645 = vmax.xlane.f32.xlu0 %v644
  %v646 = vpop.xlane.xlu0 %645
  %v647 = vsel %vm613, %v439, -inf
  %648 = vmax.xlane.f32.xlu0 %v647
  %v649 = vpop.xlane.xlu0 %648
  %v650 = vsel %vm613, %v442, -inf
  %651 = vmax.xlane.f32.xlu0 %v650
  %v652 = vpop.xlane.xlu0 %651
  %v653 = vsel %vm613, %v444, -inf
  %654 = vmax.xlane.f32.xlu0 %v653
  %v655 = vpop.xlane.xlu0 %654
  %v656 = vsel %vm613, %v447, -inf
  %657 = vmax.xlane.f32.xlu0 %v656
  %v658 = vpop.xlane.xlu0 %657
  %v659 = vsel %vm613, %v449, -inf
  %660 = vmax.xlane.f32.xlu0 %v659
  %v661 = vpop.xlane.xlu0 %660
  %v662 = vsel %vm613, %v513, -inf
  %663 = vmax.xlane.f32.xlu0 %v662
  %v664 = vpop.xlane.xlu0 %663
  %v665 = vsel %vm613, %v515, -inf
  %666 = vmax.xlane.f32.xlu0 %v665
  %v667 = vpop.xlane.xlu0 %666
  %v668 = vsel %vm613, %v518, -inf
  %669 = vmax.xlane.f32.xlu0 %v668
  %v670 = vpop.xlane.xlu0 %669
  %v671 = vsel %vm613, %v520, -inf
  %672 = vmax.xlane.f32.xlu0 %v671
  %v673 = vpop.xlane.xlu0 %672
  %v674 = vsel %vm613, %v523, -inf
  %675 = vmax.xlane.f32.xlu0 %v674
  %v676 = vpop.xlane.xlu0 %675
  %v677 = vsel %vm613, %v525, -inf
  %678 = vmax.xlane.f32.xlu0 %v677
  %v679 = vpop.xlane.xlu0 %678
  %v680 = vsel %vm613, %v528, -inf
  %681 = vmax.xlane.f32.xlu0 %v680
  %v682 = vpop.xlane.xlu0 %681
  %v683 = vsel %vm613, %v530, -inf
  %684 = vmax.xlane.f32.xlu0 %v683
  %v685 = vpop.xlane.xlu0 %684
  %v686 = vsel %vm613, %v594, -inf
  %687 = vmax.xlane.f32.xlu0 %v686
  %v688 = vpop.xlane.xlu0 %687
  %v689 = vsel %vm613, %v596, -inf
  %690 = vmax.xlane.f32.xlu0 %v689
  %v691 = vpop.xlane.xlu0 %690
  %v692 = vsel %vm613, %v599, -inf
  %693 = vmax.xlane.f32.xlu0 %v692
  %v694 = vpop.xlane.xlu0 %693
  %v695 = vsel %vm613, %v601, -inf
  %696 = vmax.xlane.f32.xlu0 %v695
  %v697 = vpop.xlane.xlu0 %696
  %v698 = vsel %vm613, %v604, -inf
  %699 = vmax.xlane.f32.xlu0 %v698
  %v700 = vpop.xlane.xlu0 %699
  %v701 = vsel %vm613, %v606, -inf
  %702 = vmax.xlane.f32.xlu0 %v701
  %v703 = vpop.xlane.xlu0 %702
  %v704 = vsel %vm613, %v609, -inf
  %705 = vmax.xlane.f32.xlu0 %v704
  %v706 = vpop.xlane.xlu0 %705
  %v707 = vsel %vm613, %v611, -inf
  %708 = vmax.xlane.f32.xlu0 %v707
  %v709 = vpop.xlane.xlu0 %708
  %v710 = vsub.f32 %v351, %v616
  %v711 = vsub.f32 %v353, %v619
  %v712 = vsub.f32 %v356, %v622
  %v713 = vsub.f32 %v358, %v625
  %v714 = vsub.f32 %v361, %v628
  %v715 = vsub.f32 %v363, %v631
  %v716 = vsub.f32 %v366, %v634
  %v717 = vsub.f32 %v368, %v637
  %v718 = vsub.f32 %v432, %v640
  %v719 = vsub.f32 %v434, %v643
  %v720 = vsub.f32 %v437, %v646
  %v721 = vsub.f32 %v439, %v649
  %v722 = vsub.f32 %v442, %v652
  %v723 = vsub.f32 %v444, %v655
  %v724 = vsub.f32 %v447, %v658
  %v725 = vsub.f32 %v449, %v661
  %v726 = vsub.f32 %v513, %v664
  %v727 = vsub.f32 %v515, %v667
  %v728 = vsub.f32 %v518, %v670
  %v729 = vsub.f32 %v520, %v673
  %v730 = vsub.f32 %v523, %v676
  %v731 = vsub.f32 %v525, %v679
  %v732 = vsub.f32 %v528, %v682
  %v733 = vsub.f32 %v530, %v685
  %v734 = vsub.f32 %v594, %v688
  %v735 = vsub.f32 %v596, %v691
  %v736 = vsub.f32 %v599, %v694
  %v737 = vsub.f32 %v601, %v697
  %v738 = vsub.f32 %v604, %v700
  %v739 = vsub.f32 %v606, %v703
  %v740 = vsub.f32 %v609, %v706
  %v741 = vsub.f32 %v611, %v709
  %v742 = vmul.f32 %v710, 1.442695
  %v743 = vpow.pop %v742
  %v744 = vmul.f32 %v711, 1.442695
  %v745 = vpow.pop %v744
  %v746 = vmul.f32 %v712, 1.442695
  %v747 = vpow.pop %v746
  %v748 = vmul.f32 %v713, 1.442695
  %v749 = vpow.pop %v748
  %v750 = vmul.f32 %v714, 1.442695
  %v751 = vpow.pop %v750
  %v752 = vmul.f32 %v715, 1.442695
  %v753 = vpow.pop %v752
  %v754 = vmul.f32 %v716, 1.442695
  %v755 = vpow.pop %v754
  %v756 = vmul.f32 %v717, 1.442695
  %v757 = vpow.pop %v756
  %v758 = vmul.f32 %v718, 1.442695
  %v759 = vpow.pop %v758
  %v760 = vmul.f32 %v719, 1.442695
  %v761 = vpow.pop %v760
  %v762 = vmul.f32 %v720, 1.442695
  %v763 = vpow.pop %v762
  %v764 = vmul.f32 %v721, 1.442695
  %v765 = vpow.pop %v764
  %v766 = vmul.f32 %v722, 1.442695
  %v767 = vpow.pop %v766
  %v768 = vmul.f32 %v723, 1.442695
  %v769 = vpow.pop %v768
  %v770 = vmul.f32 %v724, 1.442695
  %v771 = vpow.pop %v770
  %v772 = vmul.f32 %v725, 1.442695
  %v773 = vpow.pop %v772
  %v774 = vmul.f32 %v726, 1.442695
  %v775 = vpow.pop %v774
  %v776 = vmul.f32 %v727, 1.442695
  %v777 = vpow.pop %v776
  %v778 = vmul.f32 %v728, 1.442695
  %v779 = vpow.pop %v778
  %v780 = vmul.f32 %v729, 1.442695
  %v781 = vpow.pop %v780
  %v782 = vmul.f32 %v730, 1.442695
  %v783 = vpow.pop %v782
  %v784 = vmul.f32 %v731, 1.442695
  %v785 = vpow.pop %v784
  %v786 = vmul.f32 %v732, 1.442695
  %v787 = vpow.pop %v786
  %v788 = vmul.f32 %v733, 1.442695
  %v789 = vpow.pop %v788
  %v790 = vmul.f32 %v734, 1.442695
  %v791 = vpow.pop %v790
  %v792 = vmul.f32 %v735, 1.442695
  %v793 = vpow.pop %v792
  %v794 = vmul.f32 %v736, 1.442695
  %v795 = vpow.pop %v794
  %v796 = vmul.f32 %v737, 1.442695
  %v797 = vpow.pop %v796
  %v798 = vmul.f32 %v738, 1.442695
  %v799 = vpow.pop %v798
  %v800 = vmul.f32 %v739, 1.442695
  %v801 = vpow.pop %v800
  %v802 = vmul.f32 %v740, 1.442695
  %v803 = vpow.pop %v802
  %v804 = vmul.f32 %v741, 1.442695
  %v805 = vpow.pop %v804
  %v806 = vsel %vm613, %v743, 0.0
  %807 = vadd.xlane.f32.xlu0 %v806
  %v808 = vpop.xlane.xlu0 %807
  %v809 = vsel %vm613, %v745, 0.0
  %810 = vadd.xlane.f32.xlu0 %v809
  %v811 = vpop.xlane.xlu0 %810
  %v812 = vsel %vm613, %v747, 0.0
  %813 = vadd.xlane.f32.xlu0 %v812
  %v814 = vpop.xlane.xlu0 %813
  %v815 = vsel %vm613, %v749, 0.0
  %816 = vadd.xlane.f32.xlu0 %v815
  %v817 = vpop.xlane.xlu0 %816
  %v818 = vsel %vm613, %v751, 0.0
  %819 = vadd.xlane.f32.xlu0 %v818
  %v820 = vpop.xlane.xlu0 %819
  %v821 = vsel %vm613, %v753, 0.0
  %822 = vadd.xlane.f32.xlu0 %v821
  %v823 = vpop.xlane.xlu0 %822
  %v824 = vsel %vm613, %v755, 0.0
  %825 = vadd.xlane.f32.xlu0 %v824
  %v826 = vpop.xlane.xlu0 %825
  %v827 = vsel %vm613, %v757, 0.0
  %828 = vadd.xlane.f32.xlu0 %v827
  %v829 = vpop.xlane.xlu0 %828
  %v830 = vsel %vm613, %v759, 0.0
  %831 = vadd.xlane.f32.xlu0 %v830
  %v832 = vpop.xlane.xlu0 %831
  %v833 = vsel %vm613, %v761, 0.0
  %834 = vadd.xlane.f32.xlu0 %v833
  %v835 = vpop.xlane.xlu0 %834
  %v836 = vsel %vm613, %v763, 0.0
  %837 = vadd.xlane.f32.xlu0 %v836
  %v838 = vpop.xlane.xlu0 %837
  %v839 = vsel %vm613, %v765, 0.0
  %840 = vadd.xlane.f32.xlu0 %v839
  %v841 = vpop.xlane.xlu0 %840
  %v842 = vsel %vm613, %v767, 0.0
  %843 = vadd.xlane.f32.xlu0 %v842
  %v844 = vpop.xlane.xlu0 %843
  %v845 = vsel %vm613, %v769, 0.0
  %846 = vadd.xlane.f32.xlu0 %v845
  %v847 = vpop.xlane.xlu0 %846
  %v848 = vsel %vm613, %v771, 0.0
  %849 = vadd.xlane.f32.xlu0 %v848
  %v850 = vpop.xlane.xlu0 %849
  %v851 = vsel %vm613, %v773, 0.0
  %852 = vadd.xlane.f32.xlu0 %v851
  %v853 = vpop.xlane.xlu0 %852
  %v854 = vsel %vm613, %v775, 0.0
  %855 = vadd.xlane.f32.xlu0 %v854
  %v856 = vpop.xlane.xlu0 %855
  %v857 = vsel %vm613, %v777, 0.0
  %858 = vadd.xlane.f32.xlu0 %v857
  %v859 = vpop.xlane.xlu0 %858
  %v860 = vsel %vm613, %v779, 0.0
  %861 = vadd.xlane.f32.xlu0 %v860
  %v862 = vpop.xlane.xlu0 %861
  %v863 = vsel %vm613, %v781, 0.0
  %864 = vadd.xlane.f32.xlu0 %v863
  %v865 = vpop.xlane.xlu0 %864
  %v866 = vsel %vm613, %v783, 0.0
  %867 = vadd.xlane.f32.xlu0 %v866
  %v868 = vpop.xlane.xlu0 %867
  %v869 = vsel %vm613, %v785, 0.0
  %870 = vadd.xlane.f32.xlu0 %v869
  %v871 = vpop.xlane.xlu0 %870
  %v872 = vsel %vm613, %v787, 0.0
  %873 = vadd.xlane.f32.xlu0 %v872
  %v874 = vpop.xlane.xlu0 %873
  %v875 = vsel %vm613, %v789, 0.0
  %876 = vadd.xlane.f32.xlu0 %v875
  %v877 = vpop.xlane.xlu0 %876
  %v878 = vsel %vm613, %v791, 0.0
  %879 = vadd.xlane.f32.xlu0 %v878
  %v880 = vpop.xlane.xlu0 %879
  %v881 = vsel %vm613, %v793, 0.0
  %882 = vadd.xlane.f32.xlu0 %v881
  %v883 = vpop.xlane.xlu0 %882
  %v884 = vsel %vm613, %v795, 0.0
  %885 = vadd.xlane.f32.xlu0 %v884
  %v886 = vpop.xlane.xlu0 %885
  %v887 = vsel %vm613, %v797, 0.0
  %888 = vadd.xlane.f32.xlu0 %v887
  %v889 = vpop.xlane.xlu0 %888
  %v890 = vsel %vm613, %v799, 0.0
  %891 = vadd.xlane.f32.xlu0 %v890
  %v892 = vpop.xlane.xlu0 %891
  %v893 = vsel %vm613, %v801, 0.0
  %894 = vadd.xlane.f32.xlu0 %v893
  %v895 = vpop.xlane.xlu0 %894
  %v896 = vsel %vm613, %v803, 0.0
  %897 = vadd.xlane.f32.xlu0 %v896
  %v898 = vpop.xlane.xlu0 %897
  %v899 = vsel %vm613, %v805, 0.0
  %900 = vadd.xlane.f32.xlu0 %v899
  %v901 = vpop.xlane.xlu0 %900
  %v902 = vrcp.pop %v808
  %v903 = vmul.f32 %v808, %v902
  %v904 = vsub.f32 1.0, %v903
  %v905 = vmul.f32 %v902, %v904
  %v906 = vadd.f32 %v902, %v905
  %vm907 = vweird.f32 %v808
  %vm908 = vweird.f32 %v902
  %vm909 = vmor %vm907, %vm908
  %v910 = vsel %vm909, %v902, %v906
  %v911 = vand.u32 2147483647, %v808
  %vm912 = vcmp.eq.f32.partialorder %v911, 8.507059e+37
  %v913 = vand.u32 %v808, 2147483648
  %v914 = vor.u32 1.1754944e-38, %v913
  %v915 = vsel %vm912, %v914, %v910
  %v916 = vmul.f32 %v743, %v915
  %v917 = vrcp.pop %v811
  %v918 = vmul.f32 %v811, %v917
  %v919 = vsub.f32 1.0, %v918
  %v920 = vmul.f32 %v917, %v919
  %v921 = vadd.f32 %v917, %v920
  %vm922 = vweird.f32 %v811
  %vm923 = vweird.f32 %v917
  %vm924 = vmor %vm922, %vm923
  %v925 = vsel %vm924, %v917, %v921
  %v926 = vand.u32 2147483647, %v811
  %vm927 = vcmp.eq.f32.partialorder %v926, 8.507059e+37
  %v928 = vand.u32 %v811, 2147483648
  %v929 = vor.u32 1.1754944e-38, %v928
  %v930 = vsel %vm927, %v929, %v925
  %v931 = vmul.f32 %v745, %v930
  %v932 = vrcp.pop %v814
  %v933 = vmul.f32 %v814, %v932
  %v934 = vsub.f32 1.0, %v933
  %v935 = vmul.f32 %v932, %v934
  %v936 = vadd.f32 %v932, %v935
  %vm937 = vweird.f32 %v814
  %vm938 = vweird.f32 %v932
  %vm939 = vmor %vm937, %vm938
  %v940 = vsel %vm939, %v932, %v936
  %v941 = vand.u32 2147483647, %v814
  %vm942 = vcmp.eq.f32.partialorder %v941, 8.507059e+37
  %v943 = vand.u32 %v814, 2147483648
  %v944 = vor.u32 1.1754944e-38, %v943
  %v945 = vsel %vm942, %v944, %v940
  %v946 = vmul.f32 %v747, %v945
  %v947 = vrcp.pop %v817
  %v948 = vmul.f32 %v817, %v947
  %v949 = vsub.f32 1.0, %v948
  %v950 = vmul.f32 %v947, %v949
  %v951 = vadd.f32 %v947, %v950
  %vm952 = vweird.f32 %v817
  %vm953 = vweird.f32 %v947
  %vm954 = vmor %vm952, %vm953
  %v955 = vsel %vm954, %v947, %v951
  %v956 = vand.u32 2147483647, %v817
  %vm957 = vcmp.eq.f32.partialorder %v956, 8.507059e+37
  %v958 = vand.u32 %v817, 2147483648
  %v959 = vor.u32 1.1754944e-38, %v958
  %v960 = vsel %vm957, %v959, %v955
  %v961 = vmul.f32 %v749, %v960
  %v962 = vrcp.pop %v820
  %v963 = vmul.f32 %v820, %v962
  %v964 = vsub.f32 1.0, %v963
  %v965 = vmul.f32 %v962, %v964
  %v966 = vadd.f32 %v962, %v965
  %vm967 = vweird.f32 %v820
  %vm968 = vweird.f32 %v962
  %vm969 = vmor %vm967, %vm968
  %v970 = vsel %vm969, %v962, %v966
  %v971 = vand.u32 2147483647, %v820
  %vm972 = vcmp.eq.f32.partialorder %v971, 8.507059e+37
  %v973 = vand.u32 %v820, 2147483648
  %v974 = vor.u32 1.1754944e-38, %v973
  %v975 = vsel %vm972, %v974, %v970
  %v976 = vmul.f32 %v751, %v975
  %v977 = vrcp.pop %v823
  %v978 = vmul.f32 %v823, %v977
  %v979 = vsub.f32 1.0, %v978
  %v980 = vmul.f32 %v977, %v979
  %v981 = vadd.f32 %v977, %v980
  %vm982 = vweird.f32 %v823
  %vm983 = vweird.f32 %v977
  %vm984 = vmor %vm982, %vm983
  %v985 = vsel %vm984, %v977, %v981
  %v986 = vand.u32 2147483647, %v823
  %vm987 = vcmp.eq.f32.partialorder %v986, 8.507059e+37
  %v988 = vand.u32 %v823, 2147483648
  %v989 = vor.u32 1.1754944e-38, %v988
  %v990 = vsel %vm987, %v989, %v985
  %v991 = vmul.f32 %v753, %v990
  %v992 = vrcp.pop %v826
  %v993 = vmul.f32 %v826, %v992
  %v994 = vsub.f32 1.0, %v993
  %v995 = vmul.f32 %v992, %v994
  %v996 = vadd.f32 %v992, %v995
  %vm997 = vweird.f32 %v826
  %vm998 = vweird.f32 %v992
  %vm999 = vmor %vm997, %vm998
  %v1000 = vsel %vm999, %v992, %v996
  %v1001 = vand.u32 2147483647, %v826
  %vm1002 = vcmp.eq.f32.partialorder %v1001, 8.507059e+37
  %v1003 = vand.u32 %v826, 2147483648
  %v1004 = vor.u32 1.1754944e-38, %v1003
  %v1005 = vsel %vm1002, %v1004, %v1000
  %v1006 = vmul.f32 %v755, %v1005
  %v1007 = vrcp.pop %v829
  %v1008 = vmul.f32 %v829, %v1007
  %v1009 = vsub.f32 1.0, %v1008
  %v1010 = vmul.f32 %v1007, %v1009
  %v1011 = vadd.f32 %v1007, %v1010
  %vm1012 = vweird.f32 %v829
  %vm1013 = vweird.f32 %v1007
  %vm1014 = vmor %vm1012, %vm1013
  %v1015 = vsel %vm1014, %v1007, %v1011
  %v1016 = vand.u32 2147483647, %v829
  %vm1017 = vcmp.eq.f32.partialorder %v1016, 8.507059e+37
  %v1018 = vand.u32 %v829, 2147483648
  %v1019 = vor.u32 1.1754944e-38, %v1018
  %v1020 = vsel %vm1017, %v1019, %v1015
  %v1021 = vmul.f32 %v757, %v1020
  %v1022 = vrcp.pop %v832
  %v1023 = vmul.f32 %v832, %v1022
  %v1024 = vsub.f32 1.0, %v1023
  %v1025 = vmul.f32 %v1022, %v1024
  %v1026 = vadd.f32 %v1022, %v1025
  %vm1027 = vweird.f32 %v832
  %vm1028 = vweird.f32 %v1022
  %vm1029 = vmor %vm1027, %vm1028
  %v1030 = vsel %vm1029, %v1022, %v1026
  %v1031 = vand.u32 2147483647, %v832
  %vm1032 = vcmp.eq.f32.partialorder %v1031, 8.507059e+37
  %v1033 = vand.u32 %v832, 2147483648
  %v1034 = vor.u32 1.1754944e-38, %v1033
  %v1035 = vsel %vm1032, %v1034, %v1030
  %v1036 = vmul.f32 %v759, %v1035
  %v1037 = vrcp.pop %v835
  %v1038 = vmul.f32 %v835, %v1037
  %v1039 = vsub.f32 1.0, %v1038
  %v1040 = vmul.f32 %v1037, %v1039
  %v1041 = vadd.f32 %v1037, %v1040
  %vm1042 = vweird.f32 %v835
  %vm1043 = vweird.f32 %v1037
  %vm1044 = vmor %vm1042, %vm1043
  %v1045 = vsel %vm1044, %v1037, %v1041
  %v1046 = vand.u32 2147483647, %v835
  %vm1047 = vcmp.eq.f32.partialorder %v1046, 8.507059e+37
  %v1048 = vand.u32 %v835, 2147483648
  %v1049 = vor.u32 1.1754944e-38, %v1048
  %v1050 = vsel %vm1047, %v1049, %v1045
  %v1051 = vmul.f32 %v761, %v1050
  %v1052 = vrcp.pop %v838
  %v1053 = vmul.f32 %v838, %v1052
  %v1054 = vsub.f32 1.0, %v1053
  %v1055 = vmul.f32 %v1052, %v1054
  %v1056 = vadd.f32 %v1052, %v1055
  %vm1057 = vweird.f32 %v838
  %vm1058 = vweird.f32 %v1052
  %vm1059 = vmor %vm1057, %vm1058
  %v1060 = vsel %vm1059, %v1052, %v1056
  %v1061 = vand.u32 2147483647, %v838
  %vm1062 = vcmp.eq.f32.partialorder %v1061, 8.507059e+37
  %v1063 = vand.u32 %v838, 2147483648
  %v1064 = vor.u32 1.1754944e-38, %v1063
  %v1065 = vsel %vm1062, %v1064, %v1060
  %v1066 = vmul.f32 %v763, %v1065
  %v1067 = vrcp.pop %v841
  %v1068 = vmul.f32 %v841, %v1067
  %v1069 = vsub.f32 1.0, %v1068
  %v1070 = vmul.f32 %v1067, %v1069
  %v1071 = vadd.f32 %v1067, %v1070
  %vm1072 = vweird.f32 %v841
  %vm1073 = vweird.f32 %v1067
  %vm1074 = vmor %vm1072, %vm1073
  %v1075 = vsel %vm1074, %v1067, %v1071
  %v1076 = vand.u32 2147483647, %v841
  %vm1077 = vcmp.eq.f32.partialorder %v1076, 8.507059e+37
  %v1078 = vand.u32 %v841, 2147483648
  %v1079 = vor.u32 1.1754944e-38, %v1078
  %v1080 = vsel %vm1077, %v1079, %v1075
  %v1081 = vmul.f32 %v765, %v1080
  %v1082 = vrcp.pop %v844
  %v1083 = vmul.f32 %v844, %v1082
  %v1084 = vsub.f32 1.0, %v1083
  %v1085 = vmul.f32 %v1082, %v1084
  %v1086 = vadd.f32 %v1082, %v1085
  %vm1087 = vweird.f32 %v844
  %vm1088 = vweird.f32 %v1082
  %vm1089 = vmor %vm1087, %vm1088
  %v1090 = vsel %vm1089, %v1082, %v1086
  %v1091 = vand.u32 2147483647, %v844
  %vm1092 = vcmp.eq.f32.partialorder %v1091, 8.507059e+37
  %v1093 = vand.u32 %v844, 2147483648
  %v1094 = vor.u32 1.1754944e-38, %v1093
  %v1095 = vsel %vm1092, %v1094, %v1090
  %v1096 = vmul.f32 %v767, %v1095
  %v1097 = vrcp.pop %v847
  %v1098 = vmul.f32 %v847, %v1097
  %v1099 = vsub.f32 1.0, %v1098
  %v1100 = vmul.f32 %v1097, %v1099
  %v1101 = vadd.f32 %v1097, %v1100
  %vm1102 = vweird.f32 %v847
  %vm1103 = vweird.f32 %v1097
  %vm1104 = vmor %vm1102, %vm1103
  %v1105 = vsel %vm1104, %v1097, %v1101
  %v1106 = vand.u32 2147483647, %v847
  %vm1107 = vcmp.eq.f32.partialorder %v1106, 8.507059e+37
  %v1108 = vand.u32 %v847, 2147483648
  %v1109 = vor.u32 1.1754944e-38, %v1108
  %v1110 = vsel %vm1107, %v1109, %v1105
  %v1111 = vmul.f32 %v769, %v1110
  %v1112 = vrcp.pop %v850
  %v1113 = vmul.f32 %v850, %v1112
  %v1114 = vsub.f32 1.0, %v1113
  %v1115 = vmul.f32 %v1112, %v1114
  %v1116 = vadd.f32 %v1112, %v1115
  %vm1117 = vweird.f32 %v850
  %vm1118 = vweird.f32 %v1112
  %vm1119 = vmor %vm1117, %vm1118
  %v1120 = vsel %vm1119, %v1112, %v1116
  %v1121 = vand.u32 2147483647, %v850
  %vm1122 = vcmp.eq.f32.partialorder %v1121, 8.507059e+37
  %v1123 = vand.u32 %v850, 2147483648
  %v1124 = vor.u32 1.1754944e-38, %v1123
  %v1125 = vsel %vm1122, %v1124, %v1120
  %v1126 = vmul.f32 %v771, %v1125
  %v1127 = vrcp.pop %v853
  %v1128 = vmul.f32 %v853, %v1127
  %v1129 = vsub.f32 1.0, %v1128
  %v1130 = vmul.f32 %v1127, %v1129
  %v1131 = vadd.f32 %v1127, %v1130
  %vm1132 = vweird.f32 %v853
  %vm1133 = vweird.f32 %v1127
  %vm1134 = vmor %vm1132, %vm1133
  %v1135 = vsel %vm1134, %v1127, %v1131
  %v1136 = vand.u32 2147483647, %v853
  %vm1137 = vcmp.eq.f32.partialorder %v1136, 8.507059e+37
  %v1138 = vand.u32 %v853, 2147483648
  %v1139 = vor.u32 1.1754944e-38, %v1138
  %v1140 = vsel %vm1137, %v1139, %v1135
  %v1141 = vmul.f32 %v773, %v1140
  %v1142 = vrcp.pop %v856
  %v1143 = vmul.f32 %v856, %v1142
  %v1144 = vsub.f32 1.0, %v1143
  %v1145 = vmul.f32 %v1142, %v1144
  %v1146 = vadd.f32 %v1142, %v1145
  %vm1147 = vweird.f32 %v856
  %vm1148 = vweird.f32 %v1142
  %vm1149 = vmor %vm1147, %vm1148
  %v1150 = vsel %vm1149, %v1142, %v1146
  %v1151 = vand.u32 2147483647, %v856
  %vm1152 = vcmp.eq.f32.partialorder %v1151, 8.507059e+37
  %v1153 = vand.u32 %v856, 2147483648
  %v1154 = vor.u32 1.1754944e-38, %v1153
  %v1155 = vsel %vm1152, %v1154, %v1150
  %v1156 = vmul.f32 %v775, %v1155
  %v1157 = vrcp.pop %v859
  %v1158 = vmul.f32 %v859, %v1157
  %v1159 = vsub.f32 1.0, %v1158
  %v1160 = vmul.f32 %v1157, %v1159
  %v1161 = vadd.f32 %v1157, %v1160
  %vm1162 = vweird.f32 %v859
  %vm1163 = vweird.f32 %v1157
  %vm1164 = vmor %vm1162, %vm1163
  %v1165 = vsel %vm1164, %v1157, %v1161
  %v1166 = vand.u32 2147483647, %v859
  %vm1167 = vcmp.eq.f32.partialorder %v1166, 8.507059e+37
  %v1168 = vand.u32 %v859, 2147483648
  %v1169 = vor.u32 1.1754944e-38, %v1168
  %v1170 = vsel %vm1167, %v1169, %v1165
  %v1171 = vmul.f32 %v777, %v1170
  %v1172 = vrcp.pop %v862
  %v1173 = vmul.f32 %v862, %v1172
  %v1174 = vsub.f32 1.0, %v1173
  %v1175 = vmul.f32 %v1172, %v1174
  %v1176 = vadd.f32 %v1172, %v1175
  %vm1177 = vweird.f32 %v862
  %vm1178 = vweird.f32 %v1172
  %vm1179 = vmor %vm1177, %vm1178
  %v1180 = vsel %vm1179, %v1172, %v1176
  %v1181 = vand.u32 2147483647, %v862
  %vm1182 = vcmp.eq.f32.partialorder %v1181, 8.507059e+37
  %v1183 = vand.u32 %v862, 2147483648
  %v1184 = vor.u32 1.1754944e-38, %v1183
  %v1185 = vsel %vm1182, %v1184, %v1180
  %v1186 = vmul.f32 %v779, %v1185
  %v1187 = vrcp.pop %v865
  %v1188 = vmul.f32 %v865, %v1187
  %v1189 = vsub.f32 1.0, %v1188
  %v1190 = vmul.f32 %v1187, %v1189
  %v1191 = vadd.f32 %v1187, %v1190
  %vm1192 = vweird.f32 %v865
  %vm1193 = vweird.f32 %v1187
  %vm1194 = vmor %vm1192, %vm1193
  %v1195 = vsel %vm1194, %v1187, %v1191
  %v1196 = vand.u32 2147483647, %v865
  %vm1197 = vcmp.eq.f32.partialorder %v1196, 8.507059e+37
  %v1198 = vand.u32 %v865, 2147483648
  %v1199 = vor.u32 1.1754944e-38, %v1198
  %v1200 = vsel %vm1197, %v1199, %v1195
  %v1201 = vmul.f32 %v781, %v1200
  %v1202 = vrcp.pop %v868
  %v1203 = vmul.f32 %v868, %v1202
  %v1204 = vsub.f32 1.0, %v1203
  %v1205 = vmul.f32 %v1202, %v1204
  %v1206 = vadd.f32 %v1202, %v1205
  %vm1207 = vweird.f32 %v868
  %vm1208 = vweird.f32 %v1202
  %vm1209 = vmor %vm1207, %vm1208
  %v1210 = vsel %vm1209, %v1202, %v1206
  %v1211 = vand.u32 2147483647, %v868
  %vm1212 = vcmp.eq.f32.partialorder %v1211, 8.507059e+37
  %v1213 = vand.u32 %v868, 2147483648
  %v1214 = vor.u32 1.1754944e-38, %v1213
  %v1215 = vsel %vm1212, %v1214, %v1210
  %v1216 = vmul.f32 %v783, %v1215
  %v1217 = vrcp.pop %v871
  %v1218 = vmul.f32 %v871, %v1217
  %v1219 = vsub.f32 1.0, %v1218
  %v1220 = vmul.f32 %v1217, %v1219
  %v1221 = vadd.f32 %v1217, %v1220
  %vm1222 = vweird.f32 %v871
  %vm1223 = vweird.f32 %v1217
  %vm1224 = vmor %vm1222, %vm1223
  %v1225 = vsel %vm1224, %v1217, %v1221
  %v1226 = vand.u32 2147483647, %v871
  %vm1227 = vcmp.eq.f32.partialorder %v1226, 8.507059e+37
  %v1228 = vand.u32 %v871, 2147483648
  %v1229 = vor.u32 1.1754944e-38, %v1228
  %v1230 = vsel %vm1227, %v1229, %v1225
  %v1231 = vmul.f32 %v785, %v1230
  %v1232 = vrcp.pop %v874
  %v1233 = vmul.f32 %v874, %v1232
  %v1234 = vsub.f32 1.0, %v1233
  %v1235 = vmul.f32 %v1232, %v1234
  %v1236 = vadd.f32 %v1232, %v1235
  %vm1237 = vweird.f32 %v874
  %vm1238 = vweird.f32 %v1232
  %vm1239 = vmor %vm1237, %vm1238
  %v1240 = vsel %vm1239, %v1232, %v1236
  %v1241 = vand.u32 2147483647, %v874
  %vm1242 = vcmp.eq.f32.partialorder %v1241, 8.507059e+37
  %v1243 = vand.u32 %v874, 2147483648
  %v1244 = vor.u32 1.1754944e-38, %v1243
  %v1245 = vsel %vm1242, %v1244, %v1240
  %v1246 = vmul.f32 %v787, %v1245
  %v1247 = vrcp.pop %v877
  %v1248 = vmul.f32 %v877, %v1247
  %v1249 = vsub.f32 1.0, %v1248
  %v1250 = vmul.f32 %v1247, %v1249
  %v1251 = vadd.f32 %v1247, %v1250
  %vm1252 = vweird.f32 %v877
  %vm1253 = vweird.f32 %v1247
  %vm1254 = vmor %vm1252, %vm1253
  %v1255 = vsel %vm1254, %v1247, %v1251
  %v1256 = vand.u32 2147483647, %v877
  %vm1257 = vcmp.eq.f32.partialorder %v1256, 8.507059e+37
  %v1258 = vand.u32 %v877, 2147483648
  %v1259 = vor.u32 1.1754944e-38, %v1258
  %v1260 = vsel %vm1257, %v1259, %v1255
  %v1261 = vmul.f32 %v789, %v1260
  %v1262 = vrcp.pop %v880
  %v1263 = vmul.f32 %v880, %v1262
  %v1264 = vsub.f32 1.0, %v1263
  %v1265 = vmul.f32 %v1262, %v1264
  %v1266 = vadd.f32 %v1262, %v1265
  %vm1267 = vweird.f32 %v880
  %vm1268 = vweird.f32 %v1262
  %vm1269 = vmor %vm1267, %vm1268
  %v1270 = vsel %vm1269, %v1262, %v1266
  %v1271 = vand.u32 2147483647, %v880
  %vm1272 = vcmp.eq.f32.partialorder %v1271, 8.507059e+37
  %v1273 = vand.u32 %v880, 2147483648
  %v1274 = vor.u32 1.1754944e-38, %v1273
  %v1275 = vsel %vm1272, %v1274, %v1270
  %v1276 = vmul.f32 %v791, %v1275
  %v1277 = vrcp.pop %v883
  %v1278 = vmul.f32 %v883, %v1277
  %v1279 = vsub.f32 1.0, %v1278
  %v1280 = vmul.f32 %v1277, %v1279
  %v1281 = vadd.f32 %v1277, %v1280
  %vm1282 = vweird.f32 %v883
  %vm1283 = vweird.f32 %v1277
  %vm1284 = vmor %vm1282, %vm1283
  %v1285 = vsel %vm1284, %v1277, %v1281
  %v1286 = vand.u32 2147483647, %v883
  %vm1287 = vcmp.eq.f32.partialorder %v1286, 8.507059e+37
  %v1288 = vand.u32 %v883, 2147483648
  %v1289 = vor.u32 1.1754944e-38, %v1288
  %v1290 = vsel %vm1287, %v1289, %v1285
  %v1291 = vmul.f32 %v793, %v1290
  %v1292 = vrcp.pop %v886
  %v1293 = vmul.f32 %v886, %v1292
  %v1294 = vsub.f32 1.0, %v1293
  %v1295 = vmul.f32 %v1292, %v1294
  %v1296 = vadd.f32 %v1292, %v1295
  %vm1297 = vweird.f32 %v886
  %vm1298 = vweird.f32 %v1292
  %vm1299 = vmor %vm1297, %vm1298
  %v1300 = vsel %vm1299, %v1292, %v1296
  %v1301 = vand.u32 2147483647, %v886
  %vm1302 = vcmp.eq.f32.partialorder %v1301, 8.507059e+37
  %v1303 = vand.u32 %v886, 2147483648
  %v1304 = vor.u32 1.1754944e-38, %v1303
  %v1305 = vsel %vm1302, %v1304, %v1300
  %v1306 = vmul.f32 %v795, %v1305
  %v1307 = vrcp.pop %v889
  %v1308 = vmul.f32 %v889, %v1307
  %v1309 = vsub.f32 1.0, %v1308
  %v1310 = vmul.f32 %v1307, %v1309
  %v1311 = vadd.f32 %v1307, %v1310
  %vm1312 = vweird.f32 %v889
  %vm1313 = vweird.f32 %v1307
  %vm1314 = vmor %vm1312, %vm1313
  %v1315 = vsel %vm1314, %v1307, %v1311
  %v1316 = vand.u32 2147483647, %v889
  %vm1317 = vcmp.eq.f32.partialorder %v1316, 8.507059e+37
  %v1318 = vand.u32 %v889, 2147483648
  %v1319 = vor.u32 1.1754944e-38, %v1318
  %v1320 = vsel %vm1317, %v1319, %v1315
  %v1321 = vmul.f32 %v797, %v1320
  %v1322 = vrcp.pop %v892
  %v1323 = vmul.f32 %v892, %v1322
  %v1324 = vsub.f32 1.0, %v1323
  %v1325 = vmul.f32 %v1322, %v1324
  %v1326 = vadd.f32 %v1322, %v1325
  %vm1327 = vweird.f32 %v892
  %vm1328 = vweird.f32 %v1322
  %vm1329 = vmor %vm1327, %vm1328
  %v1330 = vsel %vm1329, %v1322, %v1326
  %v1331 = vand.u32 2147483647, %v892
  %vm1332 = vcmp.eq.f32.partialorder %v1331, 8.507059e+37
  %v1333 = vand.u32 %v892, 2147483648
  %v1334 = vor.u32 1.1754944e-38, %v1333
  %v1335 = vsel %vm1332, %v1334, %v1330
  %v1336 = vmul.f32 %v799, %v1335
  %v1337 = vrcp.pop %v895
  %v1338 = vmul.f32 %v895, %v1337
  %v1339 = vsub.f32 1.0, %v1338
  %v1340 = vmul.f32 %v1337, %v1339
  %v1341 = vadd.f32 %v1337, %v1340
  %vm1342 = vweird.f32 %v895
  %vm1343 = vweird.f32 %v1337
  %vm1344 = vmor %vm1342, %vm1343
  %v1345 = vsel %vm1344, %v1337, %v1341
  %v1346 = vand.u32 2147483647, %v895
  %vm1347 = vcmp.eq.f32.partialorder %v1346, 8.507059e+37
  %v1348 = vand.u32 %v895, 2147483648
  %v1349 = vor.u32 1.1754944e-38, %v1348
  %v1350 = vsel %vm1347, %v1349, %v1345
  %v1351 = vmul.f32 %v801, %v1350
  %v1352 = vrcp.pop %v898
  %v1353 = vmul.f32 %v898, %v1352
  %v1354 = vsub.f32 1.0, %v1353
  %v1355 = vmul.f32 %v1352, %v1354
  %v1356 = vadd.f32 %v1352, %v1355
  %vm1357 = vweird.f32 %v898
  %vm1358 = vweird.f32 %v1352
  %vm1359 = vmor %vm1357, %vm1358
  %v1360 = vsel %vm1359, %v1352, %v1356
  %v1361 = vand.u32 2147483647, %v898
  %vm1362 = vcmp.eq.f32.partialorder %v1361, 8.507059e+37
  %v1363 = vand.u32 %v898, 2147483648
  %v1364 = vor.u32 1.1754944e-38, %v1363
  %v1365 = vsel %vm1362, %v1364, %v1360
  %v1366 = vmul.f32 %v803, %v1365
  %v1367 = vrcp.pop %v901
  %v1368 = vmul.f32 %v901, %v1367
  %v1369 = vsub.f32 1.0, %v1368
  %v1370 = vmul.f32 %v1367, %v1369
  %v1371 = vadd.f32 %v1367, %v1370
  %vm1372 = vweird.f32 %v901
  %vm1373 = vweird.f32 %v1367
  %vm1374 = vmor %vm1372, %vm1373
  %v1375 = vsel %vm1374, %v1367, %v1371
  %v1376 = vand.u32 2147483647, %v901
  %vm1377 = vcmp.eq.f32.partialorder %v1376, 8.507059e+37
  %v1378 = vand.u32 %v901, 2147483648
  %v1379 = vor.u32 1.1754944e-38, %v1378
  %v1380 = vsel %vm1377, %v1379, %v1375
  %v1381 = vmul.f32 %v805, %v1380
  %v1382 = vpack.c.bf16 %v916, %v916
  %v1383 = vpack.c.bf16 %v931, %v931
  %v1384 = vpack.c.bf16 %v946, %v946
  %v1385 = vpack.c.bf16 %v961, %v961
  %v1386 = vpack.c.bf16 %v976, %v976
  %v1387 = vpack.c.bf16 %v991, %v991
  %v1388 = vpack.c.bf16 %v1006, %v1006
  %v1389 = vpack.c.bf16 %v1021, %v1021
  %v1390 = vpack.c.bf16 %v1036, %v1036
  %v1391 = vpack.c.bf16 %v1051, %v1051
  %v1392 = vpack.c.bf16 %v1066, %v1066
  %v1393 = vpack.c.bf16 %v1081, %v1081
  %v1394 = vpack.c.bf16 %v1096, %v1096
  %v1395 = vpack.c.bf16 %v1111, %v1111
  %v1396 = vpack.c.bf16 %v1126, %v1126
  %v1397 = vpack.c.bf16 %v1141, %v1141
  %v1398 = vpack.c.bf16 %v1156, %v1156
  %v1399 = vpack.c.bf16 %v1171, %v1171
  %v1400 = vpack.c.bf16 %v1186, %v1186
  %v1401 = vpack.c.bf16 %v1201, %v1201
  %v1402 = vpack.c.bf16 %v1216, %v1216
  %v1403 = vpack.c.bf16 %v1231, %v1231
  %v1404 = vpack.c.bf16 %v1246, %v1246
  %v1405 = vpack.c.bf16 %v1261, %v1261
  %v1406 = vpack.c.bf16 %v1276, %v1276
  %v1407 = vpack.c.bf16 %v1291, %v1291
  %v1408 = vpack.c.bf16 %v1306, %v1306
  %v1409 = vpack.c.bf16 %v1321, %v1321
  %v1410 = vpack.c.bf16 %v1336, %v1336
  %v1411 = vpack.c.bf16 %v1351, %v1351
  %v1412 = vpack.c.bf16 %v1366, %v1366
  %v1413 = vpack.c.bf16 %v1381, %v1381
  %v1422 = vunpack.c.l.b16 %v1382
  %v1423 = vunpack.c.l.b16 %v1383
  %v1424 = vunpack.c.l.b16 %v1384
  %v1425 = vunpack.c.l.b16 %v1385
  %v1426 = vunpack.c.l.b16 %v1386
  %v1427 = vunpack.c.l.b16 %v1387
  %v1428 = vunpack.c.l.b16 %v1388
  %v1429 = vunpack.c.l.b16 %v1389
  %v1430 = vpack.c.b16 %v1423, %v1422
  %v1431 = vpack.c.b16 %v1425, %v1424
  %v1432 = vpack.c.b16 %v1427, %v1426
  %v1433 = vpack.c.b16 %v1429, %v1428
  %1434 = vrot.lane.b32.xlu0 %v304, 64
  %v1435 = vpop.permute.xlu0 %1434
  %1436 = vrot.lane.b32.xlu0 %v305, 64
  %v1437 = vpop.permute.xlu0 %1436
  %1438 = vrot.lane.b32.xlu0 %v306, 64
  %v1439 = vpop.permute.xlu0 %1438
  %1440 = vrot.lane.b32.xlu0 %v307, 64
  %v1441 = vpop.permute.xlu0 %1440
  %v1447 = vsel %vm613, %v1430, 0
  %v1450 = vsel %vm613, %v1431, 0
  %v1453 = vsel %vm613, %v1432, 0
  %v1456 = vsel %vm613, %v1433, 0
  %1458 = vmatpush.bf16.msra.mxu0 0
  %1459 = vmatpush.bf16.msra.mxu0 0
  %1460 = vmatpush.bf16.msra.mxu0 0
  %1461 = vmatpush.bf16.msra.mxu0 0
  %1462 = vmatpush.bf16.msra.mxu0 %v1441
  %1463 = vmatpush.bf16.msra.mxu0 %v1439
  %1464 = vmatpush.bf16.msra.mxu0 %v1437
  %1465 = vmatpush.bf16.msra.mxu0 %v1435
  %1466 = vmatmul.bf16.gmra.mxu0 %v1447
  %v1467 = vpop.f32.mrf.mxu0
  %v1468 = vadd.f32 0.0, %v1467
  %v1469 = vpop.f32.mrf.mxu0
  %v1470 = vadd.f32 0.0, %v1469
  %1471 = vmatmul.bf16.gmra.mxu0 %v1450
  %v1472 = vpop.f32.mrf.mxu0
  %v1473 = vadd.f32 0.0, %v1472
  %v1474 = vpop.f32.mrf.mxu0
  %v1475 = vadd.f32 0.0, %v1474
  %1476 = vmatmul.bf16.gmra.mxu0 %v1453
  %v1477 = vpop.f32.mrf.mxu0
  %v1478 = vadd.f32 0.0, %v1477
  %v1479 = vpop.f32.mrf.mxu0
  %v1480 = vadd.f32 0.0, %v1479
  %1481 = vmatmul.bf16.gmra.mxu0 %v1456
  %v1482 = vpop.f32.mrf.mxu0
  %v1483 = vadd.f32 0.0, %v1482
  %v1484 = vpop.f32.mrf.mxu0
  %v1485 = vadd.f32 0.0, %v1484
  %1486 = vdwg.mxu0
  %v1495 = vunpack.c.l.b16 %v1390
  %v1496 = vunpack.c.l.b16 %v1391
  %v1497 = vunpack.c.l.b16 %v1392
  %v1498 = vunpack.c.l.b16 %v1393
  %v1499 = vunpack.c.l.b16 %v1394
  %v1500 = vunpack.c.l.b16 %v1395
  %v1501 = vunpack.c.l.b16 %v1396
  %v1502 = vunpack.c.l.b16 %v1397
  %v1503 = vpack.c.b16 %v1496, %v1495
  %v1504 = vpack.c.b16 %v1498, %v1497
  %v1505 = vpack.c.b16 %v1500, %v1499
  %v1506 = vpack.c.b16 %v1502, %v1501
  %1507 = vrot.lane.b32.xlu0 %v386, 64
  %v1508 = vpop.permute.xlu0 %1507
  %1509 = vrot.lane.b32.xlu0 %v387, 64
  %v1510 = vpop.permute.xlu0 %1509
  %1511 = vrot.lane.b32.xlu0 %v388, 64
  %v1512 = vpop.permute.xlu0 %1511
  %1513 = vrot.lane.b32.xlu0 %v389, 64
  %v1514 = vpop.permute.xlu0 %1513
  %v1520 = vsel %vm613, %v1503, 0
  %v1523 = vsel %vm613, %v1504, 0
  %v1526 = vsel %vm613, %v1505, 0
  %v1529 = vsel %vm613, %v1506, 0
  %1531 = vmatpush.bf16.msra.mxu0 0
  %1532 = vmatpush.bf16.msra.mxu0 0
  %1533 = vmatpush.bf16.msra.mxu0 0
  %1534 = vmatpush.bf16.msra.mxu0 0
  %1535 = vmatpush.bf16.msra.mxu0 %v1514
  %1536 = vmatpush.bf16.msra.mxu0 %v1512
  %1537 = vmatpush.bf16.msra.mxu0 %v1510
  %1538 = vmatpush.bf16.msra.mxu0 %v1508
  %1539 = vmatmul.bf16.gmra.mxu0 %v1520
  %v1540 = vpop.f32.mrf.mxu0
  %v1541 = vadd.f32 0.0, %v1540
  %v1542 = vpop.f32.mrf.mxu0
  %v1543 = vadd.f32 0.0, %v1542
  %1544 = vmatmul.bf16.gmra.mxu0 %v1523
  %v1545 = vpop.f32.mrf.mxu0
  %v1546 = vadd.f32 0.0, %v1545
  %v1547 = vpop.f32.mrf.mxu0
  %v1548 = vadd.f32 0.0, %v1547
  %1549 = vmatmul.bf16.gmra.mxu0 %v1526
  %v1550 = vpop.f32.mrf.mxu0
  %v1551 = vadd.f32 0.0, %v1550
  %v1552 = vpop.f32.mrf.mxu0
  %v1553 = vadd.f32 0.0, %v1552
  %1554 = vmatmul.bf16.gmra.mxu0 %v1529
  %v1555 = vpop.f32.mrf.mxu0
  %v1556 = vadd.f32 0.0, %v1555
  %v1557 = vpop.f32.mrf.mxu0
  %v1558 = vadd.f32 0.0, %v1557
  %1559 = vdwg.mxu0
  %v1568 = vunpack.c.l.b16 %v1398
  %v1569 = vunpack.c.l.b16 %v1399
  %v1570 = vunpack.c.l.b16 %v1400
  %v1571 = vunpack.c.l.b16 %v1401
  %v1572 = vunpack.c.l.b16 %v1402
  %v1573 = vunpack.c.l.b16 %v1403
  %v1574 = vunpack.c.l.b16 %v1404
  %v1575 = vunpack.c.l.b16 %v1405
  %v1576 = vpack.c.b16 %v1569, %v1568
  %v1577 = vpack.c.b16 %v1571, %v1570
  %v1578 = vpack.c.b16 %v1573, %v1572
  %v1579 = vpack.c.b16 %v1575, %v1574
  %1580 = vrot.lane.b32.xlu0 %v467, 64
  %v1581 = vpop.permute.xlu0 %1580
  %1582 = vrot.lane.b32.xlu0 %v468, 64
  %v1583 = vpop.permute.xlu0 %1582
  %1584 = vrot.lane.b32.xlu0 %v469, 64
  %v1585 = vpop.permute.xlu0 %1584
  %1586 = vrot.lane.b32.xlu0 %v470, 64
  %v1587 = vpop.permute.xlu0 %1586
  %v1593 = vsel %vm613, %v1576, 0
  %v1596 = vsel %vm613, %v1577, 0
  %v1599 = vsel %vm613, %v1578, 0
  %v1602 = vsel %vm613, %v1579, 0
  %1604 = vmatpush.bf16.msra.mxu0 0
  %1605 = vmatpush.bf16.msra.mxu0 0
  %1606 = vmatpush.bf16.msra.mxu0 0
  %1607 = vmatpush.bf16.msra.mxu0 0
  %1608 = vmatpush.bf16.msra.mxu0 %v1587
  %1609 = vmatpush.bf16.msra.mxu0 %v1585
  %1610 = vmatpush.bf16.msra.mxu0 %v1583
  %1611 = vmatpush.bf16.msra.mxu0 %v1581
  %1612 = vmatmul.bf16.gmra.mxu0 %v1593
  %v1613 = vpop.f32.mrf.mxu0
  %v1614 = vadd.f32 0.0, %v1613
  %v1615 = vpop.f32.mrf.mxu0
  %v1616 = vadd.f32 0.0, %v1615
  %1617 = vmatmul.bf16.gmra.mxu0 %v1596
  %v1618 = vpop.f32.mrf.mxu0
  %v1619 = vadd.f32 0.0, %v1618
  %v1620 = vpop.f32.mrf.mxu0
  %v1621 = vadd.f32 0.0, %v1620
  %1622 = vmatmul.bf16.gmra.mxu0 %v1599
  %v1623 = vpop.f32.mrf.mxu0
  %v1624 = vadd.f32 0.0, %v1623
  %v1625 = vpop.f32.mrf.mxu0
  %v1626 = vadd.f32 0.0, %v1625
  %1627 = vmatmul.bf16.gmra.mxu0 %v1602
  %v1628 = vpop.f32.mrf.mxu0
  %v1629 = vadd.f32 0.0, %v1628
  %v1630 = vpop.f32.mrf.mxu0
  %v1631 = vadd.f32 0.0, %v1630
  %1632 = vdwg.mxu0
  %v1641 = vunpack.c.l.b16 %v1406
  %v1642 = vunpack.c.l.b16 %v1407
  %v1643 = vunpack.c.l.b16 %v1408
  %v1644 = vunpack.c.l.b16 %v1409
  %v1645 = vunpack.c.l.b16 %v1410
  %v1646 = vunpack.c.l.b16 %v1411
  %v1647 = vunpack.c.l.b16 %v1412
  %v1648 = vunpack.c.l.b16 %v1413
  %v1649 = vpack.c.b16 %v1642, %v1641
  %v1650 = vpack.c.b16 %v1644, %v1643
  %v1651 = vpack.c.b16 %v1646, %v1645
  %v1652 = vpack.c.b16 %v1648, %v1647
  %1653 = vrot.lane.b32.xlu0 %v548, 64
  %v1654 = vpop.permute.xlu0 %1653
  %1655 = vrot.lane.b32.xlu0 %v549, 64
  %v1656 = vpop.permute.xlu0 %1655
  %1657 = vrot.lane.b32.xlu0 %v550, 64
  %v1658 = vpop.permute.xlu0 %1657
  %1659 = vrot.lane.b32.xlu0 %v551, 64
  %v1660 = vpop.permute.xlu0 %1659
  %v1666 = vsel %vm613, %v1649, 0
  %v1669 = vsel %vm613, %v1650, 0
  %v1672 = vsel %vm613, %v1651, 0
  %v1675 = vsel %vm613, %v1652, 0
  %1677 = vmatpush.bf16.msra.mxu0 0
  %1678 = vmatpush.bf16.msra.mxu0 0
  %1679 = vmatpush.bf16.msra.mxu0 0
  %1680 = vmatpush.bf16.msra.mxu0 0
  %1681 = vmatpush.bf16.msra.mxu0 %v1660
  %1682 = vmatpush.bf16.msra.mxu0 %v1658
  %1683 = vmatpush.bf16.msra.mxu0 %v1656
  %1684 = vmatpush.bf16.msra.mxu0 %v1654
  %1685 = vmatmul.bf16.gmra.mxu0 %v1666
  %v1686 = vpop.f32.mrf.mxu0
  %v1687 = vadd.f32 0.0, %v1686
  %v1688 = vpop.f32.mrf.mxu0
  %v1689 = vadd.f32 0.0, %v1688
  %1690 = vmatmul.bf16.gmra.mxu0 %v1669
  %v1691 = vpop.f32.mrf.mxu0
  %v1692 = vadd.f32 0.0, %v1691
  %v1693 = vpop.f32.mrf.mxu0
  %v1694 = vadd.f32 0.0, %v1693
  %1695 = vmatmul.bf16.gmra.mxu0 %v1672
  %v1696 = vpop.f32.mrf.mxu0
  %v1697 = vadd.f32 0.0, %v1696
  %v1698 = vpop.f32.mrf.mxu0
  %v1699 = vadd.f32 0.0, %v1698
  %1700 = vmatmul.bf16.gmra.mxu0 %v1675
  %v1701 = vpop.f32.mrf.mxu0
  %v1702 = vadd.f32 0.0, %v1701
  %v1703 = vpop.f32.mrf.mxu0
  %v1704 = vadd.f32 0.0, %v1703
  %1705 = vdwg.mxu0
  %v1706 = vpack.c.bf16 %v1470, %v1468
  %v1707 = vpack.c.bf16 %v1475, %v1473
  %v1708 = vpack.c.bf16 %v1480, %v1478
  %v1709 = vpack.c.bf16 %v1485, %v1483
  %v1710 = vpack.c.bf16 %v1543, %v1541
  %v1711 = vpack.c.bf16 %v1548, %v1546
  %v1712 = vpack.c.bf16 %v1553, %v1551
  %v1713 = vpack.c.bf16 %v1558, %v1556
  %v1714 = vpack.c.bf16 %v1616, %v1614
  %v1715 = vpack.c.bf16 %v1621, %v1619
  %v1716 = vpack.c.bf16 %v1626, %v1624
  %v1717 = vpack.c.bf16 %v1631, %v1629
  %v1718 = vpack.c.bf16 %v1689, %v1687
  %v1719 = vpack.c.bf16 %v1694, %v1692
  %v1720 = vpack.c.bf16 %v1699, %v1697
  %v1721 = vpack.c.bf16 %v1704, %v1702
  %v1722 = vld [vmem:[%s3] sm:$0xf]
  %v1724 = vsel %vm316, %v1706, 0
  %v1727 = vsel %vm316, %v1707, 0
  %v1730 = vsel %vm316, %v1708, 0
  %v1733 = vsel %vm316, %v1709, 0
  %v1736 = vsel %vm316, %v1710, 0
  %v1739 = vsel %vm316, %v1711, 0
  %v1742 = vsel %vm316, %v1712, 0
  %v1745 = vsel %vm316, %v1713, 0
  %v1748 = vsel %vm316, %v1714, 0
  %v1751 = vsel %vm316, %v1715, 0
  %v1754 = vsel %vm316, %v1716, 0
  %v1757 = vsel %vm316, %v1717, 0
  %v1760 = vsel %vm316, %v1718, 0
  %v1763 = vsel %vm316, %v1719, 0
  %v1766 = vsel %vm316, %v1720, 0
  %v1769 = vsel %vm316, %v1721, 0
  %vm1771 = vcmask 1043456
  %v1773 = vsel %vm1771, %v1722, 0
  %1775 = vmatpush.bf16.msra.mxu0 0
  %1776 = vmatpush.bf16.msra.mxu0 0
  %1777 = vmatpush.bf16.msra.mxu0 0
  %1778 = vmatpush.bf16.msra.mxu0 0
  %1779 = vmatpush.bf16.msra.mxu0 0
  %1780 = vmatpush.bf16.msra.mxu0 0
  %1781 = vmatpush.bf16.msra.mxu0 0
  %1782 = vmatpush.bf16.msra.mxu0 %v1773
  %1783 = vmatmul.bf16.gmra.mxu0 %v1724
  %v1784 = vpop.f32.mrf.mxu0
  %v1785 = vadd.f32 0.0, %v1784
  %v1786 = vpop.f32.mrf.mxu0
  %v1787 = vadd.f32 0.0, %v1786
  %1788 = vmatmul.bf16.gmra.mxu0 %v1727
  %v1789 = vpop.f32.mrf.mxu0
  %v1790 = vadd.f32 0.0, %v1789
  %v1791 = vpop.f32.mrf.mxu0
  %v1792 = vadd.f32 0.0, %v1791
  %1793 = vmatmul.bf16.gmra.mxu0 %v1730
  %v1794 = vpop.f32.mrf.mxu0
  %v1795 = vadd.f32 0.0, %v1794
  %v1796 = vpop.f32.mrf.mxu0
  %v1797 = vadd.f32 0.0, %v1796
  %1798 = vmatmul.bf16.gmra.mxu0 %v1733
  %v1799 = vpop.f32.mrf.mxu0
  %v1800 = vadd.f32 0.0, %v1799
  %v1801 = vpop.f32.mrf.mxu0
  %v1802 = vadd.f32 0.0, %v1801
  %1803 = vmatmul.bf16.gmra.mxu0 %v1736
  %v1804 = vpop.f32.mrf.mxu0
  %v1805 = vadd.f32 0.0, %v1804
  %v1806 = vpop.f32.mrf.mxu0
  %v1807 = vadd.f32 0.0, %v1806
  %1808 = vmatmul.bf16.gmra.mxu0 %v1739
  %v1809 = vpop.f32.mrf.mxu0
  %v1810 = vadd.f32 0.0, %v1809
  %v1811 = vpop.f32.mrf.mxu0
  %v1812 = vadd.f32 0.0, %v1811
  %1813 = vmatmul.bf16.gmra.mxu0 %v1742
  %v1814 = vpop.f32.mrf.mxu0
  %v1815 = vadd.f32 0.0, %v1814
  %v1816 = vpop.f32.mrf.mxu0
  %v1817 = vadd.f32 0.0, %v1816
  %1818 = vmatmul.bf16.gmra.mxu0 %v1745
  %v1819 = vpop.f32.mrf.mxu0
  %v1820 = vadd.f32 0.0, %v1819
  %v1821 = vpop.f32.mrf.mxu0
  %v1822 = vadd.f32 0.0, %v1821
  %1823 = vmatmul.bf16.gmra.mxu0 %v1748
  %v1824 = vpop.f32.mrf.mxu0
  %v1825 = vadd.f32 0.0, %v1824
  %v1826 = vpop.f32.mrf.mxu0
  %v1827 = vadd.f32 0.0, %v1826
  %1828 = vmatmul.bf16.gmra.mxu0 %v1751
  %v1829 = vpop.f32.mrf.mxu0
  %v1830 = vadd.f32 0.0, %v1829
  %v1831 = vpop.f32.mrf.mxu0
  %v1832 = vadd.f32 0.0, %v1831
  %1833 = vmatmul.bf16.gmra.mxu0 %v1754
  %v1834 = vpop.f32.mrf.mxu0
  %v1835 = vadd.f32 0.0, %v1834
  %v1836 = vpop.f32.mrf.mxu0
  %v1837 = vadd.f32 0.0, %v1836
  %1838 = vmatmul.bf16.gmra.mxu0 %v1757
  %v1839 = vpop.f32.mrf.mxu0
  %v1840 = vadd.f32 0.0, %v1839
  %v1841 = vpop.f32.mrf.mxu0
  %v1842 = vadd.f32 0.0, %v1841
  %1843 = vmatmul.bf16.gmra.mxu0 %v1760
  %v1844 = vpop.f32.mrf.mxu0
  %v1845 = vadd.f32 0.0, %v1844
  %v1846 = vpop.f32.mrf.mxu0
  %v1847 = vadd.f32 0.0, %v1846
  %1848 = vmatmul.bf16.gmra.mxu0 %v1763
  %v1849 = vpop.f32.mrf.mxu0
  %v1850 = vadd.f32 0.0, %v1849
  %v1851 = vpop.f32.mrf.mxu0
  %v1852 = vadd.f32 0.0, %v1851
  %1853 = vmatmul.bf16.gmra.mxu0 %v1766
  %v1854 = vpop.f32.mrf.mxu0
  %v1855 = vadd.f32 0.0, %v1854
  %v1856 = vpop.f32.mrf.mxu0
  %v1857 = vadd.f32 0.0, %v1856
  %1858 = vmatmul.bf16.gmra.mxu0 %v1769
  %v1859 = vpop.f32.mrf.mxu0
  %v1860 = vadd.f32 0.0, %v1859
  %v1861 = vpop.f32.mrf.mxu0
  %v1862 = vadd.f32 0.0, %v1861
  %1863 = vdwg.mxu0
  %v1864 = vadd.f32 %v287, %v1785
  %v1865 = vadd.f32 %v287, %v1787
  %v1866 = vadd.f32 %v287, %v1790
  %v1867 = vadd.f32 %v287, %v1792
  %v1868 = vadd.f32 %v287, %v1795
  %v1869 = vadd.f32 %v287, %v1797
  %v1870 = vadd.f32 %v287, %v1800
  %v1871 = vadd.f32 %v287, %v1802
  %v1872 = vadd.f32 %v287, %v1805
  %v1873 = vadd.f32 %v287, %v1807
  %v1874 = vadd.f32 %v287, %v1810
  %v1875 = vadd.f32 %v287, %v1812
  %v1876 = vadd.f32 %v287, %v1815
  %v1877 = vadd.f32 %v287, %v1817
  %v1878 = vadd.f32 %v287, %v1820
  %v1879 = vadd.f32 %v287, %v1822
  %v1880 = vadd.f32 %v287, %v1825
  %v1881 = vadd.f32 %v287, %v1827
  %v1882 = vadd.f32 %v287, %v1830
  %v1883 = vadd.f32 %v287, %v1832
  %v1884 = vadd.f32 %v287, %v1835
  %v1885 = vadd.f32 %v287, %v1837
  %v1886 = vadd.f32 %v287, %v1840
  %v1887 = vadd.f32 %v287, %v1842
  %v1888 = vadd.f32 %v287, %v1845
  %v1889 = vadd.f32 %v287, %v1847
  %v1890 = vadd.f32 %v287, %v1850
  %v1891 = vadd.f32 %v287, %v1852
  %v1892 = vadd.f32 %v287, %v1855
  %v1893 = vadd.f32 %v287, %v1857
  %v1894 = vadd.f32 %v287, %v1860
  %v1895 = vadd.f32 %v287, %v1862
  %1896 = vrot.lane.b32.xlu0 %v304, 120
  %v1897 = vpop.permute.xlu0 %1896
  %1898 = vrot.lane.b32.xlu0 %v305, 120
  %v1899 = vpop.permute.xlu0 %1898
  %1900 = vrot.lane.b32.xlu0 %v306, 120
  %v1901 = vpop.permute.xlu0 %1900
  %1902 = vrot.lane.b32.xlu0 %v307, 120
  %v1903 = vpop.permute.xlu0 %1902
  %1904 = vrot.lane.b32.xlu0 %v304, 88
  %v1905 = vpop.permute.xlu0 %1904
  %1906 = vrot.lane.b32.xlu0 %v305, 88
  %v1907 = vpop.permute.xlu0 %1906
  %1908 = vrot.lane.b32.xlu0 %v306, 88
  %v1909 = vpop.permute.xlu0 %1908
  %1910 = vrot.lane.b32.xlu0 %v307, 88
  %v1911 = vpop.permute.xlu0 %1910
  %v1913 = vsel %vm316, %v1897, 0
  %v1916 = vsel %vm316, %v1899, 0
  %v1919 = vsel %vm316, %v1901, 0
  %v1922 = vsel %vm316, %v1903, 0
  %v1925 = vsel %vm316, %v1905, 0
  %v1928 = vsel %vm316, %v1907, 0
  %v1931 = vsel %vm316, %v1909, 0
  %v1934 = vsel %vm316, %v1911, 0
  %1936 = vmatpush.bf16.xpose.msra.mxu0 0
  %1937 = vmatpush.bf16.xpose.msra.mxu0 0
  %1938 = vmatpush.bf16.xpose.msra.mxu0 0
  %1939 = vmatpush.bf16.xpose.msra.mxu0 0
  %1940 = vmatpush.bf16.xpose.msra.mxu0 %v1934
  %1941 = vmatpush.bf16.xpose.msra.mxu0 %v1931
  %1942 = vmatpush.bf16.xpose.msra.mxu0 %v1928
  %1943 = vmatpush.bf16.xpose.msra.mxu0 %v1925
  %1944 = vmatmul.bf16.gmra.mxu0 %v1913
  %v1945 = vpop.f32.mrf.mxu0
  %v1946 = vadd.f32 0.0, %v1945
  %v1947 = vpop.f32.mrf.mxu0
  %v1948 = vadd.f32 0.0, %v1947
  %1949 = vmatmul.bf16.gmra.mxu0 %v1916
  %v1950 = vpop.f32.mrf.mxu0
  %v1951 = vadd.f32 0.0, %v1950
  %v1952 = vpop.f32.mrf.mxu0
  %v1953 = vadd.f32 0.0, %v1952
  %1954 = vmatmul.bf16.gmra.mxu0 %v1919
  %v1955 = vpop.f32.mrf.mxu0
  %v1956 = vadd.f32 0.0, %v1955
  %v1957 = vpop.f32.mrf.mxu0
  %v1958 = vadd.f32 0.0, %v1957
  %1959 = vmatmul.bf16.gmra.mxu0 %v1922
  %v1960 = vpop.f32.mrf.mxu0
  %v1961 = vadd.f32 0.0, %v1960
  %v1962 = vpop.f32.mrf.mxu0
  %v1963 = vadd.f32 0.0, %v1962
  %1964 = vdwg.mxu0
  %1965 = vrot.lane.b32.xlu0 %v386, 120
  %v1966 = vpop.permute.xlu0 %1965
  %1967 = vrot.lane.b32.xlu0 %v387, 120
  %v1968 = vpop.permute.xlu0 %1967
  %1969 = vrot.lane.b32.xlu0 %v388, 120
  %v1970 = vpop.permute.xlu0 %1969
  %1971 = vrot.lane.b32.xlu0 %v389, 120
  %v1972 = vpop.permute.xlu0 %1971
  %1973 = vrot.lane.b32.xlu0 %v386, 88
  %v1974 = vpop.permute.xlu0 %1973
  %1975 = vrot.lane.b32.xlu0 %v387, 88
  %v1976 = vpop.permute.xlu0 %1975
  %1977 = vrot.lane.b32.xlu0 %v388, 88
  %v1978 = vpop.permute.xlu0 %1977
  %1979 = vrot.lane.b32.xlu0 %v389, 88
  %v1980 = vpop.permute.xlu0 %1979
  %v1982 = vsel %vm316, %v1966, 0
  %v1985 = vsel %vm316, %v1968, 0
  %v1988 = vsel %vm316, %v1970, 0
  %v1991 = vsel %vm316, %v1972, 0
  %v1994 = vsel %vm316, %v1974, 0
  %v1997 = vsel %vm316, %v1976, 0
  %v2000 = vsel %vm316, %v1978, 0
  %v2003 = vsel %vm316, %v1980, 0
  %2005 = vmatpush.bf16.xpose.msra.mxu0 0
  %2006 = vmatpush.bf16.xpose.msra.mxu0 0
  %2007 = vmatpush.bf16.xpose.msra.mxu0 0
  %2008 = vmatpush.bf16.xpose.msra.mxu0 0
  %2009 = vmatpush.bf16.xpose.msra.mxu0 %v2003
  %2010 = vmatpush.bf16.xpose.msra.mxu0 %v2000
  %2011 = vmatpush.bf16.xpose.msra.mxu0 %v1997
  %2012 = vmatpush.bf16.xpose.msra.mxu0 %v1994
  %2013 = vmatmul.bf16.gmra.mxu0 %v1982
  %v2014 = vpop.f32.mrf.mxu0
  %v2015 = vadd.f32 0.0, %v2014
  %v2016 = vpop.f32.mrf.mxu0
  %v2017 = vadd.f32 0.0, %v2016
  %2018 = vmatmul.bf16.gmra.mxu0 %v1985
  %v2019 = vpop.f32.mrf.mxu0
  %v2020 = vadd.f32 0.0, %v2019
  %v2021 = vpop.f32.mrf.mxu0
  %v2022 = vadd.f32 0.0, %v2021
  %2023 = vmatmul.bf16.gmra.mxu0 %v1988
  %v2024 = vpop.f32.mrf.mxu0
  %v2025 = vadd.f32 0.0, %v2024
  %v2026 = vpop.f32.mrf.mxu0
  %v2027 = vadd.f32 0.0, %v2026
  %2028 = vmatmul.bf16.gmra.mxu0 %v1991
  %v2029 = vpop.f32.mrf.mxu0
  %v2030 = vadd.f32 0.0, %v2029
  %v2031 = vpop.f32.mrf.mxu0
  %v2032 = vadd.f32 0.0, %v2031
  %2033 = vdwg.mxu0
  %2034 = vrot.lane.b32.xlu0 %v467, 120
  %v2035 = vpop.permute.xlu0 %2034
  %2036 = vrot.lane.b32.xlu0 %v468, 120
  %v2037 = vpop.permute.xlu0 %2036
  %2038 = vrot.lane.b32.xlu0 %v469, 120
  %v2039 = vpop.permute.xlu0 %2038
  %2040 = vrot.lane.b32.xlu0 %v470, 120
  %v2041 = vpop.permute.xlu0 %2040
  %2042 = vrot.lane.b32.xlu0 %v467, 88
  %v2043 = vpop.permute.xlu0 %2042
  %2044 = vrot.lane.b32.xlu0 %v468, 88
  %v2045 = vpop.permute.xlu0 %2044
  %2046 = vrot.lane.b32.xlu0 %v469, 88
  %v2047 = vpop.permute.xlu0 %2046
  %2048 = vrot.lane.b32.xlu0 %v470, 88
  %v2049 = vpop.permute.xlu0 %2048
  %v2051 = vsel %vm316, %v2035, 0
  %v2054 = vsel %vm316, %v2037, 0
  %v2057 = vsel %vm316, %v2039, 0
  %v2060 = vsel %vm316, %v2041, 0
  %v2063 = vsel %vm316, %v2043, 0
  %v2066 = vsel %vm316, %v2045, 0
  %v2069 = vsel %vm316, %v2047, 0
  %v2072 = vsel %vm316, %v2049, 0
  %2074 = vmatpush.bf16.xpose.msra.mxu0 0
  %2075 = vmatpush.bf16.xpose.msra.mxu0 0
  %2076 = vmatpush.bf16.xpose.msra.mxu0 0
  %2077 = vmatpush.bf16.xpose.msra.mxu0 0
  %2078 = vmatpush.bf16.xpose.msra.mxu0 %v2072
  %2079 = vmatpush.bf16.xpose.msra.mxu0 %v2069
  %2080 = vmatpush.bf16.xpose.msra.mxu0 %v2066
  %2081 = vmatpush.bf16.xpose.msra.mxu0 %v2063
  %2082 = vmatmul.bf16.gmra.mxu0 %v2051
  %v2083 = vpop.f32.mrf.mxu0
  %v2084 = vadd.f32 0.0, %v2083
  %v2085 = vpop.f32.mrf.mxu0
  %v2086 = vadd.f32 0.0, %v2085
  %2087 = vmatmul.bf16.gmra.mxu0 %v2054
  %v2088 = vpop.f32.mrf.mxu0
  %v2089 = vadd.f32 0.0, %v2088
  %v2090 = vpop.f32.mrf.mxu0
  %v2091 = vadd.f32 0.0, %v2090
  %2092 = vmatmul.bf16.gmra.mxu0 %v2057
  %v2093 = vpop.f32.mrf.mxu0
  %v2094 = vadd.f32 0.0, %v2093
  %v2095 = vpop.f32.mrf.mxu0
  %v2096 = vadd.f32 0.0, %v2095
  %2097 = vmatmul.bf16.gmra.mxu0 %v2060
  %v2098 = vpop.f32.mrf.mxu0
  %v2099 = vadd.f32 0.0, %v2098
  %v2100 = vpop.f32.mrf.mxu0
  %v2101 = vadd.f32 0.0, %v2100
  %2102 = vdwg.mxu0
  %2103 = vrot.lane.b32.xlu0 %v548, 120
  %v2104 = vpop.permute.xlu0 %2103
  %2105 = vrot.lane.b32.xlu0 %v549, 120
  %v2106 = vpop.permute.xlu0 %2105
  %2107 = vrot.lane.b32.xlu0 %v550, 120
  %v2108 = vpop.permute.xlu0 %2107
  %2109 = vrot.lane.b32.xlu0 %v551, 120
  %v2110 = vpop.permute.xlu0 %2109
  %2111 = vrot.lane.b32.xlu0 %v548, 88
  %v2112 = vpop.permute.xlu0 %2111
  %2113 = vrot.lane.b32.xlu0 %v549, 88
  %v2114 = vpop.permute.xlu0 %2113
  %2115 = vrot.lane.b32.xlu0 %v550, 88
  %v2116 = vpop.permute.xlu0 %2115
  %2117 = vrot.lane.b32.xlu0 %v551, 88
  %v2118 = vpop.permute.xlu0 %2117
  %v2120 = vsel %vm316, %v2104, 0
  %v2123 = vsel %vm316, %v2106, 0
  %v2126 = vsel %vm316, %v2108, 0
  %v2129 = vsel %vm316, %v2110, 0
  %v2132 = vsel %vm316, %v2112, 0
  %v2135 = vsel %vm316, %v2114, 0
  %v2138 = vsel %vm316, %v2116, 0
  %v2141 = vsel %vm316, %v2118, 0
  %2143 = vmatpush.bf16.xpose.msra.mxu0 0
  %2144 = vmatpush.bf16.xpose.msra.mxu0 0
  %2145 = vmatpush.bf16.xpose.msra.mxu0 0
  %2146 = vmatpush.bf16.xpose.msra.mxu0 0
  %2147 = vmatpush.bf16.xpose.msra.mxu0 %v2141
  %2148 = vmatpush.bf16.xpose.msra.mxu0 %v2138
  %2149 = vmatpush.bf16.xpose.msra.mxu0 %v2135
  %2150 = vmatpush.bf16.xpose.msra.mxu0 %v2132
  %2151 = vmatmul.bf16.gmra.mxu0 %v2120
  %v2152 = vpop.f32.mrf.mxu0
  %v2153 = vadd.f32 0.0, %v2152
  %v2154 = vpop.f32.mrf.mxu0
  %v2155 = vadd.f32 0.0, %v2154
  %2156 = vmatmul.bf16.gmra.mxu0 %v2123
  %v2157 = vpop.f32.mrf.mxu0
  %v2158 = vadd.f32 0.0, %v2157
  %v2159 = vpop.f32.mrf.mxu0
  %v2160 = vadd.f32 0.0, %v2159
  %2161 = vmatmul.bf16.gmra.mxu0 %v2126
  %v2162 = vpop.f32.mrf.mxu0
  %v2163 = vadd.f32 0.0, %v2162
  %v2164 = vpop.f32.mrf.mxu0
  %v2165 = vadd.f32 0.0, %v2164
  %2166 = vmatmul.bf16.gmra.mxu0 %v2129
  %v2167 = vpop.f32.mrf.mxu0
  %v2168 = vadd.f32 0.0, %v2167
  %v2169 = vpop.f32.mrf.mxu0
  %v2170 = vadd.f32 0.0, %v2169
  %2171 = vdwg.mxu0
  %v2172 = vsel %vm613, %v1946, -inf
  %2173 = vmax.xlane.f32.xlu0 %v2172
  %v2174 = vpop.xlane.xlu0 %2173
  %v2175 = vsel %vm613, %v1948, -inf
  %2176 = vmax.xlane.f32.xlu0 %v2175
  %v2177 = vpop.xlane.xlu0 %2176
  %v2178 = vsel %vm613, %v1951, -inf
  %2179 = vmax.xlane.f32.xlu0 %v2178
  %v2180 = vpop.xlane.xlu0 %2179
  %v2181 = vsel %vm613, %v1953, -inf
  %2182 = vmax.xlane.f32.xlu0 %v2181
  %v2183 = vpop.xlane.xlu0 %2182
  %v2184 = vsel %vm613, %v1956, -inf
  %2185 = vmax.xlane.f32.xlu0 %v2184
  %v2186 = vpop.xlane.xlu0 %2185
  %v2187 = vsel %vm613, %v1958, -inf
  %2188 = vmax.xlane.f32.xlu0 %v2187
  %v2189 = vpop.xlane.xlu0 %2188
  %v2190 = vsel %vm613, %v1961, -inf
  %2191 = vmax.xlane.f32.xlu0 %v2190
  %v2192 = vpop.xlane.xlu0 %2191
  %v2193 = vsel %vm613, %v1963, -inf
  %2194 = vmax.xlane.f32.xlu0 %v2193
  %v2195 = vpop.xlane.xlu0 %2194
  %v2196 = vsel %vm613, %v2015, -inf
  %2197 = vmax.xlane.f32.xlu0 %v2196
  %v2198 = vpop.xlane.xlu0 %2197
  %v2199 = vsel %vm613, %v2017, -inf
  %2200 = vmax.xlane.f32.xlu0 %v2199
  %v2201 = vpop.xlane.xlu0 %2200
  %v2202 = vsel %vm613, %v2020, -inf
  %2203 = vmax.xlane.f32.xlu0 %v2202
  %v2204 = vpop.xlane.xlu0 %2203
  %v2205 = vsel %vm613, %v2022, -inf
  %2206 = vmax.xlane.f32.xlu0 %v2205
  %v2207 = vpop.xlane.xlu0 %2206
  %v2208 = vsel %vm613, %v2025, -inf
  %2209 = vmax.xlane.f32.xlu0 %v2208
  %v2210 = vpop.xlane.xlu0 %2209
  %v2211 = vsel %vm613, %v2027, -inf
  %2212 = vmax.xlane.f32.xlu0 %v2211
  %v2213 = vpop.xlane.xlu0 %2212
  %v2214 = vsel %vm613, %v2030, -inf
  %2215 = vmax.xlane.f32.xlu0 %v2214
  %v2216 = vpop.xlane.xlu0 %2215
  %v2217 = vsel %vm613, %v2032, -inf
  %2218 = vmax.xlane.f32.xlu0 %v2217
  %v2219 = vpop.xlane.xlu0 %2218
  %v2220 = vsel %vm613, %v2084, -inf
  %2221 = vmax.xlane.f32.xlu0 %v2220
  %v2222 = vpop.xlane.xlu0 %2221
  %v2223 = vsel %vm613, %v2086, -inf
  %2224 = vmax.xlane.f32.xlu0 %v2223
  %v2225 = vpop.xlane.xlu0 %2224
  %v2226 = vsel %vm613, %v2089, -inf
  %2227 = vmax.xlane.f32.xlu0 %v2226
  %v2228 = vpop.xlane.xlu0 %2227
  %v2229 = vsel %vm613, %v2091, -inf
  %2230 = vmax.xlane.f32.xlu0 %v2229
  %v2231 = vpop.xlane.xlu0 %2230
  %v2232 = vsel %vm613, %v2094, -inf
  %2233 = vmax.xlane.f32.xlu0 %v2232
  %v2234 = vpop.xlane.xlu0 %2233
  %v2235 = vsel %vm613, %v2096, -inf
  %2236 = vmax.xlane.f32.xlu0 %v2235
  %v2237 = vpop.xlane.xlu0 %2236
  %v2238 = vsel %vm613, %v2099, -inf
  %2239 = vmax.xlane.f32.xlu0 %v2238
  %v2240 = vpop.xlane.xlu0 %2239
  %v2241 = vsel %vm613, %v2101, -inf
  %2242 = vmax.xlane.f32.xlu0 %v2241
  %v2243 = vpop.xlane.xlu0 %2242
  %v2244 = vsel %vm613, %v2153, -inf
  %2245 = vmax.xlane.f32.xlu0 %v2244
  %v2246 = vpop.xlane.xlu0 %2245
  %v2247 = vsel %vm613, %v2155, -inf
  %2248 = vmax.xlane.f32.xlu0 %v2247
  %v2249 = vpop.xlane.xlu0 %2248
  %v2250 = vsel %vm613, %v2158, -inf
  %2251 = vmax.xlane.f32.xlu0 %v2250
  %v2252 = vpop.xlane.xlu0 %2251
  %v2253 = vsel %vm613, %v2160, -inf
  %2254 = vmax.xlane.f32.xlu0 %v2253
  %v2255 = vpop.xlane.xlu0 %2254
  %v2256 = vsel %vm613, %v2163, -inf
  %2257 = vmax.xlane.f32.xlu0 %v2256
  %v2258 = vpop.xlane.xlu0 %2257
  %v2259 = vsel %vm613, %v2165, -inf
  %2260 = vmax.xlane.f32.xlu0 %v2259
  %v2261 = vpop.xlane.xlu0 %2260
  %v2262 = vsel %vm613, %v2168, -inf
  %2263 = vmax.xlane.f32.xlu0 %v2262
  %v2264 = vpop.xlane.xlu0 %2263
  %v2265 = vsel %vm613, %v2170, -inf
  %2266 = vmax.xlane.f32.xlu0 %v2265
  %v2267 = vpop.xlane.xlu0 %2266
  %v2268 = vsub.f32 %v1946, %v2174
  %v2269 = vsub.f32 %v1948, %v2177
  %v2270 = vsub.f32 %v1951, %v2180
  %v2271 = vsub.f32 %v1953, %v2183
  %v2272 = vsub.f32 %v1956, %v2186
  %v2273 = vsub.f32 %v1958, %v2189
  %v2274 = vsub.f32 %v1961, %v2192
  %v2275 = vsub.f32 %v1963, %v2195
  %v2276 = vsub.f32 %v2015, %v2198
  %v2277 = vsub.f32 %v2017, %v2201
  %v2278 = vsub.f32 %v2020, %v2204
  %v2279 = vsub.f32 %v2022, %v2207
  %v2280 = vsub.f32 %v2025, %v2210
  %v2281 = vsub.f32 %v2027, %v2213
  %v2282 = vsub.f32 %v2030, %v2216
  %v2283 = vsub.f32 %v2032, %v2219
  %v2284 = vsub.f32 %v2084, %v2222
  %v2285 = vsub.f32 %v2086, %v2225
  %v2286 = vsub.f32 %v2089, %v2228
  %v2287 = vsub.f32 %v2091, %v2231
  %v2288 = vsub.f32 %v2094, %v2234
  %v2289 = vsub.f32 %v2096, %v2237
  %v2290 = vsub.f32 %v2099, %v2240
  %v2291 = vsub.f32 %v2101, %v2243
  %v2292 = vsub.f32 %v2153, %v2246
  %v2293 = vsub.f32 %v2155, %v2249
  %v2294 = vsub.f32 %v2158, %v2252
  %v2295 = vsub.f32 %v2160, %v2255
  %v2296 = vsub.f32 %v2163, %v2258
  %v2297 = vsub.f32 %v2165, %v2261
  %v2298 = vsub.f32 %v2168, %v2264
  %v2299 = vsub.f32 %v2170, %v2267
  %v2300 = vmul.f32 %v2268, 1.442695
  %v2301 = vpow.pop %v2300
  %v2302 = vmul.f32 %v2269, 1.442695
  %v2303 = vpow.pop %v2302
  %v2304 = vmul.f32 %v2270, 1.442695
  %v2305 = vpow.pop %v2304
  %v2306 = vmul.f32 %v2271, 1.442695
  %v2307 = vpow.pop %v2306
  %v2308 = vmul.f32 %v2272, 1.442695
  %v2309 = vpow.pop %v2308
  %v2310 = vmul.f32 %v2273, 1.442695
  %v2311 = vpow.pop %v2310
  %v2312 = vmul.f32 %v2274, 1.442695
  %v2313 = vpow.pop %v2312
  %v2314 = vmul.f32 %v2275, 1.442695
  %v2315 = vpow.pop %v2314
  %v2316 = vmul.f32 %v2276, 1.442695
  %v2317 = vpow.pop %v2316
  %v2318 = vmul.f32 %v2277, 1.442695
  %v2319 = vpow.pop %v2318
  %v2320 = vmul.f32 %v2278, 1.442695
  %v2321 = vpow.pop %v2320
  %v2322 = vmul.f32 %v2279, 1.442695
  %v2323 = vpow.pop %v2322
  %v2324 = vmul.f32 %v2280, 1.442695
  %v2325 = vpow.pop %v2324
  %v2326 = vmul.f32 %v2281, 1.442695
  %v2327 = vpow.pop %v2326
  %v2328 = vmul.f32 %v2282, 1.442695
  %v2329 = vpow.pop %v2328
  %v2330 = vmul.f32 %v2283, 1.442695
  %v2331 = vpow.pop %v2330
  %v2332 = vmul.f32 %v2284, 1.442695
  %v2333 = vpow.pop %v2332
  %v2334 = vmul.f32 %v2285, 1.442695
  %v2335 = vpow.pop %v2334
  %v2336 = vmul.f32 %v2286, 1.442695
  %v2337 = vpow.pop %v2336
  %v2338 = vmul.f32 %v2287, 1.442695
  %v2339 = vpow.pop %v2338
  %v2340 = vmul.f32 %v2288, 1.442695
  %v2341 = vpow.pop %v2340
  %v2342 = vmul.f32 %v2289, 1.442695
  %v2343 = vpow.pop %v2342
  %v2344 = vmul.f32 %v2290, 1.442695
  %v2345 = vpow.pop %v2344
  %v2346 = vmul.f32 %v2291, 1.442695
  %v2347 = vpow.pop %v2346
  %v2348 = vmul.f32 %v2292, 1.442695
  %v2349 = vpow.pop %v2348
  %v2350 = vmul.f32 %v2293, 1.442695
  %v2351 = vpow.pop %v2350
  %v2352 = vmul.f32 %v2294, 1.442695
  %v2353 = vpow.pop %v2352
  %v2354 = vmul.f32 %v2295, 1.442695
  %v2355 = vpow.pop %v2354
  %v2356 = vmul.f32 %v2296, 1.442695
  %v2357 = vpow.pop %v2356
  %v2358 = vmul.f32 %v2297, 1.442695
  %v2359 = vpow.pop %v2358
  %v2360 = vmul.f32 %v2298, 1.442695
  %v2361 = vpow.pop %v2360
  %v2362 = vmul.f32 %v2299, 1.442695
  %v2363 = vpow.pop %v2362
  %v2364 = vsel %vm613, %v2301, 0.0
  %2365 = vadd.xlane.f32.xlu0 %v2364
  %v2366 = vpop.xlane.xlu0 %2365
  %v2367 = vsel %vm613, %v2303, 0.0
  %2368 = vadd.xlane.f32.xlu0 %v2367
  %v2369 = vpop.xlane.xlu0 %2368
  %v2370 = vsel %vm613, %v2305, 0.0
  %2371 = vadd.xlane.f32.xlu0 %v2370
  %v2372 = vpop.xlane.xlu0 %2371
  %v2373 = vsel %vm613, %v2307, 0.0
  %2374 = vadd.xlane.f32.xlu0 %v2373
  %v2375 = vpop.xlane.xlu0 %2374
  %v2376 = vsel %vm613, %v2309, 0.0
  %2377 = vadd.xlane.f32.xlu0 %v2376
  %v2378 = vpop.xlane.xlu0 %2377
  %v2379 = vsel %vm613, %v2311, 0.0
  %2380 = vadd.xlane.f32.xlu0 %v2379
  %v2381 = vpop.xlane.xlu0 %2380
  %v2382 = vsel %vm613, %v2313, 0.0
  %2383 = vadd.xlane.f32.xlu0 %v2382
  %v2384 = vpop.xlane.xlu0 %2383
  %v2385 = vsel %vm613, %v2315, 0.0
  %2386 = vadd.xlane.f32.xlu0 %v2385
  %v2387 = vpop.xlane.xlu0 %2386
  %v2388 = vsel %vm613, %v2317, 0.0
  %2389 = vadd.xlane.f32.xlu0 %v2388
  %v2390 = vpop.xlane.xlu0 %2389
  %v2391 = vsel %vm613, %v2319, 0.0
  %2392 = vadd.xlane.f32.xlu0 %v2391
  %v2393 = vpop.xlane.xlu0 %2392
  %v2394 = vsel %vm613, %v2321, 0.0
  %2395 = vadd.xlane.f32.xlu0 %v2394
  %v2396 = vpop.xlane.xlu0 %2395
  %v2397 = vsel %vm613, %v2323, 0.0
  %2398 = vadd.xlane.f32.xlu0 %v2397
  %v2399 = vpop.xlane.xlu0 %2398
  %v2400 = vsel %vm613, %v2325, 0.0
  %2401 = vadd.xlane.f32.xlu0 %v2400
  %v2402 = vpop.xlane.xlu0 %2401
  %v2403 = vsel %vm613, %v2327, 0.0
  %2404 = vadd.xlane.f32.xlu0 %v2403
  %v2405 = vpop.xlane.xlu0 %2404
  %v2406 = vsel %vm613, %v2329, 0.0
  %2407 = vadd.xlane.f32.xlu0 %v2406
  %v2408 = vpop.xlane.xlu0 %2407
  %v2409 = vsel %vm613, %v2331, 0.0
  %2410 = vadd.xlane.f32.xlu0 %v2409
  %v2411 = vpop.xlane.xlu0 %2410
  %v2412 = vsel %vm613, %v2333, 0.0
  %2413 = vadd.xlane.f32.xlu0 %v2412
  %v2414 = vpop.xlane.xlu0 %2413
  %v2415 = vsel %vm613, %v2335, 0.0
  %2416 = vadd.xlane.f32.xlu0 %v2415
  %v2417 = vpop.xlane.xlu0 %2416
  %v2418 = vsel %vm613, %v2337, 0.0
  %2419 = vadd.xlane.f32.xlu0 %v2418
  %v2420 = vpop.xlane.xlu0 %2419
  %v2421 = vsel %vm613, %v2339, 0.0
  %2422 = vadd.xlane.f32.xlu0 %v2421
  %v2423 = vpop.xlane.xlu0 %2422
  %v2424 = vsel %vm613, %v2341, 0.0
  %2425 = vadd.xlane.f32.xlu0 %v2424
  %v2426 = vpop.xlane.xlu0 %2425
  %v2427 = vsel %vm613, %v2343, 0.0
  %2428 = vadd.xlane.f32.xlu0 %v2427
  %v2429 = vpop.xlane.xlu0 %2428
  %v2430 = vsel %vm613, %v2345, 0.0
  %2431 = vadd.xlane.f32.xlu0 %v2430
  %v2432 = vpop.xlane.xlu0 %2431
  %v2433 = vsel %vm613, %v2347, 0.0
  %2434 = vadd.xlane.f32.xlu0 %v2433
  %v2435 = vpop.xlane.xlu0 %2434
  %v2436 = vsel %vm613, %v2349, 0.0
  %2437 = vadd.xlane.f32.xlu0 %v2436
  %v2438 = vpop.xlane.xlu0 %2437
  %v2439 = vsel %vm613, %v2351, 0.0
  %2440 = vadd.xlane.f32.xlu0 %v2439
  %v2441 = vpop.xlane.xlu0 %2440
  %v2442 = vsel %vm613, %v2353, 0.0
  %2443 = vadd.xlane.f32.xlu0 %v2442
  %v2444 = vpop.xlane.xlu0 %2443
  %v2445 = vsel %vm613, %v2355, 0.0
  %2446 = vadd.xlane.f32.xlu0 %v2445
  %v2447 = vpop.xlane.xlu0 %2446
  %v2448 = vsel %vm613, %v2357, 0.0
  %2449 = vadd.xlane.f32.xlu0 %v2448
  %v2450 = vpop.xlane.xlu0 %2449
  %v2451 = vsel %vm613, %v2359, 0.0
  %2452 = vadd.xlane.f32.xlu0 %v2451
  %v2453 = vpop.xlane.xlu0 %2452
  %v2454 = vsel %vm613, %v2361, 0.0
  %2455 = vadd.xlane.f32.xlu0 %v2454
  %v2456 = vpop.xlane.xlu0 %2455
  %v2457 = vsel %vm613, %v2363, 0.0
  %2458 = vadd.xlane.f32.xlu0 %v2457
  %v2459 = vpop.xlane.xlu0 %2458
  %v2460 = vrcp.pop %v2366
  %v2461 = vmul.f32 %v2366, %v2460
  %v2462 = vsub.f32 1.0, %v2461
  %v2463 = vmul.f32 %v2460, %v2462
  %v2464 = vadd.f32 %v2460, %v2463
  %vm2465 = vweird.f32 %v2366
  %vm2466 = vweird.f32 %v2460
  %vm2467 = vmor %vm2465, %vm2466
  %v2468 = vsel %vm2467, %v2460, %v2464
  %v2469 = vand.u32 2147483647, %v2366
  %vm2470 = vcmp.eq.f32.partialorder %v2469, 8.507059e+37
  %v2471 = vand.u32 %v2366, 2147483648
  %v2472 = vor.u32 1.1754944e-38, %v2471
  %v2473 = vsel %vm2470, %v2472, %v2468
  %v2474 = vmul.f32 %v2301, %v2473
  %v2475 = vrcp.pop %v2369
  %v2476 = vmul.f32 %v2369, %v2475
  %v2477 = vsub.f32 1.0, %v2476
  %v2478 = vmul.f32 %v2475, %v2477
  %v2479 = vadd.f32 %v2475, %v2478
  %vm2480 = vweird.f32 %v2369
  %vm2481 = vweird.f32 %v2475
  %vm2482 = vmor %vm2480, %vm2481
  %v2483 = vsel %vm2482, %v2475, %v2479
  %v2484 = vand.u32 2147483647, %v2369
  %vm2485 = vcmp.eq.f32.partialorder %v2484, 8.507059e+37
  %v2486 = vand.u32 %v2369, 2147483648
  %v2487 = vor.u32 1.1754944e-38, %v2486
  %v2488 = vsel %vm2485, %v2487, %v2483
  %v2489 = vmul.f32 %v2303, %v2488
  %v2490 = vrcp.pop %v2372
  %v2491 = vmul.f32 %v2372, %v2490
  %v2492 = vsub.f32 1.0, %v2491
  %v2493 = vmul.f32 %v2490, %v2492
  %v2494 = vadd.f32 %v2490, %v2493
  %vm2495 = vweird.f32 %v2372
  %vm2496 = vweird.f32 %v2490
  %vm2497 = vmor %vm2495, %vm2496
  %v2498 = vsel %vm2497, %v2490, %v2494
  %v2499 = vand.u32 2147483647, %v2372
  %vm2500 = vcmp.eq.f32.partialorder %v2499, 8.507059e+37
  %v2501 = vand.u32 %v2372, 2147483648
  %v2502 = vor.u32 1.1754944e-38, %v2501
  %v2503 = vsel %vm2500, %v2502, %v2498
  %v2504 = vmul.f32 %v2305, %v2503
  %v2505 = vrcp.pop %v2375
  %v2506 = vmul.f32 %v2375, %v2505
  %v2507 = vsub.f32 1.0, %v2506
  %v2508 = vmul.f32 %v2505, %v2507
  %v2509 = vadd.f32 %v2505, %v2508
  %vm2510 = vweird.f32 %v2375
  %vm2511 = vweird.f32 %v2505
  %vm2512 = vmor %vm2510, %vm2511
  %v2513 = vsel %vm2512, %v2505, %v2509
  %v2514 = vand.u32 2147483647, %v2375
  %vm2515 = vcmp.eq.f32.partialorder %v2514, 8.507059e+37
  %v2516 = vand.u32 %v2375, 2147483648
  %v2517 = vor.u32 1.1754944e-38, %v2516
  %v2518 = vsel %vm2515, %v2517, %v2513
  %v2519 = vmul.f32 %v2307, %v2518
  %v2520 = vrcp.pop %v2378
  %v2521 = vmul.f32 %v2378, %v2520
  %v2522 = vsub.f32 1.0, %v2521
  %v2523 = vmul.f32 %v2520, %v2522
  %v2524 = vadd.f32 %v2520, %v2523
  %vm2525 = vweird.f32 %v2378
  %vm2526 = vweird.f32 %v2520
  %vm2527 = vmor %vm2525, %vm2526
  %v2528 = vsel %vm2527, %v2520, %v2524
  %v2529 = vand.u32 2147483647, %v2378
  %vm2530 = vcmp.eq.f32.partialorder %v2529, 8.507059e+37
  %v2531 = vand.u32 %v2378, 2147483648
  %v2532 = vor.u32 1.1754944e-38, %v2531
  %v2533 = vsel %vm2530, %v2532, %v2528
  %v2534 = vmul.f32 %v2309, %v2533
  %v2535 = vrcp.pop %v2381
  %v2536 = vmul.f32 %v2381, %v2535
  %v2537 = vsub.f32 1.0, %v2536
  %v2538 = vmul.f32 %v2535, %v2537
  %v2539 = vadd.f32 %v2535, %v2538
  %vm2540 = vweird.f32 %v2381
  %vm2541 = vweird.f32 %v2535
  %vm2542 = vmor %vm2540, %vm2541
  %v2543 = vsel %vm2542, %v2535, %v2539
  %v2544 = vand.u32 2147483647, %v2381
  %vm2545 = vcmp.eq.f32.partialorder %v2544, 8.507059e+37
  %v2546 = vand.u32 %v2381, 2147483648
  %v2547 = vor.u32 1.1754944e-38, %v2546
  %v2548 = vsel %vm2545, %v2547, %v2543
  %v2549 = vmul.f32 %v2311, %v2548
  %v2550 = vrcp.pop %v2384
  %v2551 = vmul.f32 %v2384, %v2550
  %v2552 = vsub.f32 1.0, %v2551
  %v2553 = vmul.f32 %v2550, %v2552
  %v2554 = vadd.f32 %v2550, %v2553
  %vm2555 = vweird.f32 %v2384
  %vm2556 = vweird.f32 %v2550
  %vm2557 = vmor %vm2555, %vm2556
  %v2558 = vsel %vm2557, %v2550, %v2554
  %v2559 = vand.u32 2147483647, %v2384
  %vm2560 = vcmp.eq.f32.partialorder %v2559, 8.507059e+37
  %v2561 = vand.u32 %v2384, 2147483648
  %v2562 = vor.u32 1.1754944e-38, %v2561
  %v2563 = vsel %vm2560, %v2562, %v2558
  %v2564 = vmul.f32 %v2313, %v2563
  %v2565 = vrcp.pop %v2387
  %v2566 = vmul.f32 %v2387, %v2565
  %v2567 = vsub.f32 1.0, %v2566
  %v2568 = vmul.f32 %v2565, %v2567
  %v2569 = vadd.f32 %v2565, %v2568
  %vm2570 = vweird.f32 %v2387
  %vm2571 = vweird.f32 %v2565
  %vm2572 = vmor %vm2570, %vm2571
  %v2573 = vsel %vm2572, %v2565, %v2569
  %v2574 = vand.u32 2147483647, %v2387
  %vm2575 = vcmp.eq.f32.partialorder %v2574, 8.507059e+37
  %v2576 = vand.u32 %v2387, 2147483648
  %v2577 = vor.u32 1.1754944e-38, %v2576
  %v2578 = vsel %vm2575, %v2577, %v2573
  %v2579 = vmul.f32 %v2315, %v2578
  %v2580 = vrcp.pop %v2390
  %v2581 = vmul.f32 %v2390, %v2580
  %v2582 = vsub.f32 1.0, %v2581
  %v2583 = vmul.f32 %v2580, %v2582
  %v2584 = vadd.f32 %v2580, %v2583
  %vm2585 = vweird.f32 %v2390
  %vm2586 = vweird.f32 %v2580
  %vm2587 = vmor %vm2585, %vm2586
  %v2588 = vsel %vm2587, %v2580, %v2584
  %v2589 = vand.u32 2147483647, %v2390
  %vm2590 = vcmp.eq.f32.partialorder %v2589, 8.507059e+37
  %v2591 = vand.u32 %v2390, 2147483648
  %v2592 = vor.u32 1.1754944e-38, %v2591
  %v2593 = vsel %vm2590, %v2592, %v2588
  %v2594 = vmul.f32 %v2317, %v2593
  %v2595 = vrcp.pop %v2393
  %v2596 = vmul.f32 %v2393, %v2595
  %v2597 = vsub.f32 1.0, %v2596
  %v2598 = vmul.f32 %v2595, %v2597
  %v2599 = vadd.f32 %v2595, %v2598
  %vm2600 = vweird.f32 %v2393
  %vm2601 = vweird.f32 %v2595
  %vm2602 = vmor %vm2600, %vm2601
  %v2603 = vsel %vm2602, %v2595, %v2599
  %v2604 = vand.u32 2147483647, %v2393
  %vm2605 = vcmp.eq.f32.partialorder %v2604, 8.507059e+37
  %v2606 = vand.u32 %v2393, 2147483648
  %v2607 = vor.u32 1.1754944e-38, %v2606
  %v2608 = vsel %vm2605, %v2607, %v2603
  %v2609 = vmul.f32 %v2319, %v2608
  %v2610 = vrcp.pop %v2396
  %v2611 = vmul.f32 %v2396, %v2610
  %v2612 = vsub.f32 1.0, %v2611
  %v2613 = vmul.f32 %v2610, %v2612
  %v2614 = vadd.f32 %v2610, %v2613
  %vm2615 = vweird.f32 %v2396
  %vm2616 = vweird.f32 %v2610
  %vm2617 = vmor %vm2615, %vm2616
  %v2618 = vsel %vm2617, %v2610, %v2614
  %v2619 = vand.u32 2147483647, %v2396
  %vm2620 = vcmp.eq.f32.partialorder %v2619, 8.507059e+37
  %v2621 = vand.u32 %v2396, 2147483648
  %v2622 = vor.u32 1.1754944e-38, %v2621
  %v2623 = vsel %vm2620, %v2622, %v2618
  %v2624 = vmul.f32 %v2321, %v2623
  %v2625 = vrcp.pop %v2399
  %v2626 = vmul.f32 %v2399, %v2625
  %v2627 = vsub.f32 1.0, %v2626
  %v2628 = vmul.f32 %v2625, %v2627
  %v2629 = vadd.f32 %v2625, %v2628
  %vm2630 = vweird.f32 %v2399
  %vm2631 = vweird.f32 %v2625
  %vm2632 = vmor %vm2630, %vm2631
  %v2633 = vsel %vm2632, %v2625, %v2629
  %v2634 = vand.u32 2147483647, %v2399
  %vm2635 = vcmp.eq.f32.partialorder %v2634, 8.507059e+37
  %v2636 = vand.u32 %v2399, 2147483648
  %v2637 = vor.u32 1.1754944e-38, %v2636
  %v2638 = vsel %vm2635, %v2637, %v2633
  %v2639 = vmul.f32 %v2323, %v2638
  %v2640 = vrcp.pop %v2402
  %v2641 = vmul.f32 %v2402, %v2640
  %v2642 = vsub.f32 1.0, %v2641
  %v2643 = vmul.f32 %v2640, %v2642
  %v2644 = vadd.f32 %v2640, %v2643
  %vm2645 = vweird.f32 %v2402
  %vm2646 = vweird.f32 %v2640
  %vm2647 = vmor %vm2645, %vm2646
  %v2648 = vsel %vm2647, %v2640, %v2644
  %v2649 = vand.u32 2147483647, %v2402
  %vm2650 = vcmp.eq.f32.partialorder %v2649, 8.507059e+37
  %v2651 = vand.u32 %v2402, 2147483648
  %v2652 = vor.u32 1.1754944e-38, %v2651
  %v2653 = vsel %vm2650, %v2652, %v2648
  %v2654 = vmul.f32 %v2325, %v2653
  %v2655 = vrcp.pop %v2405
  %v2656 = vmul.f32 %v2405, %v2655
  %v2657 = vsub.f32 1.0, %v2656
  %v2658 = vmul.f32 %v2655, %v2657
  %v2659 = vadd.f32 %v2655, %v2658
  %vm2660 = vweird.f32 %v2405
  %vm2661 = vweird.f32 %v2655
  %vm2662 = vmor %vm2660, %vm2661
  %v2663 = vsel %vm2662, %v2655, %v2659
  %v2664 = vand.u32 2147483647, %v2405
  %vm2665 = vcmp.eq.f32.partialorder %v2664, 8.507059e+37
  %v2666 = vand.u32 %v2405, 2147483648
  %v2667 = vor.u32 1.1754944e-38, %v2666
  %v2668 = vsel %vm2665, %v2667, %v2663
  %v2669 = vmul.f32 %v2327, %v2668
  %v2670 = vrcp.pop %v2408
  %v2671 = vmul.f32 %v2408, %v2670
  %v2672 = vsub.f32 1.0, %v2671
  %v2673 = vmul.f32 %v2670, %v2672
  %v2674 = vadd.f32 %v2670, %v2673
  %vm2675 = vweird.f32 %v2408
  %vm2676 = vweird.f32 %v2670
  %vm2677 = vmor %vm2675, %vm2676
  %v2678 = vsel %vm2677, %v2670, %v2674
  %v2679 = vand.u32 2147483647, %v2408
  %vm2680 = vcmp.eq.f32.partialorder %v2679, 8.507059e+37
  %v2681 = vand.u32 %v2408, 2147483648
  %v2682 = vor.u32 1.1754944e-38, %v2681
  %v2683 = vsel %vm2680, %v2682, %v2678
  %v2684 = vmul.f32 %v2329, %v2683
  %v2685 = vrcp.pop %v2411
  %v2686 = vmul.f32 %v2411, %v2685
  %v2687 = vsub.f32 1.0, %v2686
  %v2688 = vmul.f32 %v2685, %v2687
  %v2689 = vadd.f32 %v2685, %v2688
  %vm2690 = vweird.f32 %v2411
  %vm2691 = vweird.f32 %v2685
  %vm2692 = vmor %vm2690, %vm2691
  %v2693 = vsel %vm2692, %v2685, %v2689
  %v2694 = vand.u32 2147483647, %v2411
  %vm2695 = vcmp.eq.f32.partialorder %v2694, 8.507059e+37
  %v2696 = vand.u32 %v2411, 2147483648
  %v2697 = vor.u32 1.1754944e-38, %v2696
  %v2698 = vsel %vm2695, %v2697, %v2693
  %v2699 = vmul.f32 %v2331, %v2698
  %v2700 = vrcp.pop %v2414
  %v2701 = vmul.f32 %v2414, %v2700
  %v2702 = vsub.f32 1.0, %v2701
  %v2703 = vmul.f32 %v2700, %v2702
  %v2704 = vadd.f32 %v2700, %v2703
  %vm2705 = vweird.f32 %v2414
  %vm2706 = vweird.f32 %v2700
  %vm2707 = vmor %vm2705, %vm2706
  %v2708 = vsel %vm2707, %v2700, %v2704
  %v2709 = vand.u32 2147483647, %v2414
  %vm2710 = vcmp.eq.f32.partialorder %v2709, 8.507059e+37
  %v2711 = vand.u32 %v2414, 2147483648
  %v2712 = vor.u32 1.1754944e-38, %v2711
  %v2713 = vsel %vm2710, %v2712, %v2708
  %v2714 = vmul.f32 %v2333, %v2713
  %v2715 = vrcp.pop %v2417
  %v2716 = vmul.f32 %v2417, %v2715
  %v2717 = vsub.f32 1.0, %v2716
  %v2718 = vmul.f32 %v2715, %v2717
  %v2719 = vadd.f32 %v2715, %v2718
  %vm2720 = vweird.f32 %v2417
  %vm2721 = vweird.f32 %v2715
  %vm2722 = vmor %vm2720, %vm2721
  %v2723 = vsel %vm2722, %v2715, %v2719
  %v2724 = vand.u32 2147483647, %v2417
  %vm2725 = vcmp.eq.f32.partialorder %v2724, 8.507059e+37
  %v2726 = vand.u32 %v2417, 2147483648
  %v2727 = vor.u32 1.1754944e-38, %v2726
  %v2728 = vsel %vm2725, %v2727, %v2723
  %v2729 = vmul.f32 %v2335, %v2728
  %v2730 = vrcp.pop %v2420
  %v2731 = vmul.f32 %v2420, %v2730
  %v2732 = vsub.f32 1.0, %v2731
  %v2733 = vmul.f32 %v2730, %v2732
  %v2734 = vadd.f32 %v2730, %v2733
  %vm2735 = vweird.f32 %v2420
  %vm2736 = vweird.f32 %v2730
  %vm2737 = vmor %vm2735, %vm2736
  %v2738 = vsel %vm2737, %v2730, %v2734
  %v2739 = vand.u32 2147483647, %v2420
  %vm2740 = vcmp.eq.f32.partialorder %v2739, 8.507059e+37
  %v2741 = vand.u32 %v2420, 2147483648
  %v2742 = vor.u32 1.1754944e-38, %v2741
  %v2743 = vsel %vm2740, %v2742, %v2738
  %v2744 = vmul.f32 %v2337, %v2743
  %v2745 = vrcp.pop %v2423
  %v2746 = vmul.f32 %v2423, %v2745
  %v2747 = vsub.f32 1.0, %v2746
  %v2748 = vmul.f32 %v2745, %v2747
  %v2749 = vadd.f32 %v2745, %v2748
  %vm2750 = vweird.f32 %v2423
  %vm2751 = vweird.f32 %v2745
  %vm2752 = vmor %vm2750, %vm2751
  %v2753 = vsel %vm2752, %v2745, %v2749
  %v2754 = vand.u32 2147483647, %v2423
  %vm2755 = vcmp.eq.f32.partialorder %v2754, 8.507059e+37
  %v2756 = vand.u32 %v2423, 2147483648
  %v2757 = vor.u32 1.1754944e-38, %v2756
  %v2758 = vsel %vm2755, %v2757, %v2753
  %v2759 = vmul.f32 %v2339, %v2758
  %v2760 = vrcp.pop %v2426
  %v2761 = vmul.f32 %v2426, %v2760
  %v2762 = vsub.f32 1.0, %v2761
  %v2763 = vmul.f32 %v2760, %v2762
  %v2764 = vadd.f32 %v2760, %v2763
  %vm2765 = vweird.f32 %v2426
  %vm2766 = vweird.f32 %v2760
  %vm2767 = vmor %vm2765, %vm2766
  %v2768 = vsel %vm2767, %v2760, %v2764
  %v2769 = vand.u32 2147483647, %v2426
  %vm2770 = vcmp.eq.f32.partialorder %v2769, 8.507059e+37
  %v2771 = vand.u32 %v2426, 2147483648
  %v2772 = vor.u32 1.1754944e-38, %v2771
  %v2773 = vsel %vm2770, %v2772, %v2768
  %v2774 = vmul.f32 %v2341, %v2773
  %v2775 = vrcp.pop %v2429
  %v2776 = vmul.f32 %v2429, %v2775
  %v2777 = vsub.f32 1.0, %v2776
  %v2778 = vmul.f32 %v2775, %v2777
  %v2779 = vadd.f32 %v2775, %v2778
  %vm2780 = vweird.f32 %v2429
  %vm2781 = vweird.f32 %v2775
  %vm2782 = vmor %vm2780, %vm2781
  %v2783 = vsel %vm2782, %v2775, %v2779
  %v2784 = vand.u32 2147483647, %v2429
  %vm2785 = vcmp.eq.f32.partialorder %v2784, 8.507059e+37
  %v2786 = vand.u32 %v2429, 2147483648
  %v2787 = vor.u32 1.1754944e-38, %v2786
  %v2788 = vsel %vm2785, %v2787, %v2783
  %v2789 = vmul.f32 %v2343, %v2788
  %v2790 = vrcp.pop %v2432
  %v2791 = vmul.f32 %v2432, %v2790
  %v2792 = vsub.f32 1.0, %v2791
  %v2793 = vmul.f32 %v2790, %v2792
  %v2794 = vadd.f32 %v2790, %v2793
  %vm2795 = vweird.f32 %v2432
  %vm2796 = vweird.f32 %v2790
  %vm2797 = vmor %vm2795, %vm2796
  %v2798 = vsel %vm2797, %v2790, %v2794
  %v2799 = vand.u32 2147483647, %v2432
  %vm2800 = vcmp.eq.f32.partialorder %v2799, 8.507059e+37
  %v2801 = vand.u32 %v2432, 2147483648
  %v2802 = vor.u32 1.1754944e-38, %v2801
  %v2803 = vsel %vm2800, %v2802, %v2798
  %v2804 = vmul.f32 %v2345, %v2803
  %v2805 = vrcp.pop %v2435
  %v2806 = vmul.f32 %v2435, %v2805
  %v2807 = vsub.f32 1.0, %v2806
  %v2808 = vmul.f32 %v2805, %v2807
  %v2809 = vadd.f32 %v2805, %v2808
  %vm2810 = vweird.f32 %v2435
  %vm2811 = vweird.f32 %v2805
  %vm2812 = vmor %vm2810, %vm2811
  %v2813 = vsel %vm2812, %v2805, %v2809
  %v2814 = vand.u32 2147483647, %v2435
  %vm2815 = vcmp.eq.f32.partialorder %v2814, 8.507059e+37
  %v2816 = vand.u32 %v2435, 2147483648
  %v2817 = vor.u32 1.1754944e-38, %v2816
  %v2818 = vsel %vm2815, %v2817, %v2813
  %v2819 = vmul.f32 %v2347, %v2818
  %v2820 = vrcp.pop %v2438
  %v2821 = vmul.f32 %v2438, %v2820
  %v2822 = vsub.f32 1.0, %v2821
  %v2823 = vmul.f32 %v2820, %v2822
  %v2824 = vadd.f32 %v2820, %v2823
  %vm2825 = vweird.f32 %v2438
  %vm2826 = vweird.f32 %v2820
  %vm2827 = vmor %vm2825, %vm2826
  %v2828 = vsel %vm2827, %v2820, %v2824
  %v2829 = vand.u32 2147483647, %v2438
  %vm2830 = vcmp.eq.f32.partialorder %v2829, 8.507059e+37
  %v2831 = vand.u32 %v2438, 2147483648
  %v2832 = vor.u32 1.1754944e-38, %v2831
  %v2833 = vsel %vm2830, %v2832, %v2828
  %v2834 = vmul.f32 %v2349, %v2833
  %v2835 = vrcp.pop %v2441
  %v2836 = vmul.f32 %v2441, %v2835
  %v2837 = vsub.f32 1.0, %v2836
  %v2838 = vmul.f32 %v2835, %v2837
  %v2839 = vadd.f32 %v2835, %v2838
  %vm2840 = vweird.f32 %v2441
  %vm2841 = vweird.f32 %v2835
  %vm2842 = vmor %vm2840, %vm2841
  %v2843 = vsel %vm2842, %v2835, %v2839
  %v2844 = vand.u32 2147483647, %v2441
  %vm2845 = vcmp.eq.f32.partialorder %v2844, 8.507059e+37
  %v2846 = vand.u32 %v2441, 2147483648
  %v2847 = vor.u32 1.1754944e-38, %v2846
  %v2848 = vsel %vm2845, %v2847, %v2843
  %v2849 = vmul.f32 %v2351, %v2848
  %v2850 = vrcp.pop %v2444
  %v2851 = vmul.f32 %v2444, %v2850
  %v2852 = vsub.f32 1.0, %v2851
  %v2853 = vmul.f32 %v2850, %v2852
  %v2854 = vadd.f32 %v2850, %v2853
  %vm2855 = vweird.f32 %v2444
  %vm2856 = vweird.f32 %v2850
  %vm2857 = vmor %vm2855, %vm2856
  %v2858 = vsel %vm2857, %v2850, %v2854
  %v2859 = vand.u32 2147483647, %v2444
  %vm2860 = vcmp.eq.f32.partialorder %v2859, 8.507059e+37
  %v2861 = vand.u32 %v2444, 2147483648
  %v2862 = vor.u32 1.1754944e-38, %v2861
  %v2863 = vsel %vm2860, %v2862, %v2858
  %v2864 = vmul.f32 %v2353, %v2863
  %v2865 = vrcp.pop %v2447
  %v2866 = vmul.f32 %v2447, %v2865
  %v2867 = vsub.f32 1.0, %v2866
  %v2868 = vmul.f32 %v2865, %v2867
  %v2869 = vadd.f32 %v2865, %v2868
  %vm2870 = vweird.f32 %v2447
  %vm2871 = vweird.f32 %v2865
  %vm2872 = vmor %vm2870, %vm2871
  %v2873 = vsel %vm2872, %v2865, %v2869
  %v2874 = vand.u32 2147483647, %v2447
  %vm2875 = vcmp.eq.f32.partialorder %v2874, 8.507059e+37
  %v2876 = vand.u32 %v2447, 2147483648
  %v2877 = vor.u32 1.1754944e-38, %v2876
  %v2878 = vsel %vm2875, %v2877, %v2873
  %v2879 = vmul.f32 %v2355, %v2878
  %v2880 = vrcp.pop %v2450
  %v2881 = vmul.f32 %v2450, %v2880
  %v2882 = vsub.f32 1.0, %v2881
  %v2883 = vmul.f32 %v2880, %v2882
  %v2884 = vadd.f32 %v2880, %v2883
  %vm2885 = vweird.f32 %v2450
  %vm2886 = vweird.f32 %v2880
  %vm2887 = vmor %vm2885, %vm2886
  %v2888 = vsel %vm2887, %v2880, %v2884
  %v2889 = vand.u32 2147483647, %v2450
  %vm2890 = vcmp.eq.f32.partialorder %v2889, 8.507059e+37
  %v2891 = vand.u32 %v2450, 2147483648
  %v2892 = vor.u32 1.1754944e-38, %v2891
  %v2893 = vsel %vm2890, %v2892, %v2888
  %v2894 = vmul.f32 %v2357, %v2893
  %v2895 = vrcp.pop %v2453
  %v2896 = vmul.f32 %v2453, %v2895
  %v2897 = vsub.f32 1.0, %v2896
  %v2898 = vmul.f32 %v2895, %v2897
  %v2899 = vadd.f32 %v2895, %v2898
  %vm2900 = vweird.f32 %v2453
  %vm2901 = vweird.f32 %v2895
  %vm2902 = vmor %vm2900, %vm2901
  %v2903 = vsel %vm2902, %v2895, %v2899
  %v2904 = vand.u32 2147483647, %v2453
  %vm2905 = vcmp.eq.f32.partialorder %v2904, 8.507059e+37
  %v2906 = vand.u32 %v2453, 2147483648
  %v2907 = vor.u32 1.1754944e-38, %v2906
  %v2908 = vsel %vm2905, %v2907, %v2903
  %v2909 = vmul.f32 %v2359, %v2908
  %v2910 = vrcp.pop %v2456
  %v2911 = vmul.f32 %v2456, %v2910
  %v2912 = vsub.f32 1.0, %v2911
  %v2913 = vmul.f32 %v2910, %v2912
  %v2914 = vadd.f32 %v2910, %v2913
  %vm2915 = vweird.f32 %v2456
  %vm2916 = vweird.f32 %v2910
  %vm2917 = vmor %vm2915, %vm2916
  %v2918 = vsel %vm2917, %v2910, %v2914
  %v2919 = vand.u32 2147483647, %v2456
  %vm2920 = vcmp.eq.f32.partialorder %v2919, 8.507059e+37
  %v2921 = vand.u32 %v2456, 2147483648
  %v2922 = vor.u32 1.1754944e-38, %v2921
  %v2923 = vsel %vm2920, %v2922, %v2918
  %v2924 = vmul.f32 %v2361, %v2923
  %v2925 = vrcp.pop %v2459
  %v2926 = vmul.f32 %v2459, %v2925
  %v2927 = vsub.f32 1.0, %v2926
  %v2928 = vmul.f32 %v2925, %v2927
  %v2929 = vadd.f32 %v2925, %v2928
  %vm2930 = vweird.f32 %v2459
  %vm2931 = vweird.f32 %v2925
  %vm2932 = vmor %vm2930, %vm2931
  %v2933 = vsel %vm2932, %v2925, %v2929
  %v2934 = vand.u32 2147483647, %v2459
  %vm2935 = vcmp.eq.f32.partialorder %v2934, 8.507059e+37
  %v2936 = vand.u32 %v2459, 2147483648
  %v2937 = vor.u32 1.1754944e-38, %v2936
  %v2938 = vsel %vm2935, %v2937, %v2933
  %v2939 = vmul.f32 %v2363, %v2938
  %v2940 = vpack.c.bf16 %v2474, %v2474
  %v2941 = vpack.c.bf16 %v2489, %v2489
  %v2942 = vpack.c.bf16 %v2504, %v2504
  %v2943 = vpack.c.bf16 %v2519, %v2519
  %v2944 = vpack.c.bf16 %v2534, %v2534
  %v2945 = vpack.c.bf16 %v2549, %v2549
  %v2946 = vpack.c.bf16 %v2564, %v2564
  %v2947 = vpack.c.bf16 %v2579, %v2579
  %v2948 = vpack.c.bf16 %v2594, %v2594
  %v2949 = vpack.c.bf16 %v2609, %v2609
  %v2950 = vpack.c.bf16 %v2624, %v2624
  %v2951 = vpack.c.bf16 %v2639, %v2639
  %v2952 = vpack.c.bf16 %v2654, %v2654
  %v2953 = vpack.c.bf16 %v2669, %v2669
  %v2954 = vpack.c.bf16 %v2684, %v2684
  %v2955 = vpack.c.bf16 %v2699, %v2699
  %v2956 = vpack.c.bf16 %v2714, %v2714
  %v2957 = vpack.c.bf16 %v2729, %v2729
  %v2958 = vpack.c.bf16 %v2744, %v2744
  %v2959 = vpack.c.bf16 %v2759, %v2759
  %v2960 = vpack.c.bf16 %v2774, %v2774
  %v2961 = vpack.c.bf16 %v2789, %v2789
  %v2962 = vpack.c.bf16 %v2804, %v2804
  %v2963 = vpack.c.bf16 %v2819, %v2819
  %v2964 = vpack.c.bf16 %v2834, %v2834
  %v2965 = vpack.c.bf16 %v2849, %v2849
  %v2966 = vpack.c.bf16 %v2864, %v2864
  %v2967 = vpack.c.bf16 %v2879, %v2879
  %v2968 = vpack.c.bf16 %v2894, %v2894
  %v2969 = vpack.c.bf16 %v2909, %v2909
  %v2970 = vpack.c.bf16 %v2924, %v2924
  %v2971 = vpack.c.bf16 %v2939, %v2939
  %v2980 = vunpack.c.l.b16 %v2940
  %v2981 = vunpack.c.l.b16 %v2941
  %v2982 = vunpack.c.l.b16 %v2942
  %v2983 = vunpack.c.l.b16 %v2943
  %v2984 = vunpack.c.l.b16 %v2944
  %v2985 = vunpack.c.l.b16 %v2945
  %v2986 = vunpack.c.l.b16 %v2946
  %v2987 = vunpack.c.l.b16 %v2947
  %v2988 = vpack.c.b16 %v2981, %v2980
  %v2989 = vpack.c.b16 %v2983, %v2982
  %v2990 = vpack.c.b16 %v2985, %v2984
  %v2991 = vpack.c.b16 %v2987, %v2986
  %2992 = vrot.lane.b32.xlu0 %v304, 56
  %v2993 = vpop.permute.xlu0 %2992
  %2994 = vrot.lane.b32.xlu0 %v305, 56
  %v2995 = vpop.permute.xlu0 %2994
  %2996 = vrot.lane.b32.xlu0 %v306, 56
  %v2997 = vpop.permute.xlu0 %2996
  %2998 = vrot.lane.b32.xlu0 %v307, 56
  %v2999 = vpop.permute.xlu0 %2998
  %v3005 = vsel %vm613, %v2988, 0
  %v3008 = vsel %vm613, %v2989, 0
  %v3011 = vsel %vm613, %v2990, 0
  %v3014 = vsel %vm613, %v2991, 0
  %3016 = vmatpush.bf16.msra.mxu0 0
  %3017 = vmatpush.bf16.msra.mxu0 0
  %3018 = vmatpush.bf16.msra.mxu0 0
  %3019 = vmatpush.bf16.msra.mxu0 0
  %3020 = vmatpush.bf16.msra.mxu0 %v2999
  %3021 = vmatpush.bf16.msra.mxu0 %v2997
  %3022 = vmatpush.bf16.msra.mxu0 %v2995
  %3023 = vmatpush.bf16.msra.mxu0 %v2993
  %3024 = vmatmul.bf16.gmra.mxu0 %v3005
  %v3025 = vpop.f32.mrf.mxu0
  %v3026 = vadd.f32 0.0, %v3025
  %v3027 = vpop.f32.mrf.mxu0
  %v3028 = vadd.f32 0.0, %v3027
  %3029 = vmatmul.bf16.gmra.mxu0 %v3008
  %v3030 = vpop.f32.mrf.mxu0
  %v3031 = vadd.f32 0.0, %v3030
  %v3032 = vpop.f32.mrf.mxu0
  %v3033 = vadd.f32 0.0, %v3032
  %3034 = vmatmul.bf16.gmra.mxu0 %v3011
  %v3035 = vpop.f32.mrf.mxu0
  %v3036 = vadd.f32 0.0, %v3035
  %v3037 = vpop.f32.mrf.mxu0
  %v3038 = vadd.f32 0.0, %v3037
  %3039 = vmatmul.bf16.gmra.mxu0 %v3014
  %v3040 = vpop.f32.mrf.mxu0
  %v3041 = vadd.f32 0.0, %v3040
  %v3042 = vpop.f32.mrf.mxu0
  %v3043 = vadd.f32 0.0, %v3042
  %3044 = vdwg.mxu0
  %v3053 = vunpack.c.l.b16 %v2948
  %v3054 = vunpack.c.l.b16 %v2949
  %v3055 = vunpack.c.l.b16 %v2950
  %v3056 = vunpack.c.l.b16 %v2951
  %v3057 = vunpack.c.l.b16 %v2952
  %v3058 = vunpack.c.l.b16 %v2953
  %v3059 = vunpack.c.l.b16 %v2954
  %v3060 = vunpack.c.l.b16 %v2955
  %v3061 = vpack.c.b16 %v3054, %v3053
  %v3062 = vpack.c.b16 %v3056, %v3055
  %v3063 = vpack.c.b16 %v3058, %v3057
  %v3064 = vpack.c.b16 %v3060, %v3059
  %3065 = vrot.lane.b32.xlu0 %v386, 56
  %v3066 = vpop.permute.xlu0 %3065
  %3067 = vrot.lane.b32.xlu0 %v387, 56
  %v3068 = vpop.permute.xlu0 %3067
  %3069 = vrot.lane.b32.xlu0 %v388, 56
  %v3070 = vpop.permute.xlu0 %3069
  %3071 = vrot.lane.b32.xlu0 %v389, 56
  %v3072 = vpop.permute.xlu0 %3071
  %v3078 = vsel %vm613, %v3061, 0
  %v3081 = vsel %vm613, %v3062, 0
  %v3084 = vsel %vm613, %v3063, 0
  %v3087 = vsel %vm613, %v3064, 0
  %3089 = vmatpush.bf16.msra.mxu0 0
  %3090 = vmatpush.bf16.msra.mxu0 0
  %3091 = vmatpush.bf16.msra.mxu0 0
  %3092 = vmatpush.bf16.msra.mxu0 0
  %3093 = vmatpush.bf16.msra.mxu0 %v3072
  %3094 = vmatpush.bf16.msra.mxu0 %v3070
  %3095 = vmatpush.bf16.msra.mxu0 %v3068
  %3096 = vmatpush.bf16.msra.mxu0 %v3066
  %3097 = vmatmul.bf16.gmra.mxu0 %v3078
  %v3098 = vpop.f32.mrf.mxu0
  %v3099 = vadd.f32 0.0, %v3098
  %v3100 = vpop.f32.mrf.mxu0
  %v3101 = vadd.f32 0.0, %v3100
  %3102 = vmatmul.bf16.gmra.mxu0 %v3081
  %v3103 = vpop.f32.mrf.mxu0
  %v3104 = vadd.f32 0.0, %v3103
  %v3105 = vpop.f32.mrf.mxu0
  %v3106 = vadd.f32 0.0, %v3105
  %3107 = vmatmul.bf16.gmra.mxu0 %v3084
  %v3108 = vpop.f32.mrf.mxu0
  %v3109 = vadd.f32 0.0, %v3108
  %v3110 = vpop.f32.mrf.mxu0
  %v3111 = vadd.f32 0.0, %v3110
  %3112 = vmatmul.bf16.gmra.mxu0 %v3087
  %v3113 = vpop.f32.mrf.mxu0
  %v3114 = vadd.f32 0.0, %v3113
  %v3115 = vpop.f32.mrf.mxu0
  %v3116 = vadd.f32 0.0, %v3115
  %3117 = vdwg.mxu0
  %v3126 = vunpack.c.l.b16 %v2956
  %v3127 = vunpack.c.l.b16 %v2957
  %v3128 = vunpack.c.l.b16 %v2958
  %v3129 = vunpack.c.l.b16 %v2959
  %v3130 = vunpack.c.l.b16 %v2960
  %v3131 = vunpack.c.l.b16 %v2961
  %v3132 = vunpack.c.l.b16 %v2962
  %v3133 = vunpack.c.l.b16 %v2963
  %v3134 = vpack.c.b16 %v3127, %v3126
  %v3135 = vpack.c.b16 %v3129, %v3128
  %v3136 = vpack.c.b16 %v3131, %v3130
  %v3137 = vpack.c.b16 %v3133, %v3132
  %3138 = vrot.lane.b32.xlu0 %v467, 56
  %v3139 = vpop.permute.xlu0 %3138
  %3140 = vrot.lane.b32.xlu0 %v468, 56
  %v3141 = vpop.permute.xlu0 %3140
  %3142 = vrot.lane.b32.xlu0 %v469, 56
  %v3143 = vpop.permute.xlu0 %3142
  %3144 = vrot.lane.b32.xlu0 %v470, 56
  %v3145 = vpop.permute.xlu0 %3144
  %v3151 = vsel %vm613, %v3134, 0
  %v3154 = vsel %vm613, %v3135, 0
  %v3157 = vsel %vm613, %v3136, 0
  %v3160 = vsel %vm613, %v3137, 0
  %3162 = vmatpush.bf16.msra.mxu0 0
  %3163 = vmatpush.bf16.msra.mxu0 0
  %3164 = vmatpush.bf16.msra.mxu0 0
  %3165 = vmatpush.bf16.msra.mxu0 0
  %3166 = vmatpush.bf16.msra.mxu0 %v3145
  %3167 = vmatpush.bf16.msra.mxu0 %v3143
  %3168 = vmatpush.bf16.msra.mxu0 %v3141
  %3169 = vmatpush.bf16.msra.mxu0 %v3139
  %3170 = vmatmul.bf16.gmra.mxu0 %v3151
  %v3171 = vpop.f32.mrf.mxu0
  %v3172 = vadd.f32 0.0, %v3171
  %v3173 = vpop.f32.mrf.mxu0
  %v3174 = vadd.f32 0.0, %v3173
  %3175 = vmatmul.bf16.gmra.mxu0 %v3154
  %v3176 = vpop.f32.mrf.mxu0
  %v3177 = vadd.f32 0.0, %v3176
  %v3178 = vpop.f32.mrf.mxu0
  %v3179 = vadd.f32 0.0, %v3178
  %3180 = vmatmul.bf16.gmra.mxu0 %v3157
  %v3181 = vpop.f32.mrf.mxu0
  %v3182 = vadd.f32 0.0, %v3181
  %v3183 = vpop.f32.mrf.mxu0
  %v3184 = vadd.f32 0.0, %v3183
  %3185 = vmatmul.bf16.gmra.mxu0 %v3160
  %v3186 = vpop.f32.mrf.mxu0
  %v3187 = vadd.f32 0.0, %v3186
  %v3188 = vpop.f32.mrf.mxu0
  %v3189 = vadd.f32 0.0, %v3188
  %3190 = vdwg.mxu0
  %v3199 = vunpack.c.l.b16 %v2964
  %v3200 = vunpack.c.l.b16 %v2965
  %v3201 = vunpack.c.l.b16 %v2966
  %v3202 = vunpack.c.l.b16 %v2967
  %v3203 = vunpack.c.l.b16 %v2968
  %v3204 = vunpack.c.l.b16 %v2969
  %v3205 = vunpack.c.l.b16 %v2970
  %v3206 = vunpack.c.l.b16 %v2971
  %v3207 = vpack.c.b16 %v3200, %v3199
  %v3208 = vpack.c.b16 %v3202, %v3201
  %v3209 = vpack.c.b16 %v3204, %v3203
  %v3210 = vpack.c.b16 %v3206, %v3205
  %3211 = vrot.lane.b32.xlu0 %v548, 56
  %v3212 = vpop.permute.xlu0 %3211
  %3213 = vrot.lane.b32.xlu0 %v549, 56
  %v3214 = vpop.permute.xlu0 %3213
  %3215 = vrot.lane.b32.xlu0 %v550, 56
  %v3216 = vpop.permute.xlu0 %3215
  %3217 = vrot.lane.b32.xlu0 %v551, 56
  %v3218 = vpop.permute.xlu0 %3217
  %v3224 = vsel %vm613, %v3207, 0
  %v3227 = vsel %vm613, %v3208, 0
  %v3230 = vsel %vm613, %v3209, 0
  %v3233 = vsel %vm613, %v3210, 0
  %3235 = vmatpush.bf16.msra.mxu0 0
  %3236 = vmatpush.bf16.msra.mxu0 0
  %3237 = vmatpush.bf16.msra.mxu0 0
  %3238 = vmatpush.bf16.msra.mxu0 0
  %3239 = vmatpush.bf16.msra.mxu0 %v3218
  %3240 = vmatpush.bf16.msra.mxu0 %v3216
  %3241 = vmatpush.bf16.msra.mxu0 %v3214
  %3242 = vmatpush.bf16.msra.mxu0 %v3212
  %3243 = vmatmul.bf16.gmra.mxu0 %v3224
  %v3244 = vpop.f32.mrf.mxu0
  %v3245 = vadd.f32 0.0, %v3244
  %v3246 = vpop.f32.mrf.mxu0
  %v3247 = vadd.f32 0.0, %v3246
  %3248 = vmatmul.bf16.gmra.mxu0 %v3227
  %v3249 = vpop.f32.mrf.mxu0
  %v3250 = vadd.f32 0.0, %v3249
  %v3251 = vpop.f32.mrf.mxu0
  %v3252 = vadd.f32 0.0, %v3251
  %3253 = vmatmul.bf16.gmra.mxu0 %v3230
  %v3254 = vpop.f32.mrf.mxu0
  %v3255 = vadd.f32 0.0, %v3254
  %v3256 = vpop.f32.mrf.mxu0
  %v3257 = vadd.f32 0.0, %v3256
  %3258 = vmatmul.bf16.gmra.mxu0 %v3233
  %v3259 = vpop.f32.mrf.mxu0
  %v3260 = vadd.f32 0.0, %v3259
  %v3261 = vpop.f32.mrf.mxu0
  %v3262 = vadd.f32 0.0, %v3261
  %3263 = vdwg.mxu0
  %v3264 = vpack.c.bf16 %v3028, %v3026
  %v3265 = vpack.c.bf16 %v3033, %v3031
  %v3266 = vpack.c.bf16 %v3038, %v3036
  %v3267 = vpack.c.bf16 %v3043, %v3041
  %v3268 = vpack.c.bf16 %v3101, %v3099
  %v3269 = vpack.c.bf16 %v3106, %v3104
  %v3270 = vpack.c.bf16 %v3111, %v3109
  %v3271 = vpack.c.bf16 %v3116, %v3114
  %v3272 = vpack.c.bf16 %v3174, %v3172
  %v3273 = vpack.c.bf16 %v3179, %v3177
  %v3274 = vpack.c.bf16 %v3184, %v3182
  %v3275 = vpack.c.bf16 %v3189, %v3187
  %v3276 = vpack.c.bf16 %v3247, %v3245
  %v3277 = vpack.c.bf16 %v3252, %v3250
  %v3278 = vpack.c.bf16 %v3257, %v3255
  %v3279 = vpack.c.bf16 %v3262, %v3260
  %v3280 = vld [vmem:[%s3 + $0x4] sm:$0xf]
  %v3282 = vsel %vm316, %v3264, 0
  %v3285 = vsel %vm316, %v3265, 0
  %v3288 = vsel %vm316, %v3266, 0
  %v3291 = vsel %vm316, %v3267, 0
  %v3294 = vsel %vm316, %v3268, 0
  %v3297 = vsel %vm316, %v3269, 0
  %v3300 = vsel %vm316, %v3270, 0
  %v3303 = vsel %vm316, %v3271, 0
  %v3306 = vsel %vm316, %v3272, 0
  %v3309 = vsel %vm316, %v3273, 0
  %v3312 = vsel %vm316, %v3274, 0
  %v3315 = vsel %vm316, %v3275, 0
  %v3318 = vsel %vm316, %v3276, 0
  %v3321 = vsel %vm316, %v3277, 0
  %v3324 = vsel %vm316, %v3278, 0
  %v3327 = vsel %vm316, %v3279, 0
  %v3330 = vsel %vm1771, %v3280, 0
  %3332 = vmatpush.bf16.msra.mxu0 0
  %3333 = vmatpush.bf16.msra.mxu0 0
  %3334 = vmatpush.bf16.msra.mxu0 0
  %3335 = vmatpush.bf16.msra.mxu0 0
  %3336 = vmatpush.bf16.msra.mxu0 0
  %3337 = vmatpush.bf16.msra.mxu0 0
  %3338 = vmatpush.bf16.msra.mxu0 0
  %3339 = vmatpush.bf16.msra.mxu0 %v3330
  %3340 = vmatmul.bf16.gmra.mxu0 %v3282
  %v3341 = vpop.f32.mrf.mxu0
  %v3342 = vadd.f32 0.0, %v3341
  %v3343 = vpop.f32.mrf.mxu0
  %v3344 = vadd.f32 0.0, %v3343
  %3345 = vmatmul.bf16.gmra.mxu0 %v3285
  %v3346 = vpop.f32.mrf.mxu0
  %v3347 = vadd.f32 0.0, %v3346
  %v3348 = vpop.f32.mrf.mxu0
  %v3349 = vadd.f32 0.0, %v3348
  %3350 = vmatmul.bf16.gmra.mxu0 %v3288
  %v3351 = vpop.f32.mrf.mxu0
  %v3352 = vadd.f32 0.0, %v3351
  %v3353 = vpop.f32.mrf.mxu0
  %v3354 = vadd.f32 0.0, %v3353
  %3355 = vmatmul.bf16.gmra.mxu0 %v3291
  %v3356 = vpop.f32.mrf.mxu0
  %v3357 = vadd.f32 0.0, %v3356
  %v3358 = vpop.f32.mrf.mxu0
  %v3359 = vadd.f32 0.0, %v3358
  %3360 = vmatmul.bf16.gmra.mxu0 %v3294
  %v3361 = vpop.f32.mrf.mxu0
  %v3362 = vadd.f32 0.0, %v3361
  %v3363 = vpop.f32.mrf.mxu0
  %v3364 = vadd.f32 0.0, %v3363
  %3365 = vmatmul.bf16.gmra.mxu0 %v3297
  %v3366 = vpop.f32.mrf.mxu0
  %v3367 = vadd.f32 0.0, %v3366
  %v3368 = vpop.f32.mrf.mxu0
  %v3369 = vadd.f32 0.0, %v3368
  %3370 = vmatmul.bf16.gmra.mxu0 %v3300
  %v3371 = vpop.f32.mrf.mxu0
  %v3372 = vadd.f32 0.0, %v3371
  %v3373 = vpop.f32.mrf.mxu0
  %v3374 = vadd.f32 0.0, %v3373
  %3375 = vmatmul.bf16.gmra.mxu0 %v3303
  %v3376 = vpop.f32.mrf.mxu0
  %v3377 = vadd.f32 0.0, %v3376
  %v3378 = vpop.f32.mrf.mxu0
  %v3379 = vadd.f32 0.0, %v3378
  %3380 = vmatmul.bf16.gmra.mxu0 %v3306
  %v3381 = vpop.f32.mrf.mxu0
  %v3382 = vadd.f32 0.0, %v3381
  %v3383 = vpop.f32.mrf.mxu0
  %v3384 = vadd.f32 0.0, %v3383
  %3385 = vmatmul.bf16.gmra.mxu0 %v3309
  %v3386 = vpop.f32.mrf.mxu0
  %v3387 = vadd.f32 0.0, %v3386
  %v3388 = vpop.f32.mrf.mxu0
  %v3389 = vadd.f32 0.0, %v3388
  %3390 = vmatmul.bf16.gmra.mxu0 %v3312
  %v3391 = vpop.f32.mrf.mxu0
  %v3392 = vadd.f32 0.0, %v3391
  %v3393 = vpop.f32.mrf.mxu0
  %v3394 = vadd.f32 0.0, %v3393
  %3395 = vmatmul.bf16.gmra.mxu0 %v3315
  %v3396 = vpop.f32.mrf.mxu0
  %v3397 = vadd.f32 0.0, %v3396
  %v3398 = vpop.f32.mrf.mxu0
  %v3399 = vadd.f32 0.0, %v3398
  %3400 = vmatmul.bf16.gmra.mxu0 %v3318
  %v3401 = vpop.f32.mrf.mxu0
  %v3402 = vadd.f32 0.0, %v3401
  %v3403 = vpop.f32.mrf.mxu0
  %v3404 = vadd.f32 0.0, %v3403
  %3405 = vmatmul.bf16.gmra.mxu0 %v3321
  %v3406 = vpop.f32.mrf.mxu0
  %v3407 = vadd.f32 0.0, %v3406
  %v3408 = vpop.f32.mrf.mxu0
  %v3409 = vadd.f32 0.0, %v3408
  %3410 = vmatmul.bf16.gmra.mxu0 %v3324
  %v3411 = vpop.f32.mrf.mxu0
  %v3412 = vadd.f32 0.0, %v3411
  %v3413 = vpop.f32.mrf.mxu0
  %v3414 = vadd.f32 0.0, %v3413
  %3415 = vmatmul.bf16.gmra.mxu0 %v3327
  %v3416 = vpop.f32.mrf.mxu0
  %v3417 = vadd.f32 0.0, %v3416
  %v3418 = vpop.f32.mrf.mxu0
  %v3419 = vadd.f32 0.0, %v3418
  %3420 = vdwg.mxu0
  %v3421 = vadd.f32 %v1864, %v3342
  %v3422 = vadd.f32 %v1865, %v3344
  %v3423 = vadd.f32 %v1866, %v3347
  %v3424 = vadd.f32 %v1867, %v3349
  %v3425 = vadd.f32 %v1868, %v3352
  %v3426 = vadd.f32 %v1869, %v3354
  %v3427 = vadd.f32 %v1870, %v3357
  %v3428 = vadd.f32 %v1871, %v3359
  %v3429 = vadd.f32 %v1872, %v3362
  %v3430 = vadd.f32 %v1873, %v3364
  %v3431 = vadd.f32 %v1874, %v3367
  %v3432 = vadd.f32 %v1875, %v3369
  %v3433 = vadd.f32 %v1876, %v3372
  %v3434 = vadd.f32 %v1877, %v3374
  %v3435 = vadd.f32 %v1878, %v3377
  %v3436 = vadd.f32 %v1879, %v3379
  %v3437 = vadd.f32 %v1880, %v3382
  %v3438 = vadd.f32 %v1881, %v3384
  %v3439 = vadd.f32 %v1882, %v3387
  %v3440 = vadd.f32 %v1883, %v3389
  %v3441 = vadd.f32 %v1884, %v3392
  %v3442 = vadd.f32 %v1885, %v3394
  %v3443 = vadd.f32 %v1886, %v3397
  %v3444 = vadd.f32 %v1887, %v3399
  %v3445 = vadd.f32 %v1888, %v3402
  %v3446 = vadd.f32 %v1889, %v3404
  %v3447 = vadd.f32 %v1890, %v3407
  %v3448 = vadd.f32 %v1891, %v3409
  %v3449 = vadd.f32 %v1892, %v3412
  %v3450 = vadd.f32 %v1893, %v3414
  %v3451 = vadd.f32 %v1894, %v3417
  %v3452 = vadd.f32 %v1895, %v3419
  %3453 = vrot.lane.b32.xlu0 %v304, 112
  %v3454 = vpop.permute.xlu0 %3453
  %3455 = vrot.lane.b32.xlu0 %v305, 112
  %v3456 = vpop.permute.xlu0 %3455
  %3457 = vrot.lane.b32.xlu0 %v306, 112
  %v3458 = vpop.permute.xlu0 %3457
  %3459 = vrot.lane.b32.xlu0 %v307, 112
  %v3460 = vpop.permute.xlu0 %3459
  %3461 = vrot.lane.b32.xlu0 %v304, 80
  %v3462 = vpop.permute.xlu0 %3461
  %3463 = vrot.lane.b32.xlu0 %v305, 80
  %v3464 = vpop.permute.xlu0 %3463
  %3465 = vrot.lane.b32.xlu0 %v306, 80
  %v3466 = vpop.permute.xlu0 %3465
  %3467 = vrot.lane.b32.xlu0 %v307, 80
  %v3468 = vpop.permute.xlu0 %3467
  %v3470 = vsel %vm316, %v3454, 0
  %v3473 = vsel %vm316, %v3456, 0
  %v3476 = vsel %vm316, %v3458, 0
  %v3479 = vsel %vm316, %v3460, 0
  %v3482 = vsel %vm316, %v3462, 0
  %v3485 = vsel %vm316, %v3464, 0
  %v3488 = vsel %vm316, %v3466, 0
  %v3491 = vsel %vm316, %v3468, 0
  %3493 = vmatpush.bf16.xpose.msra.mxu0 0
  %3494 = vmatpush.bf16.xpose.msra.mxu0 0
  %3495 = vmatpush.bf16.xpose.msra.mxu0 0
  %3496 = vmatpush.bf16.xpose.msra.mxu0 0
  %3497 = vmatpush.bf16.xpose.msra.mxu0 %v3491
  %3498 = vmatpush.bf16.xpose.msra.mxu0 %v3488
  %3499 = vmatpush.bf16.xpose.msra.mxu0 %v3485
  %3500 = vmatpush.bf16.xpose.msra.mxu0 %v3482
  %3501 = vmatmul.bf16.gmra.mxu0 %v3470
  %v3502 = vpop.f32.mrf.mxu0
  %v3503 = vadd.f32 0.0, %v3502
  %v3504 = vpop.f32.mrf.mxu0
  %v3505 = vadd.f32 0.0, %v3504
  %3506 = vmatmul.bf16.gmra.mxu0 %v3473
  %v3507 = vpop.f32.mrf.mxu0
  %v3508 = vadd.f32 0.0, %v3507
  %v3509 = vpop.f32.mrf.mxu0
  %v3510 = vadd.f32 0.0, %v3509
  %3511 = vmatmul.bf16.gmra.mxu0 %v3476
  %v3512 = vpop.f32.mrf.mxu0
  %v3513 = vadd.f32 0.0, %v3512
  %v3514 = vpop.f32.mrf.mxu0
  %v3515 = vadd.f32 0.0, %v3514
  %3516 = vmatmul.bf16.gmra.mxu0 %v3479
  %v3517 = vpop.f32.mrf.mxu0
  %v3518 = vadd.f32 0.0, %v3517
  %v3519 = vpop.f32.mrf.mxu0
  %v3520 = vadd.f32 0.0, %v3519
  %3521 = vdwg.mxu0
  %3522 = vrot.lane.b32.xlu0 %v386, 112
  %v3523 = vpop.permute.xlu0 %3522
  %3524 = vrot.lane.b32.xlu0 %v387, 112
  %v3525 = vpop.permute.xlu0 %3524
  %3526 = vrot.lane.b32.xlu0 %v388, 112
  %v3527 = vpop.permute.xlu0 %3526
  %3528 = vrot.lane.b32.xlu0 %v389, 112
  %v3529 = vpop.permute.xlu0 %3528
  %3530 = vrot.lane.b32.xlu0 %v386, 80
  %v3531 = vpop.permute.xlu0 %3530
  %3532 = vrot.lane.b32.xlu0 %v387, 80
  %v3533 = vpop.permute.xlu0 %3532
  %3534 = vrot.lane.b32.xlu0 %v388, 80
  %v3535 = vpop.permute.xlu0 %3534
  %3536 = vrot.lane.b32.xlu0 %v389, 80
  %v3537 = vpop.permute.xlu0 %3536
  %v3539 = vsel %vm316, %v3523, 0
  %v3542 = vsel %vm316, %v3525, 0
  %v3545 = vsel %vm316, %v3527, 0
  %v3548 = vsel %vm316, %v3529, 0
  %v3551 = vsel %vm316, %v3531, 0
  %v3554 = vsel %vm316, %v3533, 0
  %v3557 = vsel %vm316, %v3535, 0
  %v3560 = vsel %vm316, %v3537, 0
  %3562 = vmatpush.bf16.xpose.msra.mxu0 0
  %3563 = vmatpush.bf16.xpose.msra.mxu0 0
  %3564 = vmatpush.bf16.xpose.msra.mxu0 0
  %3565 = vmatpush.bf16.xpose.msra.mxu0 0
  %3566 = vmatpush.bf16.xpose.msra.mxu0 %v3560
  %3567 = vmatpush.bf16.xpose.msra.mxu0 %v3557
  %3568 = vmatpush.bf16.xpose.msra.mxu0 %v3554
  %3569 = vmatpush.bf16.xpose.msra.mxu0 %v3551
  %3570 = vmatmul.bf16.gmra.mxu0 %v3539
  %v3571 = vpop.f32.mrf.mxu0
  %v3572 = vadd.f32 0.0, %v3571
  %v3573 = vpop.f32.mrf.mxu0
  %v3574 = vadd.f32 0.0, %v3573
  %3575 = vmatmul.bf16.gmra.mxu0 %v3542
  %v3576 = vpop.f32.mrf.mxu0
  %v3577 = vadd.f32 0.0, %v3576
  %v3578 = vpop.f32.mrf.mxu0
  %v3579 = vadd.f32 0.0, %v3578
  %3580 = vmatmul.bf16.gmra.mxu0 %v3545
  %v3581 = vpop.f32.mrf.mxu0
  %v3582 = vadd.f32 0.0, %v3581
  %v3583 = vpop.f32.mrf.mxu0
  %v3584 = vadd.f32 0.0, %v3583
  %3585 = vmatmul.bf16.gmra.mxu0 %v3548
  %v3586 = vpop.f32.mrf.mxu0
  %v3587 = vadd.f32 0.0, %v3586
  %v3588 = vpop.f32.mrf.mxu0
  %v3589 = vadd.f32 0.0, %v3588
  %3590 = vdwg.mxu0
  %3591 = vrot.lane.b32.xlu0 %v467, 112
  %v3592 = vpop.permute.xlu0 %3591
  %3593 = vrot.lane.b32.xlu0 %v468, 112
  %v3594 = vpop.permute.xlu0 %3593
  %3595 = vrot.lane.b32.xlu0 %v469, 112
  %v3596 = vpop.permute.xlu0 %3595
  %3597 = vrot.lane.b32.xlu0 %v470, 112
  %v3598 = vpop.permute.xlu0 %3597
  %3599 = vrot.lane.b32.xlu0 %v467, 80
  %v3600 = vpop.permute.xlu0 %3599
  %3601 = vrot.lane.b32.xlu0 %v468, 80
  %v3602 = vpop.permute.xlu0 %3601
  %3603 = vrot.lane.b32.xlu0 %v469, 80
  %v3604 = vpop.permute.xlu0 %3603
  %3605 = vrot.lane.b32.xlu0 %v470, 80
  %v3606 = vpop.permute.xlu0 %3605
  %v3608 = vsel %vm316, %v3592, 0
  %v3611 = vsel %vm316, %v3594, 0
  %v3614 = vsel %vm316, %v3596, 0
  %v3617 = vsel %vm316, %v3598, 0
  %v3620 = vsel %vm316, %v3600, 0
  %v3623 = vsel %vm316, %v3602, 0
  %v3626 = vsel %vm316, %v3604, 0
  %v3629 = vsel %vm316, %v3606, 0
  %3631 = vmatpush.bf16.xpose.msra.mxu0 0
  %3632 = vmatpush.bf16.xpose.msra.mxu0 0
  %3633 = vmatpush.bf16.xpose.msra.mxu0 0
  %3634 = vmatpush.bf16.xpose.msra.mxu0 0
  %3635 = vmatpush.bf16.xpose.msra.mxu0 %v3629
  %3636 = vmatpush.bf16.xpose.msra.mxu0 %v3626
  %3637 = vmatpush.bf16.xpose.msra.mxu0 %v3623
  %3638 = vmatpush.bf16.xpose.msra.mxu0 %v3620
  %3639 = vmatmul.bf16.gmra.mxu0 %v3608
  %v3640 = vpop.f32.mrf.mxu0
  %v3641 = vadd.f32 0.0, %v3640
  %v3642 = vpop.f32.mrf.mxu0
  %v3643 = vadd.f32 0.0, %v3642
  %3644 = vmatmul.bf16.gmra.mxu0 %v3611
  %v3645 = vpop.f32.mrf.mxu0
  %v3646 = vadd.f32 0.0, %v3645
  %v3647 = vpop.f32.mrf.mxu0
  %v3648 = vadd.f32 0.0, %v3647
  %3649 = vmatmul.bf16.gmra.mxu0 %v3614
  %v3650 = vpop.f32.mrf.mxu0
  %v3651 = vadd.f32 0.0, %v3650
  %v3652 = vpop.f32.mrf.mxu0
  %v3653 = vadd.f32 0.0, %v3652
  %3654 = vmatmul.bf16.gmra.mxu0 %v3617
  %v3655 = vpop.f32.mrf.mxu0
  %v3656 = vadd.f32 0.0, %v3655
  %v3657 = vpop.f32.mrf.mxu0
  %v3658 = vadd.f32 0.0, %v3657
  %3659 = vdwg.mxu0
  %3660 = vrot.lane.b32.xlu0 %v548, 112
  %v3661 = vpop.permute.xlu0 %3660
  %3662 = vrot.lane.b32.xlu0 %v549, 112
  %v3663 = vpop.permute.xlu0 %3662
  %3664 = vrot.lane.b32.xlu0 %v550, 112
  %v3665 = vpop.permute.xlu0 %3664
  %3666 = vrot.lane.b32.xlu0 %v551, 112
  %v3667 = vpop.permute.xlu0 %3666
  %3668 = vrot.lane.b32.xlu0 %v548, 80
  %v3669 = vpop.permute.xlu0 %3668
  %3670 = vrot.lane.b32.xlu0 %v549, 80
  %v3671 = vpop.permute.xlu0 %3670
  %3672 = vrot.lane.b32.xlu0 %v550, 80
  %v3673 = vpop.permute.xlu0 %3672
  %3674 = vrot.lane.b32.xlu0 %v551, 80
  %v3675 = vpop.permute.xlu0 %3674
  %v3677 = vsel %vm316, %v3661, 0
  %v3680 = vsel %vm316, %v3663, 0
  %v3683 = vsel %vm316, %v3665, 0
  %v3686 = vsel %vm316, %v3667, 0
  %v3689 = vsel %vm316, %v3669, 0
  %v3692 = vsel %vm316, %v3671, 0
  %v3695 = vsel %vm316, %v3673, 0
  %v3698 = vsel %vm316, %v3675, 0
  %3700 = vmatpush.bf16.xpose.msra.mxu0 0
  %3701 = vmatpush.bf16.xpose.msra.mxu0 0
  %3702 = vmatpush.bf16.xpose.msra.mxu0 0
  %3703 = vmatpush.bf16.xpose.msra.mxu0 0
  %3704 = vmatpush.bf16.xpose.msra.mxu0 %v3698
  %3705 = vmatpush.bf16.xpose.msra.mxu0 %v3695
  %3706 = vmatpush.bf16.xpose.msra.mxu0 %v3692
  %3707 = vmatpush.bf16.xpose.msra.mxu0 %v3689
  %3708 = vmatmul.bf16.gmra.mxu0 %v3677
  %v3709 = vpop.f32.mrf.mxu0
  %v3710 = vadd.f32 0.0, %v3709
  %v3711 = vpop.f32.mrf.mxu0
  %v3712 = vadd.f32 0.0, %v3711
  %3713 = vmatmul.bf16.gmra.mxu0 %v3680
  %v3714 = vpop.f32.mrf.mxu0
  %v3715 = vadd.f32 0.0, %v3714
  %v3716 = vpop.f32.mrf.mxu0
  %v3717 = vadd.f32 0.0, %v3716
  %3718 = vmatmul.bf16.gmra.mxu0 %v3683
  %v3719 = vpop.f32.mrf.mxu0
  %v3720 = vadd.f32 0.0, %v3719
  %v3721 = vpop.f32.mrf.mxu0
  %v3722 = vadd.f32 0.0, %v3721
  %3723 = vmatmul.bf16.gmra.mxu0 %v3686
  %v3724 = vpop.f32.mrf.mxu0
  %v3725 = vadd.f32 0.0, %v3724
  %v3726 = vpop.f32.mrf.mxu0
  %v3727 = vadd.f32 0.0, %v3726
  %3728 = vdwg.mxu0
  %v3729 = vsel %vm613, %v3503, -inf
  %3730 = vmax.xlane.f32.xlu0 %v3729
  %v3731 = vpop.xlane.xlu0 %3730
  %v3732 = vsel %vm613, %v3505, -inf
  %3733 = vmax.xlane.f32.xlu0 %v3732
  %v3734 = vpop.xlane.xlu0 %3733
  %v3735 = vsel %vm613, %v3508, -inf
  %3736 = vmax.xlane.f32.xlu0 %v3735
  %v3737 = vpop.xlane.xlu0 %3736
  %v3738 = vsel %vm613, %v3510, -inf
  %3739 = vmax.xlane.f32.xlu0 %v3738
  %v3740 = vpop.xlane.xlu0 %3739
  %v3741 = vsel %vm613, %v3513, -inf
  %3742 = vmax.xlane.f32.xlu0 %v3741
  %v3743 = vpop.xlane.xlu0 %3742
  %v3744 = vsel %vm613, %v3515, -inf
  %3745 = vmax.xlane.f32.xlu0 %v3744
  %v3746 = vpop.xlane.xlu0 %3745
  %v3747 = vsel %vm613, %v3518, -inf
  %3748 = vmax.xlane.f32.xlu0 %v3747
  %v3749 = vpop.xlane.xlu0 %3748
  %v3750 = vsel %vm613, %v3520, -inf
  %3751 = vmax.xlane.f32.xlu0 %v3750
  %v3752 = vpop.xlane.xlu0 %3751
  %v3753 = vsel %vm613, %v3572, -inf
  %3754 = vmax.xlane.f32.xlu0 %v3753
  %v3755 = vpop.xlane.xlu0 %3754
  %v3756 = vsel %vm613, %v3574, -inf
  %3757 = vmax.xlane.f32.xlu0 %v3756
  %v3758 = vpop.xlane.xlu0 %3757
  %v3759 = vsel %vm613, %v3577, -inf
  %3760 = vmax.xlane.f32.xlu0 %v3759
  %v3761 = vpop.xlane.xlu0 %3760
  %v3762 = vsel %vm613, %v3579, -inf
  %3763 = vmax.xlane.f32.xlu0 %v3762
  %v3764 = vpop.xlane.xlu0 %3763
  %v3765 = vsel %vm613, %v3582, -inf
  %3766 = vmax.xlane.f32.xlu0 %v3765
  %v3767 = vpop.xlane.xlu0 %3766
  %v3768 = vsel %vm613, %v3584, -inf
  %3769 = vmax.xlane.f32.xlu0 %v3768
  %v3770 = vpop.xlane.xlu0 %3769
  %v3771 = vsel %vm613, %v3587, -inf
  %3772 = vmax.xlane.f32.xlu0 %v3771
  %v3773 = vpop.xlane.xlu0 %3772
  %v3774 = vsel %vm613, %v3589, -inf
  %3775 = vmax.xlane.f32.xlu0 %v3774
  %v3776 = vpop.xlane.xlu0 %3775
  %v3777 = vsel %vm613, %v3641, -inf
  %3778 = vmax.xlane.f32.xlu0 %v3777
  %v3779 = vpop.xlane.xlu0 %3778
  %v3780 = vsel %vm613, %v3643, -inf
  %3781 = vmax.xlane.f32.xlu0 %v3780
  %v3782 = vpop.xlane.xlu0 %3781
  %v3783 = vsel %vm613, %v3646, -inf
  %3784 = vmax.xlane.f32.xlu0 %v3783
  %v3785 = vpop.xlane.xlu0 %3784
  %v3786 = vsel %vm613, %v3648, -inf
  %3787 = vmax.xlane.f32.xlu0 %v3786
  %v3788 = vpop.xlane.xlu0 %3787
  %v3789 = vsel %vm613, %v3651, -inf
  %3790 = vmax.xlane.f32.xlu0 %v3789
  %v3791 = vpop.xlane.xlu0 %3790
  %v3792 = vsel %vm613, %v3653, -inf
  %3793 = vmax.xlane.f32.xlu0 %v3792
  %v3794 = vpop.xlane.xlu0 %3793
  %v3795 = vsel %vm613, %v3656, -inf
  %3796 = vmax.xlane.f32.xlu0 %v3795
  %v3797 = vpop.xlane.xlu0 %3796
  %v3798 = vsel %vm613, %v3658, -inf
  %3799 = vmax.xlane.f32.xlu0 %v3798
  %v3800 = vpop.xlane.xlu0 %3799
  %v3801 = vsel %vm613, %v3710, -inf
  %3802 = vmax.xlane.f32.xlu0 %v3801
  %v3803 = vpop.xlane.xlu0 %3802
  %v3804 = vsel %vm613, %v3712, -inf
  %3805 = vmax.xlane.f32.xlu0 %v3804
  %v3806 = vpop.xlane.xlu0 %3805
  %v3807 = vsel %vm613, %v3715, -inf
  %3808 = vmax.xlane.f32.xlu0 %v3807
  %v3809 = vpop.xlane.xlu0 %3808
  %v3810 = vsel %vm613, %v3717, -inf
  %3811 = vmax.xlane.f32.xlu0 %v3810
  %v3812 = vpop.xlane.xlu0 %3811
  %v3813 = vsel %vm613, %v3720, -inf
  %3814 = vmax.xlane.f32.xlu0 %v3813
  %v3815 = vpop.xlane.xlu0 %3814
  %v3816 = vsel %vm613, %v3722, -inf
  %3817 = vmax.xlane.f32.xlu0 %v3816
  %v3818 = vpop.xlane.xlu0 %3817
  %v3819 = vsel %vm613, %v3725, -inf
  %3820 = vmax.xlane.f32.xlu0 %v3819
  %v3821 = vpop.xlane.xlu0 %3820
  %v3822 = vsel %vm613, %v3727, -inf
  %3823 = vmax.xlane.f32.xlu0 %v3822
  %v3824 = vpop.xlane.xlu0 %3823
  %v3825 = vsub.f32 %v3503, %v3731
  %v3826 = vsub.f32 %v3505, %v3734
  %v3827 = vsub.f32 %v3508, %v3737
  %v3828 = vsub.f32 %v3510, %v3740
  %v3829 = vsub.f32 %v3513, %v3743
  %v3830 = vsub.f32 %v3515, %v3746
  %v3831 = vsub.f32 %v3518, %v3749
  %v3832 = vsub.f32 %v3520, %v3752
  %v3833 = vsub.f32 %v3572, %v3755
  %v3834 = vsub.f32 %v3574, %v3758
  %v3835 = vsub.f32 %v3577, %v3761
  %v3836 = vsub.f32 %v3579, %v3764
  %v3837 = vsub.f32 %v3582, %v3767
  %v3838 = vsub.f32 %v3584, %v3770
  %v3839 = vsub.f32 %v3587, %v3773
  %v3840 = vsub.f32 %v3589, %v3776
  %v3841 = vsub.f32 %v3641, %v3779
  %v3842 = vsub.f32 %v3643, %v3782
  %v3843 = vsub.f32 %v3646, %v3785
  %v3844 = vsub.f32 %v3648, %v3788
  %v3845 = vsub.f32 %v3651, %v3791
  %v3846 = vsub.f32 %v3653, %v3794
  %v3847 = vsub.f32 %v3656, %v3797
  %v3848 = vsub.f32 %v3658, %v3800
  %v3849 = vsub.f32 %v3710, %v3803
  %v3850 = vsub.f32 %v3712, %v3806
  %v3851 = vsub.f32 %v3715, %v3809
  %v3852 = vsub.f32 %v3717, %v3812
  %v3853 = vsub.f32 %v3720, %v3815
  %v3854 = vsub.f32 %v3722, %v3818
  %v3855 = vsub.f32 %v3725, %v3821
  %v3856 = vsub.f32 %v3727, %v3824
  %v3857 = vmul.f32 %v3825, 1.442695
  %v3858 = vpow.pop %v3857
  %v3859 = vmul.f32 %v3826, 1.442695
  %v3860 = vpow.pop %v3859
  %v3861 = vmul.f32 %v3827, 1.442695
  %v3862 = vpow.pop %v3861
  %v3863 = vmul.f32 %v3828, 1.442695
  %v3864 = vpow.pop %v3863
  %v3865 = vmul.f32 %v3829, 1.442695
  %v3866 = vpow.pop %v3865
  %v3867 = vmul.f32 %v3830, 1.442695
  %v3868 = vpow.pop %v3867
  %v3869 = vmul.f32 %v3831, 1.442695
  %v3870 = vpow.pop %v3869
  %v3871 = vmul.f32 %v3832, 1.442695
  %v3872 = vpow.pop %v3871
  %v3873 = vmul.f32 %v3833, 1.442695
  %v3874 = vpow.pop %v3873
  %v3875 = vmul.f32 %v3834, 1.442695
  %v3876 = vpow.pop %v3875
  %v3877 = vmul.f32 %v3835, 1.442695
  %v3878 = vpow.pop %v3877
  %v3879 = vmul.f32 %v3836, 1.442695
  %v3880 = vpow.pop %v3879
  %v3881 = vmul.f32 %v3837, 1.442695
  %v3882 = vpow.pop %v3881
  %v3883 = vmul.f32 %v3838, 1.442695
  %v3884 = vpow.pop %v3883
  %v3885 = vmul.f32 %v3839, 1.442695
  %v3886 = vpow.pop %v3885
  %v3887 = vmul.f32 %v3840, 1.442695
  %v3888 = vpow.pop %v3887
  %v3889 = vmul.f32 %v3841, 1.442695
  %v3890 = vpow.pop %v3889
  %v3891 = vmul.f32 %v3842, 1.442695
  %v3892 = vpow.pop %v3891
  %v3893 = vmul.f32 %v3843, 1.442695
  %v3894 = vpow.pop %v3893
  %v3895 = vmul.f32 %v3844, 1.442695
  %v3896 = vpow.pop %v3895
  %v3897 = vmul.f32 %v3845, 1.442695
  %v3898 = vpow.pop %v3897
  %v3899 = vmul.f32 %v3846, 1.442695
  %v3900 = vpow.pop %v3899
  %v3901 = vmul.f32 %v3847, 1.442695
  %v3902 = vpow.pop %v3901
  %v3903 = vmul.f32 %v3848, 1.442695
  %v3904 = vpow.pop %v3903
  %v3905 = vmul.f32 %v3849, 1.442695
  %v3906 = vpow.pop %v3905
  %v3907 = vmul.f32 %v3850, 1.442695
  %v3908 = vpow.pop %v3907
  %v3909 = vmul.f32 %v3851, 1.442695
  %v3910 = vpow.pop %v3909
  %v3911 = vmul.f32 %v3852, 1.442695
  %v3912 = vpow.pop %v3911
  %v3913 = vmul.f32 %v3853, 1.442695
  %v3914 = vpow.pop %v3913
  %v3915 = vmul.f32 %v3854, 1.442695
  %v3916 = vpow.pop %v3915
  %v3917 = vmul.f32 %v3855, 1.442695
  %v3918 = vpow.pop %v3917
  %v3919 = vmul.f32 %v3856, 1.442695
  %v3920 = vpow.pop %v3919
  %v3921 = vsel %vm613, %v3858, 0.0
  %3922 = vadd.xlane.f32.xlu0 %v3921
  %v3923 = vpop.xlane.xlu0 %3922
  %v3924 = vsel %vm613, %v3860, 0.0
  %3925 = vadd.xlane.f32.xlu0 %v3924
  %v3926 = vpop.xlane.xlu0 %3925
  %v3927 = vsel %vm613, %v3862, 0.0
  %3928 = vadd.xlane.f32.xlu0 %v3927
  %v3929 = vpop.xlane.xlu0 %3928
  %v3930 = vsel %vm613, %v3864, 0.0
  %3931 = vadd.xlane.f32.xlu0 %v3930
  %v3932 = vpop.xlane.xlu0 %3931
  %v3933 = vsel %vm613, %v3866, 0.0
  %3934 = vadd.xlane.f32.xlu0 %v3933
  %v3935 = vpop.xlane.xlu0 %3934
  %v3936 = vsel %vm613, %v3868, 0.0
  %3937 = vadd.xlane.f32.xlu0 %v3936
  %v3938 = vpop.xlane.xlu0 %3937
  %v3939 = vsel %vm613, %v3870, 0.0
  %3940 = vadd.xlane.f32.xlu0 %v3939
  %v3941 = vpop.xlane.xlu0 %3940
  %v3942 = vsel %vm613, %v3872, 0.0
  %3943 = vadd.xlane.f32.xlu0 %v3942
  %v3944 = vpop.xlane.xlu0 %3943
  %v3945 = vsel %vm613, %v3874, 0.0
  %3946 = vadd.xlane.f32.xlu0 %v3945
  %v3947 = vpop.xlane.xlu0 %3946
  %v3948 = vsel %vm613, %v3876, 0.0
  %3949 = vadd.xlane.f32.xlu0 %v3948
  %v3950 = vpop.xlane.xlu0 %3949
  %v3951 = vsel %vm613, %v3878, 0.0
  %3952 = vadd.xlane.f32.xlu0 %v3951
  %v3953 = vpop.xlane.xlu0 %3952
  %v3954 = vsel %vm613, %v3880, 0.0
  %3955 = vadd.xlane.f32.xlu0 %v3954
  %v3956 = vpop.xlane.xlu0 %3955
  %v3957 = vsel %vm613, %v3882, 0.0
  %3958 = vadd.xlane.f32.xlu0 %v3957
  %v3959 = vpop.xlane.xlu0 %3958
  %v3960 = vsel %vm613, %v3884, 0.0
  %3961 = vadd.xlane.f32.xlu0 %v3960
  %v3962 = vpop.xlane.xlu0 %3961
  %v3963 = vsel %vm613, %v3886, 0.0
  %3964 = vadd.xlane.f32.xlu0 %v3963
  %v3965 = vpop.xlane.xlu0 %3964
  %v3966 = vsel %vm613, %v3888, 0.0
  %3967 = vadd.xlane.f32.xlu0 %v3966
  %v3968 = vpop.xlane.xlu0 %3967
  %v3969 = vsel %vm613, %v3890, 0.0
  %3970 = vadd.xlane.f32.xlu0 %v3969
  %v3971 = vpop.xlane.xlu0 %3970
  %v3972 = vsel %vm613, %v3892, 0.0
  %3973 = vadd.xlane.f32.xlu0 %v3972
  %v3974 = vpop.xlane.xlu0 %3973
  %v3975 = vsel %vm613, %v3894, 0.0
  %3976 = vadd.xlane.f32.xlu0 %v3975
  %v3977 = vpop.xlane.xlu0 %3976
  %v3978 = vsel %vm613, %v3896, 0.0
  %3979 = vadd.xlane.f32.xlu0 %v3978
  %v3980 = vpop.xlane.xlu0 %3979
  %v3981 = vsel %vm613, %v3898, 0.0
  %3982 = vadd.xlane.f32.xlu0 %v3981
  %v3983 = vpop.xlane.xlu0 %3982
  %v3984 = vsel %vm613, %v3900, 0.0
  %3985 = vadd.xlane.f32.xlu0 %v3984
  %v3986 = vpop.xlane.xlu0 %3985
  %v3987 = vsel %vm613, %v3902, 0.0
  %3988 = vadd.xlane.f32.xlu0 %v3987
  %v3989 = vpop.xlane.xlu0 %3988
  %v3990 = vsel %vm613, %v3904, 0.0
  %3991 = vadd.xlane.f32.xlu0 %v3990
  %v3992 = vpop.xlane.xlu0 %3991
  %v3993 = vsel %vm613, %v3906, 0.0
  %3994 = vadd.xlane.f32.xlu0 %v3993
  %v3995 = vpop.xlane.xlu0 %3994
  %v3996 = vsel %vm613, %v3908, 0.0
  %3997 = vadd.xlane.f32.xlu0 %v3996
  %v3998 = vpop.xlane.xlu0 %3997
  %v3999 = vsel %vm613, %v3910, 0.0
  %4000 = vadd.xlane.f32.xlu0 %v3999
  %v4001 = vpop.xlane.xlu0 %4000
  %v4002 = vsel %vm613, %v3912, 0.0
  %4003 = vadd.xlane.f32.xlu0 %v4002
  %v4004 = vpop.xlane.xlu0 %4003
  %v4005 = vsel %vm613, %v3914, 0.0
  %4006 = vadd.xlane.f32.xlu0 %v4005
  %v4007 = vpop.xlane.xlu0 %4006
  %v4008 = vsel %vm613, %v3916, 0.0
  %4009 = vadd.xlane.f32.xlu0 %v4008
  %v4010 = vpop.xlane.xlu0 %4009
  %v4011 = vsel %vm613, %v3918, 0.0
  %4012 = vadd.xlane.f32.xlu0 %v4011
  %v4013 = vpop.xlane.xlu0 %4012
  %v4014 = vsel %vm613, %v3920, 0.0
  %4015 = vadd.xlane.f32.xlu0 %v4014
  %v4016 = vpop.xlane.xlu0 %4015
  %v4017 = vrcp.pop %v3923
  %v4018 = vmul.f32 %v3923, %v4017
  %v4019 = vsub.f32 1.0, %v4018
  %v4020 = vmul.f32 %v4017, %v4019
  %v4021 = vadd.f32 %v4017, %v4020
  %vm4022 = vweird.f32 %v3923
  %vm4023 = vweird.f32 %v4017
  %vm4024 = vmor %vm4022, %vm4023
  %v4025 = vsel %vm4024, %v4017, %v4021
  %v4026 = vand.u32 2147483647, %v3923
  %vm4027 = vcmp.eq.f32.partialorder %v4026, 8.507059e+37
  %v4028 = vand.u32 %v3923, 2147483648
  %v4029 = vor.u32 1.1754944e-38, %v4028
  %v4030 = vsel %vm4027, %v4029, %v4025
  %v4031 = vmul.f32 %v3858, %v4030
  %v4032 = vrcp.pop %v3926
  %v4033 = vmul.f32 %v3926, %v4032
  %v4034 = vsub.f32 1.0, %v4033
  %v4035 = vmul.f32 %v4032, %v4034
  %v4036 = vadd.f32 %v4032, %v4035
  %vm4037 = vweird.f32 %v3926
  %vm4038 = vweird.f32 %v4032
  %vm4039 = vmor %vm4037, %vm4038
  %v4040 = vsel %vm4039, %v4032, %v4036
  %v4041 = vand.u32 2147483647, %v3926
  %vm4042 = vcmp.eq.f32.partialorder %v4041, 8.507059e+37
  %v4043 = vand.u32 %v3926, 2147483648
  %v4044 = vor.u32 1.1754944e-38, %v4043
  %v4045 = vsel %vm4042, %v4044, %v4040
  %v4046 = vmul.f32 %v3860, %v4045
  %v4047 = vrcp.pop %v3929
  %v4048 = vmul.f32 %v3929, %v4047
  %v4049 = vsub.f32 1.0, %v4048
  %v4050 = vmul.f32 %v4047, %v4049
  %v4051 = vadd.f32 %v4047, %v4050
  %vm4052 = vweird.f32 %v3929
  %vm4053 = vweird.f32 %v4047
  %vm4054 = vmor %vm4052, %vm4053
  %v4055 = vsel %vm4054, %v4047, %v4051
  %v4056 = vand.u32 2147483647, %v3929
  %vm4057 = vcmp.eq.f32.partialorder %v4056, 8.507059e+37
  %v4058 = vand.u32 %v3929, 2147483648
  %v4059 = vor.u32 1.1754944e-38, %v4058
  %v4060 = vsel %vm4057, %v4059, %v4055
  %v4061 = vmul.f32 %v3862, %v4060
  %v4062 = vrcp.pop %v3932
  %v4063 = vmul.f32 %v3932, %v4062
  %v4064 = vsub.f32 1.0, %v4063
  %v4065 = vmul.f32 %v4062, %v4064
  %v4066 = vadd.f32 %v4062, %v4065
  %vm4067 = vweird.f32 %v3932
  %vm4068 = vweird.f32 %v4062
  %vm4069 = vmor %vm4067, %vm4068
  %v4070 = vsel %vm4069, %v4062, %v4066
  %v4071 = vand.u32 2147483647, %v3932
  %vm4072 = vcmp.eq.f32.partialorder %v4071, 8.507059e+37
  %v4073 = vand.u32 %v3932, 2147483648
  %v4074 = vor.u32 1.1754944e-38, %v4073
  %v4075 = vsel %vm4072, %v4074, %v4070
  %v4076 = vmul.f32 %v3864, %v4075
  %v4077 = vrcp.pop %v3935
  %v4078 = vmul.f32 %v3935, %v4077
  %v4079 = vsub.f32 1.0, %v4078
  %v4080 = vmul.f32 %v4077, %v4079
  %v4081 = vadd.f32 %v4077, %v4080
  %vm4082 = vweird.f32 %v3935
  %vm4083 = vweird.f32 %v4077
  %vm4084 = vmor %vm4082, %vm4083
  %v4085 = vsel %vm4084, %v4077, %v4081
  %v4086 = vand.u32 2147483647, %v3935
  %vm4087 = vcmp.eq.f32.partialorder %v4086, 8.507059e+37
  %v4088 = vand.u32 %v3935, 2147483648
  %v4089 = vor.u32 1.1754944e-38, %v4088
  %v4090 = vsel %vm4087, %v4089, %v4085
  %v4091 = vmul.f32 %v3866, %v4090
  %v4092 = vrcp.pop %v3938
  %v4093 = vmul.f32 %v3938, %v4092
  %v4094 = vsub.f32 1.0, %v4093
  %v4095 = vmul.f32 %v4092, %v4094
  %v4096 = vadd.f32 %v4092, %v4095
  %vm4097 = vweird.f32 %v3938
  %vm4098 = vweird.f32 %v4092
  %vm4099 = vmor %vm4097, %vm4098
  %v4100 = vsel %vm4099, %v4092, %v4096
  %v4101 = vand.u32 2147483647, %v3938
  %vm4102 = vcmp.eq.f32.partialorder %v4101, 8.507059e+37
  %v4103 = vand.u32 %v3938, 2147483648
  %v4104 = vor.u32 1.1754944e-38, %v4103
  %v4105 = vsel %vm4102, %v4104, %v4100
  %v4106 = vmul.f32 %v3868, %v4105
  %v4107 = vrcp.pop %v3941
  %v4108 = vmul.f32 %v3941, %v4107
  %v4109 = vsub.f32 1.0, %v4108
  %v4110 = vmul.f32 %v4107, %v4109
  %v4111 = vadd.f32 %v4107, %v4110
  %vm4112 = vweird.f32 %v3941
  %vm4113 = vweird.f32 %v4107
  %vm4114 = vmor %vm4112, %vm4113
  %v4115 = vsel %vm4114, %v4107, %v4111
  %v4116 = vand.u32 2147483647, %v3941
  %vm4117 = vcmp.eq.f32.partialorder %v4116, 8.507059e+37
  %v4118 = vand.u32 %v3941, 2147483648
  %v4119 = vor.u32 1.1754944e-38, %v4118
  %v4120 = vsel %vm4117, %v4119, %v4115
  %v4121 = vmul.f32 %v3870, %v4120
  %v4122 = vrcp.pop %v3944
  %v4123 = vmul.f32 %v3944, %v4122
  %v4124 = vsub.f32 1.0, %v4123
  %v4125 = vmul.f32 %v4122, %v4124
  %v4126 = vadd.f32 %v4122, %v4125
  %vm4127 = vweird.f32 %v3944
  %vm4128 = vweird.f32 %v4122
  %vm4129 = vmor %vm4127, %vm4128
  %v4130 = vsel %vm4129, %v4122, %v4126
  %v4131 = vand.u32 2147483647, %v3944
  %vm4132 = vcmp.eq.f32.partialorder %v4131, 8.507059e+37
  %v4133 = vand.u32 %v3944, 2147483648
  %v4134 = vor.u32 1.1754944e-38, %v4133
  %v4135 = vsel %vm4132, %v4134, %v4130
  %v4136 = vmul.f32 %v3872, %v4135
  %v4137 = vrcp.pop %v3947
  %v4138 = vmul.f32 %v3947, %v4137
  %v4139 = vsub.f32 1.0, %v4138
  %v4140 = vmul.f32 %v4137, %v4139
  %v4141 = vadd.f32 %v4137, %v4140
  %vm4142 = vweird.f32 %v3947
  %vm4143 = vweird.f32 %v4137
  %vm4144 = vmor %vm4142, %vm4143
  %v4145 = vsel %vm4144, %v4137, %v4141
  %v4146 = vand.u32 2147483647, %v3947
  %vm4147 = vcmp.eq.f32.partialorder %v4146, 8.507059e+37
  %v4148 = vand.u32 %v3947, 2147483648
  %v4149 = vor.u32 1.1754944e-38, %v4148
  %v4150 = vsel %vm4147, %v4149, %v4145
  %v4151 = vmul.f32 %v3874, %v4150
  %v4152 = vrcp.pop %v3950
  %v4153 = vmul.f32 %v3950, %v4152
  %v4154 = vsub.f32 1.0, %v4153
  %v4155 = vmul.f32 %v4152, %v4154
  %v4156 = vadd.f32 %v4152, %v4155
  %vm4157 = vweird.f32 %v3950
  %vm4158 = vweird.f32 %v4152
  %vm4159 = vmor %vm4157, %vm4158
  %v4160 = vsel %vm4159, %v4152, %v4156
  %v4161 = vand.u32 2147483647, %v3950
  %vm4162 = vcmp.eq.f32.partialorder %v4161, 8.507059e+37
  %v4163 = vand.u32 %v3950, 2147483648
  %v4164 = vor.u32 1.1754944e-38, %v4163
  %v4165 = vsel %vm4162, %v4164, %v4160
  %v4166 = vmul.f32 %v3876, %v4165
  %v4167 = vrcp.pop %v3953
  %v4168 = vmul.f32 %v3953, %v4167
  %v4169 = vsub.f32 1.0, %v4168
  %v4170 = vmul.f32 %v4167, %v4169
  %v4171 = vadd.f32 %v4167, %v4170
  %vm4172 = vweird.f32 %v3953
  %vm4173 = vweird.f32 %v4167
  %vm4174 = vmor %vm4172, %vm4173
  %v4175 = vsel %vm4174, %v4167, %v4171
  %v4176 = vand.u32 2147483647, %v3953
  %vm4177 = vcmp.eq.f32.partialorder %v4176, 8.507059e+37
  %v4178 = vand.u32 %v3953, 2147483648
  %v4179 = vor.u32 1.1754944e-38, %v4178
  %v4180 = vsel %vm4177, %v4179, %v4175
  %v4181 = vmul.f32 %v3878, %v4180
  %v4182 = vrcp.pop %v3956
  %v4183 = vmul.f32 %v3956, %v4182
  %v4184 = vsub.f32 1.0, %v4183
  %v4185 = vmul.f32 %v4182, %v4184
  %v4186 = vadd.f32 %v4182, %v4185
  %vm4187 = vweird.f32 %v3956
  %vm4188 = vweird.f32 %v4182
  %vm4189 = vmor %vm4187, %vm4188
  %v4190 = vsel %vm4189, %v4182, %v4186
  %v4191 = vand.u32 2147483647, %v3956
  %vm4192 = vcmp.eq.f32.partialorder %v4191, 8.507059e+37
  %v4193 = vand.u32 %v3956, 2147483648
  %v4194 = vor.u32 1.1754944e-38, %v4193
  %v4195 = vsel %vm4192, %v4194, %v4190
  %v4196 = vmul.f32 %v3880, %v4195
  %v4197 = vrcp.pop %v3959
  %v4198 = vmul.f32 %v3959, %v4197
  %v4199 = vsub.f32 1.0, %v4198
  %v4200 = vmul.f32 %v4197, %v4199
  %v4201 = vadd.f32 %v4197, %v4200
  %vm4202 = vweird.f32 %v3959
  %vm4203 = vweird.f32 %v4197
  %vm4204 = vmor %vm4202, %vm4203
  %v4205 = vsel %vm4204, %v4197, %v4201
  %v4206 = vand.u32 2147483647, %v3959
  %vm4207 = vcmp.eq.f32.partialorder %v4206, 8.507059e+37
  %v4208 = vand.u32 %v3959, 2147483648
  %v4209 = vor.u32 1.1754944e-38, %v4208
  %v4210 = vsel %vm4207, %v4209, %v4205
  %v4211 = vmul.f32 %v3882, %v4210
  %v4212 = vrcp.pop %v3962
  %v4213 = vmul.f32 %v3962, %v4212
  %v4214 = vsub.f32 1.0, %v4213
  %v4215 = vmul.f32 %v4212, %v4214
  %v4216 = vadd.f32 %v4212, %v4215
  %vm4217 = vweird.f32 %v3962
  %vm4218 = vweird.f32 %v4212
  %vm4219 = vmor %vm4217, %vm4218
  %v4220 = vsel %vm4219, %v4212, %v4216
  %v4221 = vand.u32 2147483647, %v3962
  %vm4222 = vcmp.eq.f32.partialorder %v4221, 8.507059e+37
  %v4223 = vand.u32 %v3962, 2147483648
  %v4224 = vor.u32 1.1754944e-38, %v4223
  %v4225 = vsel %vm4222, %v4224, %v4220
  %v4226 = vmul.f32 %v3884, %v4225
  %v4227 = vrcp.pop %v3965
  %v4228 = vmul.f32 %v3965, %v4227
  %v4229 = vsub.f32 1.0, %v4228
  %v4230 = vmul.f32 %v4227, %v4229
  %v4231 = vadd.f32 %v4227, %v4230
  %vm4232 = vweird.f32 %v3965
  %vm4233 = vweird.f32 %v4227
  %vm4234 = vmor %vm4232, %vm4233
  %v4235 = vsel %vm4234, %v4227, %v4231
  %v4236 = vand.u32 2147483647, %v3965
  %vm4237 = vcmp.eq.f32.partialorder %v4236, 8.507059e+37
  %v4238 = vand.u32 %v3965, 2147483648
  %v4239 = vor.u32 1.1754944e-38, %v4238
  %v4240 = vsel %vm4237, %v4239, %v4235
  %v4241 = vmul.f32 %v3886, %v4240
  %v4242 = vrcp.pop %v3968
  %v4243 = vmul.f32 %v3968, %v4242
  %v4244 = vsub.f32 1.0, %v4243
  %v4245 = vmul.f32 %v4242, %v4244
  %v4246 = vadd.f32 %v4242, %v4245
  %vm4247 = vweird.f32 %v3968
  %vm4248 = vweird.f32 %v4242
  %vm4249 = vmor %vm4247, %vm4248
  %v4250 = vsel %vm4249, %v4242, %v4246
  %v4251 = vand.u32 2147483647, %v3968
  %vm4252 = vcmp.eq.f32.partialorder %v4251, 8.507059e+37
  %v4253 = vand.u32 %v3968, 2147483648
  %v4254 = vor.u32 1.1754944e-38, %v4253
  %v4255 = vsel %vm4252, %v4254, %v4250
  %v4256 = vmul.f32 %v3888, %v4255
  %v4257 = vrcp.pop %v3971
  %v4258 = vmul.f32 %v3971, %v4257
  %v4259 = vsub.f32 1.0, %v4258
  %v4260 = vmul.f32 %v4257, %v4259
  %v4261 = vadd.f32 %v4257, %v4260
  %vm4262 = vweird.f32 %v3971
  %vm4263 = vweird.f32 %v4257
  %vm4264 = vmor %vm4262, %vm4263
  %v4265 = vsel %vm4264, %v4257, %v4261
  %v4266 = vand.u32 2147483647, %v3971
  %vm4267 = vcmp.eq.f32.partialorder %v4266, 8.507059e+37
  %v4268 = vand.u32 %v3971, 2147483648
  %v4269 = vor.u32 1.1754944e-38, %v4268
  %v4270 = vsel %vm4267, %v4269, %v4265
  %v4271 = vmul.f32 %v3890, %v4270
  %v4272 = vrcp.pop %v3974
  %v4273 = vmul.f32 %v3974, %v4272
  %v4274 = vsub.f32 1.0, %v4273
  %v4275 = vmul.f32 %v4272, %v4274
  %v4276 = vadd.f32 %v4272, %v4275
  %vm4277 = vweird.f32 %v3974
  %vm4278 = vweird.f32 %v4272
  %vm4279 = vmor %vm4277, %vm4278
  %v4280 = vsel %vm4279, %v4272, %v4276
  %v4281 = vand.u32 2147483647, %v3974
  %vm4282 = vcmp.eq.f32.partialorder %v4281, 8.507059e+37
  %v4283 = vand.u32 %v3974, 2147483648
  %v4284 = vor.u32 1.1754944e-38, %v4283
  %v4285 = vsel %vm4282, %v4284, %v4280
  %v4286 = vmul.f32 %v3892, %v4285
  %v4287 = vrcp.pop %v3977
  %v4288 = vmul.f32 %v3977, %v4287
  %v4289 = vsub.f32 1.0, %v4288
  %v4290 = vmul.f32 %v4287, %v4289
  %v4291 = vadd.f32 %v4287, %v4290
  %vm4292 = vweird.f32 %v3977
  %vm4293 = vweird.f32 %v4287
  %vm4294 = vmor %vm4292, %vm4293
  %v4295 = vsel %vm4294, %v4287, %v4291
  %v4296 = vand.u32 2147483647, %v3977
  %vm4297 = vcmp.eq.f32.partialorder %v4296, 8.507059e+37
  %v4298 = vand.u32 %v3977, 2147483648
  %v4299 = vor.u32 1.1754944e-38, %v4298
  %v4300 = vsel %vm4297, %v4299, %v4295
  %v4301 = vmul.f32 %v3894, %v4300
  %v4302 = vrcp.pop %v3980
  %v4303 = vmul.f32 %v3980, %v4302
  %v4304 = vsub.f32 1.0, %v4303
  %v4305 = vmul.f32 %v4302, %v4304
  %v4306 = vadd.f32 %v4302, %v4305
  %vm4307 = vweird.f32 %v3980
  %vm4308 = vweird.f32 %v4302
  %vm4309 = vmor %vm4307, %vm4308
  %v4310 = vsel %vm4309, %v4302, %v4306
  %v4311 = vand.u32 2147483647, %v3980
  %vm4312 = vcmp.eq.f32.partialorder %v4311, 8.507059e+37
  %v4313 = vand.u32 %v3980, 2147483648
  %v4314 = vor.u32 1.1754944e-38, %v4313
  %v4315 = vsel %vm4312, %v4314, %v4310
  %v4316 = vmul.f32 %v3896, %v4315
  %v4317 = vrcp.pop %v3983
  %v4318 = vmul.f32 %v3983, %v4317
  %v4319 = vsub.f32 1.0, %v4318
  %v4320 = vmul.f32 %v4317, %v4319
  %v4321 = vadd.f32 %v4317, %v4320
  %vm4322 = vweird.f32 %v3983
  %vm4323 = vweird.f32 %v4317
  %vm4324 = vmor %vm4322, %vm4323
  %v4325 = vsel %vm4324, %v4317, %v4321
  %v4326 = vand.u32 2147483647, %v3983
  %vm4327 = vcmp.eq.f32.partialorder %v4326, 8.507059e+37
  %v4328 = vand.u32 %v3983, 2147483648
  %v4329 = vor.u32 1.1754944e-38, %v4328
  %v4330 = vsel %vm4327, %v4329, %v4325
  %v4331 = vmul.f32 %v3898, %v4330
  %v4332 = vrcp.pop %v3986
  %v4333 = vmul.f32 %v3986, %v4332
  %v4334 = vsub.f32 1.0, %v4333
  %v4335 = vmul.f32 %v4332, %v4334
  %v4336 = vadd.f32 %v4332, %v4335
  %vm4337 = vweird.f32 %v3986
  %vm4338 = vweird.f32 %v4332
  %vm4339 = vmor %vm4337, %vm4338
  %v4340 = vsel %vm4339, %v4332, %v4336
  %v4341 = vand.u32 2147483647, %v3986
  %vm4342 = vcmp.eq.f32.partialorder %v4341, 8.507059e+37
  %v4343 = vand.u32 %v3986, 2147483648
  %v4344 = vor.u32 1.1754944e-38, %v4343
  %v4345 = vsel %vm4342, %v4344, %v4340
  %v4346 = vmul.f32 %v3900, %v4345
  %v4347 = vrcp.pop %v3989
  %v4348 = vmul.f32 %v3989, %v4347
  %v4349 = vsub.f32 1.0, %v4348
  %v4350 = vmul.f32 %v4347, %v4349
  %v4351 = vadd.f32 %v4347, %v4350
  %vm4352 = vweird.f32 %v3989
  %vm4353 = vweird.f32 %v4347
  %vm4354 = vmor %vm4352, %vm4353
  %v4355 = vsel %vm4354, %v4347, %v4351
  %v4356 = vand.u32 2147483647, %v3989
  %vm4357 = vcmp.eq.f32.partialorder %v4356, 8.507059e+37
  %v4358 = vand.u32 %v3989, 2147483648
  %v4359 = vor.u32 1.1754944e-38, %v4358
  %v4360 = vsel %vm4357, %v4359, %v4355
  %v4361 = vmul.f32 %v3902, %v4360
  %v4362 = vrcp.pop %v3992
  %v4363 = vmul.f32 %v3992, %v4362
  %v4364 = vsub.f32 1.0, %v4363
  %v4365 = vmul.f32 %v4362, %v4364
  %v4366 = vadd.f32 %v4362, %v4365
  %vm4367 = vweird.f32 %v3992
  %vm4368 = vweird.f32 %v4362
  %vm4369 = vmor %vm4367, %vm4368
  %v4370 = vsel %vm4369, %v4362, %v4366
  %v4371 = vand.u32 2147483647, %v3992
  %vm4372 = vcmp.eq.f32.partialorder %v4371, 8.507059e+37
  %v4373 = vand.u32 %v3992, 2147483648
  %v4374 = vor.u32 1.1754944e-38, %v4373
  %v4375 = vsel %vm4372, %v4374, %v4370
  %v4376 = vmul.f32 %v3904, %v4375
  %v4377 = vrcp.pop %v3995
  %v4378 = vmul.f32 %v3995, %v4377
  %v4379 = vsub.f32 1.0, %v4378
  %v4380 = vmul.f32 %v4377, %v4379
  %v4381 = vadd.f32 %v4377, %v4380
  %vm4382 = vweird.f32 %v3995
  %vm4383 = vweird.f32 %v4377
  %vm4384 = vmor %vm4382, %vm4383
  %v4385 = vsel %vm4384, %v4377, %v4381
  %v4386 = vand.u32 2147483647, %v3995
  %vm4387 = vcmp.eq.f32.partialorder %v4386, 8.507059e+37
  %v4388 = vand.u32 %v3995, 2147483648
  %v4389 = vor.u32 1.1754944e-38, %v4388
  %v4390 = vsel %vm4387, %v4389, %v4385
  %v4391 = vmul.f32 %v3906, %v4390
  %v4392 = vrcp.pop %v3998
  %v4393 = vmul.f32 %v3998, %v4392
  %v4394 = vsub.f32 1.0, %v4393
  %v4395 = vmul.f32 %v4392, %v4394
  %v4396 = vadd.f32 %v4392, %v4395
  %vm4397 = vweird.f32 %v3998
  %vm4398 = vweird.f32 %v4392
  %vm4399 = vmor %vm4397, %vm4398
  %v4400 = vsel %vm4399, %v4392, %v4396
  %v4401 = vand.u32 2147483647, %v3998
  %vm4402 = vcmp.eq.f32.partialorder %v4401, 8.507059e+37
  %v4403 = vand.u32 %v3998, 2147483648
  %v4404 = vor.u32 1.1754944e-38, %v4403
  %v4405 = vsel %vm4402, %v4404, %v4400
  %v4406 = vmul.f32 %v3908, %v4405
  %v4407 = vrcp.pop %v4001
  %v4408 = vmul.f32 %v4001, %v4407
  %v4409 = vsub.f32 1.0, %v4408
  %v4410 = vmul.f32 %v4407, %v4409
  %v4411 = vadd.f32 %v4407, %v4410
  %vm4412 = vweird.f32 %v4001
  %vm4413 = vweird.f32 %v4407
  %vm4414 = vmor %vm4412, %vm4413
  %v4415 = vsel %vm4414, %v4407, %v4411
  %v4416 = vand.u32 2147483647, %v4001
  %vm4417 = vcmp.eq.f32.partialorder %v4416, 8.507059e+37
  %v4418 = vand.u32 %v4001, 2147483648
  %v4419 = vor.u32 1.1754944e-38, %v4418
  %v4420 = vsel %vm4417, %v4419, %v4415
  %v4421 = vmul.f32 %v3910, %v4420
  %v4422 = vrcp.pop %v4004
  %v4423 = vmul.f32 %v4004, %v4422
  %v4424 = vsub.f32 1.0, %v4423
  %v4425 = vmul.f32 %v4422, %v4424
  %v4426 = vadd.f32 %v4422, %v4425
  %vm4427 = vweird.f32 %v4004
  %vm4428 = vweird.f32 %v4422
  %vm4429 = vmor %vm4427, %vm4428
  %v4430 = vsel %vm4429, %v4422, %v4426
  %v4431 = vand.u32 2147483647, %v4004
  %vm4432 = vcmp.eq.f32.partialorder %v4431, 8.507059e+37
  %v4433 = vand.u32 %v4004, 2147483648
  %v4434 = vor.u32 1.1754944e-38, %v4433
  %v4435 = vsel %vm4432, %v4434, %v4430
  %v4436 = vmul.f32 %v3912, %v4435
  %v4437 = vrcp.pop %v4007
  %v4438 = vmul.f32 %v4007, %v4437
  %v4439 = vsub.f32 1.0, %v4438
  %v4440 = vmul.f32 %v4437, %v4439
  %v4441 = vadd.f32 %v4437, %v4440
  %vm4442 = vweird.f32 %v4007
  %vm4443 = vweird.f32 %v4437
  %vm4444 = vmor %vm4442, %vm4443
  %v4445 = vsel %vm4444, %v4437, %v4441
  %v4446 = vand.u32 2147483647, %v4007
  %vm4447 = vcmp.eq.f32.partialorder %v4446, 8.507059e+37
  %v4448 = vand.u32 %v4007, 2147483648
  %v4449 = vor.u32 1.1754944e-38, %v4448
  %v4450 = vsel %vm4447, %v4449, %v4445
  %v4451 = vmul.f32 %v3914, %v4450
  %v4452 = vrcp.pop %v4010
  %v4453 = vmul.f32 %v4010, %v4452
  %v4454 = vsub.f32 1.0, %v4453
  %v4455 = vmul.f32 %v4452, %v4454
  %v4456 = vadd.f32 %v4452, %v4455
  %vm4457 = vweird.f32 %v4010
  %vm4458 = vweird.f32 %v4452
  %vm4459 = vmor %vm4457, %vm4458
  %v4460 = vsel %vm4459, %v4452, %v4456
  %v4461 = vand.u32 2147483647, %v4010
  %vm4462 = vcmp.eq.f32.partialorder %v4461, 8.507059e+37
  %v4463 = vand.u32 %v4010, 2147483648
  %v4464 = vor.u32 1.1754944e-38, %v4463
  %v4465 = vsel %vm4462, %v4464, %v4460
  %v4466 = vmul.f32 %v3916, %v4465
  %v4467 = vrcp.pop %v4013
  %v4468 = vmul.f32 %v4013, %v4467
  %v4469 = vsub.f32 1.0, %v4468
  %v4470 = vmul.f32 %v4467, %v4469
  %v4471 = vadd.f32 %v4467, %v4470
  %vm4472 = vweird.f32 %v4013
  %vm4473 = vweird.f32 %v4467
  %vm4474 = vmor %vm4472, %vm4473
  %v4475 = vsel %vm4474, %v4467, %v4471
  %v4476 = vand.u32 2147483647, %v4013
  %vm4477 = vcmp.eq.f32.partialorder %v4476, 8.507059e+37
  %v4478 = vand.u32 %v4013, 2147483648
  %v4479 = vor.u32 1.1754944e-38, %v4478
  %v4480 = vsel %vm4477, %v4479, %v4475
  %v4481 = vmul.f32 %v3918, %v4480
  %v4482 = vrcp.pop %v4016
  %v4483 = vmul.f32 %v4016, %v4482
  %v4484 = vsub.f32 1.0, %v4483
  %v4485 = vmul.f32 %v4482, %v4484
  %v4486 = vadd.f32 %v4482, %v4485
  %vm4487 = vweird.f32 %v4016
  %vm4488 = vweird.f32 %v4482
  %vm4489 = vmor %vm4487, %vm4488
  %v4490 = vsel %vm4489, %v4482, %v4486
  %v4491 = vand.u32 2147483647, %v4016
  %vm4492 = vcmp.eq.f32.partialorder %v4491, 8.507059e+37
  %v4493 = vand.u32 %v4016, 2147483648
  %v4494 = vor.u32 1.1754944e-38, %v4493
  %v4495 = vsel %vm4492, %v4494, %v4490
  %v4496 = vmul.f32 %v3920, %v4495
  %v4497 = vpack.c.bf16 %v4031, %v4031
  %v4498 = vpack.c.bf16 %v4046, %v4046
  %v4499 = vpack.c.bf16 %v4061, %v4061
  %v4500 = vpack.c.bf16 %v4076, %v4076
  %v4501 = vpack.c.bf16 %v4091, %v4091
  %v4502 = vpack.c.bf16 %v4106, %v4106
  %v4503 = vpack.c.bf16 %v4121, %v4121
  %v4504 = vpack.c.bf16 %v4136, %v4136
  %v4505 = vpack.c.bf16 %v4151, %v4151
  %v4506 = vpack.c.bf16 %v4166, %v4166
  %v4507 = vpack.c.bf16 %v4181, %v4181
  %v4508 = vpack.c.bf16 %v4196, %v4196
  %v4509 = vpack.c.bf16 %v4211, %v4211
  %v4510 = vpack.c.bf16 %v4226, %v4226
  %v4511 = vpack.c.bf16 %v4241, %v4241
  %v4512 = vpack.c.bf16 %v4256, %v4256
  %v4513 = vpack.c.bf16 %v4271, %v4271
  %v4514 = vpack.c.bf16 %v4286, %v4286
  %v4515 = vpack.c.bf16 %v4301, %v4301
  %v4516 = vpack.c.bf16 %v4316, %v4316
  %v4517 = vpack.c.bf16 %v4331, %v4331
  %v4518 = vpack.c.bf16 %v4346, %v4346
  %v4519 = vpack.c.bf16 %v4361, %v4361
  %v4520 = vpack.c.bf16 %v4376, %v4376
  %v4521 = vpack.c.bf16 %v4391, %v4391
  %v4522 = vpack.c.bf16 %v4406, %v4406
  %v4523 = vpack.c.bf16 %v4421, %v4421
  %v4524 = vpack.c.bf16 %v4436, %v4436
  %v4525 = vpack.c.bf16 %v4451, %v4451
  %v4526 = vpack.c.bf16 %v4466, %v4466
  %v4527 = vpack.c.bf16 %v4481, %v4481
  %v4528 = vpack.c.bf16 %v4496, %v4496
  %v4537 = vunpack.c.l.b16 %v4497
  %v4538 = vunpack.c.l.b16 %v4498
  %v4539 = vunpack.c.l.b16 %v4499
  %v4540 = vunpack.c.l.b16 %v4500
  %v4541 = vunpack.c.l.b16 %v4501
  %v4542 = vunpack.c.l.b16 %v4502
  %v4543 = vunpack.c.l.b16 %v4503
  %v4544 = vunpack.c.l.b16 %v4504
  %v4545 = vpack.c.b16 %v4538, %v4537
  %v4546 = vpack.c.b16 %v4540, %v4539
  %v4547 = vpack.c.b16 %v4542, %v4541
  %v4548 = vpack.c.b16 %v4544, %v4543
  %4549 = vrot.lane.b32.xlu0 %v304, 48
  %v4550 = vpop.permute.xlu0 %4549
  %4551 = vrot.lane.b32.xlu0 %v305, 48
  %v4552 = vpop.permute.xlu0 %4551
  %4553 = vrot.lane.b32.xlu0 %v306, 48
  %v4554 = vpop.permute.xlu0 %4553
  %4555 = vrot.lane.b32.xlu0 %v307, 48
  %v4556 = vpop.permute.xlu0 %4555
  %v4562 = vsel %vm613, %v4545, 0
  %v4565 = vsel %vm613, %v4546, 0
  %v4568 = vsel %vm613, %v4547, 0
  %v4571 = vsel %vm613, %v4548, 0
  %4573 = vmatpush.bf16.msra.mxu0 0
  %4574 = vmatpush.bf16.msra.mxu0 0
  %4575 = vmatpush.bf16.msra.mxu0 0
  %4576 = vmatpush.bf16.msra.mxu0 0
  %4577 = vmatpush.bf16.msra.mxu0 %v4556
  %4578 = vmatpush.bf16.msra.mxu0 %v4554
  %4579 = vmatpush.bf16.msra.mxu0 %v4552
  %4580 = vmatpush.bf16.msra.mxu0 %v4550
  %4581 = vmatmul.bf16.gmra.mxu0 %v4562
  %v4582 = vpop.f32.mrf.mxu0
  %v4583 = vadd.f32 0.0, %v4582
  %v4584 = vpop.f32.mrf.mxu0
  %v4585 = vadd.f32 0.0, %v4584
  %4586 = vmatmul.bf16.gmra.mxu0 %v4565
  %v4587 = vpop.f32.mrf.mxu0
  %v4588 = vadd.f32 0.0, %v4587
  %v4589 = vpop.f32.mrf.mxu0
  %v4590 = vadd.f32 0.0, %v4589
  %4591 = vmatmul.bf16.gmra.mxu0 %v4568
  %v4592 = vpop.f32.mrf.mxu0
  %v4593 = vadd.f32 0.0, %v4592
  %v4594 = vpop.f32.mrf.mxu0
  %v4595 = vadd.f32 0.0, %v4594
  %4596 = vmatmul.bf16.gmra.mxu0 %v4571
  %v4597 = vpop.f32.mrf.mxu0
  %v4598 = vadd.f32 0.0, %v4597
  %v4599 = vpop.f32.mrf.mxu0
  %v4600 = vadd.f32 0.0, %v4599
  %4601 = vdwg.mxu0
  %v4610 = vunpack.c.l.b16 %v4505
  %v4611 = vunpack.c.l.b16 %v4506
  %v4612 = vunpack.c.l.b16 %v4507
  %v4613 = vunpack.c.l.b16 %v4508
  %v4614 = vunpack.c.l.b16 %v4509
  %v4615 = vunpack.c.l.b16 %v4510
  %v4616 = vunpack.c.l.b16 %v4511
  %v4617 = vunpack.c.l.b16 %v4512
  %v4618 = vpack.c.b16 %v4611, %v4610
  %v4619 = vpack.c.b16 %v4613, %v4612
  %v4620 = vpack.c.b16 %v4615, %v4614
  %v4621 = vpack.c.b16 %v4617, %v4616
  %4622 = vrot.lane.b32.xlu0 %v386, 48
  %v4623 = vpop.permute.xlu0 %4622
  %4624 = vrot.lane.b32.xlu0 %v387, 48
  %v4625 = vpop.permute.xlu0 %4624
  %4626 = vrot.lane.b32.xlu0 %v388, 48
  %v4627 = vpop.permute.xlu0 %4626
  %4628 = vrot.lane.b32.xlu0 %v389, 48
  %v4629 = vpop.permute.xlu0 %4628
  %v4635 = vsel %vm613, %v4618, 0
  %v4638 = vsel %vm613, %v4619, 0
  %v4641 = vsel %vm613, %v4620, 0
  %v4644 = vsel %vm613, %v4621, 0
  %4646 = vmatpush.bf16.msra.mxu0 0
  %4647 = vmatpush.bf16.msra.mxu0 0
  %4648 = vmatpush.bf16.msra.mxu0 0
  %4649 = vmatpush.bf16.msra.mxu0 0
  %4650 = vmatpush.bf16.msra.mxu0 %v4629
  %4651 = vmatpush.bf16.msra.mxu0 %v4627
  %4652 = vmatpush.bf16.msra.mxu0 %v4625
  %4653 = vmatpush.bf16.msra.mxu0 %v4623
  %4654 = vmatmul.bf16.gmra.mxu0 %v4635
  %v4655 = vpop.f32.mrf.mxu0
  %v4656 = vadd.f32 0.0, %v4655
  %v4657 = vpop.f32.mrf.mxu0
  %v4658 = vadd.f32 0.0, %v4657
  %4659 = vmatmul.bf16.gmra.mxu0 %v4638
  %v4660 = vpop.f32.mrf.mxu0
  %v4661 = vadd.f32 0.0, %v4660
  %v4662 = vpop.f32.mrf.mxu0
  %v4663 = vadd.f32 0.0, %v4662
  %4664 = vmatmul.bf16.gmra.mxu0 %v4641
  %v4665 = vpop.f32.mrf.mxu0
  %v4666 = vadd.f32 0.0, %v4665
  %v4667 = vpop.f32.mrf.mxu0
  %v4668 = vadd.f32 0.0, %v4667
  %4669 = vmatmul.bf16.gmra.mxu0 %v4644
  %v4670 = vpop.f32.mrf.mxu0
  %v4671 = vadd.f32 0.0, %v4670
  %v4672 = vpop.f32.mrf.mxu0
  %v4673 = vadd.f32 0.0, %v4672
  %4674 = vdwg.mxu0
  %v4683 = vunpack.c.l.b16 %v4513
  %v4684 = vunpack.c.l.b16 %v4514
  %v4685 = vunpack.c.l.b16 %v4515
  %v4686 = vunpack.c.l.b16 %v4516
  %v4687 = vunpack.c.l.b16 %v4517
  %v4688 = vunpack.c.l.b16 %v4518
  %v4689 = vunpack.c.l.b16 %v4519
  %v4690 = vunpack.c.l.b16 %v4520
  %v4691 = vpack.c.b16 %v4684, %v4683
  %v4692 = vpack.c.b16 %v4686, %v4685
  %v4693 = vpack.c.b16 %v4688, %v4687
  %v4694 = vpack.c.b16 %v4690, %v4689
  %4695 = vrot.lane.b32.xlu0 %v467, 48
  %v4696 = vpop.permute.xlu0 %4695
  %4697 = vrot.lane.b32.xlu0 %v468, 48
  %v4698 = vpop.permute.xlu0 %4697
  %4699 = vrot.lane.b32.xlu0 %v469, 48
  %v4700 = vpop.permute.xlu0 %4699
  %4701 = vrot.lane.b32.xlu0 %v470, 48
  %v4702 = vpop.permute.xlu0 %4701
  %v4708 = vsel %vm613, %v4691, 0
  %v4711 = vsel %vm613, %v4692, 0
  %v4714 = vsel %vm613, %v4693, 0
  %v4717 = vsel %vm613, %v4694, 0
  %4719 = vmatpush.bf16.msra.mxu0 0
  %4720 = vmatpush.bf16.msra.mxu0 0
  %4721 = vmatpush.bf16.msra.mxu0 0
  %4722 = vmatpush.bf16.msra.mxu0 0
  %4723 = vmatpush.bf16.msra.mxu0 %v4702
  %4724 = vmatpush.bf16.msra.mxu0 %v4700
  %4725 = vmatpush.bf16.msra.mxu0 %v4698
  %4726 = vmatpush.bf16.msra.mxu0 %v4696
  %4727 = vmatmul.bf16.gmra.mxu0 %v4708
  %v4728 = vpop.f32.mrf.mxu0
  %v4729 = vadd.f32 0.0, %v4728
  %v4730 = vpop.f32.mrf.mxu0
  %v4731 = vadd.f32 0.0, %v4730
  %4732 = vmatmul.bf16.gmra.mxu0 %v4711
  %v4733 = vpop.f32.mrf.mxu0
  %v4734 = vadd.f32 0.0, %v4733
  %v4735 = vpop.f32.mrf.mxu0
  %v4736 = vadd.f32 0.0, %v4735
  %4737 = vmatmul.bf16.gmra.mxu0 %v4714
  %v4738 = vpop.f32.mrf.mxu0
  %v4739 = vadd.f32 0.0, %v4738
  %v4740 = vpop.f32.mrf.mxu0
  %v4741 = vadd.f32 0.0, %v4740
  %4742 = vmatmul.bf16.gmra.mxu0 %v4717
  %v4743 = vpop.f32.mrf.mxu0
  %v4744 = vadd.f32 0.0, %v4743
  %v4745 = vpop.f32.mrf.mxu0
  %v4746 = vadd.f32 0.0, %v4745
  %4747 = vdwg.mxu0
  %v4756 = vunpack.c.l.b16 %v4521
  %v4757 = vunpack.c.l.b16 %v4522
  %v4758 = vunpack.c.l.b16 %v4523
  %v4759 = vunpack.c.l.b16 %v4524
  %v4760 = vunpack.c.l.b16 %v4525
  %v4761 = vunpack.c.l.b16 %v4526
  %v4762 = vunpack.c.l.b16 %v4527
  %v4763 = vunpack.c.l.b16 %v4528
  %v4764 = vpack.c.b16 %v4757, %v4756
  %v4765 = vpack.c.b16 %v4759, %v4758
  %v4766 = vpack.c.b16 %v4761, %v4760
  %v4767 = vpack.c.b16 %v4763, %v4762
  %4768 = vrot.lane.b32.xlu0 %v548, 48
  %v4769 = vpop.permute.xlu0 %4768
  %4770 = vrot.lane.b32.xlu0 %v549, 48
  %v4771 = vpop.permute.xlu0 %4770
  %4772 = vrot.lane.b32.xlu0 %v550, 48
  %v4773 = vpop.permute.xlu0 %4772
  %4774 = vrot.lane.b32.xlu0 %v551, 48
  %v4775 = vpop.permute.xlu0 %4774
  %v4781 = vsel %vm613, %v4764, 0
  %v4784 = vsel %vm613, %v4765, 0
  %v4787 = vsel %vm613, %v4766, 0
  %v4790 = vsel %vm613, %v4767, 0
  %4792 = vmatpush.bf16.msra.mxu0 0
  %4793 = vmatpush.bf16.msra.mxu0 0
  %4794 = vmatpush.bf16.msra.mxu0 0
  %4795 = vmatpush.bf16.msra.mxu0 0
  %4796 = vmatpush.bf16.msra.mxu0 %v4775
  %4797 = vmatpush.bf16.msra.mxu0 %v4773
  %4798 = vmatpush.bf16.msra.mxu0 %v4771
  %4799 = vmatpush.bf16.msra.mxu0 %v4769
  %4800 = vmatmul.bf16.gmra.mxu0 %v4781
  %v4801 = vpop.f32.mrf.mxu0
  %v4802 = vadd.f32 0.0, %v4801
  %v4803 = vpop.f32.mrf.mxu0
  %v4804 = vadd.f32 0.0, %v4803
  %4805 = vmatmul.bf16.gmra.mxu0 %v4784
  %v4806 = vpop.f32.mrf.mxu0
  %v4807 = vadd.f32 0.0, %v4806
  %v4808 = vpop.f32.mrf.mxu0
  %v4809 = vadd.f32 0.0, %v4808
  %4810 = vmatmul.bf16.gmra.mxu0 %v4787
  %v4811 = vpop.f32.mrf.mxu0
  %v4812 = vadd.f32 0.0, %v4811
  %v4813 = vpop.f32.mrf.mxu0
  %v4814 = vadd.f32 0.0, %v4813
  %4815 = vmatmul.bf16.gmra.mxu0 %v4790
  %v4816 = vpop.f32.mrf.mxu0
  %v4817 = vadd.f32 0.0, %v4816
  %v4818 = vpop.f32.mrf.mxu0
  %v4819 = vadd.f32 0.0, %v4818
  %4820 = vdwg.mxu0
  %v4821 = vpack.c.bf16 %v4585, %v4583
  %v4822 = vpack.c.bf16 %v4590, %v4588
  %v4823 = vpack.c.bf16 %v4595, %v4593
  %v4824 = vpack.c.bf16 %v4600, %v4598
  %v4825 = vpack.c.bf16 %v4658, %v4656
  %v4826 = vpack.c.bf16 %v4663, %v4661
  %v4827 = vpack.c.bf16 %v4668, %v4666
  %v4828 = vpack.c.bf16 %v4673, %v4671
  %v4829 = vpack.c.bf16 %v4731, %v4729
  %v4830 = vpack.c.bf16 %v4736, %v4734
  %v4831 = vpack.c.bf16 %v4741, %v4739
  %v4832 = vpack.c.bf16 %v4746, %v4744
  %v4833 = vpack.c.bf16 %v4804, %v4802
  %v4834 = vpack.c.bf16 %v4809, %v4807
  %v4835 = vpack.c.bf16 %v4814, %v4812
  %v4836 = vpack.c.bf16 %v4819, %v4817
  %v4837 = vld [vmem:[%s3 + $0x8] sm:$0xf]
  %v4839 = vsel %vm316, %v4821, 0
  %v4842 = vsel %vm316, %v4822, 0
  %v4845 = vsel %vm316, %v4823, 0
  %v4848 = vsel %vm316, %v4824, 0
  %v4851 = vsel %vm316, %v4825, 0
  %v4854 = vsel %vm316, %v4826, 0
  %v4857 = vsel %vm316, %v4827, 0
  %v4860 = vsel %vm316, %v4828, 0
  %v4863 = vsel %vm316, %v4829, 0
  %v4866 = vsel %vm316, %v4830, 0
  %v4869 = vsel %vm316, %v4831, 0
  %v4872 = vsel %vm316, %v4832, 0
  %v4875 = vsel %vm316, %v4833, 0
  %v4878 = vsel %vm316, %v4834, 0
  %v4881 = vsel %vm316, %v4835, 0
  %v4884 = vsel %vm316, %v4836, 0
  %v4887 = vsel %vm1771, %v4837, 0
  %4889 = vmatpush.bf16.msra.mxu0 0
  %4890 = vmatpush.bf16.msra.mxu0 0
  %4891 = vmatpush.bf16.msra.mxu0 0
  %4892 = vmatpush.bf16.msra.mxu0 0
  %4893 = vmatpush.bf16.msra.mxu0 0
  %4894 = vmatpush.bf16.msra.mxu0 0
  %4895 = vmatpush.bf16.msra.mxu0 0
  %4896 = vmatpush.bf16.msra.mxu0 %v4887
  %4897 = vmatmul.bf16.gmra.mxu0 %v4839
  %v4898 = vpop.f32.mrf.mxu0
  %v4899 = vadd.f32 0.0, %v4898
  %v4900 = vpop.f32.mrf.mxu0
  %v4901 = vadd.f32 0.0, %v4900
  %4902 = vmatmul.bf16.gmra.mxu0 %v4842
  %v4903 = vpop.f32.mrf.mxu0
  %v4904 = vadd.f32 0.0, %v4903
  %v4905 = vpop.f32.mrf.mxu0
  %v4906 = vadd.f32 0.0, %v4905
  %4907 = vmatmul.bf16.gmra.mxu0 %v4845
  %v4908 = vpop.f32.mrf.mxu0
  %v4909 = vadd.f32 0.0, %v4908
  %v4910 = vpop.f32.mrf.mxu0
  %v4911 = vadd.f32 0.0, %v4910
  %4912 = vmatmul.bf16.gmra.mxu0 %v4848
  %v4913 = vpop.f32.mrf.mxu0
  %v4914 = vadd.f32 0.0, %v4913
  %v4915 = vpop.f32.mrf.mxu0
  %v4916 = vadd.f32 0.0, %v4915
  %4917 = vmatmul.bf16.gmra.mxu0 %v4851
  %v4918 = vpop.f32.mrf.mxu0
  %v4919 = vadd.f32 0.0, %v4918
  %v4920 = vpop.f32.mrf.mxu0
  %v4921 = vadd.f32 0.0, %v4920
  %4922 = vmatmul.bf16.gmra.mxu0 %v4854
  %v4923 = vpop.f32.mrf.mxu0
  %v4924 = vadd.f32 0.0, %v4923
  %v4925 = vpop.f32.mrf.mxu0
  %v4926 = vadd.f32 0.0, %v4925
  %4927 = vmatmul.bf16.gmra.mxu0 %v4857
  %v4928 = vpop.f32.mrf.mxu0
  %v4929 = vadd.f32 0.0, %v4928
  %v4930 = vpop.f32.mrf.mxu0
  %v4931 = vadd.f32 0.0, %v4930
  %4932 = vmatmul.bf16.gmra.mxu0 %v4860
  %v4933 = vpop.f32.mrf.mxu0
  %v4934 = vadd.f32 0.0, %v4933
  %v4935 = vpop.f32.mrf.mxu0
  %v4936 = vadd.f32 0.0, %v4935
  %4937 = vmatmul.bf16.gmra.mxu0 %v4863
  %v4938 = vpop.f32.mrf.mxu0
  %v4939 = vadd.f32 0.0, %v4938
  %v4940 = vpop.f32.mrf.mxu0
  %v4941 = vadd.f32 0.0, %v4940
  %4942 = vmatmul.bf16.gmra.mxu0 %v4866
  %v4943 = vpop.f32.mrf.mxu0
  %v4944 = vadd.f32 0.0, %v4943
  %v4945 = vpop.f32.mrf.mxu0
  %v4946 = vadd.f32 0.0, %v4945
  %4947 = vmatmul.bf16.gmra.mxu0 %v4869
  %v4948 = vpop.f32.mrf.mxu0
  %v4949 = vadd.f32 0.0, %v4948
  %v4950 = vpop.f32.mrf.mxu0
  %v4951 = vadd.f32 0.0, %v4950
  %4952 = vmatmul.bf16.gmra.mxu0 %v4872
  %v4953 = vpop.f32.mrf.mxu0
  %v4954 = vadd.f32 0.0, %v4953
  %v4955 = vpop.f32.mrf.mxu0
  %v4956 = vadd.f32 0.0, %v4955
  %4957 = vmatmul.bf16.gmra.mxu0 %v4875
  %v4958 = vpop.f32.mrf.mxu0
  %v4959 = vadd.f32 0.0, %v4958
  %v4960 = vpop.f32.mrf.mxu0
  %v4961 = vadd.f32 0.0, %v4960
  %4962 = vmatmul.bf16.gmra.mxu0 %v4878
  %v4963 = vpop.f32.mrf.mxu0
  %v4964 = vadd.f32 0.0, %v4963
  %v4965 = vpop.f32.mrf.mxu0
  %v4966 = vadd.f32 0.0, %v4965
  %4967 = vmatmul.bf16.gmra.mxu0 %v4881
  %v4968 = vpop.f32.mrf.mxu0
  %v4969 = vadd.f32 0.0, %v4968
  %v4970 = vpop.f32.mrf.mxu0
  %v4971 = vadd.f32 0.0, %v4970
  %4972 = vmatmul.bf16.gmra.mxu0 %v4884
  %v4973 = vpop.f32.mrf.mxu0
  %v4974 = vadd.f32 0.0, %v4973
  %v4975 = vpop.f32.mrf.mxu0
  %v4976 = vadd.f32 0.0, %v4975
  %4977 = vdwg.mxu0
  %v4978 = vadd.f32 %v3421, %v4899
  %v4979 = vadd.f32 %v3422, %v4901
  %v4980 = vadd.f32 %v3423, %v4904
  %v4981 = vadd.f32 %v3424, %v4906
  %v4982 = vadd.f32 %v3425, %v4909
  %v4983 = vadd.f32 %v3426, %v4911
  %v4984 = vadd.f32 %v3427, %v4914
  %v4985 = vadd.f32 %v3428, %v4916
  %v4986 = vadd.f32 %v3429, %v4919
  %v4987 = vadd.f32 %v3430, %v4921
  %v4988 = vadd.f32 %v3431, %v4924
  %v4989 = vadd.f32 %v3432, %v4926
  %v4990 = vadd.f32 %v3433, %v4929
  %v4991 = vadd.f32 %v3434, %v4931
  %v4992 = vadd.f32 %v3435, %v4934
  %v4993 = vadd.f32 %v3436, %v4936
  %v4994 = vadd.f32 %v3437, %v4939
  %v4995 = vadd.f32 %v3438, %v4941
  %v4996 = vadd.f32 %v3439, %v4944
  %v4997 = vadd.f32 %v3440, %v4946
  %v4998 = vadd.f32 %v3441, %v4949
  %v4999 = vadd.f32 %v3442, %v4951
  %v5000 = vadd.f32 %v3443, %v4954
  %v5001 = vadd.f32 %v3444, %v4956
  %v5002 = vadd.f32 %v3445, %v4959
  %v5003 = vadd.f32 %v3446, %v4961
  %v5004 = vadd.f32 %v3447, %v4964
  %v5005 = vadd.f32 %v3448, %v4966
  %v5006 = vadd.f32 %v3449, %v4969
  %v5007 = vadd.f32 %v3450, %v4971
  %v5008 = vadd.f32 %v3451, %v4974
  %v5009 = vadd.f32 %v3452, %v4976
  %5010 = vrot.lane.b32.xlu0 %v304, 104
  %v5011 = vpop.permute.xlu0 %5010
  %5012 = vrot.lane.b32.xlu0 %v305, 104
  %v5013 = vpop.permute.xlu0 %5012
  %5014 = vrot.lane.b32.xlu0 %v306, 104
  %v5015 = vpop.permute.xlu0 %5014
  %5016 = vrot.lane.b32.xlu0 %v307, 104
  %v5017 = vpop.permute.xlu0 %5016
  %5018 = vrot.lane.b32.xlu0 %v304, 72
  %v5019 = vpop.permute.xlu0 %5018
  %5020 = vrot.lane.b32.xlu0 %v305, 72
  %v5021 = vpop.permute.xlu0 %5020
  %5022 = vrot.lane.b32.xlu0 %v306, 72
  %v5023 = vpop.permute.xlu0 %5022
  %5024 = vrot.lane.b32.xlu0 %v307, 72
  %v5025 = vpop.permute.xlu0 %5024
  %v5027 = vsel %vm316, %v5011, 0
  %v5030 = vsel %vm316, %v5013, 0
  %v5033 = vsel %vm316, %v5015, 0
  %v5036 = vsel %vm316, %v5017, 0
  %v5039 = vsel %vm316, %v5019, 0
  %v5042 = vsel %vm316, %v5021, 0
  %v5045 = vsel %vm316, %v5023, 0
  %v5048 = vsel %vm316, %v5025, 0
  %5050 = vmatpush.bf16.xpose.msra.mxu0 0
  %5051 = vmatpush.bf16.xpose.msra.mxu0 0
  %5052 = vmatpush.bf16.xpose.msra.mxu0 0
  %5053 = vmatpush.bf16.xpose.msra.mxu0 0
  %5054 = vmatpush.bf16.xpose.msra.mxu0 %v5048
  %5055 = vmatpush.bf16.xpose.msra.mxu0 %v5045
  %5056 = vmatpush.bf16.xpose.msra.mxu0 %v5042
  %5057 = vmatpush.bf16.xpose.msra.mxu0 %v5039
  %5058 = vmatmul.bf16.gmra.mxu0 %v5027
  %v5059 = vpop.f32.mrf.mxu0
  %v5060 = vadd.f32 0.0, %v5059
  %v5061 = vpop.f32.mrf.mxu0
  %v5062 = vadd.f32 0.0, %v5061
  %5063 = vmatmul.bf16.gmra.mxu0 %v5030
  %v5064 = vpop.f32.mrf.mxu0
  %v5065 = vadd.f32 0.0, %v5064
  %v5066 = vpop.f32.mrf.mxu0
  %v5067 = vadd.f32 0.0, %v5066
  %5068 = vmatmul.bf16.gmra.mxu0 %v5033
  %v5069 = vpop.f32.mrf.mxu0
  %v5070 = vadd.f32 0.0, %v5069
  %v5071 = vpop.f32.mrf.mxu0
  %v5072 = vadd.f32 0.0, %v5071
  %5073 = vmatmul.bf16.gmra.mxu0 %v5036
  %v5074 = vpop.f32.mrf.mxu0
  %v5075 = vadd.f32 0.0, %v5074
  %v5076 = vpop.f32.mrf.mxu0
  %v5077 = vadd.f32 0.0, %v5076
  %5078 = vdwg.mxu0
  %5079 = vrot.lane.b32.xlu0 %v386, 104
  %v5080 = vpop.permute.xlu0 %5079
  %5081 = vrot.lane.b32.xlu0 %v387, 104
  %v5082 = vpop.permute.xlu0 %5081
  %5083 = vrot.lane.b32.xlu0 %v388, 104
  %v5084 = vpop.permute.xlu0 %5083
  %5085 = vrot.lane.b32.xlu0 %v389, 104
  %v5086 = vpop.permute.xlu0 %5085
  %5087 = vrot.lane.b32.xlu0 %v386, 72
  %v5088 = vpop.permute.xlu0 %5087
  %5089 = vrot.lane.b32.xlu0 %v387, 72
  %v5090 = vpop.permute.xlu0 %5089
  %5091 = vrot.lane.b32.xlu0 %v388, 72
  %v5092 = vpop.permute.xlu0 %5091
  %5093 = vrot.lane.b32.xlu0 %v389, 72
  %v5094 = vpop.permute.xlu0 %5093
  %v5096 = vsel %vm316, %v5080, 0
  %v5099 = vsel %vm316, %v5082, 0
  %v5102 = vsel %vm316, %v5084, 0
  %v5105 = vsel %vm316, %v5086, 0
  %v5108 = vsel %vm316, %v5088, 0
  %v5111 = vsel %vm316, %v5090, 0
  %v5114 = vsel %vm316, %v5092, 0
  %v5117 = vsel %vm316, %v5094, 0
  %5119 = vmatpush.bf16.xpose.msra.mxu0 0
  %5120 = vmatpush.bf16.xpose.msra.mxu0 0
  %5121 = vmatpush.bf16.xpose.msra.mxu0 0
  %5122 = vmatpush.bf16.xpose.msra.mxu0 0
  %5123 = vmatpush.bf16.xpose.msra.mxu0 %v5117
  %5124 = vmatpush.bf16.xpose.msra.mxu0 %v5114
  %5125 = vmatpush.bf16.xpose.msra.mxu0 %v5111
  %5126 = vmatpush.bf16.xpose.msra.mxu0 %v5108
  %5127 = vmatmul.bf16.gmra.mxu0 %v5096
  %v5128 = vpop.f32.mrf.mxu0
  %v5129 = vadd.f32 0.0, %v5128
  %v5130 = vpop.f32.mrf.mxu0
  %v5131 = vadd.f32 0.0, %v5130
  %5132 = vmatmul.bf16.gmra.mxu0 %v5099
  %v5133 = vpop.f32.mrf.mxu0
  %v5134 = vadd.f32 0.0, %v5133
  %v5135 = vpop.f32.mrf.mxu0
  %v5136 = vadd.f32 0.0, %v5135
  %5137 = vmatmul.bf16.gmra.mxu0 %v5102
  %v5138 = vpop.f32.mrf.mxu0
  %v5139 = vadd.f32 0.0, %v5138
  %v5140 = vpop.f32.mrf.mxu0
  %v5141 = vadd.f32 0.0, %v5140
  %5142 = vmatmul.bf16.gmra.mxu0 %v5105
  %v5143 = vpop.f32.mrf.mxu0
  %v5144 = vadd.f32 0.0, %v5143
  %v5145 = vpop.f32.mrf.mxu0
  %v5146 = vadd.f32 0.0, %v5145
  %5147 = vdwg.mxu0
  %5148 = vrot.lane.b32.xlu0 %v467, 104
  %v5149 = vpop.permute.xlu0 %5148
  %5150 = vrot.lane.b32.xlu0 %v468, 104
  %v5151 = vpop.permute.xlu0 %5150
  %5152 = vrot.lane.b32.xlu0 %v469, 104
  %v5153 = vpop.permute.xlu0 %5152
  %5154 = vrot.lane.b32.xlu0 %v470, 104
  %v5155 = vpop.permute.xlu0 %5154
  %5156 = vrot.lane.b32.xlu0 %v467, 72
  %v5157 = vpop.permute.xlu0 %5156
  %5158 = vrot.lane.b32.xlu0 %v468, 72
  %v5159 = vpop.permute.xlu0 %5158
  %5160 = vrot.lane.b32.xlu0 %v469, 72
  %v5161 = vpop.permute.xlu0 %5160
  %5162 = vrot.lane.b32.xlu0 %v470, 72
  %v5163 = vpop.permute.xlu0 %5162
  %v5165 = vsel %vm316, %v5149, 0
  %v5168 = vsel %vm316, %v5151, 0
  %v5171 = vsel %vm316, %v5153, 0
  %v5174 = vsel %vm316, %v5155, 0
  %v5177 = vsel %vm316, %v5157, 0
  %v5180 = vsel %vm316, %v5159, 0
  %v5183 = vsel %vm316, %v5161, 0
  %v5186 = vsel %vm316, %v5163, 0
  %5188 = vmatpush.bf16.xpose.msra.mxu0 0
  %5189 = vmatpush.bf16.xpose.msra.mxu0 0
  %5190 = vmatpush.bf16.xpose.msra.mxu0 0
  %5191 = vmatpush.bf16.xpose.msra.mxu0 0
  %5192 = vmatpush.bf16.xpose.msra.mxu0 %v5186
  %5193 = vmatpush.bf16.xpose.msra.mxu0 %v5183
  %5194 = vmatpush.bf16.xpose.msra.mxu0 %v5180
  %5195 = vmatpush.bf16.xpose.msra.mxu0 %v5177
  %5196 = vmatmul.bf16.gmra.mxu0 %v5165
  %v5197 = vpop.f32.mrf.mxu0
  %v5198 = vadd.f32 0.0, %v5197
  %v5199 = vpop.f32.mrf.mxu0
  %v5200 = vadd.f32 0.0, %v5199
  %5201 = vmatmul.bf16.gmra.mxu0 %v5168
  %v5202 = vpop.f32.mrf.mxu0
  %v5203 = vadd.f32 0.0, %v5202
  %v5204 = vpop.f32.mrf.mxu0
  %v5205 = vadd.f32 0.0, %v5204
  %5206 = vmatmul.bf16.gmra.mxu0 %v5171
  %v5207 = vpop.f32.mrf.mxu0
  %v5208 = vadd.f32 0.0, %v5207
  %v5209 = vpop.f32.mrf.mxu0
  %v5210 = vadd.f32 0.0, %v5209
  %5211 = vmatmul.bf16.gmra.mxu0 %v5174
  %v5212 = vpop.f32.mrf.mxu0
  %v5213 = vadd.f32 0.0, %v5212
  %v5214 = vpop.f32.mrf.mxu0
  %v5215 = vadd.f32 0.0, %v5214
  %5216 = vdwg.mxu0
  %5217 = vrot.lane.b32.xlu0 %v548, 104
  %v5218 = vpop.permute.xlu0 %5217
  %5219 = vrot.lane.b32.xlu0 %v549, 104
  %v5220 = vpop.permute.xlu0 %5219
  %5221 = vrot.lane.b32.xlu0 %v550, 104
  %v5222 = vpop.permute.xlu0 %5221
  %5223 = vrot.lane.b32.xlu0 %v551, 104
  %v5224 = vpop.permute.xlu0 %5223
  %5225 = vrot.lane.b32.xlu0 %v548, 72
  %v5226 = vpop.permute.xlu0 %5225
  %5227 = vrot.lane.b32.xlu0 %v549, 72
  %v5228 = vpop.permute.xlu0 %5227
  %5229 = vrot.lane.b32.xlu0 %v550, 72
  %v5230 = vpop.permute.xlu0 %5229
  %5231 = vrot.lane.b32.xlu0 %v551, 72
  %v5232 = vpop.permute.xlu0 %5231
  %v5234 = vsel %vm316, %v5218, 0
  %v5237 = vsel %vm316, %v5220, 0
  %v5240 = vsel %vm316, %v5222, 0
  %v5243 = vsel %vm316, %v5224, 0
  %v5246 = vsel %vm316, %v5226, 0
  %v5249 = vsel %vm316, %v5228, 0
  %v5252 = vsel %vm316, %v5230, 0
  %v5255 = vsel %vm316, %v5232, 0
  %5257 = vmatpush.bf16.xpose.msra.mxu0 0
  %5258 = vmatpush.bf16.xpose.msra.mxu0 0
  %5259 = vmatpush.bf16.xpose.msra.mxu0 0
  %5260 = vmatpush.bf16.xpose.msra.mxu0 0
  %5261 = vmatpush.bf16.xpose.msra.mxu0 %v5255
  %5262 = vmatpush.bf16.xpose.msra.mxu0 %v5252
  %5263 = vmatpush.bf16.xpose.msra.mxu0 %v5249
  %5264 = vmatpush.bf16.xpose.msra.mxu0 %v5246
  %5265 = vmatmul.bf16.gmra.mxu0 %v5234
  %v5266 = vpop.f32.mrf.mxu0
  %v5267 = vadd.f32 0.0, %v5266
  %v5268 = vpop.f32.mrf.mxu0
  %v5269 = vadd.f32 0.0, %v5268
  %5270 = vmatmul.bf16.gmra.mxu0 %v5237
  %v5271 = vpop.f32.mrf.mxu0
  %v5272 = vadd.f32 0.0, %v5271
  %v5273 = vpop.f32.mrf.mxu0
  %v5274 = vadd.f32 0.0, %v5273
  %5275 = vmatmul.bf16.gmra.mxu0 %v5240
  %v5276 = vpop.f32.mrf.mxu0
  %v5277 = vadd.f32 0.0, %v5276
  %v5278 = vpop.f32.mrf.mxu0
  %v5279 = vadd.f32 0.0, %v5278
  %5280 = vmatmul.bf16.gmra.mxu0 %v5243
  %v5281 = vpop.f32.mrf.mxu0
  %v5282 = vadd.f32 0.0, %v5281
  %v5283 = vpop.f32.mrf.mxu0
  %v5284 = vadd.f32 0.0, %v5283
  %5285 = vdwg.mxu0
  %v5286 = vsel %vm613, %v5060, -inf
  %5287 = vmax.xlane.f32.xlu0 %v5286
  %v5288 = vpop.xlane.xlu0 %5287
  %v5289 = vsel %vm613, %v5062, -inf
  %5290 = vmax.xlane.f32.xlu0 %v5289
  %v5291 = vpop.xlane.xlu0 %5290
  %v5292 = vsel %vm613, %v5065, -inf
  %5293 = vmax.xlane.f32.xlu0 %v5292
  %v5294 = vpop.xlane.xlu0 %5293
  %v5295 = vsel %vm613, %v5067, -inf
  %5296 = vmax.xlane.f32.xlu0 %v5295
  %v5297 = vpop.xlane.xlu0 %5296
  %v5298 = vsel %vm613, %v5070, -inf
  %5299 = vmax.xlane.f32.xlu0 %v5298
  %v5300 = vpop.xlane.xlu0 %5299
  %v5301 = vsel %vm613, %v5072, -inf
  %5302 = vmax.xlane.f32.xlu0 %v5301
  %v5303 = vpop.xlane.xlu0 %5302
  %v5304 = vsel %vm613, %v5075, -inf
  %5305 = vmax.xlane.f32.xlu0 %v5304
  %v5306 = vpop.xlane.xlu0 %5305
  %v5307 = vsel %vm613, %v5077, -inf
  %5308 = vmax.xlane.f32.xlu0 %v5307
  %v5309 = vpop.xlane.xlu0 %5308
  %v5310 = vsel %vm613, %v5129, -inf
  %5311 = vmax.xlane.f32.xlu0 %v5310
  %v5312 = vpop.xlane.xlu0 %5311
  %v5313 = vsel %vm613, %v5131, -inf
  %5314 = vmax.xlane.f32.xlu0 %v5313
  %v5315 = vpop.xlane.xlu0 %5314
  %v5316 = vsel %vm613, %v5134, -inf
  %5317 = vmax.xlane.f32.xlu0 %v5316
  %v5318 = vpop.xlane.xlu0 %5317
  %v5319 = vsel %vm613, %v5136, -inf
  %5320 = vmax.xlane.f32.xlu0 %v5319
  %v5321 = vpop.xlane.xlu0 %5320
  %v5322 = vsel %vm613, %v5139, -inf
  %5323 = vmax.xlane.f32.xlu0 %v5322
  %v5324 = vpop.xlane.xlu0 %5323
  %v5325 = vsel %vm613, %v5141, -inf
  %5326 = vmax.xlane.f32.xlu0 %v5325
  %v5327 = vpop.xlane.xlu0 %5326
  %v5328 = vsel %vm613, %v5144, -inf
  %5329 = vmax.xlane.f32.xlu0 %v5328
  %v5330 = vpop.xlane.xlu0 %5329
  %v5331 = vsel %vm613, %v5146, -inf
  %5332 = vmax.xlane.f32.xlu0 %v5331
  %v5333 = vpop.xlane.xlu0 %5332
  %v5334 = vsel %vm613, %v5198, -inf
  %5335 = vmax.xlane.f32.xlu0 %v5334
  %v5336 = vpop.xlane.xlu0 %5335
  %v5337 = vsel %vm613, %v5200, -inf
  %5338 = vmax.xlane.f32.xlu0 %v5337
  %v5339 = vpop.xlane.xlu0 %5338
  %v5340 = vsel %vm613, %v5203, -inf
  %5341 = vmax.xlane.f32.xlu0 %v5340
  %v5342 = vpop.xlane.xlu0 %5341
  %v5343 = vsel %vm613, %v5205, -inf
  %5344 = vmax.xlane.f32.xlu0 %v5343
  %v5345 = vpop.xlane.xlu0 %5344
  %v5346 = vsel %vm613, %v5208, -inf
  %5347 = vmax.xlane.f32.xlu0 %v5346
  %v5348 = vpop.xlane.xlu0 %5347
  %v5349 = vsel %vm613, %v5210, -inf
  %5350 = vmax.xlane.f32.xlu0 %v5349
  %v5351 = vpop.xlane.xlu0 %5350
  %v5352 = vsel %vm613, %v5213, -inf
  %5353 = vmax.xlane.f32.xlu0 %v5352
  %v5354 = vpop.xlane.xlu0 %5353
  %v5355 = vsel %vm613, %v5215, -inf
  %5356 = vmax.xlane.f32.xlu0 %v5355
  %v5357 = vpop.xlane.xlu0 %5356
  %v5358 = vsel %vm613, %v5267, -inf
  %5359 = vmax.xlane.f32.xlu0 %v5358
  %v5360 = vpop.xlane.xlu0 %5359
  %v5361 = vsel %vm613, %v5269, -inf
  %5362 = vmax.xlane.f32.xlu0 %v5361
  %v5363 = vpop.xlane.xlu0 %5362
  %v5364 = vsel %vm613, %v5272, -inf
  %5365 = vmax.xlane.f32.xlu0 %v5364
  %v5366 = vpop.xlane.xlu0 %5365
  %v5367 = vsel %vm613, %v5274, -inf
  %5368 = vmax.xlane.f32.xlu0 %v5367
  %v5369 = vpop.xlane.xlu0 %5368
  %v5370 = vsel %vm613, %v5277, -inf
  %5371 = vmax.xlane.f32.xlu0 %v5370
  %v5372 = vpop.xlane.xlu0 %5371
  %v5373 = vsel %vm613, %v5279, -inf
  %5374 = vmax.xlane.f32.xlu0 %v5373
  %v5375 = vpop.xlane.xlu0 %5374
  %v5376 = vsel %vm613, %v5282, -inf
  %5377 = vmax.xlane.f32.xlu0 %v5376
  %v5378 = vpop.xlane.xlu0 %5377
  %v5379 = vsel %vm613, %v5284, -inf
  %5380 = vmax.xlane.f32.xlu0 %v5379
  %v5381 = vpop.xlane.xlu0 %5380
  %v5382 = vsub.f32 %v5060, %v5288
  %v5383 = vsub.f32 %v5062, %v5291
  %v5384 = vsub.f32 %v5065, %v5294
  %v5385 = vsub.f32 %v5067, %v5297
  %v5386 = vsub.f32 %v5070, %v5300
  %v5387 = vsub.f32 %v5072, %v5303
  %v5388 = vsub.f32 %v5075, %v5306
  %v5389 = vsub.f32 %v5077, %v5309
  %v5390 = vsub.f32 %v5129, %v5312
  %v5391 = vsub.f32 %v5131, %v5315
  %v5392 = vsub.f32 %v5134, %v5318
  %v5393 = vsub.f32 %v5136, %v5321
  %v5394 = vsub.f32 %v5139, %v5324
  %v5395 = vsub.f32 %v5141, %v5327
  %v5396 = vsub.f32 %v5144, %v5330
  %v5397 = vsub.f32 %v5146, %v5333
  %v5398 = vsub.f32 %v5198, %v5336
  %v5399 = vsub.f32 %v5200, %v5339
  %v5400 = vsub.f32 %v5203, %v5342
  %v5401 = vsub.f32 %v5205, %v5345
  %v5402 = vsub.f32 %v5208, %v5348
  %v5403 = vsub.f32 %v5210, %v5351
  %v5404 = vsub.f32 %v5213, %v5354
  %v5405 = vsub.f32 %v5215, %v5357
  %v5406 = vsub.f32 %v5267, %v5360
  %v5407 = vsub.f32 %v5269, %v5363
  %v5408 = vsub.f32 %v5272, %v5366
  %v5409 = vsub.f32 %v5274, %v5369
  %v5410 = vsub.f32 %v5277, %v5372
  %v5411 = vsub.f32 %v5279, %v5375
  %v5412 = vsub.f32 %v5282, %v5378
  %v5413 = vsub.f32 %v5284, %v5381
  %v5414 = vmul.f32 %v5382, 1.442695
  %v5415 = vpow.pop %v5414
  %v5416 = vmul.f32 %v5383, 1.442695
  %v5417 = vpow.pop %v5416
  %v5418 = vmul.f32 %v5384, 1.442695
  %v5419 = vpow.pop %v5418
  %v5420 = vmul.f32 %v5385, 1.442695
  %v5421 = vpow.pop %v5420
  %v5422 = vmul.f32 %v5386, 1.442695
  %v5423 = vpow.pop %v5422
  %v5424 = vmul.f32 %v5387, 1.442695
  %v5425 = vpow.pop %v5424
  %v5426 = vmul.f32 %v5388, 1.442695
  %v5427 = vpow.pop %v5426
  %v5428 = vmul.f32 %v5389, 1.442695
  %v5429 = vpow.pop %v5428
  %v5430 = vmul.f32 %v5390, 1.442695
  %v5431 = vpow.pop %v5430
  %v5432 = vmul.f32 %v5391, 1.442695
  %v5433 = vpow.pop %v5432
  %v5434 = vmul.f32 %v5392, 1.442695
  %v5435 = vpow.pop %v5434
  %v5436 = vmul.f32 %v5393, 1.442695
  %v5437 = vpow.pop %v5436
  %v5438 = vmul.f32 %v5394, 1.442695
  %v5439 = vpow.pop %v5438
  %v5440 = vmul.f32 %v5395, 1.442695
  %v5441 = vpow.pop %v5440
  %v5442 = vmul.f32 %v5396, 1.442695
  %v5443 = vpow.pop %v5442
  %v5444 = vmul.f32 %v5397, 1.442695
  %v5445 = vpow.pop %v5444
  %v5446 = vmul.f32 %v5398, 1.442695
  %v5447 = vpow.pop %v5446
  %v5448 = vmul.f32 %v5399, 1.442695
  %v5449 = vpow.pop %v5448
  %v5450 = vmul.f32 %v5400, 1.442695
  %v5451 = vpow.pop %v5450
  %v5452 = vmul.f32 %v5401, 1.442695
  %v5453 = vpow.pop %v5452
  %v5454 = vmul.f32 %v5402, 1.442695
  %v5455 = vpow.pop %v5454
  %v5456 = vmul.f32 %v5403, 1.442695
  %v5457 = vpow.pop %v5456
  %v5458 = vmul.f32 %v5404, 1.442695
  %v5459 = vpow.pop %v5458
  %v5460 = vmul.f32 %v5405, 1.442695
  %v5461 = vpow.pop %v5460
  %v5462 = vmul.f32 %v5406, 1.442695
  %v5463 = vpow.pop %v5462
  %v5464 = vmul.f32 %v5407, 1.442695
  %v5465 = vpow.pop %v5464
  %v5466 = vmul.f32 %v5408, 1.442695
  %v5467 = vpow.pop %v5466
  %v5468 = vmul.f32 %v5409, 1.442695
  %v5469 = vpow.pop %v5468
  %v5470 = vmul.f32 %v5410, 1.442695
  %v5471 = vpow.pop %v5470
  %v5472 = vmul.f32 %v5411, 1.442695
  %v5473 = vpow.pop %v5472
  %v5474 = vmul.f32 %v5412, 1.442695
  %v5475 = vpow.pop %v5474
  %v5476 = vmul.f32 %v5413, 1.442695
  %v5477 = vpow.pop %v5476
  %v5478 = vsel %vm613, %v5415, 0.0
  %5479 = vadd.xlane.f32.xlu0 %v5478
  %v5480 = vpop.xlane.xlu0 %5479
  %v5481 = vsel %vm613, %v5417, 0.0
  %5482 = vadd.xlane.f32.xlu0 %v5481
  %v5483 = vpop.xlane.xlu0 %5482
  %v5484 = vsel %vm613, %v5419, 0.0
  %5485 = vadd.xlane.f32.xlu0 %v5484
  %v5486 = vpop.xlane.xlu0 %5485
  %v5487 = vsel %vm613, %v5421, 0.0
  %5488 = vadd.xlane.f32.xlu0 %v5487
  %v5489 = vpop.xlane.xlu0 %5488
  %v5490 = vsel %vm613, %v5423, 0.0
  %5491 = vadd.xlane.f32.xlu0 %v5490
  %v5492 = vpop.xlane.xlu0 %5491
  %v5493 = vsel %vm613, %v5425, 0.0
  %5494 = vadd.xlane.f32.xlu0 %v5493
  %v5495 = vpop.xlane.xlu0 %5494
  %v5496 = vsel %vm613, %v5427, 0.0
  %5497 = vadd.xlane.f32.xlu0 %v5496
  %v5498 = vpop.xlane.xlu0 %5497
  %v5499 = vsel %vm613, %v5429, 0.0
  %5500 = vadd.xlane.f32.xlu0 %v5499
  %v5501 = vpop.xlane.xlu0 %5500
  %v5502 = vsel %vm613, %v5431, 0.0
  %5503 = vadd.xlane.f32.xlu0 %v5502
  %v5504 = vpop.xlane.xlu0 %5503
  %v5505 = vsel %vm613, %v5433, 0.0
  %5506 = vadd.xlane.f32.xlu0 %v5505
  %v5507 = vpop.xlane.xlu0 %5506
  %v5508 = vsel %vm613, %v5435, 0.0
  %5509 = vadd.xlane.f32.xlu0 %v5508
  %v5510 = vpop.xlane.xlu0 %5509
  %v5511 = vsel %vm613, %v5437, 0.0
  %5512 = vadd.xlane.f32.xlu0 %v5511
  %v5513 = vpop.xlane.xlu0 %5512
  %v5514 = vsel %vm613, %v5439, 0.0
  %5515 = vadd.xlane.f32.xlu0 %v5514
  %v5516 = vpop.xlane.xlu0 %5515
  %v5517 = vsel %vm613, %v5441, 0.0
  %5518 = vadd.xlane.f32.xlu0 %v5517
  %v5519 = vpop.xlane.xlu0 %5518
  %v5520 = vsel %vm613, %v5443, 0.0
  %5521 = vadd.xlane.f32.xlu0 %v5520
  %v5522 = vpop.xlane.xlu0 %5521
  %v5523 = vsel %vm613, %v5445, 0.0
  %5524 = vadd.xlane.f32.xlu0 %v5523
  %v5525 = vpop.xlane.xlu0 %5524
  %v5526 = vsel %vm613, %v5447, 0.0
  %5527 = vadd.xlane.f32.xlu0 %v5526
  %v5528 = vpop.xlane.xlu0 %5527
  %v5529 = vsel %vm613, %v5449, 0.0
  %5530 = vadd.xlane.f32.xlu0 %v5529
  %v5531 = vpop.xlane.xlu0 %5530
  %v5532 = vsel %vm613, %v5451, 0.0
  %5533 = vadd.xlane.f32.xlu0 %v5532
  %v5534 = vpop.xlane.xlu0 %5533
  %v5535 = vsel %vm613, %v5453, 0.0
  %5536 = vadd.xlane.f32.xlu0 %v5535
  %v5537 = vpop.xlane.xlu0 %5536
  %v5538 = vsel %vm613, %v5455, 0.0
  %5539 = vadd.xlane.f32.xlu0 %v5538
  %v5540 = vpop.xlane.xlu0 %5539
  %v5541 = vsel %vm613, %v5457, 0.0
  %5542 = vadd.xlane.f32.xlu0 %v5541
  %v5543 = vpop.xlane.xlu0 %5542
  %v5544 = vsel %vm613, %v5459, 0.0
  %5545 = vadd.xlane.f32.xlu0 %v5544
  %v5546 = vpop.xlane.xlu0 %5545
  %v5547 = vsel %vm613, %v5461, 0.0
  %5548 = vadd.xlane.f32.xlu0 %v5547
  %v5549 = vpop.xlane.xlu0 %5548
  %v5550 = vsel %vm613, %v5463, 0.0
  %5551 = vadd.xlane.f32.xlu0 %v5550
  %v5552 = vpop.xlane.xlu0 %5551
  %v5553 = vsel %vm613, %v5465, 0.0
  %5554 = vadd.xlane.f32.xlu0 %v5553
  %v5555 = vpop.xlane.xlu0 %5554
  %v5556 = vsel %vm613, %v5467, 0.0
  %5557 = vadd.xlane.f32.xlu0 %v5556
  %v5558 = vpop.xlane.xlu0 %5557
  %v5559 = vsel %vm613, %v5469, 0.0
  %5560 = vadd.xlane.f32.xlu0 %v5559
  %v5561 = vpop.xlane.xlu0 %5560
  %v5562 = vsel %vm613, %v5471, 0.0
  %5563 = vadd.xlane.f32.xlu0 %v5562
  %v5564 = vpop.xlane.xlu0 %5563
  %v5565 = vsel %vm613, %v5473, 0.0
  %5566 = vadd.xlane.f32.xlu0 %v5565
  %v5567 = vpop.xlane.xlu0 %5566
  %v5568 = vsel %vm613, %v5475, 0.0
  %5569 = vadd.xlane.f32.xlu0 %v5568
  %v5570 = vpop.xlane.xlu0 %5569
  %v5571 = vsel %vm613, %v5477, 0.0
  %5572 = vadd.xlane.f32.xlu0 %v5571
  %v5573 = vpop.xlane.xlu0 %5572
  %v5574 = vrcp.pop %v5480
  %v5575 = vmul.f32 %v5480, %v5574
  %v5576 = vsub.f32 1.0, %v5575
  %v5577 = vmul.f32 %v5574, %v5576
  %v5578 = vadd.f32 %v5574, %v5577
  %vm5579 = vweird.f32 %v5480
  %vm5580 = vweird.f32 %v5574
  %vm5581 = vmor %vm5579, %vm5580
  %v5582 = vsel %vm5581, %v5574, %v5578
  %v5583 = vand.u32 2147483647, %v5480
  %vm5584 = vcmp.eq.f32.partialorder %v5583, 8.507059e+37
  %v5585 = vand.u32 %v5480, 2147483648
  %v5586 = vor.u32 1.1754944e-38, %v5585
  %v5587 = vsel %vm5584, %v5586, %v5582
  %v5588 = vmul.f32 %v5415, %v5587
  %v5589 = vrcp.pop %v5483
  %v5590 = vmul.f32 %v5483, %v5589
  %v5591 = vsub.f32 1.0, %v5590
  %v5592 = vmul.f32 %v5589, %v5591
  %v5593 = vadd.f32 %v5589, %v5592
  %vm5594 = vweird.f32 %v5483
  %vm5595 = vweird.f32 %v5589
  %vm5596 = vmor %vm5594, %vm5595
  %v5597 = vsel %vm5596, %v5589, %v5593
  %v5598 = vand.u32 2147483647, %v5483
  %vm5599 = vcmp.eq.f32.partialorder %v5598, 8.507059e+37
  %v5600 = vand.u32 %v5483, 2147483648
  %v5601 = vor.u32 1.1754944e-38, %v5600
  %v5602 = vsel %vm5599, %v5601, %v5597
  %v5603 = vmul.f32 %v5417, %v5602
  %v5604 = vrcp.pop %v5486
  %v5605 = vmul.f32 %v5486, %v5604
  %v5606 = vsub.f32 1.0, %v5605
  %v5607 = vmul.f32 %v5604, %v5606
  %v5608 = vadd.f32 %v5604, %v5607
  %vm5609 = vweird.f32 %v5486
  %vm5610 = vweird.f32 %v5604
  %vm5611 = vmor %vm5609, %vm5610
  %v5612 = vsel %vm5611, %v5604, %v5608
  %v5613 = vand.u32 2147483647, %v5486
  %vm5614 = vcmp.eq.f32.partialorder %v5613, 8.507059e+37
  %v5615 = vand.u32 %v5486, 2147483648
  %v5616 = vor.u32 1.1754944e-38, %v5615
  %v5617 = vsel %vm5614, %v5616, %v5612
  %v5618 = vmul.f32 %v5419, %v5617
  %v5619 = vrcp.pop %v5489
  %v5620 = vmul.f32 %v5489, %v5619
  %v5621 = vsub.f32 1.0, %v5620
  %v5622 = vmul.f32 %v5619, %v5621
  %v5623 = vadd.f32 %v5619, %v5622
  %vm5624 = vweird.f32 %v5489
  %vm5625 = vweird.f32 %v5619
  %vm5626 = vmor %vm5624, %vm5625
  %v5627 = vsel %vm5626, %v5619, %v5623
  %v5628 = vand.u32 2147483647, %v5489
  %vm5629 = vcmp.eq.f32.partialorder %v5628, 8.507059e+37
  %v5630 = vand.u32 %v5489, 2147483648
  %v5631 = vor.u32 1.1754944e-38, %v5630
  %v5632 = vsel %vm5629, %v5631, %v5627
  %v5633 = vmul.f32 %v5421, %v5632
  %v5634 = vrcp.pop %v5492
  %v5635 = vmul.f32 %v5492, %v5634
  %v5636 = vsub.f32 1.0, %v5635
  %v5637 = vmul.f32 %v5634, %v5636
  %v5638 = vadd.f32 %v5634, %v5637
  %vm5639 = vweird.f32 %v5492
  %vm5640 = vweird.f32 %v5634
  %vm5641 = vmor %vm5639, %vm5640
  %v5642 = vsel %vm5641, %v5634, %v5638
  %v5643 = vand.u32 2147483647, %v5492
  %vm5644 = vcmp.eq.f32.partialorder %v5643, 8.507059e+37
  %v5645 = vand.u32 %v5492, 2147483648
  %v5646 = vor.u32 1.1754944e-38, %v5645
  %v5647 = vsel %vm5644, %v5646, %v5642
  %v5648 = vmul.f32 %v5423, %v5647
  %v5649 = vrcp.pop %v5495
  %v5650 = vmul.f32 %v5495, %v5649
  %v5651 = vsub.f32 1.0, %v5650
  %v5652 = vmul.f32 %v5649, %v5651
  %v5653 = vadd.f32 %v5649, %v5652
  %vm5654 = vweird.f32 %v5495
  %vm5655 = vweird.f32 %v5649
  %vm5656 = vmor %vm5654, %vm5655
  %v5657 = vsel %vm5656, %v5649, %v5653
  %v5658 = vand.u32 2147483647, %v5495
  %vm5659 = vcmp.eq.f32.partialorder %v5658, 8.507059e+37
  %v5660 = vand.u32 %v5495, 2147483648
  %v5661 = vor.u32 1.1754944e-38, %v5660
  %v5662 = vsel %vm5659, %v5661, %v5657
  %v5663 = vmul.f32 %v5425, %v5662
  %v5664 = vrcp.pop %v5498
  %v5665 = vmul.f32 %v5498, %v5664
  %v5666 = vsub.f32 1.0, %v5665
  %v5667 = vmul.f32 %v5664, %v5666
  %v5668 = vadd.f32 %v5664, %v5667
  %vm5669 = vweird.f32 %v5498
  %vm5670 = vweird.f32 %v5664
  %vm5671 = vmor %vm5669, %vm5670
  %v5672 = vsel %vm5671, %v5664, %v5668
  %v5673 = vand.u32 2147483647, %v5498
  %vm5674 = vcmp.eq.f32.partialorder %v5673, 8.507059e+37
  %v5675 = vand.u32 %v5498, 2147483648
  %v5676 = vor.u32 1.1754944e-38, %v5675
  %v5677 = vsel %vm5674, %v5676, %v5672
  %v5678 = vmul.f32 %v5427, %v5677
  %v5679 = vrcp.pop %v5501
  %v5680 = vmul.f32 %v5501, %v5679
  %v5681 = vsub.f32 1.0, %v5680
  %v5682 = vmul.f32 %v5679, %v5681
  %v5683 = vadd.f32 %v5679, %v5682
  %vm5684 = vweird.f32 %v5501
  %vm5685 = vweird.f32 %v5679
  %vm5686 = vmor %vm5684, %vm5685
  %v5687 = vsel %vm5686, %v5679, %v5683
  %v5688 = vand.u32 2147483647, %v5501
  %vm5689 = vcmp.eq.f32.partialorder %v5688, 8.507059e+37
  %v5690 = vand.u32 %v5501, 2147483648
  %v5691 = vor.u32 1.1754944e-38, %v5690
  %v5692 = vsel %vm5689, %v5691, %v5687
  %v5693 = vmul.f32 %v5429, %v5692
  %v5694 = vrcp.pop %v5504
  %v5695 = vmul.f32 %v5504, %v5694
  %v5696 = vsub.f32 1.0, %v5695
  %v5697 = vmul.f32 %v5694, %v5696
  %v5698 = vadd.f32 %v5694, %v5697
  %vm5699 = vweird.f32 %v5504
  %vm5700 = vweird.f32 %v5694
  %vm5701 = vmor %vm5699, %vm5700
  %v5702 = vsel %vm5701, %v5694, %v5698
  %v5703 = vand.u32 2147483647, %v5504
  %vm5704 = vcmp.eq.f32.partialorder %v5703, 8.507059e+37
  %v5705 = vand.u32 %v5504, 2147483648
  %v5706 = vor.u32 1.1754944e-38, %v5705
  %v5707 = vsel %vm5704, %v5706, %v5702
  %v5708 = vmul.f32 %v5431, %v5707
  %v5709 = vrcp.pop %v5507
  %v5710 = vmul.f32 %v5507, %v5709
  %v5711 = vsub.f32 1.0, %v5710
  %v5712 = vmul.f32 %v5709, %v5711
  %v5713 = vadd.f32 %v5709, %v5712
  %vm5714 = vweird.f32 %v5507
  %vm5715 = vweird.f32 %v5709
  %vm5716 = vmor %vm5714, %vm5715
  %v5717 = vsel %vm5716, %v5709, %v5713
  %v5718 = vand.u32 2147483647, %v5507
  %vm5719 = vcmp.eq.f32.partialorder %v5718, 8.507059e+37
  %v5720 = vand.u32 %v5507, 2147483648
  %v5721 = vor.u32 1.1754944e-38, %v5720
  %v5722 = vsel %vm5719, %v5721, %v5717
  %v5723 = vmul.f32 %v5433, %v5722
  %v5724 = vrcp.pop %v5510
  %v5725 = vmul.f32 %v5510, %v5724
  %v5726 = vsub.f32 1.0, %v5725
  %v5727 = vmul.f32 %v5724, %v5726
  %v5728 = vadd.f32 %v5724, %v5727
  %vm5729 = vweird.f32 %v5510
  %vm5730 = vweird.f32 %v5724
  %vm5731 = vmor %vm5729, %vm5730
  %v5732 = vsel %vm5731, %v5724, %v5728
  %v5733 = vand.u32 2147483647, %v5510
  %vm5734 = vcmp.eq.f32.partialorder %v5733, 8.507059e+37
  %v5735 = vand.u32 %v5510, 2147483648
  %v5736 = vor.u32 1.1754944e-38, %v5735
  %v5737 = vsel %vm5734, %v5736, %v5732
  %v5738 = vmul.f32 %v5435, %v5737
  %v5739 = vrcp.pop %v5513
  %v5740 = vmul.f32 %v5513, %v5739
  %v5741 = vsub.f32 1.0, %v5740
  %v5742 = vmul.f32 %v5739, %v5741
  %v5743 = vadd.f32 %v5739, %v5742
  %vm5744 = vweird.f32 %v5513
  %vm5745 = vweird.f32 %v5739
  %vm5746 = vmor %vm5744, %vm5745
  %v5747 = vsel %vm5746, %v5739, %v5743
  %v5748 = vand.u32 2147483647, %v5513
  %vm5749 = vcmp.eq.f32.partialorder %v5748, 8.507059e+37
  %v5750 = vand.u32 %v5513, 2147483648
  %v5751 = vor.u32 1.1754944e-38, %v5750
  %v5752 = vsel %vm5749, %v5751, %v5747
  %v5753 = vmul.f32 %v5437, %v5752
  %v5754 = vrcp.pop %v5516
  %v5755 = vmul.f32 %v5516, %v5754
  %v5756 = vsub.f32 1.0, %v5755
  %v5757 = vmul.f32 %v5754, %v5756
  %v5758 = vadd.f32 %v5754, %v5757
  %vm5759 = vweird.f32 %v5516
  %vm5760 = vweird.f32 %v5754
  %vm5761 = vmor %vm5759, %vm5760
  %v5762 = vsel %vm5761, %v5754, %v5758
  %v5763 = vand.u32 2147483647, %v5516
  %vm5764 = vcmp.eq.f32.partialorder %v5763, 8.507059e+37
  %v5765 = vand.u32 %v5516, 2147483648
  %v5766 = vor.u32 1.1754944e-38, %v5765
  %v5767 = vsel %vm5764, %v5766, %v5762
  %v5768 = vmul.f32 %v5439, %v5767
  %v5769 = vrcp.pop %v5519
  %v5770 = vmul.f32 %v5519, %v5769
  %v5771 = vsub.f32 1.0, %v5770
  %v5772 = vmul.f32 %v5769, %v5771
  %v5773 = vadd.f32 %v5769, %v5772
  %vm5774 = vweird.f32 %v5519
  %vm5775 = vweird.f32 %v5769
  %vm5776 = vmor %vm5774, %vm5775
  %v5777 = vsel %vm5776, %v5769, %v5773
  %v5778 = vand.u32 2147483647, %v5519
  %vm5779 = vcmp.eq.f32.partialorder %v5778, 8.507059e+37
  %v5780 = vand.u32 %v5519, 2147483648
  %v5781 = vor.u32 1.1754944e-38, %v5780
  %v5782 = vsel %vm5779, %v5781, %v5777
  %v5783 = vmul.f32 %v5441, %v5782
  %v5784 = vrcp.pop %v5522
  %v5785 = vmul.f32 %v5522, %v5784
  %v5786 = vsub.f32 1.0, %v5785
  %v5787 = vmul.f32 %v5784, %v5786
  %v5788 = vadd.f32 %v5784, %v5787
  %vm5789 = vweird.f32 %v5522
  %vm5790 = vweird.f32 %v5784
  %vm5791 = vmor %vm5789, %vm5790
  %v5792 = vsel %vm5791, %v5784, %v5788
  %v5793 = vand.u32 2147483647, %v5522
  %vm5794 = vcmp.eq.f32.partialorder %v5793, 8.507059e+37
  %v5795 = vand.u32 %v5522, 2147483648
  %v5796 = vor.u32 1.1754944e-38, %v5795
  %v5797 = vsel %vm5794, %v5796, %v5792
  %v5798 = vmul.f32 %v5443, %v5797
  %v5799 = vrcp.pop %v5525
  %v5800 = vmul.f32 %v5525, %v5799
  %v5801 = vsub.f32 1.0, %v5800
  %v5802 = vmul.f32 %v5799, %v5801
  %v5803 = vadd.f32 %v5799, %v5802
  %vm5804 = vweird.f32 %v5525
  %vm5805 = vweird.f32 %v5799
  %vm5806 = vmor %vm5804, %vm5805
  %v5807 = vsel %vm5806, %v5799, %v5803
  %v5808 = vand.u32 2147483647, %v5525
  %vm5809 = vcmp.eq.f32.partialorder %v5808, 8.507059e+37
  %v5810 = vand.u32 %v5525, 2147483648
  %v5811 = vor.u32 1.1754944e-38, %v5810
  %v5812 = vsel %vm5809, %v5811, %v5807
  %v5813 = vmul.f32 %v5445, %v5812
  %v5814 = vrcp.pop %v5528
  %v5815 = vmul.f32 %v5528, %v5814
  %v5816 = vsub.f32 1.0, %v5815
  %v5817 = vmul.f32 %v5814, %v5816
  %v5818 = vadd.f32 %v5814, %v5817
  %vm5819 = vweird.f32 %v5528
  %vm5820 = vweird.f32 %v5814
  %vm5821 = vmor %vm5819, %vm5820
  %v5822 = vsel %vm5821, %v5814, %v5818
  %v5823 = vand.u32 2147483647, %v5528
  %vm5824 = vcmp.eq.f32.partialorder %v5823, 8.507059e+37
  %v5825 = vand.u32 %v5528, 2147483648
  %v5826 = vor.u32 1.1754944e-38, %v5825
  %v5827 = vsel %vm5824, %v5826, %v5822
  %v5828 = vmul.f32 %v5447, %v5827
  %v5829 = vrcp.pop %v5531
  %v5830 = vmul.f32 %v5531, %v5829
  %v5831 = vsub.f32 1.0, %v5830
  %v5832 = vmul.f32 %v5829, %v5831
  %v5833 = vadd.f32 %v5829, %v5832
  %vm5834 = vweird.f32 %v5531
  %vm5835 = vweird.f32 %v5829
  %vm5836 = vmor %vm5834, %vm5835
  %v5837 = vsel %vm5836, %v5829, %v5833
  %v5838 = vand.u32 2147483647, %v5531
  %vm5839 = vcmp.eq.f32.partialorder %v5838, 8.507059e+37
  %v5840 = vand.u32 %v5531, 2147483648
  %v5841 = vor.u32 1.1754944e-38, %v5840
  %v5842 = vsel %vm5839, %v5841, %v5837
  %v5843 = vmul.f32 %v5449, %v5842
  %v5844 = vrcp.pop %v5534
  %v5845 = vmul.f32 %v5534, %v5844
  %v5846 = vsub.f32 1.0, %v5845
  %v5847 = vmul.f32 %v5844, %v5846
  %v5848 = vadd.f32 %v5844, %v5847
  %vm5849 = vweird.f32 %v5534
  %vm5850 = vweird.f32 %v5844
  %vm5851 = vmor %vm5849, %vm5850
  %v5852 = vsel %vm5851, %v5844, %v5848
  %v5853 = vand.u32 2147483647, %v5534
  %vm5854 = vcmp.eq.f32.partialorder %v5853, 8.507059e+37
  %v5855 = vand.u32 %v5534, 2147483648
  %v5856 = vor.u32 1.1754944e-38, %v5855
  %v5857 = vsel %vm5854, %v5856, %v5852
  %v5858 = vmul.f32 %v5451, %v5857
  %v5859 = vrcp.pop %v5537
  %v5860 = vmul.f32 %v5537, %v5859
  %v5861 = vsub.f32 1.0, %v5860
  %v5862 = vmul.f32 %v5859, %v5861
  %v5863 = vadd.f32 %v5859, %v5862
  %vm5864 = vweird.f32 %v5537
  %vm5865 = vweird.f32 %v5859
  %vm5866 = vmor %vm5864, %vm5865
  %v5867 = vsel %vm5866, %v5859, %v5863
  %v5868 = vand.u32 2147483647, %v5537
  %vm5869 = vcmp.eq.f32.partialorder %v5868, 8.507059e+37
  %v5870 = vand.u32 %v5537, 2147483648
  %v5871 = vor.u32 1.1754944e-38, %v5870
  %v5872 = vsel %vm5869, %v5871, %v5867
  %v5873 = vmul.f32 %v5453, %v5872
  %v5874 = vrcp.pop %v5540
  %v5875 = vmul.f32 %v5540, %v5874
  %v5876 = vsub.f32 1.0, %v5875
  %v5877 = vmul.f32 %v5874, %v5876
  %v5878 = vadd.f32 %v5874, %v5877
  %vm5879 = vweird.f32 %v5540
  %vm5880 = vweird.f32 %v5874
  %vm5881 = vmor %vm5879, %vm5880
  %v5882 = vsel %vm5881, %v5874, %v5878
  %v5883 = vand.u32 2147483647, %v5540
  %vm5884 = vcmp.eq.f32.partialorder %v5883, 8.507059e+37
  %v5885 = vand.u32 %v5540, 2147483648
  %v5886 = vor.u32 1.1754944e-38, %v5885
  %v5887 = vsel %vm5884, %v5886, %v5882
  %v5888 = vmul.f32 %v5455, %v5887
  %v5889 = vrcp.pop %v5543
  %v5890 = vmul.f32 %v5543, %v5889
  %v5891 = vsub.f32 1.0, %v5890
  %v5892 = vmul.f32 %v5889, %v5891
  %v5893 = vadd.f32 %v5889, %v5892
  %vm5894 = vweird.f32 %v5543
  %vm5895 = vweird.f32 %v5889
  %vm5896 = vmor %vm5894, %vm5895
  %v5897 = vsel %vm5896, %v5889, %v5893
  %v5898 = vand.u32 2147483647, %v5543
  %vm5899 = vcmp.eq.f32.partialorder %v5898, 8.507059e+37
  %v5900 = vand.u32 %v5543, 2147483648
  %v5901 = vor.u32 1.1754944e-38, %v5900
  %v5902 = vsel %vm5899, %v5901, %v5897
  %v5903 = vmul.f32 %v5457, %v5902
  %v5904 = vrcp.pop %v5546
  %v5905 = vmul.f32 %v5546, %v5904
  %v5906 = vsub.f32 1.0, %v5905
  %v5907 = vmul.f32 %v5904, %v5906
  %v5908 = vadd.f32 %v5904, %v5907
  %vm5909 = vweird.f32 %v5546
  %vm5910 = vweird.f32 %v5904
  %vm5911 = vmor %vm5909, %vm5910
  %v5912 = vsel %vm5911, %v5904, %v5908
  %v5913 = vand.u32 2147483647, %v5546
  %vm5914 = vcmp.eq.f32.partialorder %v5913, 8.507059e+37
  %v5915 = vand.u32 %v5546, 2147483648
  %v5916 = vor.u32 1.1754944e-38, %v5915
  %v5917 = vsel %vm5914, %v5916, %v5912
  %v5918 = vmul.f32 %v5459, %v5917
  %v5919 = vrcp.pop %v5549
  %v5920 = vmul.f32 %v5549, %v5919
  %v5921 = vsub.f32 1.0, %v5920
  %v5922 = vmul.f32 %v5919, %v5921
  %v5923 = vadd.f32 %v5919, %v5922
  %vm5924 = vweird.f32 %v5549
  %vm5925 = vweird.f32 %v5919
  %vm5926 = vmor %vm5924, %vm5925
  %v5927 = vsel %vm5926, %v5919, %v5923
  %v5928 = vand.u32 2147483647, %v5549
  %vm5929 = vcmp.eq.f32.partialorder %v5928, 8.507059e+37
  %v5930 = vand.u32 %v5549, 2147483648
  %v5931 = vor.u32 1.1754944e-38, %v5930
  %v5932 = vsel %vm5929, %v5931, %v5927
  %v5933 = vmul.f32 %v5461, %v5932
  %v5934 = vrcp.pop %v5552
  %v5935 = vmul.f32 %v5552, %v5934
  %v5936 = vsub.f32 1.0, %v5935
  %v5937 = vmul.f32 %v5934, %v5936
  %v5938 = vadd.f32 %v5934, %v5937
  %vm5939 = vweird.f32 %v5552
  %vm5940 = vweird.f32 %v5934
  %vm5941 = vmor %vm5939, %vm5940
  %v5942 = vsel %vm5941, %v5934, %v5938
  %v5943 = vand.u32 2147483647, %v5552
  %vm5944 = vcmp.eq.f32.partialorder %v5943, 8.507059e+37
  %v5945 = vand.u32 %v5552, 2147483648
  %v5946 = vor.u32 1.1754944e-38, %v5945
  %v5947 = vsel %vm5944, %v5946, %v5942
  %v5948 = vmul.f32 %v5463, %v5947
  %v5949 = vrcp.pop %v5555
  %v5950 = vmul.f32 %v5555, %v5949
  %v5951 = vsub.f32 1.0, %v5950
  %v5952 = vmul.f32 %v5949, %v5951
  %v5953 = vadd.f32 %v5949, %v5952
  %vm5954 = vweird.f32 %v5555
  %vm5955 = vweird.f32 %v5949
  %vm5956 = vmor %vm5954, %vm5955
  %v5957 = vsel %vm5956, %v5949, %v5953
  %v5958 = vand.u32 2147483647, %v5555
  %vm5959 = vcmp.eq.f32.partialorder %v5958, 8.507059e+37
  %v5960 = vand.u32 %v5555, 2147483648
  %v5961 = vor.u32 1.1754944e-38, %v5960
  %v5962 = vsel %vm5959, %v5961, %v5957
  %v5963 = vmul.f32 %v5465, %v5962
  %v5964 = vrcp.pop %v5558
  %v5965 = vmul.f32 %v5558, %v5964
  %v5966 = vsub.f32 1.0, %v5965
  %v5967 = vmul.f32 %v5964, %v5966
  %v5968 = vadd.f32 %v5964, %v5967
  %vm5969 = vweird.f32 %v5558
  %vm5970 = vweird.f32 %v5964
  %vm5971 = vmor %vm5969, %vm5970
  %v5972 = vsel %vm5971, %v5964, %v5968
  %v5973 = vand.u32 2147483647, %v5558
  %vm5974 = vcmp.eq.f32.partialorder %v5973, 8.507059e+37
  %v5975 = vand.u32 %v5558, 2147483648
  %v5976 = vor.u32 1.1754944e-38, %v5975
  %v5977 = vsel %vm5974, %v5976, %v5972
  %v5978 = vmul.f32 %v5467, %v5977
  %v5979 = vrcp.pop %v5561
  %v5980 = vmul.f32 %v5561, %v5979
  %v5981 = vsub.f32 1.0, %v5980
  %v5982 = vmul.f32 %v5979, %v5981
  %v5983 = vadd.f32 %v5979, %v5982
  %vm5984 = vweird.f32 %v5561
  %vm5985 = vweird.f32 %v5979
  %vm5986 = vmor %vm5984, %vm5985
  %v5987 = vsel %vm5986, %v5979, %v5983
  %v5988 = vand.u32 2147483647, %v5561
  %vm5989 = vcmp.eq.f32.partialorder %v5988, 8.507059e+37
  %v5990 = vand.u32 %v5561, 2147483648
  %v5991 = vor.u32 1.1754944e-38, %v5990
  %v5992 = vsel %vm5989, %v5991, %v5987
  %v5993 = vmul.f32 %v5469, %v5992
  %v5994 = vrcp.pop %v5564
  %v5995 = vmul.f32 %v5564, %v5994
  %v5996 = vsub.f32 1.0, %v5995
  %v5997 = vmul.f32 %v5994, %v5996
  %v5998 = vadd.f32 %v5994, %v5997
  %vm5999 = vweird.f32 %v5564
  %vm6000 = vweird.f32 %v5994
  %vm6001 = vmor %vm5999, %vm6000
  %v6002 = vsel %vm6001, %v5994, %v5998
  %v6003 = vand.u32 2147483647, %v5564
  %vm6004 = vcmp.eq.f32.partialorder %v6003, 8.507059e+37
  %v6005 = vand.u32 %v5564, 2147483648
  %v6006 = vor.u32 1.1754944e-38, %v6005
  %v6007 = vsel %vm6004, %v6006, %v6002
  %v6008 = vmul.f32 %v5471, %v6007
  %v6009 = vrcp.pop %v5567
  %v6010 = vmul.f32 %v5567, %v6009
  %v6011 = vsub.f32 1.0, %v6010
  %v6012 = vmul.f32 %v6009, %v6011
  %v6013 = vadd.f32 %v6009, %v6012
  %vm6014 = vweird.f32 %v5567
  %vm6015 = vweird.f32 %v6009
  %vm6016 = vmor %vm6014, %vm6015
  %v6017 = vsel %vm6016, %v6009, %v6013
  %v6018 = vand.u32 2147483647, %v5567
  %vm6019 = vcmp.eq.f32.partialorder %v6018, 8.507059e+37
  %v6020 = vand.u32 %v5567, 2147483648
  %v6021 = vor.u32 1.1754944e-38, %v6020
  %v6022 = vsel %vm6019, %v6021, %v6017
  %v6023 = vmul.f32 %v5473, %v6022
  %v6024 = vrcp.pop %v5570
  %v6025 = vmul.f32 %v5570, %v6024
  %v6026 = vsub.f32 1.0, %v6025
  %v6027 = vmul.f32 %v6024, %v6026
  %v6028 = vadd.f32 %v6024, %v6027
  %vm6029 = vweird.f32 %v5570
  %vm6030 = vweird.f32 %v6024
  %vm6031 = vmor %vm6029, %vm6030
  %v6032 = vsel %vm6031, %v6024, %v6028
  %v6033 = vand.u32 2147483647, %v5570
  %vm6034 = vcmp.eq.f32.partialorder %v6033, 8.507059e+37
  %v6035 = vand.u32 %v5570, 2147483648
  %v6036 = vor.u32 1.1754944e-38, %v6035
  %v6037 = vsel %vm6034, %v6036, %v6032
  %v6038 = vmul.f32 %v5475, %v6037
  %v6039 = vrcp.pop %v5573
  %v6040 = vmul.f32 %v5573, %v6039
  %v6041 = vsub.f32 1.0, %v6040
  %v6042 = vmul.f32 %v6039, %v6041
  %v6043 = vadd.f32 %v6039, %v6042
  %vm6044 = vweird.f32 %v5573
  %vm6045 = vweird.f32 %v6039
  %vm6046 = vmor %vm6044, %vm6045
  %v6047 = vsel %vm6046, %v6039, %v6043
  %v6048 = vand.u32 2147483647, %v5573
  %vm6049 = vcmp.eq.f32.partialorder %v6048, 8.507059e+37
  %v6050 = vand.u32 %v5573, 2147483648
  %v6051 = vor.u32 1.1754944e-38, %v6050
  %v6052 = vsel %vm6049, %v6051, %v6047
  %v6053 = vmul.f32 %v5477, %v6052
  %v6054 = vpack.c.bf16 %v5588, %v5588
  %v6055 = vpack.c.bf16 %v5603, %v5603
  %v6056 = vpack.c.bf16 %v5618, %v5618
  %v6057 = vpack.c.bf16 %v5633, %v5633
  %v6058 = vpack.c.bf16 %v5648, %v5648
  %v6059 = vpack.c.bf16 %v5663, %v5663
  %v6060 = vpack.c.bf16 %v5678, %v5678
  %v6061 = vpack.c.bf16 %v5693, %v5693
  %v6062 = vpack.c.bf16 %v5708, %v5708
  %v6063 = vpack.c.bf16 %v5723, %v5723
  %v6064 = vpack.c.bf16 %v5738, %v5738
  %v6065 = vpack.c.bf16 %v5753, %v5753
  %v6066 = vpack.c.bf16 %v5768, %v5768
  %v6067 = vpack.c.bf16 %v5783, %v5783
  %v6068 = vpack.c.bf16 %v5798, %v5798
  %v6069 = vpack.c.bf16 %v5813, %v5813
  %v6070 = vpack.c.bf16 %v5828, %v5828
  %v6071 = vpack.c.bf16 %v5843, %v5843
  %v6072 = vpack.c.bf16 %v5858, %v5858
  %v6073 = vpack.c.bf16 %v5873, %v5873
  %v6074 = vpack.c.bf16 %v5888, %v5888
  %v6075 = vpack.c.bf16 %v5903, %v5903
  %v6076 = vpack.c.bf16 %v5918, %v5918
  %v6077 = vpack.c.bf16 %v5933, %v5933
  %v6078 = vpack.c.bf16 %v5948, %v5948
  %v6079 = vpack.c.bf16 %v5963, %v5963
  %v6080 = vpack.c.bf16 %v5978, %v5978
  %v6081 = vpack.c.bf16 %v5993, %v5993
  %v6082 = vpack.c.bf16 %v6008, %v6008
  %v6083 = vpack.c.bf16 %v6023, %v6023
  %v6084 = vpack.c.bf16 %v6038, %v6038
  %v6085 = vpack.c.bf16 %v6053, %v6053
  %v6094 = vunpack.c.l.b16 %v6054
  %v6095 = vunpack.c.l.b16 %v6055
  %v6096 = vunpack.c.l.b16 %v6056
  %v6097 = vunpack.c.l.b16 %v6057
  %v6098 = vunpack.c.l.b16 %v6058
  %v6099 = vunpack.c.l.b16 %v6059
  %v6100 = vunpack.c.l.b16 %v6060
  %v6101 = vunpack.c.l.b16 %v6061
  %v6102 = vpack.c.b16 %v6095, %v6094
  %v6103 = vpack.c.b16 %v6097, %v6096
  %v6104 = vpack.c.b16 %v6099, %v6098
  %v6105 = vpack.c.b16 %v6101, %v6100
  %6106 = vrot.lane.b32.xlu0 %v304, 40
  %v6107 = vpop.permute.xlu0 %6106
  %6108 = vrot.lane.b32.xlu0 %v305, 40
  %v6109 = vpop.permute.xlu0 %6108
  %6110 = vrot.lane.b32.xlu0 %v306, 40
  %v6111 = vpop.permute.xlu0 %6110
  %6112 = vrot.lane.b32.xlu0 %v307, 40
  %v6113 = vpop.permute.xlu0 %6112
  %v6119 = vsel %vm613, %v6102, 0
  %v6122 = vsel %vm613, %v6103, 0
  %v6125 = vsel %vm613, %v6104, 0
  %v6128 = vsel %vm613, %v6105, 0
  %6130 = vmatpush.bf16.msra.mxu0 0
  %6131 = vmatpush.bf16.msra.mxu0 0
  %6132 = vmatpush.bf16.msra.mxu0 0
  %6133 = vmatpush.bf16.msra.mxu0 0
  %6134 = vmatpush.bf16.msra.mxu0 %v6113
  %6135 = vmatpush.bf16.msra.mxu0 %v6111
  %6136 = vmatpush.bf16.msra.mxu0 %v6109
  %6137 = vmatpush.bf16.msra.mxu0 %v6107
  %6138 = vmatmul.bf16.gmra.mxu0 %v6119
  %v6139 = vpop.f32.mrf.mxu0
  %v6140 = vadd.f32 0.0, %v6139
  %v6141 = vpop.f32.mrf.mxu0
  %v6142 = vadd.f32 0.0, %v6141
  %6143 = vmatmul.bf16.gmra.mxu0 %v6122
  %v6144 = vpop.f32.mrf.mxu0
  %v6145 = vadd.f32 0.0, %v6144
  %v6146 = vpop.f32.mrf.mxu0
  %v6147 = vadd.f32 0.0, %v6146
  %6148 = vmatmul.bf16.gmra.mxu0 %v6125
  %v6149 = vpop.f32.mrf.mxu0
  %v6150 = vadd.f32 0.0, %v6149
  %v6151 = vpop.f32.mrf.mxu0
  %v6152 = vadd.f32 0.0, %v6151
  %6153 = vmatmul.bf16.gmra.mxu0 %v6128
  %v6154 = vpop.f32.mrf.mxu0
  %v6155 = vadd.f32 0.0, %v6154
  %v6156 = vpop.f32.mrf.mxu0
  %v6157 = vadd.f32 0.0, %v6156
  %6158 = vdwg.mxu0
  %v6167 = vunpack.c.l.b16 %v6062
  %v6168 = vunpack.c.l.b16 %v6063
  %v6169 = vunpack.c.l.b16 %v6064
  %v6170 = vunpack.c.l.b16 %v6065
  %v6171 = vunpack.c.l.b16 %v6066
  %v6172 = vunpack.c.l.b16 %v6067
  %v6173 = vunpack.c.l.b16 %v6068
  %v6174 = vunpack.c.l.b16 %v6069
  %v6175 = vpack.c.b16 %v6168, %v6167
  %v6176 = vpack.c.b16 %v6170, %v6169
  %v6177 = vpack.c.b16 %v6172, %v6171
  %v6178 = vpack.c.b16 %v6174, %v6173
  %6179 = vrot.lane.b32.xlu0 %v386, 40
  %v6180 = vpop.permute.xlu0 %6179
  %6181 = vrot.lane.b32.xlu0 %v387, 40
  %v6182 = vpop.permute.xlu0 %6181
  %6183 = vrot.lane.b32.xlu0 %v388, 40
  %v6184 = vpop.permute.xlu0 %6183
  %6185 = vrot.lane.b32.xlu0 %v389, 40
  %v6186 = vpop.permute.xlu0 %6185
  %v6192 = vsel %vm613, %v6175, 0
  %v6195 = vsel %vm613, %v6176, 0
  %v6198 = vsel %vm613, %v6177, 0
  %v6201 = vsel %vm613, %v6178, 0
  %6203 = vmatpush.bf16.msra.mxu0 0
  %6204 = vmatpush.bf16.msra.mxu0 0
  %6205 = vmatpush.bf16.msra.mxu0 0
  %6206 = vmatpush.bf16.msra.mxu0 0
  %6207 = vmatpush.bf16.msra.mxu0 %v6186
  %6208 = vmatpush.bf16.msra.mxu0 %v6184
  %6209 = vmatpush.bf16.msra.mxu0 %v6182
  %6210 = vmatpush.bf16.msra.mxu0 %v6180
  %6211 = vmatmul.bf16.gmra.mxu0 %v6192
  %v6212 = vpop.f32.mrf.mxu0
  %v6213 = vadd.f32 0.0, %v6212
  %v6214 = vpop.f32.mrf.mxu0
  %v6215 = vadd.f32 0.0, %v6214
  %6216 = vmatmul.bf16.gmra.mxu0 %v6195
  %v6217 = vpop.f32.mrf.mxu0
  %v6218 = vadd.f32 0.0, %v6217
  %v6219 = vpop.f32.mrf.mxu0
  %v6220 = vadd.f32 0.0, %v6219
  %6221 = vmatmul.bf16.gmra.mxu0 %v6198
  %v6222 = vpop.f32.mrf.mxu0
  %v6223 = vadd.f32 0.0, %v6222
  %v6224 = vpop.f32.mrf.mxu0
  %v6225 = vadd.f32 0.0, %v6224
  %6226 = vmatmul.bf16.gmra.mxu0 %v6201
  %v6227 = vpop.f32.mrf.mxu0
  %v6228 = vadd.f32 0.0, %v6227
  %v6229 = vpop.f32.mrf.mxu0
  %v6230 = vadd.f32 0.0, %v6229
  %6231 = vdwg.mxu0
  %v6240 = vunpack.c.l.b16 %v6070
  %v6241 = vunpack.c.l.b16 %v6071
  %v6242 = vunpack.c.l.b16 %v6072
  %v6243 = vunpack.c.l.b16 %v6073
  %v6244 = vunpack.c.l.b16 %v6074
  %v6245 = vunpack.c.l.b16 %v6075
  %v6246 = vunpack.c.l.b16 %v6076
  %v6247 = vunpack.c.l.b16 %v6077
  %v6248 = vpack.c.b16 %v6241, %v6240
  %v6249 = vpack.c.b16 %v6243, %v6242
  %v6250 = vpack.c.b16 %v6245, %v6244
  %v6251 = vpack.c.b16 %v6247, %v6246
  %6252 = vrot.lane.b32.xlu0 %v467, 40
  %v6253 = vpop.permute.xlu0 %6252
  %6254 = vrot.lane.b32.xlu0 %v468, 40
  %v6255 = vpop.permute.xlu0 %6254
  %6256 = vrot.lane.b32.xlu0 %v469, 40
  %v6257 = vpop.permute.xlu0 %6256
  %6258 = vrot.lane.b32.xlu0 %v470, 40
  %v6259 = vpop.permute.xlu0 %6258
  %v6265 = vsel %vm613, %v6248, 0
  %v6268 = vsel %vm613, %v6249, 0
  %v6271 = vsel %vm613, %v6250, 0
  %v6274 = vsel %vm613, %v6251, 0
  %6276 = vmatpush.bf16.msra.mxu0 0
  %6277 = vmatpush.bf16.msra.mxu0 0
  %6278 = vmatpush.bf16.msra.mxu0 0
  %6279 = vmatpush.bf16.msra.mxu0 0
  %6280 = vmatpush.bf16.msra.mxu0 %v6259
  %6281 = vmatpush.bf16.msra.mxu0 %v6257
  %6282 = vmatpush.bf16.msra.mxu0 %v6255
  %6283 = vmatpush.bf16.msra.mxu0 %v6253
  %6284 = vmatmul.bf16.gmra.mxu0 %v6265
  %v6285 = vpop.f32.mrf.mxu0
  %v6286 = vadd.f32 0.0, %v6285
  %v6287 = vpop.f32.mrf.mxu0
  %v6288 = vadd.f32 0.0, %v6287
  %6289 = vmatmul.bf16.gmra.mxu0 %v6268
  %v6290 = vpop.f32.mrf.mxu0
  %v6291 = vadd.f32 0.0, %v6290
  %v6292 = vpop.f32.mrf.mxu0
  %v6293 = vadd.f32 0.0, %v6292
  %6294 = vmatmul.bf16.gmra.mxu0 %v6271
  %v6295 = vpop.f32.mrf.mxu0
  %v6296 = vadd.f32 0.0, %v6295
  %v6297 = vpop.f32.mrf.mxu0
  %v6298 = vadd.f32 0.0, %v6297
  %6299 = vmatmul.bf16.gmra.mxu0 %v6274
  %v6300 = vpop.f32.mrf.mxu0
  %v6301 = vadd.f32 0.0, %v6300
  %v6302 = vpop.f32.mrf.mxu0
  %v6303 = vadd.f32 0.0, %v6302
  %6304 = vdwg.mxu0
  %v6313 = vunpack.c.l.b16 %v6078
  %v6314 = vunpack.c.l.b16 %v6079
  %v6315 = vunpack.c.l.b16 %v6080
  %v6316 = vunpack.c.l.b16 %v6081
  %v6317 = vunpack.c.l.b16 %v6082
  %v6318 = vunpack.c.l.b16 %v6083
  %v6319 = vunpack.c.l.b16 %v6084
  %v6320 = vunpack.c.l.b16 %v6085
  %v6321 = vpack.c.b16 %v6314, %v6313
  %v6322 = vpack.c.b16 %v6316, %v6315
  %v6323 = vpack.c.b16 %v6318, %v6317
  %v6324 = vpack.c.b16 %v6320, %v6319
  %6325 = vrot.lane.b32.xlu0 %v548, 40
  %v6326 = vpop.permute.xlu0 %6325
  %6327 = vrot.lane.b32.xlu0 %v549, 40
  %v6328 = vpop.permute.xlu0 %6327
  %6329 = vrot.lane.b32.xlu0 %v550, 40
  %v6330 = vpop.permute.xlu0 %6329
  %6331 = vrot.lane.b32.xlu0 %v551, 40
  %v6332 = vpop.permute.xlu0 %6331
  %v6338 = vsel %vm613, %v6321, 0
  %v6341 = vsel %vm613, %v6322, 0
  %v6344 = vsel %vm613, %v6323, 0
  %v6347 = vsel %vm613, %v6324, 0
  %6349 = vmatpush.bf16.msra.mxu0 0
  %6350 = vmatpush.bf16.msra.mxu0 0
  %6351 = vmatpush.bf16.msra.mxu0 0
  %6352 = vmatpush.bf16.msra.mxu0 0
  %6353 = vmatpush.bf16.msra.mxu0 %v6332
  %6354 = vmatpush.bf16.msra.mxu0 %v6330
  %6355 = vmatpush.bf16.msra.mxu0 %v6328
  %6356 = vmatpush.bf16.msra.mxu0 %v6326
  %6357 = vmatmul.bf16.gmra.mxu0 %v6338
  %v6358 = vpop.f32.mrf.mxu0
  %v6359 = vadd.f32 0.0, %v6358
  %v6360 = vpop.f32.mrf.mxu0
  %v6361 = vadd.f32 0.0, %v6360
  %6362 = vmatmul.bf16.gmra.mxu0 %v6341
  %v6363 = vpop.f32.mrf.mxu0
  %v6364 = vadd.f32 0.0, %v6363
  %v6365 = vpop.f32.mrf.mxu0
  %v6366 = vadd.f32 0.0, %v6365
  %6367 = vmatmul.bf16.gmra.mxu0 %v6344
  %v6368 = vpop.f32.mrf.mxu0
  %v6369 = vadd.f32 0.0, %v6368
  %v6370 = vpop.f32.mrf.mxu0
  %v6371 = vadd.f32 0.0, %v6370
  %6372 = vmatmul.bf16.gmra.mxu0 %v6347
  %v6373 = vpop.f32.mrf.mxu0
  %v6374 = vadd.f32 0.0, %v6373
  %v6375 = vpop.f32.mrf.mxu0
  %v6376 = vadd.f32 0.0, %v6375
  %6377 = vdwg.mxu0
  %v6378 = vpack.c.bf16 %v6142, %v6140
  %v6379 = vpack.c.bf16 %v6147, %v6145
  %v6380 = vpack.c.bf16 %v6152, %v6150
  %v6381 = vpack.c.bf16 %v6157, %v6155
  %v6382 = vpack.c.bf16 %v6215, %v6213
  %v6383 = vpack.c.bf16 %v6220, %v6218
  %v6384 = vpack.c.bf16 %v6225, %v6223
  %v6385 = vpack.c.bf16 %v6230, %v6228
  %v6386 = vpack.c.bf16 %v6288, %v6286
  %v6387 = vpack.c.bf16 %v6293, %v6291
  %v6388 = vpack.c.bf16 %v6298, %v6296
  %v6389 = vpack.c.bf16 %v6303, %v6301
  %v6390 = vpack.c.bf16 %v6361, %v6359
  %v6391 = vpack.c.bf16 %v6366, %v6364
  %v6392 = vpack.c.bf16 %v6371, %v6369
  %v6393 = vpack.c.bf16 %v6376, %v6374
  %v6394 = vld [vmem:[%s3 + $0xc] sm:$0xf]
  %v6396 = vsel %vm316, %v6378, 0
  %v6399 = vsel %vm316, %v6379, 0
  %v6402 = vsel %vm316, %v6380, 0
  %v6405 = vsel %vm316, %v6381, 0
  %v6408 = vsel %vm316, %v6382, 0
  %v6411 = vsel %vm316, %v6383, 0
  %v6414 = vsel %vm316, %v6384, 0
  %v6417 = vsel %vm316, %v6385, 0
  %v6420 = vsel %vm316, %v6386, 0
  %v6423 = vsel %vm316, %v6387, 0
  %v6426 = vsel %vm316, %v6388, 0
  %v6429 = vsel %vm316, %v6389, 0
  %v6432 = vsel %vm316, %v6390, 0
  %v6435 = vsel %vm316, %v6391, 0
  %v6438 = vsel %vm316, %v6392, 0
  %v6441 = vsel %vm316, %v6393, 0
  %v6444 = vsel %vm1771, %v6394, 0
  %6446 = vmatpush.bf16.msra.mxu0 0
  %6447 = vmatpush.bf16.msra.mxu0 0
  %6448 = vmatpush.bf16.msra.mxu0 0
  %6449 = vmatpush.bf16.msra.mxu0 0
  %6450 = vmatpush.bf16.msra.mxu0 0
  %6451 = vmatpush.bf16.msra.mxu0 0
  %6452 = vmatpush.bf16.msra.mxu0 0
  %6453 = vmatpush.bf16.msra.mxu0 %v6444
  %6454 = vmatmul.bf16.gmra.mxu0 %v6396
  %v6455 = vpop.f32.mrf.mxu0
  %v6456 = vadd.f32 0.0, %v6455
  %v6457 = vpop.f32.mrf.mxu0
  %v6458 = vadd.f32 0.0, %v6457
  %6459 = vmatmul.bf16.gmra.mxu0 %v6399
  %v6460 = vpop.f32.mrf.mxu0
  %v6461 = vadd.f32 0.0, %v6460
  %v6462 = vpop.f32.mrf.mxu0
  %v6463 = vadd.f32 0.0, %v6462
  %6464 = vmatmul.bf16.gmra.mxu0 %v6402
  %v6465 = vpop.f32.mrf.mxu0
  %v6466 = vadd.f32 0.0, %v6465
  %v6467 = vpop.f32.mrf.mxu0
  %v6468 = vadd.f32 0.0, %v6467
  %6469 = vmatmul.bf16.gmra.mxu0 %v6405
  %v6470 = vpop.f32.mrf.mxu0
  %v6471 = vadd.f32 0.0, %v6470
  %v6472 = vpop.f32.mrf.mxu0
  %v6473 = vadd.f32 0.0, %v6472
  %6474 = vmatmul.bf16.gmra.mxu0 %v6408
  %v6475 = vpop.f32.mrf.mxu0
  %v6476 = vadd.f32 0.0, %v6475
  %v6477 = vpop.f32.mrf.mxu0
  %v6478 = vadd.f32 0.0, %v6477
  %6479 = vmatmul.bf16.gmra.mxu0 %v6411
  %v6480 = vpop.f32.mrf.mxu0
  %v6481 = vadd.f32 0.0, %v6480
  %v6482 = vpop.f32.mrf.mxu0
  %v6483 = vadd.f32 0.0, %v6482
  %6484 = vmatmul.bf16.gmra.mxu0 %v6414
  %v6485 = vpop.f32.mrf.mxu0
  %v6486 = vadd.f32 0.0, %v6485
  %v6487 = vpop.f32.mrf.mxu0
  %v6488 = vadd.f32 0.0, %v6487
  %6489 = vmatmul.bf16.gmra.mxu0 %v6417
  %v6490 = vpop.f32.mrf.mxu0
  %v6491 = vadd.f32 0.0, %v6490
  %v6492 = vpop.f32.mrf.mxu0
  %v6493 = vadd.f32 0.0, %v6492
  %6494 = vmatmul.bf16.gmra.mxu0 %v6420
  %v6495 = vpop.f32.mrf.mxu0
  %v6496 = vadd.f32 0.0, %v6495
  %v6497 = vpop.f32.mrf.mxu0
  %v6498 = vadd.f32 0.0, %v6497
  %6499 = vmatmul.bf16.gmra.mxu0 %v6423
  %v6500 = vpop.f32.mrf.mxu0
  %v6501 = vadd.f32 0.0, %v6500
  %v6502 = vpop.f32.mrf.mxu0
  %v6503 = vadd.f32 0.0, %v6502
  %6504 = vmatmul.bf16.gmra.mxu0 %v6426
  %v6505 = vpop.f32.mrf.mxu0
  %v6506 = vadd.f32 0.0, %v6505
  %v6507 = vpop.f32.mrf.mxu0
  %v6508 = vadd.f32 0.0, %v6507
  %6509 = vmatmul.bf16.gmra.mxu0 %v6429
  %v6510 = vpop.f32.mrf.mxu0
  %v6511 = vadd.f32 0.0, %v6510
  %v6512 = vpop.f32.mrf.mxu0
  %v6513 = vadd.f32 0.0, %v6512
  %6514 = vmatmul.bf16.gmra.mxu0 %v6432
  %v6515 = vpop.f32.mrf.mxu0
  %v6516 = vadd.f32 0.0, %v6515
  %v6517 = vpop.f32.mrf.mxu0
  %v6518 = vadd.f32 0.0, %v6517
  %6519 = vmatmul.bf16.gmra.mxu0 %v6435
  %v6520 = vpop.f32.mrf.mxu0
  %v6521 = vadd.f32 0.0, %v6520
  %v6522 = vpop.f32.mrf.mxu0
  %v6523 = vadd.f32 0.0, %v6522
  %6524 = vmatmul.bf16.gmra.mxu0 %v6438
  %v6525 = vpop.f32.mrf.mxu0
  %v6526 = vadd.f32 0.0, %v6525
  %v6527 = vpop.f32.mrf.mxu0
  %v6528 = vadd.f32 0.0, %v6527
  %6529 = vmatmul.bf16.gmra.mxu0 %v6441
  %v6530 = vpop.f32.mrf.mxu0
  %v6531 = vadd.f32 0.0, %v6530
  %v6532 = vpop.f32.mrf.mxu0
  %v6533 = vadd.f32 0.0, %v6532
  %6534 = vdwg.mxu0
  %v6535 = vadd.f32 %v4978, %v6456
  %v6536 = vadd.f32 %v4979, %v6458
  %v6537 = vadd.f32 %v4980, %v6461
  %v6538 = vadd.f32 %v4981, %v6463
  %v6539 = vadd.f32 %v4982, %v6466
  %v6540 = vadd.f32 %v4983, %v6468
  %v6541 = vadd.f32 %v4984, %v6471
  %v6542 = vadd.f32 %v4985, %v6473
  %v6543 = vadd.f32 %v4986, %v6476
  %v6544 = vadd.f32 %v4987, %v6478
  %v6545 = vadd.f32 %v4988, %v6481
  %v6546 = vadd.f32 %v4989, %v6483
  %v6547 = vadd.f32 %v4990, %v6486
  %v6548 = vadd.f32 %v4991, %v6488
  %v6549 = vadd.f32 %v4992, %v6491
  %v6550 = vadd.f32 %v4993, %v6493
  %v6551 = vadd.f32 %v4994, %v6496
  %v6552 = vadd.f32 %v4995, %v6498
  %v6553 = vadd.f32 %v4996, %v6501
  %v6554 = vadd.f32 %v4997, %v6503
  %v6555 = vadd.f32 %v4998, %v6506
  %v6556 = vadd.f32 %v4999, %v6508
  %v6557 = vadd.f32 %v5000, %v6511
  %v6558 = vadd.f32 %v5001, %v6513
  %v6559 = vadd.f32 %v5002, %v6516
  %v6560 = vadd.f32 %v5003, %v6518
  %v6561 = vadd.f32 %v5004, %v6521
  %v6562 = vadd.f32 %v5005, %v6523
  %v6563 = vadd.f32 %v5006, %v6526
  %v6564 = vadd.f32 %v5007, %v6528
  %v6565 = vadd.f32 %v5008, %v6531
  %v6566 = vadd.f32 %v5009, %v6533
  %v6567 = vadd.f32 %v45, %v6535
  %v6568 = vadd.f32 %v46, %v6536
  %v6569 = vadd.f32 %v47, %v6537
  %v6570 = vadd.f32 %v48, %v6538
  %v6571 = vadd.f32 %v49, %v6539
  %v6572 = vadd.f32 %v50, %v6540
  %v6573 = vadd.f32 %v51, %v6541
  %v6574 = vadd.f32 %v52, %v6542
  %v6575 = vadd.f32 %v53, %v6543
  %v6576 = vadd.f32 %v54, %v6544
  %v6577 = vadd.f32 %v55, %v6545
  %v6578 = vadd.f32 %v56, %v6546
  %v6579 = vadd.f32 %v57, %v6547
  %v6580 = vadd.f32 %v58, %v6548
  %v6581 = vadd.f32 %v59, %v6549
  %v6582 = vadd.f32 %v60, %v6550
  %v6583 = vadd.f32 %v61, %v6551
  %v6584 = vadd.f32 %v62, %v6552
  %v6585 = vadd.f32 %v63, %v6553
  %v6586 = vadd.f32 %v64, %v6554
  %v6587 = vadd.f32 %v65, %v6555
  %v6588 = vadd.f32 %v66, %v6556
  %v6589 = vadd.f32 %v67, %v6557
  %v6590 = vadd.f32 %v68, %v6558
  %v6591 = vadd.f32 %v69, %v6559
  %v6592 = vadd.f32 %v70, %v6560
  %v6593 = vadd.f32 %v71, %v6561
  %v6594 = vadd.f32 %v72, %v6562
  %v6595 = vadd.f32 %v73, %v6563
  %v6596 = vadd.f32 %v74, %v6564
  %v6597 = vadd.f32 %v75, %v6565
  %v6598 = vadd.f32 %v76, %v6566
  %v6599 = vld [vmem:[%s5] sm:$0x1]
  %v6600 = vld [vmem:[%s6] sm:$0x1]
  %v6601 = vsel %vm113, %v6567, 0.0
  %6602 = vadd.xlane.f32.xlu0 %v6601
  %v6603 = vpop.xlane.xlu0 %6602
  %v6604 = vsel %vm113, %v6568, 0.0
  %6605 = vadd.xlane.f32.xlu0 %v6604
  %v6606 = vpop.xlane.xlu0 %6605
  %v6607 = vsel %vm113, %v6569, 0.0
  %6608 = vadd.xlane.f32.xlu0 %v6607
  %v6609 = vpop.xlane.xlu0 %6608
  %v6610 = vsel %vm113, %v6570, 0.0
  %6611 = vadd.xlane.f32.xlu0 %v6610
  %v6612 = vpop.xlane.xlu0 %6611
  %v6613 = vsel %vm113, %v6571, 0.0
  %6614 = vadd.xlane.f32.xlu0 %v6613
  %v6615 = vpop.xlane.xlu0 %6614
  %v6616 = vsel %vm113, %v6572, 0.0
  %6617 = vadd.xlane.f32.xlu0 %v6616
  %v6618 = vpop.xlane.xlu0 %6617
  %v6619 = vsel %vm113, %v6573, 0.0
  %6620 = vadd.xlane.f32.xlu0 %v6619
  %v6621 = vpop.xlane.xlu0 %6620
  %v6622 = vsel %vm113, %v6574, 0.0
  %6623 = vadd.xlane.f32.xlu0 %v6622
  %v6624 = vpop.xlane.xlu0 %6623
  %v6625 = vsel %vm113, %v6575, 0.0
  %6626 = vadd.xlane.f32.xlu0 %v6625
  %v6627 = vpop.xlane.xlu0 %6626
  %v6628 = vsel %vm113, %v6576, 0.0
  %6629 = vadd.xlane.f32.xlu0 %v6628
  %v6630 = vpop.xlane.xlu0 %6629
  %v6631 = vsel %vm113, %v6577, 0.0
  %6632 = vadd.xlane.f32.xlu0 %v6631
  %v6633 = vpop.xlane.xlu0 %6632
  %v6634 = vsel %vm113, %v6578, 0.0
  %6635 = vadd.xlane.f32.xlu0 %v6634
  %v6636 = vpop.xlane.xlu0 %6635
  %v6637 = vsel %vm113, %v6579, 0.0
  %6638 = vadd.xlane.f32.xlu0 %v6637
  %v6639 = vpop.xlane.xlu0 %6638
  %v6640 = vsel %vm113, %v6580, 0.0
  %6641 = vadd.xlane.f32.xlu0 %v6640
  %v6642 = vpop.xlane.xlu0 %6641
  %v6643 = vsel %vm113, %v6581, 0.0
  %6644 = vadd.xlane.f32.xlu0 %v6643
  %v6645 = vpop.xlane.xlu0 %6644
  %v6646 = vsel %vm113, %v6582, 0.0
  %6647 = vadd.xlane.f32.xlu0 %v6646
  %v6648 = vpop.xlane.xlu0 %6647
  %v6649 = vsel %vm113, %v6583, 0.0
  %6650 = vadd.xlane.f32.xlu0 %v6649
  %v6651 = vpop.xlane.xlu0 %6650
  %v6652 = vsel %vm113, %v6584, 0.0
  %6653 = vadd.xlane.f32.xlu0 %v6652
  %v6654 = vpop.xlane.xlu0 %6653
  %v6655 = vsel %vm113, %v6585, 0.0
  %6656 = vadd.xlane.f32.xlu0 %v6655
  %v6657 = vpop.xlane.xlu0 %6656
  %v6658 = vsel %vm113, %v6586, 0.0
  %6659 = vadd.xlane.f32.xlu0 %v6658
  %v6660 = vpop.xlane.xlu0 %6659
  %v6661 = vsel %vm113, %v6587, 0.0
  %6662 = vadd.xlane.f32.xlu0 %v6661
  %v6663 = vpop.xlane.xlu0 %6662
  %v6664 = vsel %vm113, %v6588, 0.0
  %6665 = vadd.xlane.f32.xlu0 %v6664
  %v6666 = vpop.xlane.xlu0 %6665
  %v6667 = vsel %vm113, %v6589, 0.0
  %6668 = vadd.xlane.f32.xlu0 %v6667
  %v6669 = vpop.xlane.xlu0 %6668
  %v6670 = vsel %vm113, %v6590, 0.0
  %6671 = vadd.xlane.f32.xlu0 %v6670
  %v6672 = vpop.xlane.xlu0 %6671
  %v6673 = vsel %vm113, %v6591, 0.0
  %6674 = vadd.xlane.f32.xlu0 %v6673
  %v6675 = vpop.xlane.xlu0 %6674
  %v6676 = vsel %vm113, %v6592, 0.0
  %6677 = vadd.xlane.f32.xlu0 %v6676
  %v6678 = vpop.xlane.xlu0 %6677
  %v6679 = vsel %vm113, %v6593, 0.0
  %6680 = vadd.xlane.f32.xlu0 %v6679
  %v6681 = vpop.xlane.xlu0 %6680
  %v6682 = vsel %vm113, %v6594, 0.0
  %6683 = vadd.xlane.f32.xlu0 %v6682
  %v6684 = vpop.xlane.xlu0 %6683
  %v6685 = vsel %vm113, %v6595, 0.0
  %6686 = vadd.xlane.f32.xlu0 %v6685
  %v6687 = vpop.xlane.xlu0 %6686
  %v6688 = vsel %vm113, %v6596, 0.0
  %6689 = vadd.xlane.f32.xlu0 %v6688
  %v6690 = vpop.xlane.xlu0 %6689
  %v6691 = vsel %vm113, %v6597, 0.0
  %6692 = vadd.xlane.f32.xlu0 %v6691
  %v6693 = vpop.xlane.xlu0 %6692
  %v6694 = vsel %vm113, %v6598, 0.0
  %6695 = vadd.xlane.f32.xlu0 %v6694
  %v6696 = vpop.xlane.xlu0 %6695
  %v6697 = vrcp.pop 32.0
  %v6698 = vmul.f32 32.0, %v6697
  %v6699 = vsub.f32 1.0, %v6698
  %v6700 = vmul.f32 %v6697, %v6699
  %v6701 = vadd.f32 %v6697, %v6700
  %vm6702 = vweird.f32 %v6697
  %v6703 = vsel %vm6702, %v6697, %v6701
  %v6704 = vmul.f32 %v6603, %v6703
  %v6705 = vmul.f32 %v6606, %v6703
  %v6706 = vmul.f32 %v6609, %v6703
  %v6707 = vmul.f32 %v6612, %v6703
  %v6708 = vmul.f32 %v6615, %v6703
  %v6709 = vmul.f32 %v6618, %v6703
  %v6710 = vmul.f32 %v6621, %v6703
  %v6711 = vmul.f32 %v6624, %v6703
  %v6712 = vmul.f32 %v6627, %v6703
  %v6713 = vmul.f32 %v6630, %v6703
  %v6714 = vmul.f32 %v6633, %v6703
  %v6715 = vmul.f32 %v6636, %v6703
  %v6716 = vmul.f32 %v6639, %v6703
  %v6717 = vmul.f32 %v6642, %v6703
  %v6718 = vmul.f32 %v6645, %v6703
  %v6719 = vmul.f32 %v6648, %v6703
  %v6720 = vmul.f32 %v6651, %v6703
  %v6721 = vmul.f32 %v6654, %v6703
  %v6722 = vmul.f32 %v6657, %v6703
  %v6723 = vmul.f32 %v6660, %v6703
  %v6724 = vmul.f32 %v6663, %v6703
  %v6725 = vmul.f32 %v6666, %v6703
  %v6726 = vmul.f32 %v6669, %v6703
  %v6727 = vmul.f32 %v6672, %v6703
  %v6728 = vmul.f32 %v6675, %v6703
  %v6729 = vmul.f32 %v6678, %v6703
  %v6730 = vmul.f32 %v6681, %v6703
  %v6731 = vmul.f32 %v6684, %v6703
  %v6732 = vmul.f32 %v6687, %v6703
  %v6733 = vmul.f32 %v6690, %v6703
  %v6734 = vmul.f32 %v6693, %v6703
  %v6735 = vmul.f32 %v6696, %v6703
  %v6736 = vsub.f32 %v6567, %v6704
  %v6737 = vsub.f32 %v6568, %v6705
  %v6738 = vsub.f32 %v6569, %v6706
  %v6739 = vsub.f32 %v6570, %v6707
  %v6740 = vsub.f32 %v6571, %v6708
  %v6741 = vsub.f32 %v6572, %v6709
  %v6742 = vsub.f32 %v6573, %v6710
  %v6743 = vsub.f32 %v6574, %v6711
  %v6744 = vsub.f32 %v6575, %v6712
  %v6745 = vsub.f32 %v6576, %v6713
  %v6746 = vsub.f32 %v6577, %v6714
  %v6747 = vsub.f32 %v6578, %v6715
  %v6748 = vsub.f32 %v6579, %v6716
  %v6749 = vsub.f32 %v6580, %v6717
  %v6750 = vsub.f32 %v6581, %v6718
  %v6751 = vsub.f32 %v6582, %v6719
  %v6752 = vsub.f32 %v6583, %v6720
  %v6753 = vsub.f32 %v6584, %v6721
  %v6754 = vsub.f32 %v6585, %v6722
  %v6755 = vsub.f32 %v6586, %v6723
  %v6756 = vsub.f32 %v6587, %v6724
  %v6757 = vsub.f32 %v6588, %v6725
  %v6758 = vsub.f32 %v6589, %v6726
  %v6759 = vsub.f32 %v6590, %v6727
  %v6760 = vsub.f32 %v6591, %v6728
  %v6761 = vsub.f32 %v6592, %v6729
  %v6762 = vsub.f32 %v6593, %v6730
  %v6763 = vsub.f32 %v6594, %v6731
  %v6764 = vsub.f32 %v6595, %v6732
  %v6765 = vsub.f32 %v6596, %v6733
  %v6766 = vsub.f32 %v6597, %v6734
  %v6767 = vsub.f32 %v6598, %v6735
  %v6768 = vmul.f32 %v6736, %v6736
  %v6769 = vmul.f32 %v6737, %v6737
  %v6770 = vmul.f32 %v6738, %v6738
  %v6771 = vmul.f32 %v6739, %v6739
  %v6772 = vmul.f32 %v6740, %v6740
  %v6773 = vmul.f32 %v6741, %v6741
  %v6774 = vmul.f32 %v6742, %v6742
  %v6775 = vmul.f32 %v6743, %v6743
  %v6776 = vmul.f32 %v6744, %v6744
  %v6777 = vmul.f32 %v6745, %v6745
  %v6778 = vmul.f32 %v6746, %v6746
  %v6779 = vmul.f32 %v6747, %v6747
  %v6780 = vmul.f32 %v6748, %v6748
  %v6781 = vmul.f32 %v6749, %v6749
  %v6782 = vmul.f32 %v6750, %v6750
  %v6783 = vmul.f32 %v6751, %v6751
  %v6784 = vmul.f32 %v6752, %v6752
  %v6785 = vmul.f32 %v6753, %v6753
  %v6786 = vmul.f32 %v6754, %v6754
  %v6787 = vmul.f32 %v6755, %v6755
  %v6788 = vmul.f32 %v6756, %v6756
  %v6789 = vmul.f32 %v6757, %v6757
  %v6790 = vmul.f32 %v6758, %v6758
  %v6791 = vmul.f32 %v6759, %v6759
  %v6792 = vmul.f32 %v6760, %v6760
  %v6793 = vmul.f32 %v6761, %v6761
  %v6794 = vmul.f32 %v6762, %v6762
  %v6795 = vmul.f32 %v6763, %v6763
  %v6796 = vmul.f32 %v6764, %v6764
  %v6797 = vmul.f32 %v6765, %v6765
  %v6798 = vmul.f32 %v6766, %v6766
  %v6799 = vmul.f32 %v6767, %v6767
  %v6800 = vsel %vm113, %v6768, 0.0
  %6801 = vadd.xlane.f32.xlu0 %v6800
  %v6802 = vpop.xlane.xlu0 %6801
  %v6803 = vsel %vm113, %v6769, 0.0
  %6804 = vadd.xlane.f32.xlu0 %v6803
  %v6805 = vpop.xlane.xlu0 %6804
  %v6806 = vsel %vm113, %v6770, 0.0
  %6807 = vadd.xlane.f32.xlu0 %v6806
  %v6808 = vpop.xlane.xlu0 %6807
  %v6809 = vsel %vm113, %v6771, 0.0
  %6810 = vadd.xlane.f32.xlu0 %v6809
  %v6811 = vpop.xlane.xlu0 %6810
  %v6812 = vsel %vm113, %v6772, 0.0
  %6813 = vadd.xlane.f32.xlu0 %v6812
  %v6814 = vpop.xlane.xlu0 %6813
  %v6815 = vsel %vm113, %v6773, 0.0
  %6816 = vadd.xlane.f32.xlu0 %v6815
  %v6817 = vpop.xlane.xlu0 %6816
  %v6818 = vsel %vm113, %v6774, 0.0
  %6819 = vadd.xlane.f32.xlu0 %v6818
  %v6820 = vpop.xlane.xlu0 %6819
  %v6821 = vsel %vm113, %v6775, 0.0
  %6822 = vadd.xlane.f32.xlu0 %v6821
  %v6823 = vpop.xlane.xlu0 %6822
  %v6824 = vsel %vm113, %v6776, 0.0
  %6825 = vadd.xlane.f32.xlu0 %v6824
  %v6826 = vpop.xlane.xlu0 %6825
  %v6827 = vsel %vm113, %v6777, 0.0
  %6828 = vadd.xlane.f32.xlu0 %v6827
  %v6829 = vpop.xlane.xlu0 %6828
  %v6830 = vsel %vm113, %v6778, 0.0
  %6831 = vadd.xlane.f32.xlu0 %v6830
  %v6832 = vpop.xlane.xlu0 %6831
  %v6833 = vsel %vm113, %v6779, 0.0
  %6834 = vadd.xlane.f32.xlu0 %v6833
  %v6835 = vpop.xlane.xlu0 %6834
  %v6836 = vsel %vm113, %v6780, 0.0
  %6837 = vadd.xlane.f32.xlu0 %v6836
  %v6838 = vpop.xlane.xlu0 %6837
  %v6839 = vsel %vm113, %v6781, 0.0
  %6840 = vadd.xlane.f32.xlu0 %v6839
  %v6841 = vpop.xlane.xlu0 %6840
  %v6842 = vsel %vm113, %v6782, 0.0
  %6843 = vadd.xlane.f32.xlu0 %v6842
  %v6844 = vpop.xlane.xlu0 %6843
  %v6845 = vsel %vm113, %v6783, 0.0
  %6846 = vadd.xlane.f32.xlu0 %v6845
  %v6847 = vpop.xlane.xlu0 %6846
  %v6848 = vsel %vm113, %v6784, 0.0
  %6849 = vadd.xlane.f32.xlu0 %v6848
  %v6850 = vpop.xlane.xlu0 %6849
  %v6851 = vsel %vm113, %v6785, 0.0
  %6852 = vadd.xlane.f32.xlu0 %v6851
  %v6853 = vpop.xlane.xlu0 %6852
  %v6854 = vsel %vm113, %v6786, 0.0
  %6855 = vadd.xlane.f32.xlu0 %v6854
  %v6856 = vpop.xlane.xlu0 %6855
  %v6857 = vsel %vm113, %v6787, 0.0
  %6858 = vadd.xlane.f32.xlu0 %v6857
  %v6859 = vpop.xlane.xlu0 %6858
  %v6860 = vsel %vm113, %v6788, 0.0
  %6861 = vadd.xlane.f32.xlu0 %v6860
  %v6862 = vpop.xlane.xlu0 %6861
  %v6863 = vsel %vm113, %v6789, 0.0
  %6864 = vadd.xlane.f32.xlu0 %v6863
  %v6865 = vpop.xlane.xlu0 %6864
  %v6866 = vsel %vm113, %v6790, 0.0
  %6867 = vadd.xlane.f32.xlu0 %v6866
  %v6868 = vpop.xlane.xlu0 %6867
  %v6869 = vsel %vm113, %v6791, 0.0
  %6870 = vadd.xlane.f32.xlu0 %v6869
  %v6871 = vpop.xlane.xlu0 %6870
  %v6872 = vsel %vm113, %v6792, 0.0
  %6873 = vadd.xlane.f32.xlu0 %v6872
  %v6874 = vpop.xlane.xlu0 %6873
  %v6875 = vsel %vm113, %v6793, 0.0
  %6876 = vadd.xlane.f32.xlu0 %v6875
  %v6877 = vpop.xlane.xlu0 %6876
  %v6878 = vsel %vm113, %v6794, 0.0
  %6879 = vadd.xlane.f32.xlu0 %v6878
  %v6880 = vpop.xlane.xlu0 %6879
  %v6881 = vsel %vm113, %v6795, 0.0
  %6882 = vadd.xlane.f32.xlu0 %v6881
  %v6883 = vpop.xlane.xlu0 %6882
  %v6884 = vsel %vm113, %v6796, 0.0
  %6885 = vadd.xlane.f32.xlu0 %v6884
  %v6886 = vpop.xlane.xlu0 %6885
  %v6887 = vsel %vm113, %v6797, 0.0
  %6888 = vadd.xlane.f32.xlu0 %v6887
  %v6889 = vpop.xlane.xlu0 %6888
  %v6890 = vsel %vm113, %v6798, 0.0
  %6891 = vadd.xlane.f32.xlu0 %v6890
  %v6892 = vpop.xlane.xlu0 %6891
  %v6893 = vsel %vm113, %v6799, 0.0
  %6894 = vadd.xlane.f32.xlu0 %v6893
  %v6895 = vpop.xlane.xlu0 %6894
  %v6896 = vmul.f32 %v6802, %v6703
  %v6897 = vmul.f32 %v6805, %v6703
  %v6898 = vmul.f32 %v6808, %v6703
  %v6899 = vmul.f32 %v6811, %v6703
  %v6900 = vmul.f32 %v6814, %v6703
  %v6901 = vmul.f32 %v6817, %v6703
  %v6902 = vmul.f32 %v6820, %v6703
  %v6903 = vmul.f32 %v6823, %v6703
  %v6904 = vmul.f32 %v6826, %v6703
  %v6905 = vmul.f32 %v6829, %v6703
  %v6906 = vmul.f32 %v6832, %v6703
  %v6907 = vmul.f32 %v6835, %v6703
  %v6908 = vmul.f32 %v6838, %v6703
  %v6909 = vmul.f32 %v6841, %v6703
  %v6910 = vmul.f32 %v6844, %v6703
  %v6911 = vmul.f32 %v6847, %v6703
  %v6912 = vmul.f32 %v6850, %v6703
  %v6913 = vmul.f32 %v6853, %v6703
  %v6914 = vmul.f32 %v6856, %v6703
  %v6915 = vmul.f32 %v6859, %v6703
  %v6916 = vmul.f32 %v6862, %v6703
  %v6917 = vmul.f32 %v6865, %v6703
  %v6918 = vmul.f32 %v6868, %v6703
  %v6919 = vmul.f32 %v6871, %v6703
  %v6920 = vmul.f32 %v6874, %v6703
  %v6921 = vmul.f32 %v6877, %v6703
  %v6922 = vmul.f32 %v6880, %v6703
  %v6923 = vmul.f32 %v6883, %v6703
  %v6924 = vmul.f32 %v6886, %v6703
  %v6925 = vmul.f32 %v6889, %v6703
  %v6926 = vmul.f32 %v6892, %v6703
  %v6927 = vmul.f32 %v6895, %v6703
  %v6928 = vadd.f32 %v6896, 1e-05
  %v6929 = vadd.f32 %v6897, 1e-05
  %v6930 = vadd.f32 %v6898, 1e-05
  %v6931 = vadd.f32 %v6899, 1e-05
  %v6932 = vadd.f32 %v6900, 1e-05
  %v6933 = vadd.f32 %v6901, 1e-05
  %v6934 = vadd.f32 %v6902, 1e-05
  %v6935 = vadd.f32 %v6903, 1e-05
  %v6936 = vadd.f32 %v6904, 1e-05
  %v6937 = vadd.f32 %v6905, 1e-05
  %v6938 = vadd.f32 %v6906, 1e-05
  %v6939 = vadd.f32 %v6907, 1e-05
  %v6940 = vadd.f32 %v6908, 1e-05
  %v6941 = vadd.f32 %v6909, 1e-05
  %v6942 = vadd.f32 %v6910, 1e-05
  %v6943 = vadd.f32 %v6911, 1e-05
  %v6944 = vadd.f32 %v6912, 1e-05
  %v6945 = vadd.f32 %v6913, 1e-05
  %v6946 = vadd.f32 %v6914, 1e-05
  %v6947 = vadd.f32 %v6915, 1e-05
  %v6948 = vadd.f32 %v6916, 1e-05
  %v6949 = vadd.f32 %v6917, 1e-05
  %v6950 = vadd.f32 %v6918, 1e-05
  %v6951 = vadd.f32 %v6919, 1e-05
  %v6952 = vadd.f32 %v6920, 1e-05
  %v6953 = vadd.f32 %v6921, 1e-05
  %v6954 = vadd.f32 %v6922, 1e-05
  %v6955 = vadd.f32 %v6923, 1e-05
  %v6956 = vadd.f32 %v6924, 1e-05
  %v6957 = vadd.f32 %v6925, 1e-05
  %v6958 = vadd.f32 %v6926, 1e-05
  %v6959 = vadd.f32 %v6927, 1e-05
  %v6960 = vrsqrt.pop %v6928
  %v6961 = vmul.f32 %v6960, %v6928
  %v6962 = vmul.f32 %v6961, %v6960
  %v6963 = vmul.f32 0.5, %v6962
  %v6964 = vsub.f32 1.5, %v6963
  %v6965 = vmul.f32 %v6960, %v6964
  %vm6966 = vweird.f32 %v6928
  %vm6967 = vweird.f32 %v6960
  %vm6968 = vmor %vm6966, %vm6967
  %v6969 = vsel %vm6968, %v6960, %v6965
  %v6970 = vrsqrt.pop %v6929
  %v6971 = vmul.f32 %v6970, %v6929
  %v6972 = vmul.f32 %v6971, %v6970
  %v6973 = vmul.f32 0.5, %v6972
  %v6974 = vsub.f32 1.5, %v6973
  %v6975 = vmul.f32 %v6970, %v6974
  %vm6976 = vweird.f32 %v6929
  %vm6977 = vweird.f32 %v6970
  %vm6978 = vmor %vm6976, %vm6977
  %v6979 = vsel %vm6978, %v6970, %v6975
  %v6980 = vrsqrt.pop %v6930
  %v6981 = vmul.f32 %v6980, %v6930
  %v6982 = vmul.f32 %v6981, %v6980
  %v6983 = vmul.f32 0.5, %v6982
  %v6984 = vsub.f32 1.5, %v6983
  %v6985 = vmul.f32 %v6980, %v6984
  %vm6986 = vweird.f32 %v6930
  %vm6987 = vweird.f32 %v6980
  %vm6988 = vmor %vm6986, %vm6987
  %v6989 = vsel %vm6988, %v6980, %v6985
  %v6990 = vrsqrt.pop %v6931
  %v6991 = vmul.f32 %v6990, %v6931
  %v6992 = vmul.f32 %v6991, %v6990
  %v6993 = vmul.f32 0.5, %v6992
  %v6994 = vsub.f32 1.5, %v6993
  %v6995 = vmul.f32 %v6990, %v6994
  %vm6996 = vweird.f32 %v6931
  %vm6997 = vweird.f32 %v6990
  %vm6998 = vmor %vm6996, %vm6997
  %v6999 = vsel %vm6998, %v6990, %v6995
  %v7000 = vrsqrt.pop %v6932
  %v7001 = vmul.f32 %v7000, %v6932
  %v7002 = vmul.f32 %v7001, %v7000
  %v7003 = vmul.f32 0.5, %v7002
  %v7004 = vsub.f32 1.5, %v7003
  %v7005 = vmul.f32 %v7000, %v7004
  %vm7006 = vweird.f32 %v6932
  %vm7007 = vweird.f32 %v7000
  %vm7008 = vmor %vm7006, %vm7007
  %v7009 = vsel %vm7008, %v7000, %v7005
  %v7010 = vrsqrt.pop %v6933
  %v7011 = vmul.f32 %v7010, %v6933
  %v7012 = vmul.f32 %v7011, %v7010
  %v7013 = vmul.f32 0.5, %v7012
  %v7014 = vsub.f32 1.5, %v7013
  %v7015 = vmul.f32 %v7010, %v7014
  %vm7016 = vweird.f32 %v6933
  %vm7017 = vweird.f32 %v7010
  %vm7018 = vmor %vm7016, %vm7017
  %v7019 = vsel %vm7018, %v7010, %v7015
  %v7020 = vrsqrt.pop %v6934
  %v7021 = vmul.f32 %v7020, %v6934
  %v7022 = vmul.f32 %v7021, %v7020
  %v7023 = vmul.f32 0.5, %v7022
  %v7024 = vsub.f32 1.5, %v7023
  %v7025 = vmul.f32 %v7020, %v7024
  %vm7026 = vweird.f32 %v6934
  %vm7027 = vweird.f32 %v7020
  %vm7028 = vmor %vm7026, %vm7027
  %v7029 = vsel %vm7028, %v7020, %v7025
  %v7030 = vrsqrt.pop %v6935
  %v7031 = vmul.f32 %v7030, %v6935
  %v7032 = vmul.f32 %v7031, %v7030
  %v7033 = vmul.f32 0.5, %v7032
  %v7034 = vsub.f32 1.5, %v7033
  %v7035 = vmul.f32 %v7030, %v7034
  %vm7036 = vweird.f32 %v6935
  %vm7037 = vweird.f32 %v7030
  %vm7038 = vmor %vm7036, %vm7037
  %v7039 = vsel %vm7038, %v7030, %v7035
  %v7040 = vrsqrt.pop %v6936
  %v7041 = vmul.f32 %v7040, %v6936
  %v7042 = vmul.f32 %v7041, %v7040
  %v7043 = vmul.f32 0.5, %v7042
  %v7044 = vsub.f32 1.5, %v7043
  %v7045 = vmul.f32 %v7040, %v7044
  %vm7046 = vweird.f32 %v6936
  %vm7047 = vweird.f32 %v7040
  %vm7048 = vmor %vm7046, %vm7047
  %v7049 = vsel %vm7048, %v7040, %v7045
  %v7050 = vrsqrt.pop %v6937
  %v7051 = vmul.f32 %v7050, %v6937
  %v7052 = vmul.f32 %v7051, %v7050
  %v7053 = vmul.f32 0.5, %v7052
  %v7054 = vsub.f32 1.5, %v7053
  %v7055 = vmul.f32 %v7050, %v7054
  %vm7056 = vweird.f32 %v6937
  %vm7057 = vweird.f32 %v7050
  %vm7058 = vmor %vm7056, %vm7057
  %v7059 = vsel %vm7058, %v7050, %v7055
  %v7060 = vrsqrt.pop %v6938
  %v7061 = vmul.f32 %v7060, %v6938
  %v7062 = vmul.f32 %v7061, %v7060
  %v7063 = vmul.f32 0.5, %v7062
  %v7064 = vsub.f32 1.5, %v7063
  %v7065 = vmul.f32 %v7060, %v7064
  %vm7066 = vweird.f32 %v6938
  %vm7067 = vweird.f32 %v7060
  %vm7068 = vmor %vm7066, %vm7067
  %v7069 = vsel %vm7068, %v7060, %v7065
  %v7070 = vrsqrt.pop %v6939
  %v7071 = vmul.f32 %v7070, %v6939
  %v7072 = vmul.f32 %v7071, %v7070
  %v7073 = vmul.f32 0.5, %v7072
  %v7074 = vsub.f32 1.5, %v7073
  %v7075 = vmul.f32 %v7070, %v7074
  %vm7076 = vweird.f32 %v6939
  %vm7077 = vweird.f32 %v7070
  %vm7078 = vmor %vm7076, %vm7077
  %v7079 = vsel %vm7078, %v7070, %v7075
  %v7080 = vrsqrt.pop %v6940
  %v7081 = vmul.f32 %v7080, %v6940
  %v7082 = vmul.f32 %v7081, %v7080
  %v7083 = vmul.f32 0.5, %v7082
  %v7084 = vsub.f32 1.5, %v7083
  %v7085 = vmul.f32 %v7080, %v7084
  %vm7086 = vweird.f32 %v6940
  %vm7087 = vweird.f32 %v7080
  %vm7088 = vmor %vm7086, %vm7087
  %v7089 = vsel %vm7088, %v7080, %v7085
  %v7090 = vrsqrt.pop %v6941
  %v7091 = vmul.f32 %v7090, %v6941
  %v7092 = vmul.f32 %v7091, %v7090
  %v7093 = vmul.f32 0.5, %v7092
  %v7094 = vsub.f32 1.5, %v7093
  %v7095 = vmul.f32 %v7090, %v7094
  %vm7096 = vweird.f32 %v6941
  %vm7097 = vweird.f32 %v7090
  %vm7098 = vmor %vm7096, %vm7097
  %v7099 = vsel %vm7098, %v7090, %v7095
  %v7100 = vrsqrt.pop %v6942
  %v7101 = vmul.f32 %v7100, %v6942
  %v7102 = vmul.f32 %v7101, %v7100
  %v7103 = vmul.f32 0.5, %v7102
  %v7104 = vsub.f32 1.5, %v7103
  %v7105 = vmul.f32 %v7100, %v7104
  %vm7106 = vweird.f32 %v6942
  %vm7107 = vweird.f32 %v7100
  %vm7108 = vmor %vm7106, %vm7107
  %v7109 = vsel %vm7108, %v7100, %v7105
  %v7110 = vrsqrt.pop %v6943
  %v7111 = vmul.f32 %v7110, %v6943
  %v7112 = vmul.f32 %v7111, %v7110
  %v7113 = vmul.f32 0.5, %v7112
  %v7114 = vsub.f32 1.5, %v7113
  %v7115 = vmul.f32 %v7110, %v7114
  %vm7116 = vweird.f32 %v6943
  %vm7117 = vweird.f32 %v7110
  %vm7118 = vmor %vm7116, %vm7117
  %v7119 = vsel %vm7118, %v7110, %v7115
  %v7120 = vrsqrt.pop %v6944
  %v7121 = vmul.f32 %v7120, %v6944
  %v7122 = vmul.f32 %v7121, %v7120
  %v7123 = vmul.f32 0.5, %v7122
  %v7124 = vsub.f32 1.5, %v7123
  %v7125 = vmul.f32 %v7120, %v7124
  %vm7126 = vweird.f32 %v6944
  %vm7127 = vweird.f32 %v7120
  %vm7128 = vmor %vm7126, %vm7127
  %v7129 = vsel %vm7128, %v7120, %v7125
  %v7130 = vrsqrt.pop %v6945
  %v7131 = vmul.f32 %v7130, %v6945
  %v7132 = vmul.f32 %v7131, %v7130
  %v7133 = vmul.f32 0.5, %v7132
  %v7134 = vsub.f32 1.5, %v7133
  %v7135 = vmul.f32 %v7130, %v7134
  %vm7136 = vweird.f32 %v6945
  %vm7137 = vweird.f32 %v7130
  %vm7138 = vmor %vm7136, %vm7137
  %v7139 = vsel %vm7138, %v7130, %v7135
  %v7140 = vrsqrt.pop %v6946
  %v7141 = vmul.f32 %v7140, %v6946
  %v7142 = vmul.f32 %v7141, %v7140
  %v7143 = vmul.f32 0.5, %v7142
  %v7144 = vsub.f32 1.5, %v7143
  %v7145 = vmul.f32 %v7140, %v7144
  %vm7146 = vweird.f32 %v6946
  %vm7147 = vweird.f32 %v7140
  %vm7148 = vmor %vm7146, %vm7147
  %v7149 = vsel %vm7148, %v7140, %v7145
  %v7150 = vrsqrt.pop %v6947
  %v7151 = vmul.f32 %v7150, %v6947
  %v7152 = vmul.f32 %v7151, %v7150
  %v7153 = vmul.f32 0.5, %v7152
  %v7154 = vsub.f32 1.5, %v7153
  %v7155 = vmul.f32 %v7150, %v7154
  %vm7156 = vweird.f32 %v6947
  %vm7157 = vweird.f32 %v7150
  %vm7158 = vmor %vm7156, %vm7157
  %v7159 = vsel %vm7158, %v7150, %v7155
  %v7160 = vrsqrt.pop %v6948
  %v7161 = vmul.f32 %v7160, %v6948
  %v7162 = vmul.f32 %v7161, %v7160
  %v7163 = vmul.f32 0.5, %v7162
  %v7164 = vsub.f32 1.5, %v7163
  %v7165 = vmul.f32 %v7160, %v7164
  %vm7166 = vweird.f32 %v6948
  %vm7167 = vweird.f32 %v7160
  %vm7168 = vmor %vm7166, %vm7167
  %v7169 = vsel %vm7168, %v7160, %v7165
  %v7170 = vrsqrt.pop %v6949
  %v7171 = vmul.f32 %v7170, %v6949
  %v7172 = vmul.f32 %v7171, %v7170
  %v7173 = vmul.f32 0.5, %v7172
  %v7174 = vsub.f32 1.5, %v7173
  %v7175 = vmul.f32 %v7170, %v7174
  %vm7176 = vweird.f32 %v6949
  %vm7177 = vweird.f32 %v7170
  %vm7178 = vmor %vm7176, %vm7177
  %v7179 = vsel %vm7178, %v7170, %v7175
  %v7180 = vrsqrt.pop %v6950
  %v7181 = vmul.f32 %v7180, %v6950
  %v7182 = vmul.f32 %v7181, %v7180
  %v7183 = vmul.f32 0.5, %v7182
  %v7184 = vsub.f32 1.5, %v7183
  %v7185 = vmul.f32 %v7180, %v7184
  %vm7186 = vweird.f32 %v6950
  %vm7187 = vweird.f32 %v7180
  %vm7188 = vmor %vm7186, %vm7187
  %v7189 = vsel %vm7188, %v7180, %v7185
  %v7190 = vrsqrt.pop %v6951
  %v7191 = vmul.f32 %v7190, %v6951
  %v7192 = vmul.f32 %v7191, %v7190
  %v7193 = vmul.f32 0.5, %v7192
  %v7194 = vsub.f32 1.5, %v7193
  %v7195 = vmul.f32 %v7190, %v7194
  %vm7196 = vweird.f32 %v6951
  %vm7197 = vweird.f32 %v7190
  %vm7198 = vmor %vm7196, %vm7197
  %v7199 = vsel %vm7198, %v7190, %v7195
  %v7200 = vrsqrt.pop %v6952
  %v7201 = vmul.f32 %v7200, %v6952
  %v7202 = vmul.f32 %v7201, %v7200
  %v7203 = vmul.f32 0.5, %v7202
  %v7204 = vsub.f32 1.5, %v7203
  %v7205 = vmul.f32 %v7200, %v7204
  %vm7206 = vweird.f32 %v6952
  %vm7207 = vweird.f32 %v7200
  %vm7208 = vmor %vm7206, %vm7207
  %v7209 = vsel %vm7208, %v7200, %v7205
  %v7210 = vrsqrt.pop %v6953
  %v7211 = vmul.f32 %v7210, %v6953
  %v7212 = vmul.f32 %v7211, %v7210
  %v7213 = vmul.f32 0.5, %v7212
  %v7214 = vsub.f32 1.5, %v7213
  %v7215 = vmul.f32 %v7210, %v7214
  %vm7216 = vweird.f32 %v6953
  %vm7217 = vweird.f32 %v7210
  %vm7218 = vmor %vm7216, %vm7217
  %v7219 = vsel %vm7218, %v7210, %v7215
  %v7220 = vrsqrt.pop %v6954
  %v7221 = vmul.f32 %v7220, %v6954
  %v7222 = vmul.f32 %v7221, %v7220
  %v7223 = vmul.f32 0.5, %v7222
  %v7224 = vsub.f32 1.5, %v7223
  %v7225 = vmul.f32 %v7220, %v7224
  %vm7226 = vweird.f32 %v6954
  %vm7227 = vweird.f32 %v7220
  %vm7228 = vmor %vm7226, %vm7227
  %v7229 = vsel %vm7228, %v7220, %v7225
  %v7230 = vrsqrt.pop %v6955
  %v7231 = vmul.f32 %v7230, %v6955
  %v7232 = vmul.f32 %v7231, %v7230
  %v7233 = vmul.f32 0.5, %v7232
  %v7234 = vsub.f32 1.5, %v7233
  %v7235 = vmul.f32 %v7230, %v7234
  %vm7236 = vweird.f32 %v6955
  %vm7237 = vweird.f32 %v7230
  %vm7238 = vmor %vm7236, %vm7237
  %v7239 = vsel %vm7238, %v7230, %v7235
  %v7240 = vrsqrt.pop %v6956
  %v7241 = vmul.f32 %v7240, %v6956
  %v7242 = vmul.f32 %v7241, %v7240
  %v7243 = vmul.f32 0.5, %v7242
  %v7244 = vsub.f32 1.5, %v7243
  %v7245 = vmul.f32 %v7240, %v7244
  %vm7246 = vweird.f32 %v6956
  %vm7247 = vweird.f32 %v7240
  %vm7248 = vmor %vm7246, %vm7247
  %v7249 = vsel %vm7248, %v7240, %v7245
  %v7250 = vrsqrt.pop %v6957
  %v7251 = vmul.f32 %v7250, %v6957
  %v7252 = vmul.f32 %v7251, %v7250
  %v7253 = vmul.f32 0.5, %v7252
  %v7254 = vsub.f32 1.5, %v7253
  %v7255 = vmul.f32 %v7250, %v7254
  %vm7256 = vweird.f32 %v6957
  %vm7257 = vweird.f32 %v7250
  %vm7258 = vmor %vm7256, %vm7257
  %v7259 = vsel %vm7258, %v7250, %v7255
  %v7260 = vrsqrt.pop %v6958
  %v7261 = vmul.f32 %v7260, %v6958
  %v7262 = vmul.f32 %v7261, %v7260
  %v7263 = vmul.f32 0.5, %v7262
  %v7264 = vsub.f32 1.5, %v7263
  %v7265 = vmul.f32 %v7260, %v7264
  %vm7266 = vweird.f32 %v6958
  %vm7267 = vweird.f32 %v7260
  %vm7268 = vmor %vm7266, %vm7267
  %v7269 = vsel %vm7268, %v7260, %v7265
  %v7270 = vrsqrt.pop %v6959
  %v7271 = vmul.f32 %v7270, %v6959
  %v7272 = vmul.f32 %v7271, %v7270
  %v7273 = vmul.f32 0.5, %v7272
  %v7274 = vsub.f32 1.5, %v7273
  %v7275 = vmul.f32 %v7270, %v7274
  %vm7276 = vweird.f32 %v6959
  %vm7277 = vweird.f32 %v7270
  %vm7278 = vmor %vm7276, %vm7277
  %v7279 = vsel %vm7278, %v7270, %v7275
  %v7280 = vmul.f32 %v6736, %v6969
  %v7281 = vmul.f32 %v6737, %v6979
  %v7282 = vmul.f32 %v6738, %v6989
  %v7283 = vmul.f32 %v6739, %v6999
  %v7284 = vmul.f32 %v6740, %v7009
  %v7285 = vmul.f32 %v6741, %v7019
  %v7286 = vmul.f32 %v6742, %v7029
  %v7287 = vmul.f32 %v6743, %v7039
  %v7288 = vmul.f32 %v6744, %v7049
  %v7289 = vmul.f32 %v6745, %v7059
  %v7290 = vmul.f32 %v6746, %v7069
  %v7291 = vmul.f32 %v6747, %v7079
  %v7292 = vmul.f32 %v6748, %v7089
  %v7293 = vmul.f32 %v6749, %v7099
  %v7294 = vmul.f32 %v6750, %v7109
  %v7295 = vmul.f32 %v6751, %v7119
  %v7296 = vmul.f32 %v6752, %v7129
  %v7297 = vmul.f32 %v6753, %v7139
  %v7298 = vmul.f32 %v6754, %v7149
  %v7299 = vmul.f32 %v6755, %v7159
  %v7300 = vmul.f32 %v6756, %v7169
  %v7301 = vmul.f32 %v6757, %v7179
  %v7302 = vmul.f32 %v6758, %v7189
  %v7303 = vmul.f32 %v6759, %v7199
  %v7304 = vmul.f32 %v6760, %v7209
  %v7305 = vmul.f32 %v6761, %v7219
  %v7306 = vmul.f32 %v6762, %v7229
  %v7307 = vmul.f32 %v6763, %v7239
  %v7308 = vmul.f32 %v6764, %v7249
  %v7309 = vmul.f32 %v6765, %v7259
  %v7310 = vmul.f32 %v6766, %v7269
  %v7311 = vmul.f32 %v6767, %v7279
  %v7313 = vperm.slane %v6599, 0
  %v7315 = vmul.f32 %v7280, %v7313
  %v7316 = vmul.f32 %v7281, %v7313
  %v7317 = vmul.f32 %v7282, %v7313
  %v7318 = vmul.f32 %v7283, %v7313
  %v7319 = vmul.f32 %v7284, %v7313
  %v7320 = vmul.f32 %v7285, %v7313
  %v7321 = vmul.f32 %v7286, %v7313
  %v7322 = vmul.f32 %v7287, %v7313
  %v7323 = vmul.f32 %v7288, %v7313
  %v7324 = vmul.f32 %v7289, %v7313
  %v7325 = vmul.f32 %v7290, %v7313
  %v7326 = vmul.f32 %v7291, %v7313
  %v7327 = vmul.f32 %v7292, %v7313
  %v7328 = vmul.f32 %v7293, %v7313
  %v7329 = vmul.f32 %v7294, %v7313
  %v7330 = vmul.f32 %v7295, %v7313
  %v7331 = vmul.f32 %v7296, %v7313
  %v7332 = vmul.f32 %v7297, %v7313
  %v7333 = vmul.f32 %v7298, %v7313
  %v7334 = vmul.f32 %v7299, %v7313
  %v7335 = vmul.f32 %v7300, %v7313
  %v7336 = vmul.f32 %v7301, %v7313
  %v7337 = vmul.f32 %v7302, %v7313
  %v7338 = vmul.f32 %v7303, %v7313
  %v7339 = vmul.f32 %v7304, %v7313
  %v7340 = vmul.f32 %v7305, %v7313
  %v7341 = vmul.f32 %v7306, %v7313
  %v7342 = vmul.f32 %v7307, %v7313
  %v7343 = vmul.f32 %v7308, %v7313
  %v7344 = vmul.f32 %v7309, %v7313
  %v7345 = vmul.f32 %v7310, %v7313
  %v7346 = vmul.f32 %v7311, %v7313
  %v7348 = vperm.slane %v6600, 0
  %v7350 = vadd.f32 %v7315, %v7348
  %v7351 = vadd.f32 %v7316, %v7348
  %v7352 = vadd.f32 %v7317, %v7348
  %v7353 = vadd.f32 %v7318, %v7348
  %v7354 = vadd.f32 %v7319, %v7348
  %v7355 = vadd.f32 %v7320, %v7348
  %v7356 = vadd.f32 %v7321, %v7348
  %v7357 = vadd.f32 %v7322, %v7348
  %v7358 = vadd.f32 %v7323, %v7348
  %v7359 = vadd.f32 %v7324, %v7348
  %v7360 = vadd.f32 %v7325, %v7348
  %v7361 = vadd.f32 %v7326, %v7348
  %v7362 = vadd.f32 %v7327, %v7348
  %v7363 = vadd.f32 %v7328, %v7348
  %v7364 = vadd.f32 %v7329, %v7348
  %v7365 = vadd.f32 %v7330, %v7348
  %v7366 = vadd.f32 %v7331, %v7348
  %v7367 = vadd.f32 %v7332, %v7348
  %v7368 = vadd.f32 %v7333, %v7348
  %v7369 = vadd.f32 %v7334, %v7348
  %v7370 = vadd.f32 %v7335, %v7348
  %v7371 = vadd.f32 %v7336, %v7348
  %v7372 = vadd.f32 %v7337, %v7348
  %v7373 = vadd.f32 %v7338, %v7348
  %v7374 = vadd.f32 %v7339, %v7348
  %v7375 = vadd.f32 %v7340, %v7348
  %v7376 = vadd.f32 %v7341, %v7348
  %v7377 = vadd.f32 %v7342, %v7348
  %v7378 = vadd.f32 %v7343, %v7348
  %v7379 = vadd.f32 %v7344, %v7348
  %v7380 = vadd.f32 %v7345, %v7348
  %v7381 = vadd.f32 %v7346, %v7348
  %v7382 = vpack.c.bf16 %v7351, %v7350
  %v7383 = vpack.c.bf16 %v7353, %v7352
  %v7384 = vpack.c.bf16 %v7355, %v7354
  %v7385 = vpack.c.bf16 %v7357, %v7356
  %v7386 = vpack.c.bf16 %v7359, %v7358
  %v7387 = vpack.c.bf16 %v7361, %v7360
  %v7388 = vpack.c.bf16 %v7363, %v7362
  %v7389 = vpack.c.bf16 %v7365, %v7364
  %v7390 = vpack.c.bf16 %v7367, %v7366
  %v7391 = vpack.c.bf16 %v7369, %v7368
  %v7392 = vpack.c.bf16 %v7371, %v7370
  %v7393 = vpack.c.bf16 %v7373, %v7372
  %v7394 = vpack.c.bf16 %v7375, %v7374
  %v7395 = vpack.c.bf16 %v7377, %v7376
  %v7396 = vpack.c.bf16 %v7379, %v7378
  %v7397 = vpack.c.bf16 %v7381, %v7380
  %v7398 = vld [vmem:[%s7] sm:$0xf]
  %v7399 = vld [vmem:[%s7 + $0x4] sm:$0xf]
  %v7400 = vld [vmem:[%s7 + $0x8] sm:$0xf]
  %v7401 = vld [vmem:[%s7 + $0xc] sm:$0xf]
  %v7402 = vld [vmem:[%s8] sm:$0x1]
  %v7404 = vperm.slane %v7402, 0
  %v7410 = vunpack.c.l.b16 %v7398
  %v7411 = vunpack.c.l.b16 %v7399
  %v7412 = vunpack.c.l.b16 %v7400
  %v7413 = vunpack.c.l.b16 %v7401
  %v7414 = vpack.c.b16 %v7411, %v7410
  %v7415 = vpack.c.b16 %v7413, %v7412
  %v7419 = vsel %vm113, %v7382, 0
  %v7422 = vsel %vm113, %v7383, 0
  %v7425 = vsel %vm113, %v7384, 0
  %v7428 = vsel %vm113, %v7385, 0
  %v7431 = vsel %vm113, %v7386, 0
  %v7434 = vsel %vm113, %v7387, 0
  %v7437 = vsel %vm113, %v7388, 0
  %v7440 = vsel %vm113, %v7389, 0
  %v7443 = vsel %vm113, %v7390, 0
  %v7446 = vsel %vm113, %v7391, 0
  %v7449 = vsel %vm113, %v7392, 0
  %v7452 = vsel %vm113, %v7393, 0
  %v7455 = vsel %vm113, %v7394, 0
  %v7458 = vsel %vm113, %v7395, 0
  %v7461 = vsel %vm113, %v7396, 0
  %v7464 = vsel %vm113, %v7397, 0
  %7466 = vmatpush.bf16.msra.mxu0 0
  %7467 = vmatpush.bf16.msra.mxu0 0
  %7468 = vmatpush.bf16.msra.mxu0 0
  %7469 = vmatpush.bf16.msra.mxu0 0
  %7470 = vmatpush.bf16.msra.mxu0 0
  %7471 = vmatpush.bf16.msra.mxu0 0
  %7472 = vmatpush.bf16.msra.mxu0 %v7415
  %7473 = vmatpush.bf16.msra.mxu0 %v7414
  %7474 = vmatmul.bf16.gmra.mxu0 %v7419
  %v7475 = vpop.f32.mrf.mxu0
  %v7476 = vadd.f32 %v7404, %v7475
  %v7477 = vpop.f32.mrf.mxu0
  %v7478 = vadd.f32 %v7404, %v7477
  %7479 = vmatmul.bf16.gmra.mxu0 %v7422
  %v7480 = vpop.f32.mrf.mxu0
  %v7481 = vadd.f32 %v7404, %v7480
  %v7482 = vpop.f32.mrf.mxu0
  %v7483 = vadd.f32 %v7404, %v7482
  %7484 = vmatmul.bf16.gmra.mxu0 %v7425
  %v7485 = vpop.f32.mrf.mxu0
  %v7486 = vadd.f32 %v7404, %v7485
  %v7487 = vpop.f32.mrf.mxu0
  %v7488 = vadd.f32 %v7404, %v7487
  %7489 = vmatmul.bf16.gmra.mxu0 %v7428
  %v7490 = vpop.f32.mrf.mxu0
  %v7491 = vadd.f32 %v7404, %v7490
  %v7492 = vpop.f32.mrf.mxu0
  %v7493 = vadd.f32 %v7404, %v7492
  %7494 = vmatmul.bf16.gmra.mxu0 %v7431
  %v7495 = vpop.f32.mrf.mxu0
  %v7496 = vadd.f32 %v7404, %v7495
  %v7497 = vpop.f32.mrf.mxu0
  %v7498 = vadd.f32 %v7404, %v7497
  %7499 = vmatmul.bf16.gmra.mxu0 %v7434
  %v7500 = vpop.f32.mrf.mxu0
  %v7501 = vadd.f32 %v7404, %v7500
  %v7502 = vpop.f32.mrf.mxu0
  %v7503 = vadd.f32 %v7404, %v7502
  %7504 = vmatmul.bf16.gmra.mxu0 %v7437
  %v7505 = vpop.f32.mrf.mxu0
  %v7506 = vadd.f32 %v7404, %v7505
  %v7507 = vpop.f32.mrf.mxu0
  %v7508 = vadd.f32 %v7404, %v7507
  %7509 = vmatmul.bf16.gmra.mxu0 %v7440
  %v7510 = vpop.f32.mrf.mxu0
  %v7511 = vadd.f32 %v7404, %v7510
  %v7512 = vpop.f32.mrf.mxu0
  %v7513 = vadd.f32 %v7404, %v7512
  %7514 = vmatmul.bf16.gmra.mxu0 %v7443
  %v7515 = vpop.f32.mrf.mxu0
  %v7516 = vadd.f32 %v7404, %v7515
  %v7517 = vpop.f32.mrf.mxu0
  %v7518 = vadd.f32 %v7404, %v7517
  %7519 = vmatmul.bf16.gmra.mxu0 %v7446
  %v7520 = vpop.f32.mrf.mxu0
  %v7521 = vadd.f32 %v7404, %v7520
  %v7522 = vpop.f32.mrf.mxu0
  %v7523 = vadd.f32 %v7404, %v7522
  %7524 = vmatmul.bf16.gmra.mxu0 %v7449
  %v7525 = vpop.f32.mrf.mxu0
  %v7526 = vadd.f32 %v7404, %v7525
  %v7527 = vpop.f32.mrf.mxu0
  %v7528 = vadd.f32 %v7404, %v7527
  %7529 = vmatmul.bf16.gmra.mxu0 %v7452
  %v7530 = vpop.f32.mrf.mxu0
  %v7531 = vadd.f32 %v7404, %v7530
  %v7532 = vpop.f32.mrf.mxu0
  %v7533 = vadd.f32 %v7404, %v7532
  %7534 = vmatmul.bf16.gmra.mxu0 %v7455
  %v7535 = vpop.f32.mrf.mxu0
  %v7536 = vadd.f32 %v7404, %v7535
  %v7537 = vpop.f32.mrf.mxu0
  %v7538 = vadd.f32 %v7404, %v7537
  %7539 = vmatmul.bf16.gmra.mxu0 %v7458
  %v7540 = vpop.f32.mrf.mxu0
  %v7541 = vadd.f32 %v7404, %v7540
  %v7542 = vpop.f32.mrf.mxu0
  %v7543 = vadd.f32 %v7404, %v7542
  %7544 = vmatmul.bf16.gmra.mxu0 %v7461
  %v7545 = vpop.f32.mrf.mxu0
  %v7546 = vadd.f32 %v7404, %v7545
  %v7547 = vpop.f32.mrf.mxu0
  %v7548 = vadd.f32 %v7404, %v7547
  %7549 = vmatmul.bf16.gmra.mxu0 %v7464
  %v7550 = vpop.f32.mrf.mxu0
  %v7551 = vadd.f32 %v7404, %v7550
  %v7552 = vpop.f32.mrf.mxu0
  %v7553 = vadd.f32 %v7404, %v7552
  %7554 = vdwg.mxu0
  %v7555 = vmax.f32 %v7476, 0.0
  %v7556 = vmax.f32 %v7478, 0.0
  %v7557 = vmax.f32 %v7481, 0.0
  %v7558 = vmax.f32 %v7483, 0.0
  %v7559 = vmax.f32 %v7486, 0.0
  %v7560 = vmax.f32 %v7488, 0.0
  %v7561 = vmax.f32 %v7491, 0.0
  %v7562 = vmax.f32 %v7493, 0.0
  %v7563 = vmax.f32 %v7496, 0.0
  %v7564 = vmax.f32 %v7498, 0.0
  %v7565 = vmax.f32 %v7501, 0.0
  %v7566 = vmax.f32 %v7503, 0.0
  %v7567 = vmax.f32 %v7506, 0.0
  %v7568 = vmax.f32 %v7508, 0.0
  %v7569 = vmax.f32 %v7511, 0.0
  %v7570 = vmax.f32 %v7513, 0.0
  %v7571 = vmax.f32 %v7516, 0.0
  %v7572 = vmax.f32 %v7518, 0.0
  %v7573 = vmax.f32 %v7521, 0.0
  %v7574 = vmax.f32 %v7523, 0.0
  %v7575 = vmax.f32 %v7526, 0.0
  %v7576 = vmax.f32 %v7528, 0.0
  %v7577 = vmax.f32 %v7531, 0.0
  %v7578 = vmax.f32 %v7533, 0.0
  %v7579 = vmax.f32 %v7536, 0.0
  %v7580 = vmax.f32 %v7538, 0.0
  %v7581 = vmax.f32 %v7541, 0.0
  %v7582 = vmax.f32 %v7543, 0.0
  %v7583 = vmax.f32 %v7546, 0.0
  %v7584 = vmax.f32 %v7548, 0.0
  %v7585 = vmax.f32 %v7551, 0.0
  %v7586 = vmax.f32 %v7553, 0.0
  %v7587 = vmul.f32 %v7555, %v7555
  %v7588 = vmul.f32 %v7556, %v7556
  %v7589 = vmul.f32 %v7557, %v7557
  %v7590 = vmul.f32 %v7558, %v7558
  %v7591 = vmul.f32 %v7559, %v7559
  %v7592 = vmul.f32 %v7560, %v7560
  %v7593 = vmul.f32 %v7561, %v7561
  %v7594 = vmul.f32 %v7562, %v7562
  %v7595 = vmul.f32 %v7563, %v7563
  %v7596 = vmul.f32 %v7564, %v7564
  %v7597 = vmul.f32 %v7565, %v7565
  %v7598 = vmul.f32 %v7566, %v7566
  %v7599 = vmul.f32 %v7567, %v7567
  %v7600 = vmul.f32 %v7568, %v7568
  %v7601 = vmul.f32 %v7569, %v7569
  %v7602 = vmul.f32 %v7570, %v7570
  %v7603 = vmul.f32 %v7571, %v7571
  %v7604 = vmul.f32 %v7572, %v7572
  %v7605 = vmul.f32 %v7573, %v7573
  %v7606 = vmul.f32 %v7574, %v7574
  %v7607 = vmul.f32 %v7575, %v7575
  %v7608 = vmul.f32 %v7576, %v7576
  %v7609 = vmul.f32 %v7577, %v7577
  %v7610 = vmul.f32 %v7578, %v7578
  %v7611 = vmul.f32 %v7579, %v7579
  %v7612 = vmul.f32 %v7580, %v7580
  %v7613 = vmul.f32 %v7581, %v7581
  %v7614 = vmul.f32 %v7582, %v7582
  %v7615 = vmul.f32 %v7583, %v7583
  %v7616 = vmul.f32 %v7584, %v7584
  %v7617 = vmul.f32 %v7585, %v7585
  %v7618 = vmul.f32 %v7586, %v7586
  %v7619 = vpack.c.bf16 %v7588, %v7587
  %v7620 = vpack.c.bf16 %v7590, %v7589
  %v7621 = vpack.c.bf16 %v7592, %v7591
  %v7622 = vpack.c.bf16 %v7594, %v7593
  %v7623 = vpack.c.bf16 %v7596, %v7595
  %v7624 = vpack.c.bf16 %v7598, %v7597
  %v7625 = vpack.c.bf16 %v7600, %v7599
  %v7626 = vpack.c.bf16 %v7602, %v7601
  %v7627 = vpack.c.bf16 %v7604, %v7603
  %v7628 = vpack.c.bf16 %v7606, %v7605
  %v7629 = vpack.c.bf16 %v7608, %v7607
  %v7630 = vpack.c.bf16 %v7610, %v7609
  %v7631 = vpack.c.bf16 %v7612, %v7611
  %v7632 = vpack.c.bf16 %v7614, %v7613
  %v7633 = vpack.c.bf16 %v7616, %v7615
  %v7634 = vpack.c.bf16 %v7618, %v7617
  %v7635 = vld [vmem:[%s9] sm:$0xf]
  %v7636 = vld [vmem:[%s9 + $0x4] sm:$0xf]
  %v7637 = vld [vmem:[%s9 + $0x8] sm:$0xf]
  %v7638 = vld [vmem:[%s9 + $0xc] sm:$0xf]
  %v7639 = vld [vmem:[%s9 + $0x10] sm:$0xf]
  %v7640 = vld [vmem:[%s9 + $0x14] sm:$0xf]
  %v7641 = vld [vmem:[%s9 + $0x18] sm:$0xf]
  %v7642 = vld [vmem:[%s9 + $0x1c] sm:$0xf]
  %v7643 = vld [vmem:[%s10] sm:$0x1]
  %v7645 = vperm.slane %v7643, 0
  %v7655 = vunpack.c.l.b16 %v7635
  %v7656 = vunpack.c.l.b16 %v7636
  %v7657 = vunpack.c.l.b16 %v7637
  %v7658 = vunpack.c.l.b16 %v7638
  %v7659 = vunpack.c.l.b16 %v7639
  %v7660 = vunpack.c.l.b16 %v7640
  %v7661 = vunpack.c.l.b16 %v7641
  %v7662 = vunpack.c.l.b16 %v7642
  %v7663 = vpack.c.b16 %v7656, %v7655
  %v7664 = vpack.c.b16 %v7658, %v7657
  %v7665 = vpack.c.b16 %v7660, %v7659
  %v7666 = vpack.c.b16 %v7662, %v7661
  %v7672 = vsel %vm613, %v7619, 0
  %v7675 = vsel %vm613, %v7620, 0
  %v7678 = vsel %vm613, %v7621, 0
  %v7681 = vsel %vm613, %v7622, 0
  %v7684 = vsel %vm613, %v7623, 0
  %v7687 = vsel %vm613, %v7624, 0
  %v7690 = vsel %vm613, %v7625, 0
  %v7693 = vsel %vm613, %v7626, 0
  %v7696 = vsel %vm613, %v7627, 0
  %v7699 = vsel %vm613, %v7628, 0
  %v7702 = vsel %vm613, %v7629, 0
  %v7705 = vsel %vm613, %v7630, 0
  %v7708 = vsel %vm613, %v7631, 0
  %v7711 = vsel %vm613, %v7632, 0
  %v7714 = vsel %vm613, %v7633, 0
  %v7717 = vsel %vm613, %v7634, 0
  %7719 = vmatpush.bf16.msra.mxu0 0
  %7720 = vmatpush.bf16.msra.mxu0 0
  %7721 = vmatpush.bf16.msra.mxu0 0
  %7722 = vmatpush.bf16.msra.mxu0 0
  %7723 = vmatpush.bf16.msra.mxu0 %v7666
  %7724 = vmatpush.bf16.msra.mxu0 %v7665
  %7725 = vmatpush.bf16.msra.mxu0 %v7664
  %7726 = vmatpush.bf16.msra.mxu0 %v7663
  %7727 = vmatmul.bf16.gmra.mxu0 %v7672
  %v7728 = vpop.f32.mrf.mxu0
  %v7729 = vadd.f32 %v7645, %v7728
  %v7730 = vpop.f32.mrf.mxu0
  %v7731 = vadd.f32 %v7645, %v7730
  %7732 = vmatmul.bf16.gmra.mxu0 %v7675
  %v7733 = vpop.f32.mrf.mxu0
  %v7734 = vadd.f32 %v7645, %v7733
  %v7735 = vpop.f32.mrf.mxu0
  %v7736 = vadd.f32 %v7645, %v7735
  %7737 = vmatmul.bf16.gmra.mxu0 %v7678
  %v7738 = vpop.f32.mrf.mxu0
  %v7739 = vadd.f32 %v7645, %v7738
  %v7740 = vpop.f32.mrf.mxu0
  %v7741 = vadd.f32 %v7645, %v7740
  %7742 = vmatmul.bf16.gmra.mxu0 %v7681
  %v7743 = vpop.f32.mrf.mxu0
  %v7744 = vadd.f32 %v7645, %v7743
  %v7745 = vpop.f32.mrf.mxu0
  %v7746 = vadd.f32 %v7645, %v7745
  %7747 = vmatmul.bf16.gmra.mxu0 %v7684
  %v7748 = vpop.f32.mrf.mxu0
  %v7749 = vadd.f32 %v7645, %v7748
  %v7750 = vpop.f32.mrf.mxu0
  %v7751 = vadd.f32 %v7645, %v7750
  %7752 = vmatmul.bf16.gmra.mxu0 %v7687
  %v7753 = vpop.f32.mrf.mxu0
  %v7754 = vadd.f32 %v7645, %v7753
  %v7755 = vpop.f32.mrf.mxu0
  %v7756 = vadd.f32 %v7645, %v7755
  %7757 = vmatmul.bf16.gmra.mxu0 %v7690
  %v7758 = vpop.f32.mrf.mxu0
  %v7759 = vadd.f32 %v7645, %v7758
  %v7760 = vpop.f32.mrf.mxu0
  %v7761 = vadd.f32 %v7645, %v7760
  %7762 = vmatmul.bf16.gmra.mxu0 %v7693
  %v7763 = vpop.f32.mrf.mxu0
  %v7764 = vadd.f32 %v7645, %v7763
  %v7765 = vpop.f32.mrf.mxu0
  %v7766 = vadd.f32 %v7645, %v7765
  %7767 = vmatmul.bf16.gmra.mxu0 %v7696
  %v7768 = vpop.f32.mrf.mxu0
  %v7769 = vadd.f32 %v7645, %v7768
  %v7770 = vpop.f32.mrf.mxu0
  %v7771 = vadd.f32 %v7645, %v7770
  %7772 = vmatmul.bf16.gmra.mxu0 %v7699
  %v7773 = vpop.f32.mrf.mxu0
  %v7774 = vadd.f32 %v7645, %v7773
  %v7775 = vpop.f32.mrf.mxu0
  %v7776 = vadd.f32 %v7645, %v7775
  %7777 = vmatmul.bf16.gmra.mxu0 %v7702
  %v7778 = vpop.f32.mrf.mxu0
  %v7779 = vadd.f32 %v7645, %v7778
  %v7780 = vpop.f32.mrf.mxu0
  %v7781 = vadd.f32 %v7645, %v7780
  %7782 = vmatmul.bf16.gmra.mxu0 %v7705
  %v7783 = vpop.f32.mrf.mxu0
  %v7784 = vadd.f32 %v7645, %v7783
  %v7785 = vpop.f32.mrf.mxu0
  %v7786 = vadd.f32 %v7645, %v7785
  %7787 = vmatmul.bf16.gmra.mxu0 %v7708
  %v7788 = vpop.f32.mrf.mxu0
  %v7789 = vadd.f32 %v7645, %v7788
  %v7790 = vpop.f32.mrf.mxu0
  %v7791 = vadd.f32 %v7645, %v7790
  %7792 = vmatmul.bf16.gmra.mxu0 %v7711
  %v7793 = vpop.f32.mrf.mxu0
  %v7794 = vadd.f32 %v7645, %v7793
  %v7795 = vpop.f32.mrf.mxu0
  %v7796 = vadd.f32 %v7645, %v7795
  %7797 = vmatmul.bf16.gmra.mxu0 %v7714
  %v7798 = vpop.f32.mrf.mxu0
  %v7799 = vadd.f32 %v7645, %v7798
  %v7800 = vpop.f32.mrf.mxu0
  %v7801 = vadd.f32 %v7645, %v7800
  %7802 = vmatmul.bf16.gmra.mxu0 %v7717
  %v7803 = vpop.f32.mrf.mxu0
  %v7804 = vadd.f32 %v7645, %v7803
  %v7805 = vpop.f32.mrf.mxu0
  %v7806 = vadd.f32 %v7645, %v7805
  %7807 = vdwg.mxu0
  %v7808 = vadd.f32 %v7350, %v7729
  %v7809 = vadd.f32 %v7351, %v7731
  %v7810 = vadd.f32 %v7352, %v7734
  %v7811 = vadd.f32 %v7353, %v7736
  %v7812 = vadd.f32 %v7354, %v7739
  %v7813 = vadd.f32 %v7355, %v7741
  %v7814 = vadd.f32 %v7356, %v7744
  %v7815 = vadd.f32 %v7357, %v7746
  %v7816 = vadd.f32 %v7358, %v7749
  %v7817 = vadd.f32 %v7359, %v7751
  %v7818 = vadd.f32 %v7360, %v7754
  %v7819 = vadd.f32 %v7361, %v7756
  %v7820 = vadd.f32 %v7362, %v7759
  %v7821 = vadd.f32 %v7363, %v7761
  %v7822 = vadd.f32 %v7364, %v7764
  %v7823 = vadd.f32 %v7365, %v7766
  %v7824 = vadd.f32 %v7366, %v7769
  %v7825 = vadd.f32 %v7367, %v7771
  %v7826 = vadd.f32 %v7368, %v7774
  %v7827 = vadd.f32 %v7369, %v7776
  %v7828 = vadd.f32 %v7370, %v7779
  %v7829 = vadd.f32 %v7371, %v7781
  %v7830 = vadd.f32 %v7372, %v7784
  %v7831 = vadd.f32 %v7373, %v7786
  %v7832 = vadd.f32 %v7374, %v7789
  %v7833 = vadd.f32 %v7375, %v7791
  %v7834 = vadd.f32 %v7376, %v7794
  %v7835 = vadd.f32 %v7377, %v7796
  %v7836 = vadd.f32 %v7378, %v7799
  %v7837 = vadd.f32 %v7379, %v7801
  %v7838 = vadd.f32 %v7380, %v7804
  %v7839 = vadd.f32 %v7381, %v7806
  %v7840 = vld [vmem:[%s11] sm:$0x1]
  %v7841 = vld [vmem:[%s12] sm:$0x1]
  %v7842 = vsel %vm113, %v7808, 0.0
  %7843 = vadd.xlane.f32.xlu0 %v7842
  %v7844 = vpop.xlane.xlu0 %7843
  %v7845 = vsel %vm113, %v7809, 0.0
  %7846 = vadd.xlane.f32.xlu0 %v7845
  %v7847 = vpop.xlane.xlu0 %7846
  %v7848 = vsel %vm113, %v7810, 0.0
  %7849 = vadd.xlane.f32.xlu0 %v7848
  %v7850 = vpop.xlane.xlu0 %7849
  %v7851 = vsel %vm113, %v7811, 0.0
  %7852 = vadd.xlane.f32.xlu0 %v7851
  %v7853 = vpop.xlane.xlu0 %7852
  %v7854 = vsel %vm113, %v7812, 0.0
  %7855 = vadd.xlane.f32.xlu0 %v7854
  %v7856 = vpop.xlane.xlu0 %7855
  %v7857 = vsel %vm113, %v7813, 0.0
  %7858 = vadd.xlane.f32.xlu0 %v7857
  %v7859 = vpop.xlane.xlu0 %7858
  %v7860 = vsel %vm113, %v7814, 0.0
  %7861 = vadd.xlane.f32.xlu0 %v7860
  %v7862 = vpop.xlane.xlu0 %7861
  %v7863 = vsel %vm113, %v7815, 0.0
  %7864 = vadd.xlane.f32.xlu0 %v7863
  %v7865 = vpop.xlane.xlu0 %7864
  %v7866 = vsel %vm113, %v7816, 0.0
  %7867 = vadd.xlane.f32.xlu0 %v7866
  %v7868 = vpop.xlane.xlu0 %7867
  %v7869 = vsel %vm113, %v7817, 0.0
  %7870 = vadd.xlane.f32.xlu0 %v7869
  %v7871 = vpop.xlane.xlu0 %7870
  %v7872 = vsel %vm113, %v7818, 0.0
  %7873 = vadd.xlane.f32.xlu0 %v7872
  %v7874 = vpop.xlane.xlu0 %7873
  %v7875 = vsel %vm113, %v7819, 0.0
  %7876 = vadd.xlane.f32.xlu0 %v7875
  %v7877 = vpop.xlane.xlu0 %7876
  %v7878 = vsel %vm113, %v7820, 0.0
  %7879 = vadd.xlane.f32.xlu0 %v7878
  %v7880 = vpop.xlane.xlu0 %7879
  %v7881 = vsel %vm113, %v7821, 0.0
  %7882 = vadd.xlane.f32.xlu0 %v7881
  %v7883 = vpop.xlane.xlu0 %7882
  %v7884 = vsel %vm113, %v7822, 0.0
  %7885 = vadd.xlane.f32.xlu0 %v7884
  %v7886 = vpop.xlane.xlu0 %7885
  %v7887 = vsel %vm113, %v7823, 0.0
  %7888 = vadd.xlane.f32.xlu0 %v7887
  %v7889 = vpop.xlane.xlu0 %7888
  %v7890 = vsel %vm113, %v7824, 0.0
  %7891 = vadd.xlane.f32.xlu0 %v7890
  %v7892 = vpop.xlane.xlu0 %7891
  %v7893 = vsel %vm113, %v7825, 0.0
  %7894 = vadd.xlane.f32.xlu0 %v7893
  %v7895 = vpop.xlane.xlu0 %7894
  %v7896 = vsel %vm113, %v7826, 0.0
  %7897 = vadd.xlane.f32.xlu0 %v7896
  %v7898 = vpop.xlane.xlu0 %7897
  %v7899 = vsel %vm113, %v7827, 0.0
  %7900 = vadd.xlane.f32.xlu0 %v7899
  %v7901 = vpop.xlane.xlu0 %7900
  %v7902 = vsel %vm113, %v7828, 0.0
  %7903 = vadd.xlane.f32.xlu0 %v7902
  %v7904 = vpop.xlane.xlu0 %7903
  %v7905 = vsel %vm113, %v7829, 0.0
  %7906 = vadd.xlane.f32.xlu0 %v7905
  %v7907 = vpop.xlane.xlu0 %7906
  %v7908 = vsel %vm113, %v7830, 0.0
  %7909 = vadd.xlane.f32.xlu0 %v7908
  %v7910 = vpop.xlane.xlu0 %7909
  %v7911 = vsel %vm113, %v7831, 0.0
  %7912 = vadd.xlane.f32.xlu0 %v7911
  %v7913 = vpop.xlane.xlu0 %7912
  %v7914 = vsel %vm113, %v7832, 0.0
  %7915 = vadd.xlane.f32.xlu0 %v7914
  %v7916 = vpop.xlane.xlu0 %7915
  %v7917 = vsel %vm113, %v7833, 0.0
  %7918 = vadd.xlane.f32.xlu0 %v7917
  %v7919 = vpop.xlane.xlu0 %7918
  %v7920 = vsel %vm113, %v7834, 0.0
  %7921 = vadd.xlane.f32.xlu0 %v7920
  %v7922 = vpop.xlane.xlu0 %7921
  %v7923 = vsel %vm113, %v7835, 0.0
  %7924 = vadd.xlane.f32.xlu0 %v7923
  %v7925 = vpop.xlane.xlu0 %7924
  %v7926 = vsel %vm113, %v7836, 0.0
  %7927 = vadd.xlane.f32.xlu0 %v7926
  %v7928 = vpop.xlane.xlu0 %7927
  %v7929 = vsel %vm113, %v7837, 0.0
  %7930 = vadd.xlane.f32.xlu0 %v7929
  %v7931 = vpop.xlane.xlu0 %7930
  %v7932 = vsel %vm113, %v7838, 0.0
  %7933 = vadd.xlane.f32.xlu0 %v7932
  %v7934 = vpop.xlane.xlu0 %7933
  %v7935 = vsel %vm113, %v7839, 0.0
  %7936 = vadd.xlane.f32.xlu0 %v7935
  %v7937 = vpop.xlane.xlu0 %7936
  %v7938 = vmul.f32 %v7844, %v6703
  %v7939 = vmul.f32 %v7847, %v6703
  %v7940 = vmul.f32 %v7850, %v6703
  %v7941 = vmul.f32 %v7853, %v6703
  %v7942 = vmul.f32 %v7856, %v6703
  %v7943 = vmul.f32 %v7859, %v6703
  %v7944 = vmul.f32 %v7862, %v6703
  %v7945 = vmul.f32 %v7865, %v6703
  %v7946 = vmul.f32 %v7868, %v6703
  %v7947 = vmul.f32 %v7871, %v6703
  %v7948 = vmul.f32 %v7874, %v6703
  %v7949 = vmul.f32 %v7877, %v6703
  %v7950 = vmul.f32 %v7880, %v6703
  %v7951 = vmul.f32 %v7883, %v6703
  %v7952 = vmul.f32 %v7886, %v6703
  %v7953 = vmul.f32 %v7889, %v6703
  %v7954 = vmul.f32 %v7892, %v6703
  %v7955 = vmul.f32 %v7895, %v6703
  %v7956 = vmul.f32 %v7898, %v6703
  %v7957 = vmul.f32 %v7901, %v6703
  %v7958 = vmul.f32 %v7904, %v6703
  %v7959 = vmul.f32 %v7907, %v6703
  %v7960 = vmul.f32 %v7910, %v6703
  %v7961 = vmul.f32 %v7913, %v6703
  %v7962 = vmul.f32 %v7916, %v6703
  %v7963 = vmul.f32 %v7919, %v6703
  %v7964 = vmul.f32 %v7922, %v6703
  %v7965 = vmul.f32 %v7925, %v6703
  %v7966 = vmul.f32 %v7928, %v6703
  %v7967 = vmul.f32 %v7931, %v6703
  %v7968 = vmul.f32 %v7934, %v6703
  %v7969 = vmul.f32 %v7937, %v6703
  %v7970 = vsub.f32 %v7808, %v7938
  %v7971 = vsub.f32 %v7809, %v7939
  %v7972 = vsub.f32 %v7810, %v7940
  %v7973 = vsub.f32 %v7811, %v7941
  %v7974 = vsub.f32 %v7812, %v7942
  %v7975 = vsub.f32 %v7813, %v7943
  %v7976 = vsub.f32 %v7814, %v7944
  %v7977 = vsub.f32 %v7815, %v7945
  %v7978 = vsub.f32 %v7816, %v7946
  %v7979 = vsub.f32 %v7817, %v7947
  %v7980 = vsub.f32 %v7818, %v7948
  %v7981 = vsub.f32 %v7819, %v7949
  %v7982 = vsub.f32 %v7820, %v7950
  %v7983 = vsub.f32 %v7821, %v7951
  %v7984 = vsub.f32 %v7822, %v7952
  %v7985 = vsub.f32 %v7823, %v7953
  %v7986 = vsub.f32 %v7824, %v7954
  %v7987 = vsub.f32 %v7825, %v7955
  %v7988 = vsub.f32 %v7826, %v7956
  %v7989 = vsub.f32 %v7827, %v7957
  %v7990 = vsub.f32 %v7828, %v7958
  %v7991 = vsub.f32 %v7829, %v7959
  %v7992 = vsub.f32 %v7830, %v7960
  %v7993 = vsub.f32 %v7831, %v7961
  %v7994 = vsub.f32 %v7832, %v7962
  %v7995 = vsub.f32 %v7833, %v7963
  %v7996 = vsub.f32 %v7834, %v7964
  %v7997 = vsub.f32 %v7835, %v7965
  %v7998 = vsub.f32 %v7836, %v7966
  %v7999 = vsub.f32 %v7837, %v7967
  %v8000 = vsub.f32 %v7838, %v7968
  %v8001 = vsub.f32 %v7839, %v7969
  %v8002 = vmul.f32 %v7970, %v7970
  %v8003 = vmul.f32 %v7971, %v7971
  %v8004 = vmul.f32 %v7972, %v7972
  %v8005 = vmul.f32 %v7973, %v7973
  %v8006 = vmul.f32 %v7974, %v7974
  %v8007 = vmul.f32 %v7975, %v7975
  %v8008 = vmul.f32 %v7976, %v7976
  %v8009 = vmul.f32 %v7977, %v7977
  %v8010 = vmul.f32 %v7978, %v7978
  %v8011 = vmul.f32 %v7979, %v7979
  %v8012 = vmul.f32 %v7980, %v7980
  %v8013 = vmul.f32 %v7981, %v7981
  %v8014 = vmul.f32 %v7982, %v7982
  %v8015 = vmul.f32 %v7983, %v7983
  %v8016 = vmul.f32 %v7984, %v7984
  %v8017 = vmul.f32 %v7985, %v7985
  %v8018 = vmul.f32 %v7986, %v7986
  %v8019 = vmul.f32 %v7987, %v7987
  %v8020 = vmul.f32 %v7988, %v7988
  %v8021 = vmul.f32 %v7989, %v7989
  %v8022 = vmul.f32 %v7990, %v7990
  %v8023 = vmul.f32 %v7991, %v7991
  %v8024 = vmul.f32 %v7992, %v7992
  %v8025 = vmul.f32 %v7993, %v7993
  %v8026 = vmul.f32 %v7994, %v7994
  %v8027 = vmul.f32 %v7995, %v7995
  %v8028 = vmul.f32 %v7996, %v7996
  %v8029 = vmul.f32 %v7997, %v7997
  %v8030 = vmul.f32 %v7998, %v7998
  %v8031 = vmul.f32 %v7999, %v7999
  %v8032 = vmul.f32 %v8000, %v8000
  %v8033 = vmul.f32 %v8001, %v8001
  %v8034 = vsel %vm113, %v8002, 0.0
  %8035 = vadd.xlane.f32.xlu0 %v8034
  %v8036 = vpop.xlane.xlu0 %8035
  %v8037 = vsel %vm113, %v8003, 0.0
  %8038 = vadd.xlane.f32.xlu0 %v8037
  %v8039 = vpop.xlane.xlu0 %8038
  %v8040 = vsel %vm113, %v8004, 0.0
  %8041 = vadd.xlane.f32.xlu0 %v8040
  %v8042 = vpop.xlane.xlu0 %8041
  %v8043 = vsel %vm113, %v8005, 0.0
  %8044 = vadd.xlane.f32.xlu0 %v8043
  %v8045 = vpop.xlane.xlu0 %8044
  %v8046 = vsel %vm113, %v8006, 0.0
  %8047 = vadd.xlane.f32.xlu0 %v8046
  %v8048 = vpop.xlane.xlu0 %8047
  %v8049 = vsel %vm113, %v8007, 0.0
  %8050 = vadd.xlane.f32.xlu0 %v8049
  %v8051 = vpop.xlane.xlu0 %8050
  %v8052 = vsel %vm113, %v8008, 0.0
  %8053 = vadd.xlane.f32.xlu0 %v8052
  %v8054 = vpop.xlane.xlu0 %8053
  %v8055 = vsel %vm113, %v8009, 0.0
  %8056 = vadd.xlane.f32.xlu0 %v8055
  %v8057 = vpop.xlane.xlu0 %8056
  %v8058 = vsel %vm113, %v8010, 0.0
  %8059 = vadd.xlane.f32.xlu0 %v8058
  %v8060 = vpop.xlane.xlu0 %8059
  %v8061 = vsel %vm113, %v8011, 0.0
  %8062 = vadd.xlane.f32.xlu0 %v8061
  %v8063 = vpop.xlane.xlu0 %8062
  %v8064 = vsel %vm113, %v8012, 0.0
  %8065 = vadd.xlane.f32.xlu0 %v8064
  %v8066 = vpop.xlane.xlu0 %8065
  %v8067 = vsel %vm113, %v8013, 0.0
  %8068 = vadd.xlane.f32.xlu0 %v8067
  %v8069 = vpop.xlane.xlu0 %8068
  %v8070 = vsel %vm113, %v8014, 0.0
  %8071 = vadd.xlane.f32.xlu0 %v8070
  %v8072 = vpop.xlane.xlu0 %8071
  %v8073 = vsel %vm113, %v8015, 0.0
  %8074 = vadd.xlane.f32.xlu0 %v8073
  %v8075 = vpop.xlane.xlu0 %8074
  %v8076 = vsel %vm113, %v8016, 0.0
  %8077 = vadd.xlane.f32.xlu0 %v8076
  %v8078 = vpop.xlane.xlu0 %8077
  %v8079 = vsel %vm113, %v8017, 0.0
  %8080 = vadd.xlane.f32.xlu0 %v8079
  %v8081 = vpop.xlane.xlu0 %8080
  %v8082 = vsel %vm113, %v8018, 0.0
  %8083 = vadd.xlane.f32.xlu0 %v8082
  %v8084 = vpop.xlane.xlu0 %8083
  %v8085 = vsel %vm113, %v8019, 0.0
  %8086 = vadd.xlane.f32.xlu0 %v8085
  %v8087 = vpop.xlane.xlu0 %8086
  %v8088 = vsel %vm113, %v8020, 0.0
  %8089 = vadd.xlane.f32.xlu0 %v8088
  %v8090 = vpop.xlane.xlu0 %8089
  %v8091 = vsel %vm113, %v8021, 0.0
  %8092 = vadd.xlane.f32.xlu0 %v8091
  %v8093 = vpop.xlane.xlu0 %8092
  %v8094 = vsel %vm113, %v8022, 0.0
  %8095 = vadd.xlane.f32.xlu0 %v8094
  %v8096 = vpop.xlane.xlu0 %8095
  %v8097 = vsel %vm113, %v8023, 0.0
  %8098 = vadd.xlane.f32.xlu0 %v8097
  %v8099 = vpop.xlane.xlu0 %8098
  %v8100 = vsel %vm113, %v8024, 0.0
  %8101 = vadd.xlane.f32.xlu0 %v8100
  %v8102 = vpop.xlane.xlu0 %8101
  %v8103 = vsel %vm113, %v8025, 0.0
  %8104 = vadd.xlane.f32.xlu0 %v8103
  %v8105 = vpop.xlane.xlu0 %8104
  %v8106 = vsel %vm113, %v8026, 0.0
  %8107 = vadd.xlane.f32.xlu0 %v8106
  %v8108 = vpop.xlane.xlu0 %8107
  %v8109 = vsel %vm113, %v8027, 0.0
  %8110 = vadd.xlane.f32.xlu0 %v8109
  %v8111 = vpop.xlane.xlu0 %8110
  %v8112 = vsel %vm113, %v8028, 0.0
  %8113 = vadd.xlane.f32.xlu0 %v8112
  %v8114 = vpop.xlane.xlu0 %8113
  %v8115 = vsel %vm113, %v8029, 0.0
  %8116 = vadd.xlane.f32.xlu0 %v8115
  %v8117 = vpop.xlane.xlu0 %8116
  %v8118 = vsel %vm113, %v8030, 0.0
  %8119 = vadd.xlane.f32.xlu0 %v8118
  %v8120 = vpop.xlane.xlu0 %8119
  %v8121 = vsel %vm113, %v8031, 0.0
  %8122 = vadd.xlane.f32.xlu0 %v8121
  %v8123 = vpop.xlane.xlu0 %8122
  %v8124 = vsel %vm113, %v8032, 0.0
  %8125 = vadd.xlane.f32.xlu0 %v8124
  %v8126 = vpop.xlane.xlu0 %8125
  %v8127 = vsel %vm113, %v8033, 0.0
  %8128 = vadd.xlane.f32.xlu0 %v8127
  %v8129 = vpop.xlane.xlu0 %8128
  %v8130 = vmul.f32 %v8036, %v6703
  %v8131 = vmul.f32 %v8039, %v6703
  %v8132 = vmul.f32 %v8042, %v6703
  %v8133 = vmul.f32 %v8045, %v6703
  %v8134 = vmul.f32 %v8048, %v6703
  %v8135 = vmul.f32 %v8051, %v6703
  %v8136 = vmul.f32 %v8054, %v6703
  %v8137 = vmul.f32 %v8057, %v6703
  %v8138 = vmul.f32 %v8060, %v6703
  %v8139 = vmul.f32 %v8063, %v6703
  %v8140 = vmul.f32 %v8066, %v6703
  %v8141 = vmul.f32 %v8069, %v6703
  %v8142 = vmul.f32 %v8072, %v6703
  %v8143 = vmul.f32 %v8075, %v6703
  %v8144 = vmul.f32 %v8078, %v6703
  %v8145 = vmul.f32 %v8081, %v6703
  %v8146 = vmul.f32 %v8084, %v6703
  %v8147 = vmul.f32 %v8087, %v6703
  %v8148 = vmul.f32 %v8090, %v6703
  %v8149 = vmul.f32 %v8093, %v6703
  %v8150 = vmul.f32 %v8096, %v6703
  %v8151 = vmul.f32 %v8099, %v6703
  %v8152 = vmul.f32 %v8102, %v6703
  %v8153 = vmul.f32 %v8105, %v6703
  %v8154 = vmul.f32 %v8108, %v6703
  %v8155 = vmul.f32 %v8111, %v6703
  %v8156 = vmul.f32 %v8114, %v6703
  %v8157 = vmul.f32 %v8117, %v6703
  %v8158 = vmul.f32 %v8120, %v6703
  %v8159 = vmul.f32 %v8123, %v6703
  %v8160 = vmul.f32 %v8126, %v6703
  %v8161 = vmul.f32 %v8129, %v6703
  %v8162 = vadd.f32 %v8130, 1e-05
  %v8163 = vadd.f32 %v8131, 1e-05
  %v8164 = vadd.f32 %v8132, 1e-05
  %v8165 = vadd.f32 %v8133, 1e-05
  %v8166 = vadd.f32 %v8134, 1e-05
  %v8167 = vadd.f32 %v8135, 1e-05
  %v8168 = vadd.f32 %v8136, 1e-05
  %v8169 = vadd.f32 %v8137, 1e-05
  %v8170 = vadd.f32 %v8138, 1e-05
  %v8171 = vadd.f32 %v8139, 1e-05
  %v8172 = vadd.f32 %v8140, 1e-05
  %v8173 = vadd.f32 %v8141, 1e-05
  %v8174 = vadd.f32 %v8142, 1e-05
  %v8175 = vadd.f32 %v8143, 1e-05
  %v8176 = vadd.f32 %v8144, 1e-05
  %v8177 = vadd.f32 %v8145, 1e-05
  %v8178 = vadd.f32 %v8146, 1e-05
  %v8179 = vadd.f32 %v8147, 1e-05
  %v8180 = vadd.f32 %v8148, 1e-05
  %v8181 = vadd.f32 %v8149, 1e-05
  %v8182 = vadd.f32 %v8150, 1e-05
  %v8183 = vadd.f32 %v8151, 1e-05
  %v8184 = vadd.f32 %v8152, 1e-05
  %v8185 = vadd.f32 %v8153, 1e-05
  %v8186 = vadd.f32 %v8154, 1e-05
  %v8187 = vadd.f32 %v8155, 1e-05
  %v8188 = vadd.f32 %v8156, 1e-05
  %v8189 = vadd.f32 %v8157, 1e-05
  %v8190 = vadd.f32 %v8158, 1e-05
  %v8191 = vadd.f32 %v8159, 1e-05
  %v8192 = vadd.f32 %v8160, 1e-05
  %v8193 = vadd.f32 %v8161, 1e-05
  %v8194 = vrsqrt.pop %v8162
  %v8195 = vmul.f32 %v8194, %v8162
  %v8196 = vmul.f32 %v8195, %v8194
  %v8197 = vmul.f32 0.5, %v8196
  %v8198 = vsub.f32 1.5, %v8197
  %v8199 = vmul.f32 %v8194, %v8198
  %vm8200 = vweird.f32 %v8162
  %vm8201 = vweird.f32 %v8194
  %vm8202 = vmor %vm8200, %vm8201
  %v8203 = vsel %vm8202, %v8194, %v8199
  %v8204 = vrsqrt.pop %v8163
  %v8205 = vmul.f32 %v8204, %v8163
  %v8206 = vmul.f32 %v8205, %v8204
  %v8207 = vmul.f32 0.5, %v8206
  %v8208 = vsub.f32 1.5, %v8207
  %v8209 = vmul.f32 %v8204, %v8208
  %vm8210 = vweird.f32 %v8163
  %vm8211 = vweird.f32 %v8204
  %vm8212 = vmor %vm8210, %vm8211
  %v8213 = vsel %vm8212, %v8204, %v8209
  %v8214 = vrsqrt.pop %v8164
  %v8215 = vmul.f32 %v8214, %v8164
  %v8216 = vmul.f32 %v8215, %v8214
  %v8217 = vmul.f32 0.5, %v8216
  %v8218 = vsub.f32 1.5, %v8217
  %v8219 = vmul.f32 %v8214, %v8218
  %vm8220 = vweird.f32 %v8164
  %vm8221 = vweird.f32 %v8214
  %vm8222 = vmor %vm8220, %vm8221
  %v8223 = vsel %vm8222, %v8214, %v8219
  %v8224 = vrsqrt.pop %v8165
  %v8225 = vmul.f32 %v8224, %v8165
  %v8226 = vmul.f32 %v8225, %v8224
  %v8227 = vmul.f32 0.5, %v8226
  %v8228 = vsub.f32 1.5, %v8227
  %v8229 = vmul.f32 %v8224, %v8228
  %vm8230 = vweird.f32 %v8165
  %vm8231 = vweird.f32 %v8224
  %vm8232 = vmor %vm8230, %vm8231
  %v8233 = vsel %vm8232, %v8224, %v8229
  %v8234 = vrsqrt.pop %v8166
  %v8235 = vmul.f32 %v8234, %v8166
  %v8236 = vmul.f32 %v8235, %v8234
  %v8237 = vmul.f32 0.5, %v8236
  %v8238 = vsub.f32 1.5, %v8237
  %v8239 = vmul.f32 %v8234, %v8238
  %vm8240 = vweird.f32 %v8166
  %vm8241 = vweird.f32 %v8234
  %vm8242 = vmor %vm8240, %vm8241
  %v8243 = vsel %vm8242, %v8234, %v8239
  %v8244 = vrsqrt.pop %v8167
  %v8245 = vmul.f32 %v8244, %v8167
  %v8246 = vmul.f32 %v8245, %v8244
  %v8247 = vmul.f32 0.5, %v8246
  %v8248 = vsub.f32 1.5, %v8247
  %v8249 = vmul.f32 %v8244, %v8248
  %vm8250 = vweird.f32 %v8167
  %vm8251 = vweird.f32 %v8244
  %vm8252 = vmor %vm8250, %vm8251
  %v8253 = vsel %vm8252, %v8244, %v8249
  %v8254 = vrsqrt.pop %v8168
  %v8255 = vmul.f32 %v8254, %v8168
  %v8256 = vmul.f32 %v8255, %v8254
  %v8257 = vmul.f32 0.5, %v8256
  %v8258 = vsub.f32 1.5, %v8257
  %v8259 = vmul.f32 %v8254, %v8258
  %vm8260 = vweird.f32 %v8168
  %vm8261 = vweird.f32 %v8254
  %vm8262 = vmor %vm8260, %vm8261
  %v8263 = vsel %vm8262, %v8254, %v8259
  %v8264 = vrsqrt.pop %v8169
  %v8265 = vmul.f32 %v8264, %v8169
  %v8266 = vmul.f32 %v8265, %v8264
  %v8267 = vmul.f32 0.5, %v8266
  %v8268 = vsub.f32 1.5, %v8267
  %v8269 = vmul.f32 %v8264, %v8268
  %vm8270 = vweird.f32 %v8169
  %vm8271 = vweird.f32 %v8264
  %vm8272 = vmor %vm8270, %vm8271
  %v8273 = vsel %vm8272, %v8264, %v8269
  %v8274 = vrsqrt.pop %v8170
  %v8275 = vmul.f32 %v8274, %v8170
  %v8276 = vmul.f32 %v8275, %v8274
  %v8277 = vmul.f32 0.5, %v8276
  %v8278 = vsub.f32 1.5, %v8277
  %v8279 = vmul.f32 %v8274, %v8278
  %vm8280 = vweird.f32 %v8170
  %vm8281 = vweird.f32 %v8274
  %vm8282 = vmor %vm8280, %vm8281
  %v8283 = vsel %vm8282, %v8274, %v8279
  %v8284 = vrsqrt.pop %v8171
  %v8285 = vmul.f32 %v8284, %v8171
  %v8286 = vmul.f32 %v8285, %v8284
  %v8287 = vmul.f32 0.5, %v8286
  %v8288 = vsub.f32 1.5, %v8287
  %v8289 = vmul.f32 %v8284, %v8288
  %vm8290 = vweird.f32 %v8171
  %vm8291 = vweird.f32 %v8284
  %vm8292 = vmor %vm8290, %vm8291
  %v8293 = vsel %vm8292, %v8284, %v8289
  %v8294 = vrsqrt.pop %v8172
  %v8295 = vmul.f32 %v8294, %v8172
  %v8296 = vmul.f32 %v8295, %v8294
  %v8297 = vmul.f32 0.5, %v8296
  %v8298 = vsub.f32 1.5, %v8297
  %v8299 = vmul.f32 %v8294, %v8298
  %vm8300 = vweird.f32 %v8172
  %vm8301 = vweird.f32 %v8294
  %vm8302 = vmor %vm8300, %vm8301
  %v8303 = vsel %vm8302, %v8294, %v8299
  %v8304 = vrsqrt.pop %v8173
  %v8305 = vmul.f32 %v8304, %v8173
  %v8306 = vmul.f32 %v8305, %v8304
  %v8307 = vmul.f32 0.5, %v8306
  %v8308 = vsub.f32 1.5, %v8307
  %v8309 = vmul.f32 %v8304, %v8308
  %vm8310 = vweird.f32 %v8173
  %vm8311 = vweird.f32 %v8304
  %vm8312 = vmor %vm8310, %vm8311
  %v8313 = vsel %vm8312, %v8304, %v8309
  %v8314 = vrsqrt.pop %v8174
  %v8315 = vmul.f32 %v8314, %v8174
  %v8316 = vmul.f32 %v8315, %v8314
  %v8317 = vmul.f32 0.5, %v8316
  %v8318 = vsub.f32 1.5, %v8317
  %v8319 = vmul.f32 %v8314, %v8318
  %vm8320 = vweird.f32 %v8174
  %vm8321 = vweird.f32 %v8314
  %vm8322 = vmor %vm8320, %vm8321
  %v8323 = vsel %vm8322, %v8314, %v8319
  %v8324 = vrsqrt.pop %v8175
  %v8325 = vmul.f32 %v8324, %v8175
  %v8326 = vmul.f32 %v8325, %v8324
  %v8327 = vmul.f32 0.5, %v8326
  %v8328 = vsub.f32 1.5, %v8327
  %v8329 = vmul.f32 %v8324, %v8328
  %vm8330 = vweird.f32 %v8175
  %vm8331 = vweird.f32 %v8324
  %vm8332 = vmor %vm8330, %vm8331
  %v8333 = vsel %vm8332, %v8324, %v8329
  %v8334 = vrsqrt.pop %v8176
  %v8335 = vmul.f32 %v8334, %v8176
  %v8336 = vmul.f32 %v8335, %v8334
  %v8337 = vmul.f32 0.5, %v8336
  %v8338 = vsub.f32 1.5, %v8337
  %v8339 = vmul.f32 %v8334, %v8338
  %vm8340 = vweird.f32 %v8176
  %vm8341 = vweird.f32 %v8334
  %vm8342 = vmor %vm8340, %vm8341
  %v8343 = vsel %vm8342, %v8334, %v8339
  %v8344 = vrsqrt.pop %v8177
  %v8345 = vmul.f32 %v8344, %v8177
  %v8346 = vmul.f32 %v8345, %v8344
  %v8347 = vmul.f32 0.5, %v8346
  %v8348 = vsub.f32 1.5, %v8347
  %v8349 = vmul.f32 %v8344, %v8348
  %vm8350 = vweird.f32 %v8177
  %vm8351 = vweird.f32 %v8344
  %vm8352 = vmor %vm8350, %vm8351
  %v8353 = vsel %vm8352, %v8344, %v8349
  %v8354 = vrsqrt.pop %v8178
  %v8355 = vmul.f32 %v8354, %v8178
  %v8356 = vmul.f32 %v8355, %v8354
  %v8357 = vmul.f32 0.5, %v8356
  %v8358 = vsub.f32 1.5, %v8357
  %v8359 = vmul.f32 %v8354, %v8358
  %vm8360 = vweird.f32 %v8178
  %vm8361 = vweird.f32 %v8354
  %vm8362 = vmor %vm8360, %vm8361
  %v8363 = vsel %vm8362, %v8354, %v8359
  %v8364 = vrsqrt.pop %v8179
  %v8365 = vmul.f32 %v8364, %v8179
  %v8366 = vmul.f32 %v8365, %v8364
  %v8367 = vmul.f32 0.5, %v8366
  %v8368 = vsub.f32 1.5, %v8367
  %v8369 = vmul.f32 %v8364, %v8368
  %vm8370 = vweird.f32 %v8179
  %vm8371 = vweird.f32 %v8364
  %vm8372 = vmor %vm8370, %vm8371
  %v8373 = vsel %vm8372, %v8364, %v8369
  %v8374 = vrsqrt.pop %v8180
  %v8375 = vmul.f32 %v8374, %v8180
  %v8376 = vmul.f32 %v8375, %v8374
  %v8377 = vmul.f32 0.5, %v8376
  %v8378 = vsub.f32 1.5, %v8377
  %v8379 = vmul.f32 %v8374, %v8378
  %vm8380 = vweird.f32 %v8180
  %vm8381 = vweird.f32 %v8374
  %vm8382 = vmor %vm8380, %vm8381
  %v8383 = vsel %vm8382, %v8374, %v8379
  %v8384 = vrsqrt.pop %v8181
  %v8385 = vmul.f32 %v8384, %v8181
  %v8386 = vmul.f32 %v8385, %v8384
  %v8387 = vmul.f32 0.5, %v8386
  %v8388 = vsub.f32 1.5, %v8387
  %v8389 = vmul.f32 %v8384, %v8388
  %vm8390 = vweird.f32 %v8181
  %vm8391 = vweird.f32 %v8384
  %vm8392 = vmor %vm8390, %vm8391
  %v8393 = vsel %vm8392, %v8384, %v8389
  %v8394 = vrsqrt.pop %v8182
  %v8395 = vmul.f32 %v8394, %v8182
  %v8396 = vmul.f32 %v8395, %v8394
  %v8397 = vmul.f32 0.5, %v8396
  %v8398 = vsub.f32 1.5, %v8397
  %v8399 = vmul.f32 %v8394, %v8398
  %vm8400 = vweird.f32 %v8182
  %vm8401 = vweird.f32 %v8394
  %vm8402 = vmor %vm8400, %vm8401
  %v8403 = vsel %vm8402, %v8394, %v8399
  %v8404 = vrsqrt.pop %v8183
  %v8405 = vmul.f32 %v8404, %v8183
  %v8406 = vmul.f32 %v8405, %v8404
  %v8407 = vmul.f32 0.5, %v8406
  %v8408 = vsub.f32 1.5, %v8407
  %v8409 = vmul.f32 %v8404, %v8408
  %vm8410 = vweird.f32 %v8183
  %vm8411 = vweird.f32 %v8404
  %vm8412 = vmor %vm8410, %vm8411
  %v8413 = vsel %vm8412, %v8404, %v8409
  %v8414 = vrsqrt.pop %v8184
  %v8415 = vmul.f32 %v8414, %v8184
  %v8416 = vmul.f32 %v8415, %v8414
  %v8417 = vmul.f32 0.5, %v8416
  %v8418 = vsub.f32 1.5, %v8417
  %v8419 = vmul.f32 %v8414, %v8418
  %vm8420 = vweird.f32 %v8184
  %vm8421 = vweird.f32 %v8414
  %vm8422 = vmor %vm8420, %vm8421
  %v8423 = vsel %vm8422, %v8414, %v8419
  %v8424 = vrsqrt.pop %v8185
  %v8425 = vmul.f32 %v8424, %v8185
  %v8426 = vmul.f32 %v8425, %v8424
  %v8427 = vmul.f32 0.5, %v8426
  %v8428 = vsub.f32 1.5, %v8427
  %v8429 = vmul.f32 %v8424, %v8428
  %vm8430 = vweird.f32 %v8185
  %vm8431 = vweird.f32 %v8424
  %vm8432 = vmor %vm8430, %vm8431
  %v8433 = vsel %vm8432, %v8424, %v8429
  %v8434 = vrsqrt.pop %v8186
  %v8435 = vmul.f32 %v8434, %v8186
  %v8436 = vmul.f32 %v8435, %v8434
  %v8437 = vmul.f32 0.5, %v8436
  %v8438 = vsub.f32 1.5, %v8437
  %v8439 = vmul.f32 %v8434, %v8438
  %vm8440 = vweird.f32 %v8186
  %vm8441 = vweird.f32 %v8434
  %vm8442 = vmor %vm8440, %vm8441
  %v8443 = vsel %vm8442, %v8434, %v8439
  %v8444 = vrsqrt.pop %v8187
  %v8445 = vmul.f32 %v8444, %v8187
  %v8446 = vmul.f32 %v8445, %v8444
  %v8447 = vmul.f32 0.5, %v8446
  %v8448 = vsub.f32 1.5, %v8447
  %v8449 = vmul.f32 %v8444, %v8448
  %vm8450 = vweird.f32 %v8187
  %vm8451 = vweird.f32 %v8444
  %vm8452 = vmor %vm8450, %vm8451
  %v8453 = vsel %vm8452, %v8444, %v8449
  %v8454 = vrsqrt.pop %v8188
  %v8455 = vmul.f32 %v8454, %v8188
  %v8456 = vmul.f32 %v8455, %v8454
  %v8457 = vmul.f32 0.5, %v8456
  %v8458 = vsub.f32 1.5, %v8457
  %v8459 = vmul.f32 %v8454, %v8458
  %vm8460 = vweird.f32 %v8188
  %vm8461 = vweird.f32 %v8454
  %vm8462 = vmor %vm8460, %vm8461
  %v8463 = vsel %vm8462, %v8454, %v8459
  %v8464 = vrsqrt.pop %v8189
  %v8465 = vmul.f32 %v8464, %v8189
  %v8466 = vmul.f32 %v8465, %v8464
  %v8467 = vmul.f32 0.5, %v8466
  %v8468 = vsub.f32 1.5, %v8467
  %v8469 = vmul.f32 %v8464, %v8468
  %vm8470 = vweird.f32 %v8189
  %vm8471 = vweird.f32 %v8464
  %vm8472 = vmor %vm8470, %vm8471
  %v8473 = vsel %vm8472, %v8464, %v8469
  %v8474 = vrsqrt.pop %v8190
  %v8475 = vmul.f32 %v8474, %v8190
  %v8476 = vmul.f32 %v8475, %v8474
  %v8477 = vmul.f32 0.5, %v8476
  %v8478 = vsub.f32 1.5, %v8477
  %v8479 = vmul.f32 %v8474, %v8478
  %vm8480 = vweird.f32 %v8190
  %vm8481 = vweird.f32 %v8474
  %vm8482 = vmor %vm8480, %vm8481
  %v8483 = vsel %vm8482, %v8474, %v8479
  %v8484 = vrsqrt.pop %v8191
  %v8485 = vmul.f32 %v8484, %v8191
  %v8486 = vmul.f32 %v8485, %v8484
  %v8487 = vmul.f32 0.5, %v8486
  %v8488 = vsub.f32 1.5, %v8487
  %v8489 = vmul.f32 %v8484, %v8488
  %vm8490 = vweird.f32 %v8191
  %vm8491 = vweird.f32 %v8484
  %vm8492 = vmor %vm8490, %vm8491
  %v8493 = vsel %vm8492, %v8484, %v8489
  %v8494 = vrsqrt.pop %v8192
  %v8495 = vmul.f32 %v8494, %v8192
  %v8496 = vmul.f32 %v8495, %v8494
  %v8497 = vmul.f32 0.5, %v8496
  %v8498 = vsub.f32 1.5, %v8497
  %v8499 = vmul.f32 %v8494, %v8498
  %vm8500 = vweird.f32 %v8192
  %vm8501 = vweird.f32 %v8494
  %vm8502 = vmor %vm8500, %vm8501
  %v8503 = vsel %vm8502, %v8494, %v8499
  %v8504 = vrsqrt.pop %v8193
  %v8505 = vmul.f32 %v8504, %v8193
  %v8506 = vmul.f32 %v8505, %v8504
  %v8507 = vmul.f32 0.5, %v8506
  %v8508 = vsub.f32 1.5, %v8507
  %v8509 = vmul.f32 %v8504, %v8508
  %vm8510 = vweird.f32 %v8193
  %vm8511 = vweird.f32 %v8504
  %vm8512 = vmor %vm8510, %vm8511
  %v8513 = vsel %vm8512, %v8504, %v8509
  %v8514 = vmul.f32 %v7970, %v8203
  %v8515 = vmul.f32 %v7971, %v8213
  %v8516 = vmul.f32 %v7972, %v8223
  %v8517 = vmul.f32 %v7973, %v8233
  %v8518 = vmul.f32 %v7974, %v8243
  %v8519 = vmul.f32 %v7975, %v8253
  %v8520 = vmul.f32 %v7976, %v8263
  %v8521 = vmul.f32 %v7977, %v8273
  %v8522 = vmul.f32 %v7978, %v8283
  %v8523 = vmul.f32 %v7979, %v8293
  %v8524 = vmul.f32 %v7980, %v8303
  %v8525 = vmul.f32 %v7981, %v8313
  %v8526 = vmul.f32 %v7982, %v8323
  %v8527 = vmul.f32 %v7983, %v8333
  %v8528 = vmul.f32 %v7984, %v8343
  %v8529 = vmul.f32 %v7985, %v8353
  %v8530 = vmul.f32 %v7986, %v8363
  %v8531 = vmul.f32 %v7987, %v8373
  %v8532 = vmul.f32 %v7988, %v8383
  %v8533 = vmul.f32 %v7989, %v8393
  %v8534 = vmul.f32 %v7990, %v8403
  %v8535 = vmul.f32 %v7991, %v8413
  %v8536 = vmul.f32 %v7992, %v8423
  %v8537 = vmul.f32 %v7993, %v8433
  %v8538 = vmul.f32 %v7994, %v8443
  %v8539 = vmul.f32 %v7995, %v8453
  %v8540 = vmul.f32 %v7996, %v8463
  %v8541 = vmul.f32 %v7997, %v8473
  %v8542 = vmul.f32 %v7998, %v8483
  %v8543 = vmul.f32 %v7999, %v8493
  %v8544 = vmul.f32 %v8000, %v8503
  %v8545 = vmul.f32 %v8001, %v8513
  %v8547 = vperm.slane %v7840, 0
  %v8549 = vmul.f32 %v8514, %v8547
  %v8550 = vmul.f32 %v8515, %v8547
  %v8551 = vmul.f32 %v8516, %v8547
  %v8552 = vmul.f32 %v8517, %v8547
  %v8553 = vmul.f32 %v8518, %v8547
  %v8554 = vmul.f32 %v8519, %v8547
  %v8555 = vmul.f32 %v8520, %v8547
  %v8556 = vmul.f32 %v8521, %v8547
  %v8557 = vmul.f32 %v8522, %v8547
  %v8558 = vmul.f32 %v8523, %v8547
  %v8559 = vmul.f32 %v8524, %v8547
  %v8560 = vmul.f32 %v8525, %v8547
  %v8561 = vmul.f32 %v8526, %v8547
  %v8562 = vmul.f32 %v8527, %v8547
  %v8563 = vmul.f32 %v8528, %v8547
  %v8564 = vmul.f32 %v8529, %v8547
  %v8565 = vmul.f32 %v8530, %v8547
  %v8566 = vmul.f32 %v8531, %v8547
  %v8567 = vmul.f32 %v8532, %v8547
  %v8568 = vmul.f32 %v8533, %v8547
  %v8569 = vmul.f32 %v8534, %v8547
  %v8570 = vmul.f32 %v8535, %v8547
  %v8571 = vmul.f32 %v8536, %v8547
  %v8572 = vmul.f32 %v8537, %v8547
  %v8573 = vmul.f32 %v8538, %v8547
  %v8574 = vmul.f32 %v8539, %v8547
  %v8575 = vmul.f32 %v8540, %v8547
  %v8576 = vmul.f32 %v8541, %v8547
  %v8577 = vmul.f32 %v8542, %v8547
  %v8578 = vmul.f32 %v8543, %v8547
  %v8579 = vmul.f32 %v8544, %v8547
  %v8580 = vmul.f32 %v8545, %v8547
  %v8582 = vperm.slane %v7841, 0
  %v8584 = vadd.f32 %v8549, %v8582
  %v8585 = vadd.f32 %v8550, %v8582
  %v8586 = vadd.f32 %v8551, %v8582
  %v8587 = vadd.f32 %v8552, %v8582
  %v8588 = vadd.f32 %v8553, %v8582
  %v8589 = vadd.f32 %v8554, %v8582
  %v8590 = vadd.f32 %v8555, %v8582
  %v8591 = vadd.f32 %v8556, %v8582
  %v8592 = vadd.f32 %v8557, %v8582
  %v8593 = vadd.f32 %v8558, %v8582
  %v8594 = vadd.f32 %v8559, %v8582
  %v8595 = vadd.f32 %v8560, %v8582
  %v8596 = vadd.f32 %v8561, %v8582
  %v8597 = vadd.f32 %v8562, %v8582
  %v8598 = vadd.f32 %v8563, %v8582
  %v8599 = vadd.f32 %v8564, %v8582
  %v8600 = vadd.f32 %v8565, %v8582
  %v8601 = vadd.f32 %v8566, %v8582
  %v8602 = vadd.f32 %v8567, %v8582
  %v8603 = vadd.f32 %v8568, %v8582
  %v8604 = vadd.f32 %v8569, %v8582
  %v8605 = vadd.f32 %v8570, %v8582
  %v8606 = vadd.f32 %v8571, %v8582
  %v8607 = vadd.f32 %v8572, %v8582
  %v8608 = vadd.f32 %v8573, %v8582
  %v8609 = vadd.f32 %v8574, %v8582
  %v8610 = vadd.f32 %v8575, %v8582
  %v8611 = vadd.f32 %v8576, %v8582
  %v8612 = vadd.f32 %v8577, %v8582
  %v8613 = vadd.f32 %v8578, %v8582
  %v8614 = vadd.f32 %v8579, %v8582
  %v8615 = vadd.f32 %v8580, %v8582
  %8616 = vst.msk [vmem:[%s13] sm:$0xff] %vm113, %v8584
  %8617 = vst.msk [vmem:[%s13 + $0x8] sm:$0xff] %vm113, %v8585
  %8618 = vst.msk [vmem:[%s13 + $0x10] sm:$0xff] %vm113, %v8586
  %8619 = vst.msk [vmem:[%s13 + $0x18] sm:$0xff] %vm113, %v8587
  %8620 = vst.msk [vmem:[%s13 + $0x20] sm:$0xff] %vm113, %v8588
  %8621 = vst.msk [vmem:[%s13 + $0x28] sm:$0xff] %vm113, %v8589
  %8622 = vst.msk [vmem:[%s13 + $0x30] sm:$0xff] %vm113, %v8590
  %8623 = vst.msk [vmem:[%s13 + $0x38] sm:$0xff] %vm113, %v8591
  %8624 = vst.msk [vmem:[%s13 + $0x40] sm:$0xff] %vm113, %v8592
  %8625 = vst.msk [vmem:[%s13 + $0x48] sm:$0xff] %vm113, %v8593
  %8626 = vst.msk [vmem:[%s13 + $0x50] sm:$0xff] %vm113, %v8594
  %8627 = vst.msk [vmem:[%s13 + $0x58] sm:$0xff] %vm113, %v8595
  %8628 = vst.msk [vmem:[%s13 + $0x60] sm:$0xff] %vm113, %v8596
  %8629 = vst.msk [vmem:[%s13 + $0x68] sm:$0xff] %vm113, %v8597
  %8630 = vst.msk [vmem:[%s13 + $0x70] sm:$0xff] %vm113, %v8598
  %8631 = vst.msk [vmem:[%s13 + $0x78] sm:$0xff] %vm113, %v8599
  %8632 = vst.msk [vmem:[%s13 + $0x80] sm:$0xff] %vm113, %v8600
  %8633 = vst.msk [vmem:[%s13 + $0x88] sm:$0xff] %vm113, %v8601
  %8634 = vst.msk [vmem:[%s13 + $0x90] sm:$0xff] %vm113, %v8602
  %8635 = vst.msk [vmem:[%s13 + $0x98] sm:$0xff] %vm113, %v8603
  %8636 = vst.msk [vmem:[%s13 + $0xa0] sm:$0xff] %vm113, %v8604
  %8637 = vst.msk [vmem:[%s13 + $0xa8] sm:$0xff] %vm113, %v8605
  %8638 = vst.msk [vmem:[%s13 + $0xb0] sm:$0xff] %vm113, %v8606
  %8639 = vst.msk [vmem:[%s13 + $0xb8] sm:$0xff] %vm113, %v8607
  %8640 = vst.msk [vmem:[%s13 + $0xc0] sm:$0xff] %vm113, %v8608
  %8641 = vst.msk [vmem:[%s13 + $0xc8] sm:$0xff] %vm113, %v8609
  %8642 = vst.msk [vmem:[%s13 + $0xd0] sm:$0xff] %vm113, %v8610
  %8643 = vst.msk [vmem:[%s13 + $0xd8] sm:$0xff] %vm113, %v8611
  %8644 = vst.msk [vmem:[%s13 + $0xe0] sm:$0xff] %vm113, %v8612
  %8645 = vst.msk [vmem:[%s13 + $0xe8] sm:$0xff] %vm113, %v8613
  %8646 = vst.msk [vmem:[%s13 + $0xf0] sm:$0xff] %vm113, %v8614
  %8647 = vst.msk [vmem:[%s13 + $0xf8] sm:$0xff] %vm113, %v8615
  // Predicated region
  $region54: #{tpu_custom_call.1} parent=0 // pred_check
    _
  $region55: #{tpu_custom_call.1} parent=0 // pred_check_branch
    %8649 = sbr.rel (0) target = $region57
  $region56: #{tpu_custom_call.1} parent=0 // pred_region
    _
  $region57: #{tpu_custom_call.1} parent=0 // pred_fallthru
    _
  // Predicated region
  $region58: #{tpu_custom_call.1} parent=0 // pred_check
    _
  $region59: #{tpu_custom_call.1} parent=0 // pred_check_branch
    %8651 = sbr.rel (0) target = $region61
  $region60: #{tpu_custom_call.1} parent=0 // pred_region
    _
  $region61: #{tpu_custom_call.1} parent=0 // pred_fallthru
    _

</llo_original>
